<compile_context>
chip_gen: v7x
topology: tpu7x:2x2x1
jax: 0.10.0
libtpu: 0.0.40
codegen_flags: <defaults>
</compile_context>

<pallas_src>
import functools

import jax
import jax.numpy as jnp
from jax.experimental import pallas as pl
from jax.experimental.pallas import tpu as pltpu


# ----------------------------- elementwise helpers ---------------------------

def _gelu(y):
    # TODO(synk): PyTorch F.gelu defaults to the exact erf form; this is the
    # tanh approximation (EUP friendly), differs by ~1e-3 relative.
    c = 0.7978845608028654  # sqrt(2/pi)
    return 0.5 * y * (1.0 + jnp.tanh(c * (y + 0.044715 * y * y * y)))


def _sigmoid(y):
    return 1.0 / (1.0 + jnp.exp(-y))


# ------------------------------ fused FNO kernel -----------------------------

def _fno_fused_kernel(*refs, n_layers, width, nelx, nely, sym_x_axis, sym_y_axis):
    """Whole FNO_Net forward in a single kernel invocation (grid=(1,)).

    ref order:
      x (N,2), fc0_w (2,C), fc0_b (1,C),
      prj_r (M,N), prj_i (M,N), inv_r (N,M), inv_i (N,M),
      { wmix_l (M,2C,2C), conv_w_l (C,C), conv_b_l (1,C) } * n_layers,
      fc1_w (C,F), fc1_b (1,F), fc2_w (F,O), fc2_b (1,O),
      out (N,O)
    """
    (x_ref, fc0_w_ref, fc0_b_ref,
     prj_r_ref, prj_i_ref, inv_r_ref, inv_i_ref) = refs[:7]
    layer_refs = refs[7:7 + 3 * n_layers]
    fc1_w_ref, fc1_b_ref, fc2_w_ref, fc2_b_ref, out_ref = refs[7 + 3 * n_layers:]

    f32 = jnp.float32

    # Input-coordinate symmetry reflection (static Python flags).
    xv = x_ref[:, 0:1]                                        # (N, 1)
    yv = x_ref[:, 1:2]
    if sym_y_axis:
        xv = 0.5 * nelx + jnp.abs(xv - 0.5 * nelx)
    if sym_x_axis:
        yv = 0.5 * nely + jnp.abs(yv - 0.5 * nely)

    # fc0 (Linear 2 -> width): contraction dim of 2 -> two VPU FMAs, no MXU.
    w0 = fc0_w_ref[...]                                       # (2, C)
    h = xv * w0[0:1, :] + yv * w0[1:2, :] + fc0_b_ref[...]    # (N, C)

    prj_r = prj_r_ref[...]                                    # (M, N)
    prj_i = prj_i_ref[...]                                    # (M, N)
    inv_r = inv_r_ref[...]                                    # (N, M)
    inv_i = inv_i_ref[...]                                    # (N, M)
    m_modes = prj_r.shape[0]

    for li in range(n_layers):
        wmix_ref, conv_w_ref, conv_b_ref = layer_refs[3 * li:3 * li + 3]

        # --- spectral branch: truncated forward DFT (kept corner modes only) -
        xfr = jnp.dot(prj_r, h, preferred_element_type=f32)   # (M, C)
        xfi = jnp.dot(prj_i, h, preferred_element_type=f32)   # (M, C)

        # Per-mode complex channel mix as ONE real batched MXU contraction:
        #   [yr | yi] = [xr | xi] @ [[Wr, Wi], [-Wi, Wr]]     (per mode)
        # wmix is pre-transposed to (M, 2Cout, 2Cin) so the contraction is on
        # the last dim of both operands (standard batched-matmul pattern).
        xp = jnp.concatenate([xfr, xfi], axis=1)              # (M, 2C)
        xp3 = xp.reshape(m_modes, 1, 2 * width)               # (M, 1, 2C)
        y3 = jnp.einsum("bqd,bkd->bqk", xp3, wmix_ref[...],
                        preferred_element_type=f32)           # (M, 1, 2C)
        y = y3.reshape(m_modes, 2 * width)
        yr = y[:, :width]
        yi = y[:, width:]

        # Truncated inverse DFT (irfft2-equivalent reconstruction).
        spec = (jnp.dot(inv_r, yr, preferred_element_type=f32)
                + jnp.dot(inv_i, yi, preferred_element_type=f32))   # (N, C)

        # --- 1x1-conv branch + residual + activation --------------------------
        z = (spec
             + jnp.dot(h, conv_w_ref[...], preferred_element_type=f32)
             + conv_b_ref[...])
        h = _gelu(z) if li < n_layers - 1 else z

    # fc1 -> GELU -> fc2 -> sigmoid (searchMode == 'cubic').
    h = _gelu(jnp.dot(h, fc1_w_ref[...], preferred_element_type=f32)
              + fc1_b_ref[...])
    o = jnp.dot(h, fc2_w_ref[...], preferred_element_type=f32) + fc2_b_ref[...]
    out_ref[...] = _sigmoid(o)


# ------------------------- constants / weight packing ------------------------

def _dft_matrices(hh, ww, m1, m2):
    """Truncated DFT / inverse-DFT projection matrices for the kept modes.

    Mode order matches the FFT reference: k1 in [0..m1-1] then [H-m1..H-1]
    ("top" block = weights1, "bottom" block = weights2), k2 in [0..m2-1],
    mode index m = a*m2 + b.  The inverse includes the 1/(H*W) irfft2 scaling
    and the factor-2 for the implicit Hermitian half (k2 > 0), with the
    imaginary part of the k2 = 0 column dropped exactly as irfft does.
    """
    hidx = jnp.arange(hh, dtype=jnp.float32)
    widx = jnp.arange(ww, dtype=jnp.float32)
    k1 = jnp.concatenate([jnp.arange(m1, dtype=jnp.float32),
                          jnp.arange(hh - m1, hh, dtype=jnp.float32)])   # (2*m1,)
    k2 = jnp.arange(m2, dtype=jnp.float32)                               # (m2,)
    theta = 2.0 * jnp.pi * (
        k1[:, None, None, None] * hidx[None, None, :, None] / float(hh)
        + k2[None, :, None, None] * widx[None, None, None, :] / float(ww))
    m_modes = 2 * m1 * m2
    theta = theta.reshape(m_modes, hh * ww)                              # (M, N)
    prj_r = jnp.cos(theta)
    prj_i = -jnp.sin(theta)
    alpha = jnp.where(k2 > 0, 2.0, 1.0)                                  # (m2,)
    alpha_m = jnp.tile(alpha, 2 * m1)[:, None]                           # (M, 1)
    scale = 1.0 / float(hh * ww)
    inv_r = (alpha_m * jnp.cos(theta) * scale).T                         # (N, M)
    inv_i = (-alpha_m * jnp.sin(theta) * scale).T                        # (N, M)
    return (prj_r.astype(jnp.float32), prj_i.astype(jnp.float32),
            inv_r.astype(jnp.float32), inv_i.astype(jnp.float32))


def _pack_mix_weights(wr, wi):
    """(M, Cin, Cout) real/imag -> (M, 2Cout, 2Cin) packed & pre-transposed."""
    top = jnp.concatenate([wr, wi], axis=2)       # (M, Cin, 2Cout)
    bot = jnp.concatenate([-wi, wr], axis=2)      # (M, Cin, 2Cout)
    wp = jnp.concatenate([top, bot], axis=1)      # (M, 2Cin, 2Cout)
    return jnp.transpose(wp, (0, 2, 1)).astype(jnp.float32)


def _full_spec(shape):
    nd = len(shape)
    return pl.BlockSpec(shape, lambda i, _nd=nd: (0,) * _nd)


# ------------------------------ fused forward --------------------------------

def fno_net_forward(params, x_coords, *, nelx, nely, resolution, width, m1, m2,
                    sym_x_axis=False, sym_y_axis=False):
    """FNO_Net.forward, searchMode='cubic': rho = sigmoid(out[:,0]), t = sigmoid(out[:,1:])."""
    hh = nelx * resolution
    ww = nely * resolution
    n = hh * ww
    n_layers = len(params["layers"])
    out_dim = params["fc2_w"].shape[1]

    prj_r, prj_i, inv_r, inv_i = _dft_matrices(hh, ww, m1, m2)

    args = [x_coords.astype(jnp.float32),
            params["fc0_w"], params["fc0_b"].reshape(1, -1),
            prj_r, prj_i, inv_r, inv_i]
    for lyr in params["layers"]:
        args += [_pack_mix_weights(lyr["spec_wr"], lyr["spec_wi"]),
                 lyr["w"], lyr["b"].reshape(1, -1)]
    args += [params["fc1_w"], params["fc1_b"].reshape(1, -1),
             params["fc2_w"], params["fc2_b"].reshape(1, -1)]

    kernel = functools.partial(
        _fno_fused_kernel, n_layers=n_layers, width=width,
        nelx=nelx, nely=nely, sym_x_axis=sym_x_axis, sym_y_axis=sym_y_axis)

    out = pl.pallas_call(
        kernel,
        out_shape=jax.ShapeDtypeStruct((n, out_dim), jnp.float32),
        grid_spec=pltpu.PrefetchScalarGridSpec(
            num_scalar_prefetch=0,
            grid=(1,),                                   # single step: everything VMEM-resident
            in_specs=[_full_spec(a.shape) for a in args],
            out_specs=_full_spec((n, out_dim))),
        compiler_params=pltpu.CompilerParams(
            dimension_semantics=("arbitrary",)),
    )(*args)

    # TODO(synk): the symYAxis/symXAxis post-FNO output-flip branch in the
    # reference uses an undefined variable (y_mid_idx) when symYAxis is set;
    # only the input-coordinate reflection is implemented (flags False here).
    rho = out[:, 0]
    t = out[:, 1:]
    return rho, t


# -------------------- pure-JAX (jnp.fft) reference, check only ---------------

def fno_reference(params, x_coords, *, nelx, nely, resolution, width, m1, m2,
                  sym_x_axis=False, sym_y_axis=False):
    xv = (0.5 * nelx + jnp.abs(x_coords[:, 0] - 0.5 * nelx)) if sym_y_axis else x_coords[:, 0]
    yv = (0.5 * nely + jnp.abs(x_coords[:, 1] - 0.5 * nely)) if sym_x_axis else x_coords[:, 1]
    x = jnp.stack([xv, yv], axis=1).astype(jnp.float32)
    hh = nelx * resolution
    ww = nely * resolution

    h = x @ params["fc0_w"] + params["fc0_b"]
    n_layers = len(params["layers"])
    for li, lyr in enumerate(params["layers"]):
        x4 = h.reshape(1, hh, ww, width)
        x_ft = jnp.fft.rfft2(x4, axes=(1, 2))
        top = x_ft[0, :m1, :m2, :].reshape(m1 * m2, width)
        bot = x_ft[0, hh - m1:, :m2, :].reshape(m1 * m2, width)
        xm = jnp.concatenate([top, bot], axis=0)
        xr, xi = jnp.real(xm), jnp.imag(xm)
        yr = (jnp.einsum("mi,mio->mo", xr, lyr["spec_wr"])
              - jnp.einsum("mi,mio->mo", xi, lyr["spec_wi"]))
        yi = (jnp.einsum("mi,mio->mo", xr, lyr["spec_wi"])
              + jnp.einsum("mi,mio->mo", xi, lyr["spec_wr"]))
        ym = (yr + 1j * yi).astype(x_ft.dtype)
        out_ft = jnp.zeros((1, hh, ww // 2 + 1, width), dtype=x_ft.dtype)
        out_ft = out_ft.at[0, :m1, :m2, :].set(ym[:m1 * m2].reshape(m1, m2, width))
        out_ft = out_ft.at[0, hh - m1:, :m2, :].set(ym[m1 * m2:].reshape(m1, m2, width))
        spec = jnp.fft.irfft2(out_ft, s=(hh, ww), axes=(1, 2)).reshape(-1, width)
        z = spec.astype(jnp.float32) + h @ lyr["w"] + lyr["b"]
        h = _gelu(z) if li < n_layers - 1 else z
    h = _gelu(h @ params["fc1_w"] + params["fc1_b"])
    out = _sigmoid(h @ params["fc2_w"] + params["fc2_b"])
    return out[:, 0], out[:, 1:]


# ------------------------------ Param init ------------------------------------

def init_params(seed, *, width, n_layers, m1, m2, fc1_dim, out_dim):
    key = jax.random.PRNGKey(seed)

    def nxt():
        nonlocal key
        key, sub = jax.random.split(key)
        return sub

    params = {
        "fc0_w": jax.random.normal(nxt(), (2, width), jnp.float32) / jnp.sqrt(2.0),
        "fc0_b": 0.01 * jax.random.normal(nxt(), (width,), jnp.float32),
        "fc1_w": jax.random.normal(nxt(), (width, fc1_dim), jnp.float32) / jnp.sqrt(1.0 * width),
        "fc1_b": 0.01 * jax.random.normal(nxt(), (fc1_dim,), jnp.float32),
        "fc2_w": jax.random.normal(nxt(), (fc1_dim, out_dim), jnp.float32) / jnp.sqrt(1.0 * fc1_dim),
        "fc2_b": 0.01 * jax.random.normal(nxt(), (out_dim,), jnp.float32),
        "layers": [],
    }

    spec_scale = 1.0 / (width * width)
    for _ in range(n_layers):
        # Complex spectral weights for the two kept corner blocks (PyTorch
        # SpectralConv2d weights1/weights2), packed as (2*m1*m2, Cin, Cout).
        w1 = spec_scale * jax.random.uniform(nxt(), (m1, m2, width, width, 2), jnp.float32)
        w2 = spec_scale * jax.random.uniform(nxt(), (m1, m2, width, width, 2), jnp.float32)
        wr = jnp.concatenate([w1[..., 0].reshape(m1 * m2, width, width),
                              w2[..., 0].reshape(m1 * m2, width, width)], axis=0)
        wi = jnp.concatenate([w1[..., 1].reshape(m1 * m2, width, width),
                              w2[..., 1].reshape(m1 * m2, width, width)], axis=0)
        conv_w = jax.random.normal(nxt(), (width, width), jnp.float32) / jnp.sqrt(1.0 * width)
        conv_b = 0.01 * jax.random.normal(nxt(), (width,), jnp.float32)
        params["layers"].append({"spec_wr": wr, "spec_wi": wi, "w": conv_w, "b": conv_b})
    return params


# --------------------------------- main ---------------------------------------

if __name__ == "__main__":
    nelx, nely, resolution = 16, 16, 1
    width, n_layers, m1, m2 = 32, 2, 4, 4
    latent_dim = 4
    out_dim = 1 + latent_dim          # searchMode == 'cubic'
    fc1_dim = 128

    params = init_params(1234, width=width, n_layers=n_layers, m1=m1, m2=m2,
                         fc1_dim=fc1_dim, out_dim=out_dim)

    # Input: (N, 2) element-center coordinates (what FNO_Net.forward consumes),
    # scaled to O(1) so the fused-kernel vs. FFT-reference check is well
    # conditioned (symmetry flags are False, so the reflection math is unused).
    key = jax.random.PRNGKey(0)
    xs = jnp.arange(nelx * resolution, dtype=jnp.float32) + 0.5
    ys = jnp.arange(nely * resolution, dtype=jnp.float32) + 0.5
    xx, yy = jnp.meshgrid(xs, ys, indexing="ij")
    x_coords = jnp.stack([xx.ravel(), yy.ravel()], axis=1)
    x_coords = x_coords + 0.01 * jax.random.normal(key, x_coords.shape, jnp.float32)
    x_coords = x_coords / float(max(nelx, nely))

    fwd = jax.jit(functools.partial(
        fno_net_forward, nelx=nelx, nely=nely, resolution=resolution,
        width=width, m1=m1, m2=m2, sym_x_axis=False, sym_y_axis=False))
    rho, t = fwd(params, x_coords)
    jax.block_until_ready((rho, t))

    rho_ref, t_ref = fno_reference(params, x_coords, nelx=nelx, nely=nely,
                                   resolution=resolution, width=width, m1=m1, m2=m2,
                                   sym_x_axis=False, sym_y_axis=False)

    n_pts = nelx * resolution * nely * resolution
    assert rho.shape == (n_pts,), rho.shape
    assert t.shape == (n_pts, latent_dim), t.shape
    assert bool(jnp.all(jnp.isfinite(rho))) and bool(jnp.all(jnp.isfinite(t)))
    err = float(jnp.maximum(jnp.max(jnp.abs(rho - rho_ref)),
                            jnp.max(jnp.abs(t - t_ref))))
    assert err < 5e-3, f"fused kernel mismatch vs FFT reference: max abs err {err}"
    print("KERNEL_OK")
</pallas_src>

<mosaic_0001>
module attributes {stable_mosaic.version = 11 : i64} {
  func.func @_fno_fused_kernel(%arg0: i32, %arg1: memref<256x2xf32, #tpu.memory_space<vmem>>, %arg2: memref<2x32xf32, #tpu.memory_space<vmem>>, %arg3: memref<1x32xf32, #tpu.memory_space<vmem>>, %arg4: memref<32x256xf32, #tpu.memory_space<vmem>>, %arg5: memref<32x256xf32, #tpu.memory_space<vmem>>, %arg6: memref<256x32xf32, #tpu.memory_space<vmem>>, %arg7: memref<256x32xf32, #tpu.memory_space<vmem>>, %arg8: memref<32x64x64xf32, #tpu.memory_space<vmem>>, %arg9: memref<32x32xf32, #tpu.memory_space<vmem>>, %arg10: memref<1x32xf32, #tpu.memory_space<vmem>>, %arg11: memref<32x64x64xf32, #tpu.memory_space<vmem>>, %arg12: memref<32x32xf32, #tpu.memory_space<vmem>>, %arg13: memref<1x32xf32, #tpu.memory_space<vmem>>, %arg14: memref<32x128xf32, #tpu.memory_space<vmem>>, %arg15: memref<1x128xf32, #tpu.memory_space<vmem>>, %arg16: memref<128x5xf32, #tpu.memory_space<vmem>>, %arg17: memref<1x5xf32, #tpu.memory_space<vmem>>, %arg18: memref<256x5xf32, #tpu.memory_space<vmem>>) attributes {dimension_semantics = [#tpu.dimension_semantics<arbitrary>], iteration_bounds = array<i64: 1>, scalar_prefetch = 0 : i64, scratch_operands = 0 : i64, tpu.core_type = #tpu.core_type<tc>, window_params = [{pipeline_mode = #tpu.pipeline_mode<synchronous>, transform_indices = @transform_0, window_bounds = array<i64: 256, 2>}, {pipeline_mode = #tpu.pipeline_mode<synchronous>, transform_indices = @transform_1, window_bounds = array<i64: 2, 32>}, {pipeline_mode = #tpu.pipeline_mode<synchronous>, transform_indices = @transform_2, window_bounds = array<i64: 1, 32>}, {pipeline_mode = #tpu.pipeline_mode<synchronous>, transform_indices = @transform_3, window_bounds = array<i64: 32, 256>}, {pipeline_mode = #tpu.pipeline_mode<synchronous>, transform_indices = @transform_4, window_bounds = array<i64: 32, 256>}, {pipeline_mode = #tpu.pipeline_mode<synchronous>, transform_indices = @transform_5, window_bounds = array<i64: 256, 32>}, {pipeline_mode = #tpu.pipeline_mode<synchronous>, transform_indices = @transform_6, window_bounds = array<i64: 256, 32>}, {pipeline_mode = #tpu.pipeline_mode<synchronous>, transform_indices = @transform_7, window_bounds = array<i64: 32, 64, 64>}, {pipeline_mode = #tpu.pipeline_mode<synchronous>, transform_indices = @transform_8, window_bounds = array<i64: 32, 32>}, {pipeline_mode = #tpu.pipeline_mode<synchronous>, transform_indices = @transform_9, window_bounds = array<i64: 1, 32>}, {pipeline_mode = #tpu.pipeline_mode<synchronous>, transform_indices = @transform_10, window_bounds = array<i64: 32, 64, 64>}, {pipeline_mode = #tpu.pipeline_mode<synchronous>, transform_indices = @transform_11, window_bounds = array<i64: 32, 32>}, {pipeline_mode = #tpu.pipeline_mode<synchronous>, transform_indices = @transform_12, window_bounds = array<i64: 1, 32>}, {pipeline_mode = #tpu.pipeline_mode<synchronous>, transform_indices = @transform_13, window_bounds = array<i64: 32, 128>}, {pipeline_mode = #tpu.pipeline_mode<synchronous>, transform_indices = @transform_14, window_bounds = array<i64: 1, 128>}, {pipeline_mode = #tpu.pipeline_mode<synchronous>, transform_indices = @transform_15, window_bounds = array<i64: 128, 5>}, {pipeline_mode = #tpu.pipeline_mode<synchronous>, transform_indices = @transform_16, window_bounds = array<i64: 1, 5>}, {pipeline_mode = #tpu.pipeline_mode<synchronous>, transform_indices = @transform_17, window_bounds = array<i64: 256, 5>}]} {
    %c0 = arith.constant 0 : index
    %c0_0 = arith.constant 0 : index
    %0 = vector.load %arg1[%c0, %c0_0] : memref<256x2xf32, #tpu.memory_space<vmem>>, vector<256x1xf32>
    %c0_1 = arith.constant 0 : index
    %c1 = arith.constant 1 : index
    %1 = vector.load %arg1[%c0_1, %c1] : memref<256x2xf32, #tpu.memory_space<vmem>>, vector<256x1xf32>
    %c0_2 = arith.constant 0 : index
    %c0_3 = arith.constant 0 : index
    %2 = vector.load %arg2[%c0_2, %c0_3] : memref<2x32xf32, #tpu.memory_space<vmem>>, vector<2x32xf32>
    %3 = vector.extract_strided_slice %2 {offsets = [0, 0], sizes = [1, 32], strides = [1, 1]} : vector<2x32xf32> to vector<1x32xf32>
    %4 = vector.broadcast %0 : vector<256x1xf32> to vector<256x32xf32>
    %5 = vector.broadcast %3 : vector<1x32xf32> to vector<256x32xf32>
    %6 = arith.mulf %4, %5 : vector<256x32xf32>
    %7 = vector.extract_strided_slice %2 {offsets = [1, 0], sizes = [1, 32], strides = [1, 1]} : vector<2x32xf32> to vector<1x32xf32>
    %8 = vector.broadcast %1 : vector<256x1xf32> to vector<256x32xf32>
    %9 = vector.broadcast %7 : vector<1x32xf32> to vector<256x32xf32>
    %10 = arith.mulf %8, %9 : vector<256x32xf32>
    %11 = arith.addf %6, %10 : vector<256x32xf32>
    %c0_4 = arith.constant 0 : index
    %c0_5 = arith.constant 0 : index
    %12 = vector.load %arg3[%c0_4, %c0_5] : memref<1x32xf32, #tpu.memory_space<vmem>>, vector<1x32xf32>
    %13 = vector.broadcast %12 : vector<1x32xf32> to vector<256x32xf32>
    %14 = arith.addf %11, %13 : vector<256x32xf32>
    %c0_6 = arith.constant 0 : index
    %c0_7 = arith.constant 0 : index
    %15 = vector.load %arg4[%c0_6, %c0_7] : memref<32x256xf32, #tpu.memory_space<vmem>>, vector<32x256xf32>
    %c0_8 = arith.constant 0 : index
    %c0_9 = arith.constant 0 : index
    %16 = vector.load %arg5[%c0_8, %c0_9] : memref<32x256xf32, #tpu.memory_space<vmem>>, vector<32x256xf32>
    %c0_10 = arith.constant 0 : index
    %c0_11 = arith.constant 0 : index
    %17 = vector.load %arg6[%c0_10, %c0_11] : memref<256x32xf32, #tpu.memory_space<vmem>>, vector<256x32xf32>
    %c0_12 = arith.constant 0 : index
    %c0_13 = arith.constant 0 : index
    %18 = vector.load %arg7[%c0_12, %c0_13] : memref<256x32xf32, #tpu.memory_space<vmem>>, vector<256x32xf32>
    %cst = arith.constant dense<0.000000e+00> : vector<32x32xf32>
    %19 = tpu.matmul %15, %14, %cst {dimension_numbers = #tpu.dot_dimension_numbers<[1], [0], [0], [1], [0, 0, 1, 1], [], []>} : vector<32x256xf32>, vector<256x32xf32>, vector<32x32xf32> -> vector<32x32xf32>
    %cst_14 = arith.constant dense<0.000000e+00> : vector<32x32xf32>
    %20 = tpu.matmul %16, %14, %cst_14 {dimension_numbers = #tpu.dot_dimension_numbers<[1], [0], [0], [1], [0, 0, 1, 1], [], []>} : vector<32x256xf32>, vector<256x32xf32>, vector<32x32xf32> -> vector<32x32xf32>
    %21 = tpu.concatenate %19, %20 in 1 : vector<32x32xf32>, vector<32x32xf32> -> vector<32x64xf32>
    %22 = vector.shape_cast %21 : vector<32x64xf32> to vector<32x1x64xf32>
    %c0_15 = arith.constant 0 : index
    %c0_16 = arith.constant 0 : index
    %c0_17 = arith.constant 0 : index
    %23 = vector.load %arg8[%c0_15, %c0_16, %c0_17] : memref<32x64x64xf32, #tpu.memory_space<vmem>>, vector<32x64x64xf32>
    "tpu.trace_start"() <{level = 10 : i32, message = "bqd,bkd->bqk"}> : () -> ()
    %cst_18 = arith.constant dense<0.000000e+00> : vector<32x1x64xf32>
    %24 = tpu.matmul %22, %23, %cst_18 {dimension_numbers = #tpu.dot_dimension_numbers<[2], [2], [1], [1], [0, 0, 0, 1, 1, 1], [0], [0]>} : vector<32x1x64xf32>, vector<32x64x64xf32>, vector<32x1x64xf32> -> vector<32x1x64xf32>
    "tpu.trace_stop"() : () -> ()
    %25 = vector.shape_cast %24 : vector<32x1x64xf32> to vector<32x64xf32>
    %26 = vector.extract_strided_slice %25 {offsets = [0, 0], sizes = [32, 32], strides = [1, 1]} : vector<32x64xf32> to vector<32x32xf32>
    %27 = vector.extract_strided_slice %25 {offsets = [0, 32], sizes = [32, 32], strides = [1, 1]} : vector<32x64xf32> to vector<32x32xf32>
    %cst_19 = arith.constant dense<0.000000e+00> : vector<256x32xf32>
    %28 = tpu.matmul %17, %26, %cst_19 {dimension_numbers = #tpu.dot_dimension_numbers<[1], [0], [0], [1], [0, 0, 1, 1], [], []>} : vector<256x32xf32>, vector<32x32xf32>, vector<256x32xf32> -> vector<256x32xf32>
    %cst_20 = arith.constant dense<0.000000e+00> : vector<256x32xf32>
    %29 = tpu.matmul %18, %27, %cst_20 {dimension_numbers = #tpu.dot_dimension_numbers<[1], [0], [0], [1], [0, 0, 1, 1], [], []>} : vector<256x32xf32>, vector<32x32xf32>, vector<256x32xf32> -> vector<256x32xf32>
    %30 = arith.addf %28, %29 : vector<256x32xf32>
    %c0_21 = arith.constant 0 : index
    %c0_22 = arith.constant 0 : index
    %31 = vector.load %arg9[%c0_21, %c0_22] : memref<32x32xf32, #tpu.memory_space<vmem>>, vector<32x32xf32>
    %cst_23 = arith.constant dense<0.000000e+00> : vector<256x32xf32>
    %32 = tpu.matmul %14, %31, %cst_23 {dimension_numbers = #tpu.dot_dimension_numbers<[1], [0], [0], [1], [0, 0, 1, 1], [], []>} : vector<256x32xf32>, vector<32x32xf32>, vector<256x32xf32> -> vector<256x32xf32>
    %33 = arith.addf %30, %32 : vector<256x32xf32>
    %c0_24 = arith.constant 0 : index
    %c0_25 = arith.constant 0 : index
    %34 = vector.load %arg10[%c0_24, %c0_25] : memref<1x32xf32, #tpu.memory_space<vmem>>, vector<1x32xf32>
    %35 = vector.broadcast %34 : vector<1x32xf32> to vector<256x32xf32>
    %36 = arith.addf %33, %35 : vector<256x32xf32>
    %cst_26 = arith.constant 5.000000e-01 : f32
    %37 = vector.broadcast %cst_26 : f32 to vector<256x32xf32>
    %38 = arith.mulf %37, %36 : vector<256x32xf32>
    %cst_27 = arith.constant 4.471500e-02 : f32
    %39 = vector.broadcast %cst_27 : f32 to vector<256x32xf32>
    %40 = arith.mulf %39, %36 : vector<256x32xf32>
    %41 = arith.mulf %40, %36 : vector<256x32xf32>
    %42 = arith.mulf %41, %36 : vector<256x32xf32>
    %43 = arith.addf %36, %42 : vector<256x32xf32>
    %cst_28 = arith.constant 0.797884583 : f32
    %44 = vector.broadcast %cst_28 : f32 to vector<256x32xf32>
    %45 = arith.mulf %44, %43 : vector<256x32xf32>
    %46 = math.tanh %45 : vector<256x32xf32>
    %cst_29 = arith.constant 1.000000e+00 : f32
    %47 = vector.broadcast %cst_29 : f32 to vector<256x32xf32>
    %48 = arith.addf %47, %46 : vector<256x32xf32>
    %49 = arith.mulf %38, %48 : vector<256x32xf32>
    %cst_30 = arith.constant dense<0.000000e+00> : vector<32x32xf32>
    %50 = tpu.matmul %15, %49, %cst_30 {dimension_numbers = #tpu.dot_dimension_numbers<[1], [0], [0], [1], [0, 0, 1, 1], [], []>} : vector<32x256xf32>, vector<256x32xf32>, vector<32x32xf32> -> vector<32x32xf32>
    %cst_31 = arith.constant dense<0.000000e+00> : vector<32x32xf32>
    %51 = tpu.matmul %16, %49, %cst_31 {dimension_numbers = #tpu.dot_dimension_numbers<[1], [0], [0], [1], [0, 0, 1, 1], [], []>} : vector<32x256xf32>, vector<256x32xf32>, vector<32x32xf32> -> vector<32x32xf32>
    %52 = tpu.concatenate %50, %51 in 1 : vector<32x32xf32>, vector<32x32xf32> -> vector<32x64xf32>
    %53 = vector.shape_cast %52 : vector<32x64xf32> to vector<32x1x64xf32>
    %c0_32 = arith.constant 0 : index
    %c0_33 = arith.constant 0 : index
    %c0_34 = arith.constant 0 : index
    %54 = vector.load %arg11[%c0_32, %c0_33, %c0_34] : memref<32x64x64xf32, #tpu.memory_space<vmem>>, vector<32x64x64xf32>
    "tpu.trace_start"() <{level = 10 : i32, message = "bqd,bkd->bqk"}> : () -> ()
    %cst_35 = arith.constant dense<0.000000e+00> : vector<32x1x64xf32>
    %55 = tpu.matmul %53, %54, %cst_35 {dimension_numbers = #tpu.dot_dimension_numbers<[2], [2], [1], [1], [0, 0, 0, 1, 1, 1], [0], [0]>} : vector<32x1x64xf32>, vector<32x64x64xf32>, vector<32x1x64xf32> -> vector<32x1x64xf32>
    "tpu.trace_stop"() : () -> ()
    %56 = vector.shape_cast %55 : vector<32x1x64xf32> to vector<32x64xf32>
    %57 = vector.extract_strided_slice %56 {offsets = [0, 0], sizes = [32, 32], strides = [1, 1]} : vector<32x64xf32> to vector<32x32xf32>
    %58 = vector.extract_strided_slice %56 {offsets = [0, 32], sizes = [32, 32], strides = [1, 1]} : vector<32x64xf32> to vector<32x32xf32>
    %cst_36 = arith.constant dense<0.000000e+00> : vector<256x32xf32>
    %59 = tpu.matmul %17, %57, %cst_36 {dimension_numbers = #tpu.dot_dimension_numbers<[1], [0], [0], [1], [0, 0, 1, 1], [], []>} : vector<256x32xf32>, vector<32x32xf32>, vector<256x32xf32> -> vector<256x32xf32>
    %cst_37 = arith.constant dense<0.000000e+00> : vector<256x32xf32>
    %60 = tpu.matmul %18, %58, %cst_37 {dimension_numbers = #tpu.dot_dimension_numbers<[1], [0], [0], [1], [0, 0, 1, 1], [], []>} : vector<256x32xf32>, vector<32x32xf32>, vector<256x32xf32> -> vector<256x32xf32>
    %61 = arith.addf %59, %60 : vector<256x32xf32>
    %c0_38 = arith.constant 0 : index
    %c0_39 = arith.constant 0 : index
    %62 = vector.load %arg12[%c0_38, %c0_39] : memref<32x32xf32, #tpu.memory_space<vmem>>, vector<32x32xf32>
    %cst_40 = arith.constant dense<0.000000e+00> : vector<256x32xf32>
    %63 = tpu.matmul %49, %62, %cst_40 {dimension_numbers = #tpu.dot_dimension_numbers<[1], [0], [0], [1], [0, 0, 1, 1], [], []>} : vector<256x32xf32>, vector<32x32xf32>, vector<256x32xf32> -> vector<256x32xf32>
    %64 = arith.addf %61, %63 : vector<256x32xf32>
    %c0_41 = arith.constant 0 : index
    %c0_42 = arith.constant 0 : index
    %65 = vector.load %arg13[%c0_41, %c0_42] : memref<1x32xf32, #tpu.memory_space<vmem>>, vector<1x32xf32>
    %66 = vector.broadcast %65 : vector<1x32xf32> to vector<256x32xf32>
    %67 = arith.addf %64, %66 : vector<256x32xf32>
    %c0_43 = arith.constant 0 : index
    %c0_44 = arith.constant 0 : index
    %68 = vector.load %arg14[%c0_43, %c0_44] : memref<32x128xf32, #tpu.memory_space<vmem>>, vector<32x128xf32>
    %cst_45 = arith.constant dense<0.000000e+00> : vector<256x128xf32>
    %69 = tpu.matmul %67, %68, %cst_45 {dimension_numbers = #tpu.dot_dimension_numbers<[1], [0], [0], [1], [0, 0, 1, 1], [], []>} : vector<256x32xf32>, vector<32x128xf32>, vector<256x128xf32> -> vector<256x128xf32>
    %c0_46 = arith.constant 0 : index
    %c0_47 = arith.constant 0 : index
    %70 = vector.load %arg15[%c0_46, %c0_47] : memref<1x128xf32, #tpu.memory_space<vmem>>, vector<1x128xf32>
    %71 = vector.broadcast %70 : vector<1x128xf32> to vector<256x128xf32>
    %72 = arith.addf %69, %71 : vector<256x128xf32>
    %cst_48 = arith.constant 5.000000e-01 : f32
    %73 = vector.broadcast %cst_48 : f32 to vector<256x128xf32>
    %74 = arith.mulf %73, %72 : vector<256x128xf32>
    %cst_49 = arith.constant 4.471500e-02 : f32
    %75 = vector.broadcast %cst_49 : f32 to vector<256x128xf32>
    %76 = arith.mulf %75, %72 : vector<256x128xf32>
    %77 = arith.mulf %76, %72 : vector<256x128xf32>
    %78 = arith.mulf %77, %72 : vector<256x128xf32>
    %79 = arith.addf %72, %78 : vector<256x128xf32>
    %cst_50 = arith.constant 0.797884583 : f32
    %80 = vector.broadcast %cst_50 : f32 to vector<256x128xf32>
    %81 = arith.mulf %80, %79 : vector<256x128xf32>
    %82 = math.tanh %81 : vector<256x128xf32>
    %cst_51 = arith.constant 1.000000e+00 : f32
    %83 = vector.broadcast %cst_51 : f32 to vector<256x128xf32>
    %84 = arith.addf %83, %82 : vector<256x128xf32>
    %85 = arith.mulf %74, %84 : vector<256x128xf32>
    %c0_52 = arith.constant 0 : index
    %c0_53 = arith.constant 0 : index
    %86 = vector.load %arg16[%c0_52, %c0_53] : memref<128x5xf32, #tpu.memory_space<vmem>>, vector<128x5xf32>
    %cst_54 = arith.constant dense<0.000000e+00> : vector<256x5xf32>
    %87 = tpu.matmul %85, %86, %cst_54 {dimension_numbers = #tpu.dot_dimension_numbers<[1], [0], [0], [1], [0, 0, 1, 1], [], []>} : vector<256x128xf32>, vector<128x5xf32>, vector<256x5xf32> -> vector<256x5xf32>
    %c0_55 = arith.constant 0 : index
    %c0_56 = arith.constant 0 : index
    %88 = vector.load %arg17[%c0_55, %c0_56] : memref<1x5xf32, #tpu.memory_space<vmem>>, vector<1x5xf32>
    %89 = vector.broadcast %88 : vector<1x5xf32> to vector<256x5xf32>
    %90 = arith.addf %87, %89 : vector<256x5xf32>
    %cst_57 = arith.constant 0.000000e+00 : f32
    %91 = vector.broadcast %cst_57 : f32 to vector<256x5xf32>
    %92 = arith.subf %91, %90 : vector<256x5xf32>
    %93 = math.exp %92 : vector<256x5xf32>
    %cst_58 = arith.constant 1.000000e+00 : f32
    %94 = vector.broadcast %cst_58 : f32 to vector<256x5xf32>
    %95 = arith.addf %94, %93 : vector<256x5xf32>
    %cst_59 = arith.constant 1.000000e+00 : f32
    %96 = vector.broadcast %cst_59 : f32 to vector<256x5xf32>
    %97 = arith.divf %96, %95 : vector<256x5xf32>
    %c0_60 = arith.constant 0 : index
    %c0_61 = arith.constant 0 : index
    %98 = vector.load %arg18[%c0_60, %c0_61] : memref<256x5xf32, #tpu.memory_space<vmem>>, vector<256x5xf32>
    tpu.vector_store %arg18[%c0_60, %c0_61], %97 {strides = array<i32>} : memref<256x5xf32, #tpu.memory_space<vmem>>, vector<256x5xf32>,
    return
  }
  func.func @transform_0(%arg0: i32) -> (i32, i32) {
    %c0_i32 = arith.constant 0 : i32
    %c0_i32_0 = arith.constant 0 : i32
    %c0_i32_1 = arith.constant 0 : i32
    return %c0_i32, %c0_i32_0 : i32, i32
  }
  func.func @transform_1(%arg0: i32) -> (i32, i32) {
    %c0_i32 = arith.constant 0 : i32
    %c0_i32_0 = arith.constant 0 : i32
    %c0_i32_1 = arith.constant 0 : i32
    return %c0_i32, %c0_i32_0 : i32, i32
  }
  func.func @transform_2(%arg0: i32) -> (i32, i32) {
    %c0_i32 = arith.constant 0 : i32
    %c0_i32_0 = arith.constant 0 : i32
    %c0_i32_1 = arith.constant 0 : i32
    return %c0_i32, %c0_i32_0 : i32, i32
  }
  func.func @transform_3(%arg0: i32) -> (i32, i32) {
    %c0_i32 = arith.constant 0 : i32
    %c0_i32_0 = arith.constant 0 : i32
    %c0_i32_1 = arith.constant 0 : i32
    return %c0_i32, %c0_i32_0 : i32, i32
  }
  func.func @transform_4(%arg0: i32) -> (i32, i32) {
    %c0_i32 = arith.constant 0 : i32
    %c0_i32_0 = arith.constant 0 : i32
    %c0_i32_1 = arith.constant 0 : i32
    return %c0_i32, %c0_i32_0 : i32, i32
  }
  func.func @transform_5(%arg0: i32) -> (i32, i32) {
    %c0_i32 = arith.constant 0 : i32
    %c0_i32_0 = arith.constant 0 : i32
    %c0_i32_1 = arith.constant 0 : i32
    return %c0_i32, %c0_i32_0 : i32, i32
  }
  func.func @transform_6(%arg0: i32) -> (i32, i32) {
    %c0_i32 = arith.constant 0 : i32
    %c0_i32_0 = arith.constant 0 : i32
    %c0_i32_1 = arith.constant 0 : i32
    return %c0_i32, %c0_i32_0 : i32, i32
  }
  func.func @transform_7(%arg0: i32) -> (i32, i32, i32) {
    %c0_i32 = arith.constant 0 : i32
    %c0_i32_0 = arith.constant 0 : i32
    %c0_i32_1 = arith.constant 0 : i32
    %c0_i32_2 = arith.constant 0 : i32
    return %c0_i32, %c0_i32_0, %c0_i32_1 : i32, i32, i32
  }
  func.func @transform_8(%arg0: i32) -> (i32, i32) {
    %c0_i32 = arith.constant 0 : i32
    %c0_i32_0 = arith.constant 0 : i32
    %c0_i32_1 = arith.constant 0 : i32
    return %c0_i32, %c0_i32_0 : i32, i32
  }
  func.func @transform_9(%arg0: i32) -> (i32, i32) {
    %c0_i32 = arith.constant 0 : i32
    %c0_i32_0 = arith.constant 0 : i32
    %c0_i32_1 = arith.constant 0 : i32
    return %c0_i32, %c0_i32_0 : i32, i32
  }
  func.func @transform_10(%arg0: i32) -> (i32, i32, i32) {
    %c0_i32 = arith.constant 0 : i32
    %c0_i32_0 = arith.constant 0 : i32
    %c0_i32_1 = arith.constant 0 : i32
    %c0_i32_2 = arith.constant 0 : i32
    return %c0_i32, %c0_i32_0, %c0_i32_1 : i32, i32, i32
  }
  func.func @transform_11(%arg0: i32) -> (i32, i32) {
    %c0_i32 = arith.constant 0 : i32
    %c0_i32_0 = arith.constant 0 : i32
    %c0_i32_1 = arith.constant 0 : i32
    return %c0_i32, %c0_i32_0 : i32, i32
  }
  func.func @transform_12(%arg0: i32) -> (i32, i32) {
    %c0_i32 = arith.constant 0 : i32
    %c0_i32_0 = arith.constant 0 : i32
    %c0_i32_1 = arith.constant 0 : i32
    return %c0_i32, %c0_i32_0 : i32, i32
  }
  func.func @transform_13(%arg0: i32) -> (i32, i32) {
    %c0_i32 = arith.constant 0 : i32
    %c0_i32_0 = arith.constant 0 : i32
    %c0_i32_1 = arith.constant 0 : i32
    return %c0_i32, %c0_i32_0 : i32, i32
  }
  func.func @transform_14(%arg0: i32) -> (i32, i32) {
    %c0_i32 = arith.constant 0 : i32
    %c0_i32_0 = arith.constant 0 : i32
    %c0_i32_1 = arith.constant 0 : i32
    return %c0_i32, %c0_i32_0 : i32, i32
  }
  func.func @transform_15(%arg0: i32) -> (i32, i32) {
    %c0_i32 = arith.constant 0 : i32
    %c0_i32_0 = arith.constant 0 : i32
    %c0_i32_1 = arith.constant 0 : i32
    return %c0_i32, %c0_i32_0 : i32, i32
  }
  func.func @transform_16(%arg0: i32) -> (i32, i32) {
    %c0_i32 = arith.constant 0 : i32
    %c0_i32_0 = arith.constant 0 : i32
    %c0_i32_1 = arith.constant 0 : i32
    return %c0_i32, %c0_i32_0 : i32, i32
  }
  func.func @transform_17(%arg0: i32) -> (i32, i32) {
    %c0_i32 = arith.constant 0 : i32
    %c0_i32_0 = arith.constant 0 : i32
    %c0_i32_1 = arith.constant 0 : i32
    return %c0_i32, %c0_i32_0 : i32, i32
  }
}

</mosaic_0001>

<llo_original>
// kernel: tile.8
$region0: #{tile.8}
  #allocation0 [shape = 's32[1]{0}', space=sflag, size = 0x4, scoped, tag = 'scoped memory for tile.8']
  %s0 = inlined_call_operand.vmem [shape: f32[4], index: 0, kind: input, shape index: {}]
  %s1 = inlined_call_operand.vmem [shape: f32[8,4], index: 1, kind: output, shape index: {}]
  // Predicated region
  $region2: #{tile.8} parent=0 // pred_check
    _
  $region3: #{tile.8} parent=0 // pred_check_branch
    %3 = sbr.rel (0) target = $region5
  $region4: #{tile.8} parent=0 // pred_region
    _
  $region5: #{tile.8} parent=0 // pred_fallthru
    _
  %v4 = vld [vmem:[%s0] ss:$0 sm:$0xff]
  %5 = vst [vmem:[%s1] sm:$0xff] %v4

// kernel: mul.43
$region0: #{mul.43}
  %s0 = inlined_call_operand.vmem [shape: f32[8,4], index: 0, kind: input, shape index: {}]
  %s1 = inlined_call_operand.vmem [shape: f32[32], index: 1, kind: output, shape index: {}]
  $region1: #{mul.43} parent=0
    #allocation0 [shape = 'u8[4096]{0}', space=vmem, size = 0x1000, scoped, tag = 'scoped mem for output reshape']
    %v2 = vld [vmem:[%s0] sm:$0x1]
    %vm3 = vcmask 31744
    %4 = vst.msk [vmem:[#allocation0] sm:$0x1] %vm3, %v2
    %s5 = scalar_lea.vmem %s0, 7
    %v6 = vld [vmem:[%s5] sm:$0x1]
    %7 = vrot.lane.b32.xlu0 %v6, 28
    %v8 = vpop.permute.xlu0 %7
    %vm9 = vcmask 261344
    %10 = vst.msk [vmem:[#allocation0] sm:$0x1] %vm9, %v8
    %s11 = scalar_lea.vmem %s0, 6
    %v12 = vld [vmem:[%s11] sm:$0x1]
    %13 = vrot.lane.b32.xlu0 %v12, 24
    %v14 = vpop.permute.xlu0 %13
    %vm15 = vcmask 228544
    %16 = vst.msk [vmem:[#allocation0] sm:$0x1] %vm15, %v14
    %s17 = scalar_lea.vmem %s0, 5
    %v18 = vld [vmem:[%s17] sm:$0x1]
    %19 = vrot.lane.b32.xlu0 %v18, 20
    %v20 = vpop.permute.xlu0 %19
    %vm21 = vcmask 195744
    %22 = vst.msk [vmem:[#allocation0] sm:$0x1] %vm21, %v20
    %s23 = scalar_lea.vmem %s0, 4
    %v24 = vld [vmem:[%s23] sm:$0x1]
    %25 = vrot.lane.b32.xlu0 %v24, 16
    %v26 = vpop.permute.xlu0 %25
    %vm27 = vcmask 162944
    %28 = vst.msk [vmem:[#allocation0] sm:$0x1] %vm27, %v26
    %s29 = scalar_lea.vmem %s0, 3
    %v30 = vld [vmem:[%s29] sm:$0x1]
    %31 = vrot.lane.b32.xlu0 %v30, 12
    %v32 = vpop.permute.xlu0 %31
    %vm33 = vcmask 130144
    %34 = vst.msk [vmem:[#allocation0] sm:$0x1] %vm33, %v32
    %s35 = scalar_lea.vmem %s0, 2
    %v36 = vld [vmem:[%s35] sm:$0x1]
    %37 = vrot.lane.b32.xlu0 %v36, 8
    %v38 = vpop.permute.xlu0 %37
    %vm39 = vcmask 97344
    %40 = vst.msk [vmem:[#allocation0] sm:$0x1] %vm39, %v38
    %s41 = scalar_lea.vmem %s0, 1
    %v42 = vld [vmem:[%s41] sm:$0x1]
    %43 = vrot.lane.b32.xlu0 %v42, 4
    %v44 = vpop.permute.xlu0 %43
    %vm45 = vcmask 64544
    %46 = vst.msk [vmem:[#allocation0] sm:$0x1] %vm45, %v44
    %s48 = sshllo.u32 0, 1
    %v50 = vld [vmem:[#allocation0] sm:%s48]
    %s51 = sshllo.u32 0, 1
    %52 = vst [vmem:[%s1] sm:%s51] %v50

// kernel: neg.8
$region0: #{neg.8}
  #allocation0 [shape = 's32[1]{0}', space=sflag, size = 0x4, scoped, tag = 'scoped memory for neg.8']
  %s0 = inlined_call_operand.vmem [shape: f32[32], index: 0, kind: input, shape index: {}]
  %s1 = inlined_call_operand.vmem [shape: f32[32], index: 1, kind: output, shape index: {}]
  %v2 = vld [vmem:[%s0] sm:$0x1]
  %3 = xla_tuple %v2
  %4 = xla_tuple %3
  %v5 = vxor.u32 %v2, 2147483648
  %6 = xla_tuple %v5
  %7 = vst [vmem:[%s1] sm:$0x1] %v5

// kernel: neg.6
$region0: #{neg.6}
  #allocation0 [shape = 's32[1]{0}', space=sflag, size = 0x4, scoped, tag = 'scoped memory for neg.6']
  %s0 = inlined_call_operand.vmem [shape: f32[32,32,32], index: 0, kind: input, shape index: {}]
  %s1 = inlined_call_operand.vmem [shape: f32[32,32,32], index: 1, kind: output, shape index: {}]
  %v2 = vld [vmem:[%s0] sm:$0xff]
  %3 = xla_tuple %v2
  %4 = xla_tuple %3
  %v5 = vxor.u32 %v2, 2147483648
  %6 = xla_tuple %v5
  %7 = vst [vmem:[%s1] sm:$0xff] %v5
  %s8 = scalar_lea.vmem %s0, 32
  %v9 = vld [vmem:[%s8] sm:$0xff]
  %10 = xla_tuple %v9
  %11 = xla_tuple %10
  %v12 = vxor.u32 %v9, 2147483648
  %13 = xla_tuple %v12
  %s14 = scalar_lea.vmem %s1, 32
  %15 = vst [vmem:[%s14] sm:$0xff] %v12
  %s16 = scalar_lea.vmem %s0, 64
  %v17 = vld [vmem:[%s16] sm:$0xff]
  %18 = xla_tuple %v17
  %19 = xla_tuple %18
  %v20 = vxor.u32 %v17, 2147483648
  %21 = xla_tuple %v20
  %s22 = scalar_lea.vmem %s1, 64
  %23 = vst [vmem:[%s22] sm:$0xff] %v20
  %s24 = scalar_lea.vmem %s0, 96
  %v25 = vld [vmem:[%s24] sm:$0xff]
  %26 = xla_tuple %v25
  %27 = xla_tuple %26
  %v28 = vxor.u32 %v25, 2147483648
  %29 = xla_tuple %v28
  %s30 = scalar_lea.vmem %s1, 96
  %31 = vst [vmem:[%s30] sm:$0xff] %v28
  %s32 = scalar_lea.vmem %s0, 128
  %v33 = vld [vmem:[%s32] sm:$0xff]
  %34 = xla_tuple %v33
  %35 = xla_tuple %34
  %v36 = vxor.u32 %v33, 2147483648
  %37 = xla_tuple %v36
  %s38 = scalar_lea.vmem %s1, 128
  %39 = vst [vmem:[%s38] sm:$0xff] %v36
  %s40 = scalar_lea.vmem %s0, 160
  %v41 = vld [vmem:[%s40] sm:$0xff]
  %42 = xla_tuple %v41
  %43 = xla_tuple %42
  %v44 = vxor.u32 %v41, 2147483648
  %45 = xla_tuple %v44
  %s46 = scalar_lea.vmem %s1, 160
  %47 = vst [vmem:[%s46] sm:$0xff] %v44
  %s48 = scalar_lea.vmem %s0, 192
  %v49 = vld [vmem:[%s48] sm:$0xff]
  %50 = xla_tuple %v49
  %51 = xla_tuple %50
  %v52 = vxor.u32 %v49, 2147483648
  %53 = xla_tuple %v52
  %s54 = scalar_lea.vmem %s1, 192
  %55 = vst [vmem:[%s54] sm:$0xff] %v52
  %s56 = scalar_lea.vmem %s0, 224
  %v57 = vld [vmem:[%s56] sm:$0xff]
  %58 = xla_tuple %v57
  %59 = xla_tuple %58
  %v60 = vxor.u32 %v57, 2147483648
  %61 = xla_tuple %v60
  %s62 = scalar_lea.vmem %s1, 224
  %63 = vst [vmem:[%s62] sm:$0xff] %v60
  %s64 = scalar_lea.vmem %s0, 256
  %v65 = vld [vmem:[%s64] sm:$0xff]
  %66 = xla_tuple %v65
  %67 = xla_tuple %66
  %v68 = vxor.u32 %v65, 2147483648
  %69 = xla_tuple %v68
  %s70 = scalar_lea.vmem %s1, 256
  %71 = vst [vmem:[%s70] sm:$0xff] %v68
  %s72 = scalar_lea.vmem %s0, 288
  %v73 = vld [vmem:[%s72] sm:$0xff]
  %74 = xla_tuple %v73
  %75 = xla_tuple %74
  %v76 = vxor.u32 %v73, 2147483648
  %77 = xla_tuple %v76
  %s78 = scalar_lea.vmem %s1, 288
  %79 = vst [vmem:[%s78] sm:$0xff] %v76
  %s80 = scalar_lea.vmem %s0, 320
  %v81 = vld [vmem:[%s80] sm:$0xff]
  %82 = xla_tuple %v81
  %83 = xla_tuple %82
  %v84 = vxor.u32 %v81, 2147483648
  %85 = xla_tuple %v84
  %s86 = scalar_lea.vmem %s1, 320
  %87 = vst [vmem:[%s86] sm:$0xff] %v84
  %s88 = scalar_lea.vmem %s0, 352
  %v89 = vld [vmem:[%s88] sm:$0xff]
  %90 = xla_tuple %v89
  %91 = xla_tuple %90
  %v92 = vxor.u32 %v89, 2147483648
  %93 = xla_tuple %v92
  %s94 = scalar_lea.vmem %s1, 352
  %95 = vst [vmem:[%s94] sm:$0xff] %v92
  %s96 = scalar_lea.vmem %s0, 384
  %v97 = vld [vmem:[%s96] sm:$0xff]
  %98 = xla_tuple %v97
  %99 = xla_tuple %98
  %v100 = vxor.u32 %v97, 2147483648
  %101 = xla_tuple %v100
  %s102 = scalar_lea.vmem %s1, 384
  %103 = vst [vmem:[%s102] sm:$0xff] %v100
  %s104 = scalar_lea.vmem %s0, 416
  %v105 = vld [vmem:[%s104] sm:$0xff]
  %106 = xla_tuple %v105
  %107 = xla_tuple %106
  %v108 = vxor.u32 %v105, 2147483648
  %109 = xla_tuple %v108
  %s110 = scalar_lea.vmem %s1, 416
  %111 = vst [vmem:[%s110] sm:$0xff] %v108
  %s112 = scalar_lea.vmem %s0, 448
  %v113 = vld [vmem:[%s112] sm:$0xff]
  %114 = xla_tuple %v113
  %115 = xla_tuple %114
  %v116 = vxor.u32 %v113, 2147483648
  %117 = xla_tuple %v116
  %s118 = scalar_lea.vmem %s1, 448
  %119 = vst [vmem:[%s118] sm:$0xff] %v116
  %s120 = scalar_lea.vmem %s0, 480
  %v121 = vld [vmem:[%s120] sm:$0xff]
  %122 = xla_tuple %v121
  %123 = xla_tuple %122
  %v124 = vxor.u32 %v121, 2147483648
  %125 = xla_tuple %v124
  %s126 = scalar_lea.vmem %s1, 480
  %127 = vst [vmem:[%s126] sm:$0xff] %v124
  %s128 = scalar_lea.vmem %s0, 512
  %v129 = vld [vmem:[%s128] sm:$0xff]
  %130 = xla_tuple %v129
  %131 = xla_tuple %130
  %v132 = vxor.u32 %v129, 2147483648
  %133 = xla_tuple %v132
  %s134 = scalar_lea.vmem %s1, 512
  %135 = vst [vmem:[%s134] sm:$0xff] %v132
  %s136 = scalar_lea.vmem %s0, 544
  %v137 = vld [vmem:[%s136] sm:$0xff]
  %138 = xla_tuple %v137
  %139 = xla_tuple %138
  %v140 = vxor.u32 %v137, 2147483648
  %141 = xla_tuple %v140
  %s142 = scalar_lea.vmem %s1, 544
  %143 = vst [vmem:[%s142] sm:$0xff] %v140
  %s144 = scalar_lea.vmem %s0, 576
  %v145 = vld [vmem:[%s144] sm:$0xff]
  %146 = xla_tuple %v145
  %147 = xla_tuple %146
  %v148 = vxor.u32 %v145, 2147483648
  %149 = xla_tuple %v148
  %s150 = scalar_lea.vmem %s1, 576
  %151 = vst [vmem:[%s150] sm:$0xff] %v148
  %s152 = scalar_lea.vmem %s0, 608
  %v153 = vld [vmem:[%s152] sm:$0xff]
  %154 = xla_tuple %v153
  %155 = xla_tuple %154
  %v156 = vxor.u32 %v153, 2147483648
  %157 = xla_tuple %v156
  %s158 = scalar_lea.vmem %s1, 608
  %159 = vst [vmem:[%s158] sm:$0xff] %v156
  %s160 = scalar_lea.vmem %s0, 640
  %v161 = vld [vmem:[%s160] sm:$0xff]
  %162 = xla_tuple %v161
  %163 = xla_tuple %162
  %v164 = vxor.u32 %v161, 2147483648
  %165 = xla_tuple %v164
  %s166 = scalar_lea.vmem %s1, 640
  %167 = vst [vmem:[%s166] sm:$0xff] %v164
  %s168 = scalar_lea.vmem %s0, 672
  %v169 = vld [vmem:[%s168] sm:$0xff]
  %170 = xla_tuple %v169
  %171 = xla_tuple %170
  %v172 = vxor.u32 %v169, 2147483648
  %173 = xla_tuple %v172
  %s174 = scalar_lea.vmem %s1, 672
  %175 = vst [vmem:[%s174] sm:$0xff] %v172
  %s176 = scalar_lea.vmem %s0, 704
  %v177 = vld [vmem:[%s176] sm:$0xff]
  %178 = xla_tuple %v177
  %179 = xla_tuple %178
  %v180 = vxor.u32 %v177, 2147483648
  %181 = xla_tuple %v180
  %s182 = scalar_lea.vmem %s1, 704
  %183 = vst [vmem:[%s182] sm:$0xff] %v180
  %s184 = scalar_lea.vmem %s0, 736
  %v185 = vld [vmem:[%s184] sm:$0xff]
  %186 = xla_tuple %v185
  %187 = xla_tuple %186
  %v188 = vxor.u32 %v185, 2147483648
  %189 = xla_tuple %v188
  %s190 = scalar_lea.vmem %s1, 736
  %191 = vst [vmem:[%s190] sm:$0xff] %v188
  %s192 = scalar_lea.vmem %s0, 768
  %v193 = vld [vmem:[%s192] sm:$0xff]
  %194 = xla_tuple %v193
  %195 = xla_tuple %194
  %v196 = vxor.u32 %v193, 2147483648
  %197 = xla_tuple %v196
  %s198 = scalar_lea.vmem %s1, 768
  %199 = vst [vmem:[%s198] sm:$0xff] %v196
  %s200 = scalar_lea.vmem %s0, 800
  %v201 = vld [vmem:[%s200] sm:$0xff]
  %202 = xla_tuple %v201
  %203 = xla_tuple %202
  %v204 = vxor.u32 %v201, 2147483648
  %205 = xla_tuple %v204
  %s206 = scalar_lea.vmem %s1, 800
  %207 = vst [vmem:[%s206] sm:$0xff] %v204
  %s208 = scalar_lea.vmem %s0, 832
  %v209 = vld [vmem:[%s208] sm:$0xff]
  %210 = xla_tuple %v209
  %211 = xla_tuple %210
  %v212 = vxor.u32 %v209, 2147483648
  %213 = xla_tuple %v212
  %s214 = scalar_lea.vmem %s1, 832
  %215 = vst [vmem:[%s214] sm:$0xff] %v212
  %s216 = scalar_lea.vmem %s0, 864
  %v217 = vld [vmem:[%s216] sm:$0xff]
  %218 = xla_tuple %v217
  %219 = xla_tuple %218
  %v220 = vxor.u32 %v217, 2147483648
  %221 = xla_tuple %v220
  %s222 = scalar_lea.vmem %s1, 864
  %223 = vst [vmem:[%s222] sm:$0xff] %v220
  %s224 = scalar_lea.vmem %s0, 896
  %v225 = vld [vmem:[%s224] sm:$0xff]
  %226 = xla_tuple %v225
  %227 = xla_tuple %226
  %v228 = vxor.u32 %v225, 2147483648
  %229 = xla_tuple %v228
  %s230 = scalar_lea.vmem %s1, 896
  %231 = vst [vmem:[%s230] sm:$0xff] %v228
  %s232 = scalar_lea.vmem %s0, 928
  %v233 = vld [vmem:[%s232] sm:$0xff]
  %234 = xla_tuple %v233
  %235 = xla_tuple %234
  %v236 = vxor.u32 %v233, 2147483648
  %237 = xla_tuple %v236
  %s238 = scalar_lea.vmem %s1, 928
  %239 = vst [vmem:[%s238] sm:$0xff] %v236
  %s240 = scalar_lea.vmem %s0, 960
  %v241 = vld [vmem:[%s240] sm:$0xff]
  %242 = xla_tuple %v241
  %243 = xla_tuple %242
  %v244 = vxor.u32 %v241, 2147483648
  %245 = xla_tuple %v244
  %s246 = scalar_lea.vmem %s1, 960
  %247 = vst [vmem:[%s246] sm:$0xff] %v244
  %s248 = scalar_lea.vmem %s0, 992
  %v249 = vld [vmem:[%s248] sm:$0xff]
  %250 = xla_tuple %v249
  %251 = xla_tuple %250
  %v252 = vxor.u32 %v249, 2147483648
  %253 = xla_tuple %v252
  %s254 = scalar_lea.vmem %s1, 992
  %255 = vst [vmem:[%s254] sm:$0xff] %v252
  %s256 = scalar_lea.vmem %s0, 8
  %v257 = vld [vmem:[%s256] sm:$0xff]
  %258 = xla_tuple %v257
  %259 = xla_tuple %258
  %v260 = vxor.u32 %v257, 2147483648
  %261 = xla_tuple %v260
  %s262 = scalar_lea.vmem %s1, 8
  %263 = vst [vmem:[%s262] sm:$0xff] %v260
  %s264 = scalar_lea.vmem %s0, 40
  %v265 = vld [vmem:[%s264] sm:$0xff]
  %266 = xla_tuple %v265
  %267 = xla_tuple %266
  %v268 = vxor.u32 %v265, 2147483648
  %269 = xla_tuple %v268
  %s270 = scalar_lea.vmem %s1, 40
  %271 = vst [vmem:[%s270] sm:$0xff] %v268
  %s272 = scalar_lea.vmem %s0, 72
  %v273 = vld [vmem:[%s272] sm:$0xff]
  %274 = xla_tuple %v273
  %275 = xla_tuple %274
  %v276 = vxor.u32 %v273, 2147483648
  %277 = xla_tuple %v276
  %s278 = scalar_lea.vmem %s1, 72
  %279 = vst [vmem:[%s278] sm:$0xff] %v276
  %s280 = scalar_lea.vmem %s0, 104
  %v281 = vld [vmem:[%s280] sm:$0xff]
  %282 = xla_tuple %v281
  %283 = xla_tuple %282
  %v284 = vxor.u32 %v281, 2147483648
  %285 = xla_tuple %v284
  %s286 = scalar_lea.vmem %s1, 104
  %287 = vst [vmem:[%s286] sm:$0xff] %v284
  %s288 = scalar_lea.vmem %s0, 136
  %v289 = vld [vmem:[%s288] sm:$0xff]
  %290 = xla_tuple %v289
  %291 = xla_tuple %290
  %v292 = vxor.u32 %v289, 2147483648
  %293 = xla_tuple %v292
  %s294 = scalar_lea.vmem %s1, 136
  %295 = vst [vmem:[%s294] sm:$0xff] %v292
  %s296 = scalar_lea.vmem %s0, 168
  %v297 = vld [vmem:[%s296] sm:$0xff]
  %298 = xla_tuple %v297
  %299 = xla_tuple %298
  %v300 = vxor.u32 %v297, 2147483648
  %301 = xla_tuple %v300
  %s302 = scalar_lea.vmem %s1, 168
  %303 = vst [vmem:[%s302] sm:$0xff] %v300
  %s304 = scalar_lea.vmem %s0, 200
  %v305 = vld [vmem:[%s304] sm:$0xff]
  %306 = xla_tuple %v305
  %307 = xla_tuple %306
  %v308 = vxor.u32 %v305, 2147483648
  %309 = xla_tuple %v308
  %s310 = scalar_lea.vmem %s1, 200
  %311 = vst [vmem:[%s310] sm:$0xff] %v308
  %s312 = scalar_lea.vmem %s0, 232
  %v313 = vld [vmem:[%s312] sm:$0xff]
  %314 = xla_tuple %v313
  %315 = xla_tuple %314
  %v316 = vxor.u32 %v313, 2147483648
  %317 = xla_tuple %v316
  %s318 = scalar_lea.vmem %s1, 232
  %319 = vst [vmem:[%s318] sm:$0xff] %v316
  %s320 = scalar_lea.vmem %s0, 264
  %v321 = vld [vmem:[%s320] sm:$0xff]
  %322 = xla_tuple %v321
  %323 = xla_tuple %322
  %v324 = vxor.u32 %v321, 2147483648
  %325 = xla_tuple %v324
  %s326 = scalar_lea.vmem %s1, 264
  %327 = vst [vmem:[%s326] sm:$0xff] %v324
  %s328 = scalar_lea.vmem %s0, 296
  %v329 = vld [vmem:[%s328] sm:$0xff]
  %330 = xla_tuple %v329
  %331 = xla_tuple %330
  %v332 = vxor.u32 %v329, 2147483648
  %333 = xla_tuple %v332
  %s334 = scalar_lea.vmem %s1, 296
  %335 = vst [vmem:[%s334] sm:$0xff] %v332
  %s336 = scalar_lea.vmem %s0, 328
  %v337 = vld [vmem:[%s336] sm:$0xff]
  %338 = xla_tuple %v337
  %339 = xla_tuple %338
  %v340 = vxor.u32 %v337, 2147483648
  %341 = xla_tuple %v340
  %s342 = scalar_lea.vmem %s1, 328
  %343 = vst [vmem:[%s342] sm:$0xff] %v340
  %s344 = scalar_lea.vmem %s0, 360
  %v345 = vld [vmem:[%s344] sm:$0xff]
  %346 = xla_tuple %v345
  %347 = xla_tuple %346
  %v348 = vxor.u32 %v345, 2147483648
  %349 = xla_tuple %v348
  %s350 = scalar_lea.vmem %s1, 360
  %351 = vst [vmem:[%s350] sm:$0xff] %v348
  %s352 = scalar_lea.vmem %s0, 392
  %v353 = vld [vmem:[%s352] sm:$0xff]
  %354 = xla_tuple %v353
  %355 = xla_tuple %354
  %v356 = vxor.u32 %v353, 2147483648
  %357 = xla_tuple %v356
  %s358 = scalar_lea.vmem %s1, 392
  %359 = vst [vmem:[%s358] sm:$0xff] %v356
  %s360 = scalar_lea.vmem %s0, 424
  %v361 = vld [vmem:[%s360] sm:$0xff]
  %362 = xla_tuple %v361
  %363 = xla_tuple %362
  %v364 = vxor.u32 %v361, 2147483648
  %365 = xla_tuple %v364
  %s366 = scalar_lea.vmem %s1, 424
  %367 = vst [vmem:[%s366] sm:$0xff] %v364
  %s368 = scalar_lea.vmem %s0, 456
  %v369 = vld [vmem:[%s368] sm:$0xff]
  %370 = xla_tuple %v369
  %371 = xla_tuple %370
  %v372 = vxor.u32 %v369, 2147483648
  %373 = xla_tuple %v372
  %s374 = scalar_lea.vmem %s1, 456
  %375 = vst [vmem:[%s374] sm:$0xff] %v372
  %s376 = scalar_lea.vmem %s0, 488
  %v377 = vld [vmem:[%s376] sm:$0xff]
  %378 = xla_tuple %v377
  %379 = xla_tuple %378
  %v380 = vxor.u32 %v377, 2147483648
  %381 = xla_tuple %v380
  %s382 = scalar_lea.vmem %s1, 488
  %383 = vst [vmem:[%s382] sm:$0xff] %v380
  %s384 = scalar_lea.vmem %s0, 520
  %v385 = vld [vmem:[%s384] sm:$0xff]
  %386 = xla_tuple %v385
  %387 = xla_tuple %386
  %v388 = vxor.u32 %v385, 2147483648
  %389 = xla_tuple %v388
  %s390 = scalar_lea.vmem %s1, 520
  %391 = vst [vmem:[%s390] sm:$0xff] %v388
  %s392 = scalar_lea.vmem %s0, 552
  %v393 = vld [vmem:[%s392] sm:$0xff]
  %394 = xla_tuple %v393
  %395 = xla_tuple %394
  %v396 = vxor.u32 %v393, 2147483648
  %397 = xla_tuple %v396
  %s398 = scalar_lea.vmem %s1, 552
  %399 = vst [vmem:[%s398] sm:$0xff] %v396
  %s400 = scalar_lea.vmem %s0, 584
  %v401 = vld [vmem:[%s400] sm:$0xff]
  %402 = xla_tuple %v401
  %403 = xla_tuple %402
  %v404 = vxor.u32 %v401, 2147483648
  %405 = xla_tuple %v404
  %s406 = scalar_lea.vmem %s1, 584
  %407 = vst [vmem:[%s406] sm:$0xff] %v404
  %s408 = scalar_lea.vmem %s0, 616
  %v409 = vld [vmem:[%s408] sm:$0xff]
  %410 = xla_tuple %v409
  %411 = xla_tuple %410
  %v412 = vxor.u32 %v409, 2147483648
  %413 = xla_tuple %v412
  %s414 = scalar_lea.vmem %s1, 616
  %415 = vst [vmem:[%s414] sm:$0xff] %v412
  %s416 = scalar_lea.vmem %s0, 648
  %v417 = vld [vmem:[%s416] sm:$0xff]
  %418 = xla_tuple %v417
  %419 = xla_tuple %418
  %v420 = vxor.u32 %v417, 2147483648
  %421 = xla_tuple %v420
  %s422 = scalar_lea.vmem %s1, 648
  %423 = vst [vmem:[%s422] sm:$0xff] %v420
  %s424 = scalar_lea.vmem %s0, 680
  %v425 = vld [vmem:[%s424] sm:$0xff]
  %426 = xla_tuple %v425
  %427 = xla_tuple %426
  %v428 = vxor.u32 %v425, 2147483648
  %429 = xla_tuple %v428
  %s430 = scalar_lea.vmem %s1, 680
  %431 = vst [vmem:[%s430] sm:$0xff] %v428
  %s432 = scalar_lea.vmem %s0, 712
  %v433 = vld [vmem:[%s432] sm:$0xff]
  %434 = xla_tuple %v433
  %435 = xla_tuple %434
  %v436 = vxor.u32 %v433, 2147483648
  %437 = xla_tuple %v436
  %s438 = scalar_lea.vmem %s1, 712
  %439 = vst [vmem:[%s438] sm:$0xff] %v436
  %s440 = scalar_lea.vmem %s0, 744
  %v441 = vld [vmem:[%s440] sm:$0xff]
  %442 = xla_tuple %v441
  %443 = xla_tuple %442
  %v444 = vxor.u32 %v441, 2147483648
  %445 = xla_tuple %v444
  %s446 = scalar_lea.vmem %s1, 744
  %447 = vst [vmem:[%s446] sm:$0xff] %v444
  %s448 = scalar_lea.vmem %s0, 776
  %v449 = vld [vmem:[%s448] sm:$0xff]
  %450 = xla_tuple %v449
  %451 = xla_tuple %450
  %v452 = vxor.u32 %v449, 2147483648
  %453 = xla_tuple %v452
  %s454 = scalar_lea.vmem %s1, 776
  %455 = vst [vmem:[%s454] sm:$0xff] %v452
  %s456 = scalar_lea.vmem %s0, 808
  %v457 = vld [vmem:[%s456] sm:$0xff]
  %458 = xla_tuple %v457
  %459 = xla_tuple %458
  %v460 = vxor.u32 %v457, 2147483648
  %461 = xla_tuple %v460
  %s462 = scalar_lea.vmem %s1, 808
  %463 = vst [vmem:[%s462] sm:$0xff] %v460
  %s464 = scalar_lea.vmem %s0, 840
  %v465 = vld [vmem:[%s464] sm:$0xff]
  %466 = xla_tuple %v465
  %467 = xla_tuple %466
  %v468 = vxor.u32 %v465, 2147483648
  %469 = xla_tuple %v468
  %s470 = scalar_lea.vmem %s1, 840
  %471 = vst [vmem:[%s470] sm:$0xff] %v468
  %s472 = scalar_lea.vmem %s0, 872
  %v473 = vld [vmem:[%s472] sm:$0xff]
  %474 = xla_tuple %v473
  %475 = xla_tuple %474
  %v476 = vxor.u32 %v473, 2147483648
  %477 = xla_tuple %v476
  %s478 = scalar_lea.vmem %s1, 872
  %479 = vst [vmem:[%s478] sm:$0xff] %v476
  %s480 = scalar_lea.vmem %s0, 904
  %v481 = vld [vmem:[%s480] sm:$0xff]
  %482 = xla_tuple %v481
  %483 = xla_tuple %482
  %v484 = vxor.u32 %v481, 2147483648
  %485 = xla_tuple %v484
  %s486 = scalar_lea.vmem %s1, 904
  %487 = vst [vmem:[%s486] sm:$0xff] %v484
  %s488 = scalar_lea.vmem %s0, 936
  %v489 = vld [vmem:[%s488] sm:$0xff]
  %490 = xla_tuple %v489
  %491 = xla_tuple %490
  %v492 = vxor.u32 %v489, 2147483648
  %493 = xla_tuple %v492
  %s494 = scalar_lea.vmem %s1, 936
  %495 = vst [vmem:[%s494] sm:$0xff] %v492
  %s496 = scalar_lea.vmem %s0, 968
  %v497 = vld [vmem:[%s496] sm:$0xff]
  %498 = xla_tuple %v497
  %499 = xla_tuple %498
  %v500 = vxor.u32 %v497, 2147483648
  %501 = xla_tuple %v500
  %s502 = scalar_lea.vmem %s1, 968
  %503 = vst [vmem:[%s502] sm:$0xff] %v500
  %s504 = scalar_lea.vmem %s0, 1000
  %v505 = vld [vmem:[%s504] sm:$0xff]
  %506 = xla_tuple %v505
  %507 = xla_tuple %506
  %v508 = vxor.u32 %v505, 2147483648
  %509 = xla_tuple %v508
  %s510 = scalar_lea.vmem %s1, 1000
  %511 = vst [vmem:[%s510] sm:$0xff] %v508
  %s512 = scalar_lea.vmem %s0, 16
  %v513 = vld [vmem:[%s512] sm:$0xff]
  %514 = xla_tuple %v513
  %515 = xla_tuple %514
  %v516 = vxor.u32 %v513, 2147483648
  %517 = xla_tuple %v516
  %s518 = scalar_lea.vmem %s1, 16
  %519 = vst [vmem:[%s518] sm:$0xff] %v516
  %s520 = scalar_lea.vmem %s0, 48
  %v521 = vld [vmem:[%s520] sm:$0xff]
  %522 = xla_tuple %v521
  %523 = xla_tuple %522
  %v524 = vxor.u32 %v521, 2147483648
  %525 = xla_tuple %v524
  %s526 = scalar_lea.vmem %s1, 48
  %527 = vst [vmem:[%s526] sm:$0xff] %v524
  %s528 = scalar_lea.vmem %s0, 80
  %v529 = vld [vmem:[%s528] sm:$0xff]
  %530 = xla_tuple %v529
  %531 = xla_tuple %530
  %v532 = vxor.u32 %v529, 2147483648
  %533 = xla_tuple %v532
  %s534 = scalar_lea.vmem %s1, 80
  %535 = vst [vmem:[%s534] sm:$0xff] %v532
  %s536 = scalar_lea.vmem %s0, 112
  %v537 = vld [vmem:[%s536] sm:$0xff]
  %538 = xla_tuple %v537
  %539 = xla_tuple %538
  %v540 = vxor.u32 %v537, 2147483648
  %541 = xla_tuple %v540
  %s542 = scalar_lea.vmem %s1, 112
  %543 = vst [vmem:[%s542] sm:$0xff] %v540
  %s544 = scalar_lea.vmem %s0, 144
  %v545 = vld [vmem:[%s544] sm:$0xff]
  %546 = xla_tuple %v545
  %547 = xla_tuple %546
  %v548 = vxor.u32 %v545, 2147483648
  %549 = xla_tuple %v548
  %s550 = scalar_lea.vmem %s1, 144
  %551 = vst [vmem:[%s550] sm:$0xff] %v548
  %s552 = scalar_lea.vmem %s0, 176
  %v553 = vld [vmem:[%s552] sm:$0xff]
  %554 = xla_tuple %v553
  %555 = xla_tuple %554
  %v556 = vxor.u32 %v553, 2147483648
  %557 = xla_tuple %v556
  %s558 = scalar_lea.vmem %s1, 176
  %559 = vst [vmem:[%s558] sm:$0xff] %v556
  %s560 = scalar_lea.vmem %s0, 208
  %v561 = vld [vmem:[%s560] sm:$0xff]
  %562 = xla_tuple %v561
  %563 = xla_tuple %562
  %v564 = vxor.u32 %v561, 2147483648
  %565 = xla_tuple %v564
  %s566 = scalar_lea.vmem %s1, 208
  %567 = vst [vmem:[%s566] sm:$0xff] %v564
  %s568 = scalar_lea.vmem %s0, 240
  %v569 = vld [vmem:[%s568] sm:$0xff]
  %570 = xla_tuple %v569
  %571 = xla_tuple %570
  %v572 = vxor.u32 %v569, 2147483648
  %573 = xla_tuple %v572
  %s574 = scalar_lea.vmem %s1, 240
  %575 = vst [vmem:[%s574] sm:$0xff] %v572
  %s576 = scalar_lea.vmem %s0, 272
  %v577 = vld [vmem:[%s576] sm:$0xff]
  %578 = xla_tuple %v577
  %579 = xla_tuple %578
  %v580 = vxor.u32 %v577, 2147483648
  %581 = xla_tuple %v580
  %s582 = scalar_lea.vmem %s1, 272
  %583 = vst [vmem:[%s582] sm:$0xff] %v580
  %s584 = scalar_lea.vmem %s0, 304
  %v585 = vld [vmem:[%s584] sm:$0xff]
  %586 = xla_tuple %v585
  %587 = xla_tuple %586
  %v588 = vxor.u32 %v585, 2147483648
  %589 = xla_tuple %v588
  %s590 = scalar_lea.vmem %s1, 304
  %591 = vst [vmem:[%s590] sm:$0xff] %v588
  %s592 = scalar_lea.vmem %s0, 336
  %v593 = vld [vmem:[%s592] sm:$0xff]
  %594 = xla_tuple %v593
  %595 = xla_tuple %594
  %v596 = vxor.u32 %v593, 2147483648
  %597 = xla_tuple %v596
  %s598 = scalar_lea.vmem %s1, 336
  %599 = vst [vmem:[%s598] sm:$0xff] %v596
  %s600 = scalar_lea.vmem %s0, 368
  %v601 = vld [vmem:[%s600] sm:$0xff]
  %602 = xla_tuple %v601
  %603 = xla_tuple %602
  %v604 = vxor.u32 %v601, 2147483648
  %605 = xla_tuple %v604
  %s606 = scalar_lea.vmem %s1, 368
  %607 = vst [vmem:[%s606] sm:$0xff] %v604
  %s608 = scalar_lea.vmem %s0, 400
  %v609 = vld [vmem:[%s608] sm:$0xff]
  %610 = xla_tuple %v609
  %611 = xla_tuple %610
  %v612 = vxor.u32 %v609, 2147483648
  %613 = xla_tuple %v612
  %s614 = scalar_lea.vmem %s1, 400
  %615 = vst [vmem:[%s614] sm:$0xff] %v612
  %s616 = scalar_lea.vmem %s0, 432
  %v617 = vld [vmem:[%s616] sm:$0xff]
  %618 = xla_tuple %v617
  %619 = xla_tuple %618
  %v620 = vxor.u32 %v617, 2147483648
  %621 = xla_tuple %v620
  %s622 = scalar_lea.vmem %s1, 432
  %623 = vst [vmem:[%s622] sm:$0xff] %v620
  %s624 = scalar_lea.vmem %s0, 464
  %v625 = vld [vmem:[%s624] sm:$0xff]
  %626 = xla_tuple %v625
  %627 = xla_tuple %626
  %v628 = vxor.u32 %v625, 2147483648
  %629 = xla_tuple %v628
  %s630 = scalar_lea.vmem %s1, 464
  %631 = vst [vmem:[%s630] sm:$0xff] %v628
  %s632 = scalar_lea.vmem %s0, 496
  %v633 = vld [vmem:[%s632] sm:$0xff]
  %634 = xla_tuple %v633
  %635 = xla_tuple %634
  %v636 = vxor.u32 %v633, 2147483648
  %637 = xla_tuple %v636
  %s638 = scalar_lea.vmem %s1, 496
  %639 = vst [vmem:[%s638] sm:$0xff] %v636
  %s640 = scalar_lea.vmem %s0, 528
  %v641 = vld [vmem:[%s640] sm:$0xff]
  %642 = xla_tuple %v641
  %643 = xla_tuple %642
  %v644 = vxor.u32 %v641, 2147483648
  %645 = xla_tuple %v644
  %s646 = scalar_lea.vmem %s1, 528
  %647 = vst [vmem:[%s646] sm:$0xff] %v644
  %s648 = scalar_lea.vmem %s0, 560
  %v649 = vld [vmem:[%s648] sm:$0xff]
  %650 = xla_tuple %v649
  %651 = xla_tuple %650
  %v652 = vxor.u32 %v649, 2147483648
  %653 = xla_tuple %v652
  %s654 = scalar_lea.vmem %s1, 560
  %655 = vst [vmem:[%s654] sm:$0xff] %v652
  %s656 = scalar_lea.vmem %s0, 592
  %v657 = vld [vmem:[%s656] sm:$0xff]
  %658 = xla_tuple %v657
  %659 = xla_tuple %658
  %v660 = vxor.u32 %v657, 2147483648
  %661 = xla_tuple %v660
  %s662 = scalar_lea.vmem %s1, 592
  %663 = vst [vmem:[%s662] sm:$0xff] %v660
  %s664 = scalar_lea.vmem %s0, 624
  %v665 = vld [vmem:[%s664] sm:$0xff]
  %666 = xla_tuple %v665
  %667 = xla_tuple %666
  %v668 = vxor.u32 %v665, 2147483648
  %669 = xla_tuple %v668
  %s670 = scalar_lea.vmem %s1, 624
  %671 = vst [vmem:[%s670] sm:$0xff] %v668
  %s672 = scalar_lea.vmem %s0, 656
  %v673 = vld [vmem:[%s672] sm:$0xff]
  %674 = xla_tuple %v673
  %675 = xla_tuple %674
  %v676 = vxor.u32 %v673, 2147483648
  %677 = xla_tuple %v676
  %s678 = scalar_lea.vmem %s1, 656
  %679 = vst [vmem:[%s678] sm:$0xff] %v676
  %s680 = scalar_lea.vmem %s0, 688
  %v681 = vld [vmem:[%s680] sm:$0xff]
  %682 = xla_tuple %v681
  %683 = xla_tuple %682
  %v684 = vxor.u32 %v681, 2147483648
  %685 = xla_tuple %v684
  %s686 = scalar_lea.vmem %s1, 688
  %687 = vst [vmem:[%s686] sm:$0xff] %v684
  %s688 = scalar_lea.vmem %s0, 720
  %v689 = vld [vmem:[%s688] sm:$0xff]
  %690 = xla_tuple %v689
  %691 = xla_tuple %690
  %v692 = vxor.u32 %v689, 2147483648
  %693 = xla_tuple %v692
  %s694 = scalar_lea.vmem %s1, 720
  %695 = vst [vmem:[%s694] sm:$0xff] %v692
  %s696 = scalar_lea.vmem %s0, 752
  %v697 = vld [vmem:[%s696] sm:$0xff]
  %698 = xla_tuple %v697
  %699 = xla_tuple %698
  %v700 = vxor.u32 %v697, 2147483648
  %701 = xla_tuple %v700
  %s702 = scalar_lea.vmem %s1, 752
  %703 = vst [vmem:[%s702] sm:$0xff] %v700
  %s704 = scalar_lea.vmem %s0, 784
  %v705 = vld [vmem:[%s704] sm:$0xff]
  %706 = xla_tuple %v705
  %707 = xla_tuple %706
  %v708 = vxor.u32 %v705, 2147483648
  %709 = xla_tuple %v708
  %s710 = scalar_lea.vmem %s1, 784
  %711 = vst [vmem:[%s710] sm:$0xff] %v708
  %s712 = scalar_lea.vmem %s0, 816
  %v713 = vld [vmem:[%s712] sm:$0xff]
  %714 = xla_tuple %v713
  %715 = xla_tuple %714
  %v716 = vxor.u32 %v713, 2147483648
  %717 = xla_tuple %v716
  %s718 = scalar_lea.vmem %s1, 816
  %719 = vst [vmem:[%s718] sm:$0xff] %v716
  %s720 = scalar_lea.vmem %s0, 848
  %v721 = vld [vmem:[%s720] sm:$0xff]
  %722 = xla_tuple %v721
  %723 = xla_tuple %722
  %v724 = vxor.u32 %v721, 2147483648
  %725 = xla_tuple %v724
  %s726 = scalar_lea.vmem %s1, 848
  %727 = vst [vmem:[%s726] sm:$0xff] %v724
  %s728 = scalar_lea.vmem %s0, 880
  %v729 = vld [vmem:[%s728] sm:$0xff]
  %730 = xla_tuple %v729
  %731 = xla_tuple %730
  %v732 = vxor.u32 %v729, 2147483648
  %733 = xla_tuple %v732
  %s734 = scalar_lea.vmem %s1, 880
  %735 = vst [vmem:[%s734] sm:$0xff] %v732
  %s736 = scalar_lea.vmem %s0, 912
  %v737 = vld [vmem:[%s736] sm:$0xff]
  %738 = xla_tuple %v737
  %739 = xla_tuple %738
  %v740 = vxor.u32 %v737, 2147483648
  %741 = xla_tuple %v740
  %s742 = scalar_lea.vmem %s1, 912
  %743 = vst [vmem:[%s742] sm:$0xff] %v740
  %s744 = scalar_lea.vmem %s0, 944
  %v745 = vld [vmem:[%s744] sm:$0xff]
  %746 = xla_tuple %v745
  %747 = xla_tuple %746
  %v748 = vxor.u32 %v745, 2147483648
  %749 = xla_tuple %v748
  %s750 = scalar_lea.vmem %s1, 944
  %751 = vst [vmem:[%s750] sm:$0xff] %v748
  %s752 = scalar_lea.vmem %s0, 976
  %v753 = vld [vmem:[%s752] sm:$0xff]
  %754 = xla_tuple %v753
  %755 = xla_tuple %754
  %v756 = vxor.u32 %v753, 2147483648
  %757 = xla_tuple %v756
  %s758 = scalar_lea.vmem %s1, 976
  %759 = vst [vmem:[%s758] sm:$0xff] %v756
  %s760 = scalar_lea.vmem %s0, 1008
  %v761 = vld [vmem:[%s760] sm:$0xff]
  %762 = xla_tuple %v761
  %763 = xla_tuple %762
  %v764 = vxor.u32 %v761, 2147483648
  %765 = xla_tuple %v764
  %s766 = scalar_lea.vmem %s1, 1008
  %767 = vst [vmem:[%s766] sm:$0xff] %v764
  %s768 = scalar_lea.vmem %s0, 24
  %v769 = vld [vmem:[%s768] sm:$0xff]
  %770 = xla_tuple %v769
  %771 = xla_tuple %770
  %v772 = vxor.u32 %v769, 2147483648
  %773 = xla_tuple %v772
  %s774 = scalar_lea.vmem %s1, 24
  %775 = vst [vmem:[%s774] sm:$0xff] %v772
  %s776 = scalar_lea.vmem %s0, 56
  %v777 = vld [vmem:[%s776] sm:$0xff]
  %778 = xla_tuple %v777
  %779 = xla_tuple %778
  %v780 = vxor.u32 %v777, 2147483648
  %781 = xla_tuple %v780
  %s782 = scalar_lea.vmem %s1, 56
  %783 = vst [vmem:[%s782] sm:$0xff] %v780
  %s784 = scalar_lea.vmem %s0, 88
  %v785 = vld [vmem:[%s784] sm:$0xff]
  %786 = xla_tuple %v785
  %787 = xla_tuple %786
  %v788 = vxor.u32 %v785, 2147483648
  %789 = xla_tuple %v788
  %s790 = scalar_lea.vmem %s1, 88
  %791 = vst [vmem:[%s790] sm:$0xff] %v788
  %s792 = scalar_lea.vmem %s0, 120
  %v793 = vld [vmem:[%s792] sm:$0xff]
  %794 = xla_tuple %v793
  %795 = xla_tuple %794
  %v796 = vxor.u32 %v793, 2147483648
  %797 = xla_tuple %v796
  %s798 = scalar_lea.vmem %s1, 120
  %799 = vst [vmem:[%s798] sm:$0xff] %v796
  %s800 = scalar_lea.vmem %s0, 152
  %v801 = vld [vmem:[%s800] sm:$0xff]
  %802 = xla_tuple %v801
  %803 = xla_tuple %802
  %v804 = vxor.u32 %v801, 2147483648
  %805 = xla_tuple %v804
  %s806 = scalar_lea.vmem %s1, 152
  %807 = vst [vmem:[%s806] sm:$0xff] %v804
  %s808 = scalar_lea.vmem %s0, 184
  %v809 = vld [vmem:[%s808] sm:$0xff]
  %810 = xla_tuple %v809
  %811 = xla_tuple %810
  %v812 = vxor.u32 %v809, 2147483648
  %813 = xla_tuple %v812
  %s814 = scalar_lea.vmem %s1, 184
  %815 = vst [vmem:[%s814] sm:$0xff] %v812
  %s816 = scalar_lea.vmem %s0, 216
  %v817 = vld [vmem:[%s816] sm:$0xff]
  %818 = xla_tuple %v817
  %819 = xla_tuple %818
  %v820 = vxor.u32 %v817, 2147483648
  %821 = xla_tuple %v820
  %s822 = scalar_lea.vmem %s1, 216
  %823 = vst [vmem:[%s822] sm:$0xff] %v820
  %s824 = scalar_lea.vmem %s0, 248
  %v825 = vld [vmem:[%s824] sm:$0xff]
  %826 = xla_tuple %v825
  %827 = xla_tuple %826
  %v828 = vxor.u32 %v825, 2147483648
  %829 = xla_tuple %v828
  %s830 = scalar_lea.vmem %s1, 248
  %831 = vst [vmem:[%s830] sm:$0xff] %v828
  %s832 = scalar_lea.vmem %s0, 280
  %v833 = vld [vmem:[%s832] sm:$0xff]
  %834 = xla_tuple %v833
  %835 = xla_tuple %834
  %v836 = vxor.u32 %v833, 2147483648
  %837 = xla_tuple %v836
  %s838 = scalar_lea.vmem %s1, 280
  %839 = vst [vmem:[%s838] sm:$0xff] %v836
  %s840 = scalar_lea.vmem %s0, 312
  %v841 = vld [vmem:[%s840] sm:$0xff]
  %842 = xla_tuple %v841
  %843 = xla_tuple %842
  %v844 = vxor.u32 %v841, 2147483648
  %845 = xla_tuple %v844
  %s846 = scalar_lea.vmem %s1, 312
  %847 = vst [vmem:[%s846] sm:$0xff] %v844
  %s848 = scalar_lea.vmem %s0, 344
  %v849 = vld [vmem:[%s848] sm:$0xff]
  %850 = xla_tuple %v849
  %851 = xla_tuple %850
  %v852 = vxor.u32 %v849, 2147483648
  %853 = xla_tuple %v852
  %s854 = scalar_lea.vmem %s1, 344
  %855 = vst [vmem:[%s854] sm:$0xff] %v852
  %s856 = scalar_lea.vmem %s0, 376
  %v857 = vld [vmem:[%s856] sm:$0xff]
  %858 = xla_tuple %v857
  %859 = xla_tuple %858
  %v860 = vxor.u32 %v857, 2147483648
  %861 = xla_tuple %v860
  %s862 = scalar_lea.vmem %s1, 376
  %863 = vst [vmem:[%s862] sm:$0xff] %v860
  %s864 = scalar_lea.vmem %s0, 408
  %v865 = vld [vmem:[%s864] sm:$0xff]
  %866 = xla_tuple %v865
  %867 = xla_tuple %866
  %v868 = vxor.u32 %v865, 2147483648
  %869 = xla_tuple %v868
  %s870 = scalar_lea.vmem %s1, 408
  %871 = vst [vmem:[%s870] sm:$0xff] %v868
  %s872 = scalar_lea.vmem %s0, 440
  %v873 = vld [vmem:[%s872] sm:$0xff]
  %874 = xla_tuple %v873
  %875 = xla_tuple %874
  %v876 = vxor.u32 %v873, 2147483648
  %877 = xla_tuple %v876
  %s878 = scalar_lea.vmem %s1, 440
  %879 = vst [vmem:[%s878] sm:$0xff] %v876
  %s880 = scalar_lea.vmem %s0, 472
  %v881 = vld [vmem:[%s880] sm:$0xff]
  %882 = xla_tuple %v881
  %883 = xla_tuple %882
  %v884 = vxor.u32 %v881, 2147483648
  %885 = xla_tuple %v884
  %s886 = scalar_lea.vmem %s1, 472
  %887 = vst [vmem:[%s886] sm:$0xff] %v884
  %s888 = scalar_lea.vmem %s0, 504
  %v889 = vld [vmem:[%s888] sm:$0xff]
  %890 = xla_tuple %v889
  %891 = xla_tuple %890
  %v892 = vxor.u32 %v889, 2147483648
  %893 = xla_tuple %v892
  %s894 = scalar_lea.vmem %s1, 504
  %895 = vst [vmem:[%s894] sm:$0xff] %v892
  %s896 = scalar_lea.vmem %s0, 536
  %v897 = vld [vmem:[%s896] sm:$0xff]
  %898 = xla_tuple %v897
  %899 = xla_tuple %898
  %v900 = vxor.u32 %v897, 2147483648
  %901 = xla_tuple %v900
  %s902 = scalar_lea.vmem %s1, 536
  %903 = vst [vmem:[%s902] sm:$0xff] %v900
  %s904 = scalar_lea.vmem %s0, 568
  %v905 = vld [vmem:[%s904] sm:$0xff]
  %906 = xla_tuple %v905
  %907 = xla_tuple %906
  %v908 = vxor.u32 %v905, 2147483648
  %909 = xla_tuple %v908
  %s910 = scalar_lea.vmem %s1, 568
  %911 = vst [vmem:[%s910] sm:$0xff] %v908
  %s912 = scalar_lea.vmem %s0, 600
  %v913 = vld [vmem:[%s912] sm:$0xff]
  %914 = xla_tuple %v913
  %915 = xla_tuple %914
  %v916 = vxor.u32 %v913, 2147483648
  %917 = xla_tuple %v916
  %s918 = scalar_lea.vmem %s1, 600
  %919 = vst [vmem:[%s918] sm:$0xff] %v916
  %s920 = scalar_lea.vmem %s0, 632
  %v921 = vld [vmem:[%s920] sm:$0xff]
  %922 = xla_tuple %v921
  %923 = xla_tuple %922
  %v924 = vxor.u32 %v921, 2147483648
  %925 = xla_tuple %v924
  %s926 = scalar_lea.vmem %s1, 632
  %927 = vst [vmem:[%s926] sm:$0xff] %v924
  %s928 = scalar_lea.vmem %s0, 664
  %v929 = vld [vmem:[%s928] sm:$0xff]
  %930 = xla_tuple %v929
  %931 = xla_tuple %930
  %v932 = vxor.u32 %v929, 2147483648
  %933 = xla_tuple %v932
  %s934 = scalar_lea.vmem %s1, 664
  %935 = vst [vmem:[%s934] sm:$0xff] %v932
  %s936 = scalar_lea.vmem %s0, 696
  %v937 = vld [vmem:[%s936] sm:$0xff]
  %938 = xla_tuple %v937
  %939 = xla_tuple %938
  %v940 = vxor.u32 %v937, 2147483648
  %941 = xla_tuple %v940
  %s942 = scalar_lea.vmem %s1, 696
  %943 = vst [vmem:[%s942] sm:$0xff] %v940
  %s944 = scalar_lea.vmem %s0, 728
  %v945 = vld [vmem:[%s944] sm:$0xff]
  %946 = xla_tuple %v945
  %947 = xla_tuple %946
  %v948 = vxor.u32 %v945, 2147483648
  %949 = xla_tuple %v948
  %s950 = scalar_lea.vmem %s1, 728
  %951 = vst [vmem:[%s950] sm:$0xff] %v948
  %s952 = scalar_lea.vmem %s0, 760
  %v953 = vld [vmem:[%s952] sm:$0xff]
  %954 = xla_tuple %v953
  %955 = xla_tuple %954
  %v956 = vxor.u32 %v953, 2147483648
  %957 = xla_tuple %v956
  %s958 = scalar_lea.vmem %s1, 760
  %959 = vst [vmem:[%s958] sm:$0xff] %v956
  %s960 = scalar_lea.vmem %s0, 792
  %v961 = vld [vmem:[%s960] sm:$0xff]
  %962 = xla_tuple %v961
  %963 = xla_tuple %962
  %v964 = vxor.u32 %v961, 2147483648
  %965 = xla_tuple %v964
  %s966 = scalar_lea.vmem %s1, 792
  %967 = vst [vmem:[%s966] sm:$0xff] %v964
  %s968 = scalar_lea.vmem %s0, 824
  %v969 = vld [vmem:[%s968] sm:$0xff]
  %970 = xla_tuple %v969
  %971 = xla_tuple %970
  %v972 = vxor.u32 %v969, 2147483648
  %973 = xla_tuple %v972
  %s974 = scalar_lea.vmem %s1, 824
  %975 = vst [vmem:[%s974] sm:$0xff] %v972
  %s976 = scalar_lea.vmem %s0, 856
  %v977 = vld [vmem:[%s976] sm:$0xff]
  %978 = xla_tuple %v977
  %979 = xla_tuple %978
  %v980 = vxor.u32 %v977, 2147483648
  %981 = xla_tuple %v980
  %s982 = scalar_lea.vmem %s1, 856
  %983 = vst [vmem:[%s982] sm:$0xff] %v980
  %s984 = scalar_lea.vmem %s0, 888
  %v985 = vld [vmem:[%s984] sm:$0xff]
  %986 = xla_tuple %v985
  %987 = xla_tuple %986
  %v988 = vxor.u32 %v985, 2147483648
  %989 = xla_tuple %v988
  %s990 = scalar_lea.vmem %s1, 888
  %991 = vst [vmem:[%s990] sm:$0xff] %v988
  %s992 = scalar_lea.vmem %s0, 920
  %v993 = vld [vmem:[%s992] sm:$0xff]
  %994 = xla_tuple %v993
  %995 = xla_tuple %994
  %v996 = vxor.u32 %v993, 2147483648
  %997 = xla_tuple %v996
  %s998 = scalar_lea.vmem %s1, 920
  %999 = vst [vmem:[%s998] sm:$0xff] %v996
  %s1000 = scalar_lea.vmem %s0, 952
  %v1001 = vld [vmem:[%s1000] sm:$0xff]
  %1002 = xla_tuple %v1001
  %1003 = xla_tuple %1002
  %v1004 = vxor.u32 %v1001, 2147483648
  %1005 = xla_tuple %v1004
  %s1006 = scalar_lea.vmem %s1, 952
  %1007 = vst [vmem:[%s1006] sm:$0xff] %v1004
  %s1008 = scalar_lea.vmem %s0, 984
  %v1009 = vld [vmem:[%s1008] sm:$0xff]
  %1010 = xla_tuple %v1009
  %1011 = xla_tuple %1010
  %v1012 = vxor.u32 %v1009, 2147483648
  %1013 = xla_tuple %v1012
  %s1014 = scalar_lea.vmem %s1, 984
  %1015 = vst [vmem:[%s1014] sm:$0xff] %v1012
  %s1016 = scalar_lea.vmem %s0, 1016
  %v1017 = vld [vmem:[%s1016] sm:$0xff]
  %1018 = xla_tuple %v1017
  %1019 = xla_tuple %1018
  %v1020 = vxor.u32 %v1017, 2147483648
  %1021 = xla_tuple %v1020
  %s1022 = scalar_lea.vmem %s1, 1016
  %1023 = vst [vmem:[%s1022] sm:$0xff] %v1020

// kernel: neg.4
$region0: #{neg.4}
  #allocation0 [shape = 's32[1]{0}', space=sflag, size = 0x4, scoped, tag = 'scoped memory for neg.4']
  %s0 = inlined_call_operand.vmem [shape: f32[32,256], index: 0, kind: input, shape index: {}]
  %s1 = inlined_call_operand.vmem [shape: f32[32,256], index: 1, kind: output, shape index: {}]
  %v2 = vld [vmem:[%s0] sm:$0xff]
  %3 = xla_tuple %v2
  %4 = xla_tuple %3
  %v5 = vxor.u32 %v2, 2147483648
  %6 = xla_tuple %v5
  %7 = vst [vmem:[%s1] sm:$0xff] %v5
  %s8 = scalar_lea.vmem %s0, 16
  %v9 = vld [vmem:[%s8] sm:$0xff]
  %10 = xla_tuple %v9
  %11 = xla_tuple %10
  %v12 = vxor.u32 %v9, 2147483648
  %13 = xla_tuple %v12
  %s14 = scalar_lea.vmem %s1, 16
  %15 = vst [vmem:[%s14] sm:$0xff] %v12
  %s16 = scalar_lea.vmem %s0, 32
  %v17 = vld [vmem:[%s16] sm:$0xff]
  %18 = xla_tuple %v17
  %19 = xla_tuple %18
  %v20 = vxor.u32 %v17, 2147483648
  %21 = xla_tuple %v20
  %s22 = scalar_lea.vmem %s1, 32
  %23 = vst [vmem:[%s22] sm:$0xff] %v20
  %s24 = scalar_lea.vmem %s0, 48
  %v25 = vld [vmem:[%s24] sm:$0xff]
  %26 = xla_tuple %v25
  %27 = xla_tuple %26
  %v28 = vxor.u32 %v25, 2147483648
  %29 = xla_tuple %v28
  %s30 = scalar_lea.vmem %s1, 48
  %31 = vst [vmem:[%s30] sm:$0xff] %v28
  %s32 = scalar_lea.vmem %s0, 8
  %v33 = vld [vmem:[%s32] sm:$0xff]
  %34 = xla_tuple %v33
  %35 = xla_tuple %34
  %v36 = vxor.u32 %v33, 2147483648
  %37 = xla_tuple %v36
  %s38 = scalar_lea.vmem %s1, 8
  %39 = vst [vmem:[%s38] sm:$0xff] %v36
  %s40 = scalar_lea.vmem %s0, 24
  %v41 = vld [vmem:[%s40] sm:$0xff]
  %42 = xla_tuple %v41
  %43 = xla_tuple %42
  %v44 = vxor.u32 %v41, 2147483648
  %45 = xla_tuple %v44
  %s46 = scalar_lea.vmem %s1, 24
  %47 = vst [vmem:[%s46] sm:$0xff] %v44
  %s48 = scalar_lea.vmem %s0, 40
  %v49 = vld [vmem:[%s48] sm:$0xff]
  %50 = xla_tuple %v49
  %51 = xla_tuple %50
  %v52 = vxor.u32 %v49, 2147483648
  %53 = xla_tuple %v52
  %s54 = scalar_lea.vmem %s1, 40
  %55 = vst [vmem:[%s54] sm:$0xff] %v52
  %s56 = scalar_lea.vmem %s0, 56
  %v57 = vld [vmem:[%s56] sm:$0xff]
  %58 = xla_tuple %v57
  %59 = xla_tuple %58
  %v60 = vxor.u32 %v57, 2147483648
  %61 = xla_tuple %v60
  %s62 = scalar_lea.vmem %s1, 56
  %63 = vst [vmem:[%s62] sm:$0xff] %v60

// kernel: fno_net_forward.1
$region0: #{fno_net_forward.1}
  #allocation0 [shape = 'u32[]', space=smem, size = 0x4, offset = 0x4, fixed_abs, tag = 'smem constant byte address 0x4 - core index']
  #allocation1 [shape = 'u32[144,128]{1,0:T(1,128)}', space=vmem, size = 0x12000, scoped, tag = 'internal scratch']
  %s0 = inlined_call_operand.vmem [shape: f32[256,2], index: 0, kind: input, shape index: {}]
  %s1 = inlined_call_operand.vmem [shape: f32[2,32], index: 1, kind: input, shape index: {}]
  %s2 = inlined_call_operand.vmem [shape: f32[1,32], index: 2, kind: input, shape index: {}]
  %s3 = inlined_call_operand.vmem [shape: f32[32,256], index: 3, kind: input, shape index: {}]
  %s4 = inlined_call_operand.vmem [shape: f32[32,256], index: 4, kind: input, shape index: {}]
  %s5 = inlined_call_operand.vmem [shape: f32[256,32], index: 5, kind: input, shape index: {}]
  %s6 = inlined_call_operand.vmem [shape: f32[256,32], index: 6, kind: input, shape index: {}]
  %s7 = inlined_call_operand.vmem [shape: f32[32,64,64], index: 7, kind: input, shape index: {}]
  %s8 = inlined_call_operand.vmem [shape: f32[32,32], index: 8, kind: input, shape index: {}]
  %s9 = inlined_call_operand.vmem [shape: f32[1,32], index: 9, kind: input, shape index: {}]
  %s10 = inlined_call_operand.vmem [shape: f32[32,64,64], index: 10, kind: input, shape index: {}]
  %s11 = inlined_call_operand.vmem [shape: f32[32,32], index: 11, kind: input, shape index: {}]
  %s12 = inlined_call_operand.vmem [shape: f32[1,32], index: 12, kind: input, shape index: {}]
  %s13 = inlined_call_operand.vmem [shape: f32[32,128], index: 13, kind: input, shape index: {}]
  %s14 = inlined_call_operand.vmem [shape: f32[1,128], index: 14, kind: input, shape index: {}]
  %s15 = inlined_call_operand.vmem [shape: f32[128,5], index: 15, kind: input, shape index: {}]
  %s16 = inlined_call_operand.vmem [shape: f32[1,5], index: 16, kind: input, shape index: {}]
  %s17 = inlined_call_operand.vmem [shape: f32[256,5], index: 17, kind: output, shape index: {}]
  %s18 = sld [smem:[#allocation0]]
  $region78: #{fno_net_forward.1} parent=0
    _
  %s20 = ssub.s32 1, %s18
  %s21 = scalar_select 0, %s20, %s18
  // Predicated region
  $region2: #{fno_net_forward.1} parent=0 // pred_check
    _
  $region3: #{fno_net_forward.1} parent=0 // pred_check_branch
    %23 = sbr.rel (0) target = $region5
  $region4: #{fno_net_forward.1} parent=0 // pred_region
    _
  $region5: #{fno_net_forward.1} parent=0 // pred_fallthru
    _
  // Predicated region
  $region6: #{fno_net_forward.1} parent=0 // pred_check
    _
  $region7: #{fno_net_forward.1} parent=0 // pred_check_branch
    %25 = sbr.rel (0) target = $region9
  $region8: #{fno_net_forward.1} parent=0 // pred_region
    _
  $region9: #{fno_net_forward.1} parent=0 // pred_fallthru
    _
  // Predicated region
  $region10: #{fno_net_forward.1} parent=0 // pred_check
    _
  $region11: #{fno_net_forward.1} parent=0 // pred_check_branch
    %27 = sbr.rel (0) target = $region13
  $region12: #{fno_net_forward.1} parent=0 // pred_region
    _
  $region13: #{fno_net_forward.1} parent=0 // pred_fallthru
    _
  // Predicated region
  $region14: #{fno_net_forward.1} parent=0 // pred_check
    _
  $region15: #{fno_net_forward.1} parent=0 // pred_check_branch
    %29 = sbr.rel (0) target = $region17
  $region16: #{fno_net_forward.1} parent=0 // pred_region
    _
  $region17: #{fno_net_forward.1} parent=0 // pred_fallthru
    _
  // Predicated region
  $region18: #{fno_net_forward.1} parent=0 // pred_check
    _
  $region19: #{fno_net_forward.1} parent=0 // pred_check_branch
    %31 = sbr.rel (0) target = $region21
  $region20: #{fno_net_forward.1} parent=0 // pred_region
    _
  $region21: #{fno_net_forward.1} parent=0 // pred_fallthru
    _
  // Predicated region
  $region22: #{fno_net_forward.1} parent=0 // pred_check
    _
  $region23: #{fno_net_forward.1} parent=0 // pred_check_branch
    %33 = sbr.rel (0) target = $region25
  $region24: #{fno_net_forward.1} parent=0 // pred_region
    _
  $region25: #{fno_net_forward.1} parent=0 // pred_fallthru
    _
  // Predicated region
  $region26: #{fno_net_forward.1} parent=0 // pred_check
    _
  $region27: #{fno_net_forward.1} parent=0 // pred_check_branch
    %35 = sbr.rel (0) target = $region29
  $region28: #{fno_net_forward.1} parent=0 // pred_region
    _
  $region29: #{fno_net_forward.1} parent=0 // pred_fallthru
    _
  // Predicated region
  $region30: #{fno_net_forward.1} parent=0 // pred_check
    _
  $region31: #{fno_net_forward.1} parent=0 // pred_check_branch
    %37 = sbr.rel (0) target = $region33
  $region32: #{fno_net_forward.1} parent=0 // pred_region
    _
  $region33: #{fno_net_forward.1} parent=0 // pred_fallthru
    _
  // Predicated region
  $region34: #{fno_net_forward.1} parent=0 // pred_check
    _
  $region35: #{fno_net_forward.1} parent=0 // pred_check_branch
    %39 = sbr.rel (0) target = $region37
  $region36: #{fno_net_forward.1} parent=0 // pred_region
    _
  $region37: #{fno_net_forward.1} parent=0 // pred_fallthru
    _
  // Predicated region
  $region38: #{fno_net_forward.1} parent=0 // pred_check
    _
  $region39: #{fno_net_forward.1} parent=0 // pred_check_branch
    %41 = sbr.rel (0) target = $region41
  $region40: #{fno_net_forward.1} parent=0 // pred_region
    _
  $region41: #{fno_net_forward.1} parent=0 // pred_fallthru
    _
  // Predicated region
  $region42: #{fno_net_forward.1} parent=0 // pred_check
    _
  $region43: #{fno_net_forward.1} parent=0 // pred_check_branch
    %43 = sbr.rel (0) target = $region45
  $region44: #{fno_net_forward.1} parent=0 // pred_region
    _
  $region45: #{fno_net_forward.1} parent=0 // pred_fallthru
    _
  // Predicated region
  $region46: #{fno_net_forward.1} parent=0 // pred_check
    _
  $region47: #{fno_net_forward.1} parent=0 // pred_check_branch
    %45 = sbr.rel (0) target = $region49
  $region48: #{fno_net_forward.1} parent=0 // pred_region
    _
  $region49: #{fno_net_forward.1} parent=0 // pred_fallthru
    _
  // Predicated region
  $region50: #{fno_net_forward.1} parent=0 // pred_check
    _
  $region51: #{fno_net_forward.1} parent=0 // pred_check_branch
    %47 = sbr.rel (0) target = $region53
  $region52: #{fno_net_forward.1} parent=0 // pred_region
    _
  $region53: #{fno_net_forward.1} parent=0 // pred_fallthru
    _
  // Predicated region
  $region54: #{fno_net_forward.1} parent=0 // pred_check
    _
  $region55: #{fno_net_forward.1} parent=0 // pred_check_branch
    %49 = sbr.rel (0) target = $region57
  $region56: #{fno_net_forward.1} parent=0 // pred_region
    _
  $region57: #{fno_net_forward.1} parent=0 // pred_fallthru
    _
  // Predicated region
  $region58: #{fno_net_forward.1} parent=0 // pred_check
    _
  $region59: #{fno_net_forward.1} parent=0 // pred_check_branch
    %51 = sbr.rel (0) target = $region61
  $region60: #{fno_net_forward.1} parent=0 // pred_region
    _
  $region61: #{fno_net_forward.1} parent=0 // pred_fallthru
    _
  // Predicated region
  $region62: #{fno_net_forward.1} parent=0 // pred_check
    _
  $region63: #{fno_net_forward.1} parent=0 // pred_check_branch
    %53 = sbr.rel (0) target = $region65
  $region64: #{fno_net_forward.1} parent=0 // pred_region
    _
  $region65: #{fno_net_forward.1} parent=0 // pred_fallthru
    _
  // Predicated region
  $region66: #{fno_net_forward.1} parent=0 // pred_check
    _
  $region67: #{fno_net_forward.1} parent=0 // pred_check_branch
    %55 = sbr.rel (0) target = $region69
  $region68: #{fno_net_forward.1} parent=0 // pred_region
    _
  $region69: #{fno_net_forward.1} parent=0 // pred_fallthru
    _
  %v56 = vld [vmem:[%s0] sm:$0xff]
  %v57 = vld [vmem:[%s0 + $0x8] sm:$0xff]
  %v58 = vld [vmem:[%s0 + $0x10] sm:$0xff]
  %v59 = vld [vmem:[%s0 + $0x18] sm:$0xff]
  %v60 = vld [vmem:[%s0 + $0x20] sm:$0xff]
  %v61 = vld [vmem:[%s0 + $0x28] sm:$0xff]
  %v62 = vld [vmem:[%s0 + $0x30] sm:$0xff]
  %v63 = vld [vmem:[%s0 + $0x38] sm:$0xff]
  %v64 = vld [vmem:[%s0 + $0x40] sm:$0xff]
  %v65 = vld [vmem:[%s0 + $0x48] sm:$0xff]
  %v66 = vld [vmem:[%s0 + $0x50] sm:$0xff]
  %v67 = vld [vmem:[%s0 + $0x58] sm:$0xff]
  %v68 = vld [vmem:[%s0 + $0x60] sm:$0xff]
  %v69 = vld [vmem:[%s0 + $0x68] sm:$0xff]
  %v70 = vld [vmem:[%s0 + $0x70] sm:$0xff]
  %v71 = vld [vmem:[%s0 + $0x78] sm:$0xff]
  %v72 = vld [vmem:[%s0 + $0x80] sm:$0xff]
  %v73 = vld [vmem:[%s0 + $0x88] sm:$0xff]
  %v74 = vld [vmem:[%s0 + $0x90] sm:$0xff]
  %v75 = vld [vmem:[%s0 + $0x98] sm:$0xff]
  %v76 = vld [vmem:[%s0 + $0xa0] sm:$0xff]
  %v77 = vld [vmem:[%s0 + $0xa8] sm:$0xff]
  %v78 = vld [vmem:[%s0 + $0xb0] sm:$0xff]
  %v79 = vld [vmem:[%s0 + $0xb8] sm:$0xff]
  %v80 = vld [vmem:[%s0 + $0xc0] sm:$0xff]
  %v81 = vld [vmem:[%s0 + $0xc8] sm:$0xff]
  %v82 = vld [vmem:[%s0 + $0xd0] sm:$0xff]
  %v83 = vld [vmem:[%s0 + $0xd8] sm:$0xff]
  %v84 = vld [vmem:[%s0 + $0xe0] sm:$0xff]
  %v85 = vld [vmem:[%s0 + $0xe8] sm:$0xff]
  %v86 = vld [vmem:[%s0 + $0xf0] sm:$0xff]
  %v87 = vld [vmem:[%s0 + $0xf8] sm:$0xff]
  %v88 = vld [vmem:[%s1] sm:$0x3]
  %90 = vset.pattern.permute.xlu0 0
  %91 = vperm.xlu0 %90, %v56
  %v92 = vpop.permute.xlu0 %91
  %95 = vset.pattern.permute.xlu0 0
  %96 = vperm.xlu0 %95, %v57
  %v97 = vpop.permute.xlu0 %96
  %100 = vset.pattern.permute.xlu0 0
  %101 = vperm.xlu0 %100, %v58
  %v102 = vpop.permute.xlu0 %101
  %105 = vset.pattern.permute.xlu0 0
  %106 = vperm.xlu0 %105, %v59
  %v107 = vpop.permute.xlu0 %106
  %110 = vset.pattern.permute.xlu0 0
  %111 = vperm.xlu0 %110, %v60
  %v112 = vpop.permute.xlu0 %111
  %115 = vset.pattern.permute.xlu0 0
  %116 = vperm.xlu0 %115, %v61
  %v117 = vpop.permute.xlu0 %116
  %120 = vset.pattern.permute.xlu0 0
  %121 = vperm.xlu0 %120, %v62
  %v122 = vpop.permute.xlu0 %121
  %125 = vset.pattern.permute.xlu0 0
  %126 = vperm.xlu0 %125, %v63
  %v127 = vpop.permute.xlu0 %126
  %130 = vset.pattern.permute.xlu0 0
  %131 = vperm.xlu0 %130, %v64
  %v132 = vpop.permute.xlu0 %131
  %135 = vset.pattern.permute.xlu0 0
  %136 = vperm.xlu0 %135, %v65
  %v137 = vpop.permute.xlu0 %136
  %140 = vset.pattern.permute.xlu0 0
  %141 = vperm.xlu0 %140, %v66
  %v142 = vpop.permute.xlu0 %141
  %145 = vset.pattern.permute.xlu0 0
  %146 = vperm.xlu0 %145, %v67
  %v147 = vpop.permute.xlu0 %146
  %150 = vset.pattern.permute.xlu0 0
  %151 = vperm.xlu0 %150, %v68
  %v152 = vpop.permute.xlu0 %151
  %155 = vset.pattern.permute.xlu0 0
  %156 = vperm.xlu0 %155, %v69
  %v157 = vpop.permute.xlu0 %156
  %160 = vset.pattern.permute.xlu0 0
  %161 = vperm.xlu0 %160, %v70
  %v162 = vpop.permute.xlu0 %161
  %165 = vset.pattern.permute.xlu0 0
  %166 = vperm.xlu0 %165, %v71
  %v167 = vpop.permute.xlu0 %166
  %170 = vset.pattern.permute.xlu0 0
  %171 = vperm.xlu0 %170, %v72
  %v172 = vpop.permute.xlu0 %171
  %175 = vset.pattern.permute.xlu0 0
  %176 = vperm.xlu0 %175, %v73
  %v177 = vpop.permute.xlu0 %176
  %180 = vset.pattern.permute.xlu0 0
  %181 = vperm.xlu0 %180, %v74
  %v182 = vpop.permute.xlu0 %181
  %185 = vset.pattern.permute.xlu0 0
  %186 = vperm.xlu0 %185, %v75
  %v187 = vpop.permute.xlu0 %186
  %190 = vset.pattern.permute.xlu0 0
  %191 = vperm.xlu0 %190, %v76
  %v192 = vpop.permute.xlu0 %191
  %195 = vset.pattern.permute.xlu0 0
  %196 = vperm.xlu0 %195, %v77
  %v197 = vpop.permute.xlu0 %196
  %200 = vset.pattern.permute.xlu0 0
  %201 = vperm.xlu0 %200, %v78
  %v202 = vpop.permute.xlu0 %201
  %205 = vset.pattern.permute.xlu0 0
  %206 = vperm.xlu0 %205, %v79
  %v207 = vpop.permute.xlu0 %206
  %210 = vset.pattern.permute.xlu0 0
  %211 = vperm.xlu0 %210, %v80
  %v212 = vpop.permute.xlu0 %211
  %215 = vset.pattern.permute.xlu0 0
  %216 = vperm.xlu0 %215, %v81
  %v217 = vpop.permute.xlu0 %216
  %220 = vset.pattern.permute.xlu0 0
  %221 = vperm.xlu0 %220, %v82
  %v222 = vpop.permute.xlu0 %221
  %225 = vset.pattern.permute.xlu0 0
  %226 = vperm.xlu0 %225, %v83
  %v227 = vpop.permute.xlu0 %226
  %230 = vset.pattern.permute.xlu0 0
  %231 = vperm.xlu0 %230, %v84
  %v232 = vpop.permute.xlu0 %231
  %235 = vset.pattern.permute.xlu0 0
  %236 = vperm.xlu0 %235, %v85
  %v237 = vpop.permute.xlu0 %236
  %240 = vset.pattern.permute.xlu0 0
  %241 = vperm.xlu0 %240, %v86
  %v242 = vpop.permute.xlu0 %241
  %245 = vset.pattern.permute.xlu0 0
  %246 = vperm.xlu0 %245, %v87
  %v247 = vpop.permute.xlu0 %246
  %v249 = vlaneseq
  %v250 = vshrl.u32 %v249, 7
  %v251 = vsub.s32 0, %v250
  %v252 = vrot.slane %v88, %v251
  %v253 = vmul.f32 %v92, %v252
  %v254 = vmul.f32 %v97, %v252
  %v255 = vmul.f32 %v102, %v252
  %v256 = vmul.f32 %v107, %v252
  %v257 = vmul.f32 %v112, %v252
  %v258 = vmul.f32 %v117, %v252
  %v259 = vmul.f32 %v122, %v252
  %v260 = vmul.f32 %v127, %v252
  %v261 = vmul.f32 %v132, %v252
  %v262 = vmul.f32 %v137, %v252
  %v263 = vmul.f32 %v142, %v252
  %v264 = vmul.f32 %v147, %v252
  %v265 = vmul.f32 %v152, %v252
  %v266 = vmul.f32 %v157, %v252
  %v267 = vmul.f32 %v162, %v252
  %v268 = vmul.f32 %v167, %v252
  %v269 = vmul.f32 %v172, %v252
  %v270 = vmul.f32 %v177, %v252
  %v271 = vmul.f32 %v182, %v252
  %v272 = vmul.f32 %v187, %v252
  %v273 = vmul.f32 %v192, %v252
  %v274 = vmul.f32 %v197, %v252
  %v275 = vmul.f32 %v202, %v252
  %v276 = vmul.f32 %v207, %v252
  %v277 = vmul.f32 %v212, %v252
  %v278 = vmul.f32 %v217, %v252
  %v279 = vmul.f32 %v222, %v252
  %v280 = vmul.f32 %v227, %v252
  %v281 = vmul.f32 %v232, %v252
  %v282 = vmul.f32 %v237, %v252
  %v283 = vmul.f32 %v242, %v252
  %v284 = vmul.f32 %v247, %v252
  %285 = vset.pattern.permute.xlu0 1
  %286 = vperm.xlu0 %285, %v56
  %v287 = vpop.permute.xlu0 %286
  %289 = vset.pattern.permute.xlu0 1
  %290 = vperm.xlu0 %289, %v57
  %v291 = vpop.permute.xlu0 %290
  %293 = vset.pattern.permute.xlu0 1
  %294 = vperm.xlu0 %293, %v58
  %v295 = vpop.permute.xlu0 %294
  %297 = vset.pattern.permute.xlu0 1
  %298 = vperm.xlu0 %297, %v59
  %v299 = vpop.permute.xlu0 %298
  %301 = vset.pattern.permute.xlu0 1
  %302 = vperm.xlu0 %301, %v60
  %v303 = vpop.permute.xlu0 %302
  %305 = vset.pattern.permute.xlu0 1
  %306 = vperm.xlu0 %305, %v61
  %v307 = vpop.permute.xlu0 %306
  %309 = vset.pattern.permute.xlu0 1
  %310 = vperm.xlu0 %309, %v62
  %v311 = vpop.permute.xlu0 %310
  %313 = vset.pattern.permute.xlu0 1
  %314 = vperm.xlu0 %313, %v63
  %v315 = vpop.permute.xlu0 %314
  %317 = vset.pattern.permute.xlu0 1
  %318 = vperm.xlu0 %317, %v64
  %v319 = vpop.permute.xlu0 %318
  %321 = vset.pattern.permute.xlu0 1
  %322 = vperm.xlu0 %321, %v65
  %v323 = vpop.permute.xlu0 %322
  %325 = vset.pattern.permute.xlu0 1
  %326 = vperm.xlu0 %325, %v66
  %v327 = vpop.permute.xlu0 %326
  %329 = vset.pattern.permute.xlu0 1
  %330 = vperm.xlu0 %329, %v67
  %v331 = vpop.permute.xlu0 %330
  %333 = vset.pattern.permute.xlu0 1
  %334 = vperm.xlu0 %333, %v68
  %v335 = vpop.permute.xlu0 %334
  %337 = vset.pattern.permute.xlu0 1
  %338 = vperm.xlu0 %337, %v69
  %v339 = vpop.permute.xlu0 %338
  %341 = vset.pattern.permute.xlu0 1
  %342 = vperm.xlu0 %341, %v70
  %v343 = vpop.permute.xlu0 %342
  %345 = vset.pattern.permute.xlu0 1
  %346 = vperm.xlu0 %345, %v71
  %v347 = vpop.permute.xlu0 %346
  %349 = vset.pattern.permute.xlu0 1
  %350 = vperm.xlu0 %349, %v72
  %v351 = vpop.permute.xlu0 %350
  %353 = vset.pattern.permute.xlu0 1
  %354 = vperm.xlu0 %353, %v73
  %v355 = vpop.permute.xlu0 %354
  %357 = vset.pattern.permute.xlu0 1
  %358 = vperm.xlu0 %357, %v74
  %v359 = vpop.permute.xlu0 %358
  %361 = vset.pattern.permute.xlu0 1
  %362 = vperm.xlu0 %361, %v75
  %v363 = vpop.permute.xlu0 %362
  %365 = vset.pattern.permute.xlu0 1
  %366 = vperm.xlu0 %365, %v76
  %v367 = vpop.permute.xlu0 %366
  %369 = vset.pattern.permute.xlu0 1
  %370 = vperm.xlu0 %369, %v77
  %v371 = vpop.permute.xlu0 %370
  %373 = vset.pattern.permute.xlu0 1
  %374 = vperm.xlu0 %373, %v78
  %v375 = vpop.permute.xlu0 %374
  %377 = vset.pattern.permute.xlu0 1
  %378 = vperm.xlu0 %377, %v79
  %v379 = vpop.permute.xlu0 %378
  %381 = vset.pattern.permute.xlu0 1
  %382 = vperm.xlu0 %381, %v80
  %v383 = vpop.permute.xlu0 %382
  %385 = vset.pattern.permute.xlu0 1
  %386 = vperm.xlu0 %385, %v81
  %v387 = vpop.permute.xlu0 %386
  %389 = vset.pattern.permute.xlu0 1
  %390 = vperm.xlu0 %389, %v82
  %v391 = vpop.permute.xlu0 %390
  %393 = vset.pattern.permute.xlu0 1
  %394 = vperm.xlu0 %393, %v83
  %v395 = vpop.permute.xlu0 %394
  %397 = vset.pattern.permute.xlu0 1
  %398 = vperm.xlu0 %397, %v84
  %v399 = vpop.permute.xlu0 %398
  %401 = vset.pattern.permute.xlu0 1
  %402 = vperm.xlu0 %401, %v85
  %v403 = vpop.permute.xlu0 %402
  %405 = vset.pattern.permute.xlu0 1
  %406 = vperm.xlu0 %405, %v86
  %v407 = vpop.permute.xlu0 %406
  %409 = vset.pattern.permute.xlu0 1
  %410 = vperm.xlu0 %409, %v87
  %v411 = vpop.permute.xlu0 %410
  %v413 = vlaneseq
  %v414 = vshrl.u32 %v413, 7
  %v415 = vsub.s32 1, %v414
  %v416 = vrot.slane %v88, %v415
  %v417 = vmul.f32 %v287, %v416
  %v418 = vmul.f32 %v291, %v416
  %v419 = vmul.f32 %v295, %v416
  %v420 = vmul.f32 %v299, %v416
  %v421 = vmul.f32 %v303, %v416
  %v422 = vmul.f32 %v307, %v416
  %v423 = vmul.f32 %v311, %v416
  %v424 = vmul.f32 %v315, %v416
  %v425 = vmul.f32 %v319, %v416
  %v426 = vmul.f32 %v323, %v416
  %v427 = vmul.f32 %v327, %v416
  %v428 = vmul.f32 %v331, %v416
  %v429 = vmul.f32 %v335, %v416
  %v430 = vmul.f32 %v339, %v416
  %v431 = vmul.f32 %v343, %v416
  %v432 = vmul.f32 %v347, %v416
  %v433 = vmul.f32 %v351, %v416
  %v434 = vmul.f32 %v355, %v416
  %v435 = vmul.f32 %v359, %v416
  %v436 = vmul.f32 %v363, %v416
  %v437 = vmul.f32 %v367, %v416
  %v438 = vmul.f32 %v371, %v416
  %v439 = vmul.f32 %v375, %v416
  %v440 = vmul.f32 %v379, %v416
  %v441 = vmul.f32 %v383, %v416
  %v442 = vmul.f32 %v387, %v416
  %v443 = vmul.f32 %v391, %v416
  %v444 = vmul.f32 %v395, %v416
  %v445 = vmul.f32 %v399, %v416
  %v446 = vmul.f32 %v403, %v416
  %v447 = vmul.f32 %v407, %v416
  %v448 = vmul.f32 %v411, %v416
  %v449 = vadd.f32 %v253, %v417
  %v450 = vadd.f32 %v254, %v418
  %v451 = vadd.f32 %v255, %v419
  %v452 = vadd.f32 %v256, %v420
  %v453 = vadd.f32 %v257, %v421
  %v454 = vadd.f32 %v258, %v422
  %v455 = vadd.f32 %v259, %v423
  %v456 = vadd.f32 %v260, %v424
  %v457 = vadd.f32 %v261, %v425
  %v458 = vadd.f32 %v262, %v426
  %v459 = vadd.f32 %v263, %v427
  %v460 = vadd.f32 %v264, %v428
  %v461 = vadd.f32 %v265, %v429
  %v462 = vadd.f32 %v266, %v430
  %v463 = vadd.f32 %v267, %v431
  %v464 = vadd.f32 %v268, %v432
  %v465 = vadd.f32 %v269, %v433
  %v466 = vadd.f32 %v270, %v434
  %v467 = vadd.f32 %v271, %v435
  %v468 = vadd.f32 %v272, %v436
  %v469 = vadd.f32 %v273, %v437
  %v470 = vadd.f32 %v274, %v438
  %v471 = vadd.f32 %v275, %v439
  %v472 = vadd.f32 %v276, %v440
  %v473 = vadd.f32 %v277, %v441
  %v474 = vadd.f32 %v278, %v442
  %v475 = vadd.f32 %v279, %v443
  %v476 = vadd.f32 %v280, %v444
  %v477 = vadd.f32 %v281, %v445
  %v478 = vadd.f32 %v282, %v446
  %v479 = vadd.f32 %v283, %v447
  %v480 = vadd.f32 %v284, %v448
  %v481 = vld [vmem:[%s2] sm:$0x1]
  %v483 = vlaneseq
  %v484 = vshrl.u32 %v483, 7
  %v485 = vsub.s32 0, %v484
  %v486 = vrot.slane %v481, %v485
  %v488 = vadd.f32 %v449, %v486
  %v489 = vadd.f32 %v450, %v486
  %v490 = vadd.f32 %v451, %v486
  %v491 = vadd.f32 %v452, %v486
  %v492 = vadd.f32 %v453, %v486
  %v493 = vadd.f32 %v454, %v486
  %v494 = vadd.f32 %v455, %v486
  %v495 = vadd.f32 %v456, %v486
  %v496 = vadd.f32 %v457, %v486
  %v497 = vadd.f32 %v458, %v486
  %v498 = vadd.f32 %v459, %v486
  %v499 = vadd.f32 %v460, %v486
  %v500 = vadd.f32 %v461, %v486
  %v501 = vadd.f32 %v462, %v486
  %v502 = vadd.f32 %v463, %v486
  %v503 = vadd.f32 %v464, %v486
  %v504 = vadd.f32 %v465, %v486
  %v505 = vadd.f32 %v466, %v486
  %v506 = vadd.f32 %v467, %v486
  %v507 = vadd.f32 %v468, %v486
  %v508 = vadd.f32 %v469, %v486
  %v509 = vadd.f32 %v470, %v486
  %v510 = vadd.f32 %v471, %v486
  %v511 = vadd.f32 %v472, %v486
  %v512 = vadd.f32 %v473, %v486
  %v513 = vadd.f32 %v474, %v486
  %v514 = vadd.f32 %v475, %v486
  %v515 = vadd.f32 %v476, %v486
  %v516 = vadd.f32 %v477, %v486
  %v517 = vadd.f32 %v478, %v486
  %v518 = vadd.f32 %v479, %v486
  %v519 = vadd.f32 %v480, %v486
  %v520 = vld [vmem:[%s3] sm:$0xff]
  %v521 = vld [vmem:[%s3 + $0x8] sm:$0xff]
  %v522 = vld [vmem:[%s3 + $0x10] sm:$0xff]
  %v523 = vld [vmem:[%s3 + $0x18] sm:$0xff]
  %v524 = vld [vmem:[%s3 + $0x20] sm:$0xff]
  %v525 = vld [vmem:[%s3 + $0x28] sm:$0xff]
  %v526 = vld [vmem:[%s3 + $0x30] sm:$0xff]
  %v527 = vld [vmem:[%s3 + $0x38] sm:$0xff]
  %v528 = vld [vmem:[%s4] sm:$0xff]
  %v529 = vld [vmem:[%s4 + $0x8] sm:$0xff]
  %v530 = vld [vmem:[%s4 + $0x10] sm:$0xff]
  %v531 = vld [vmem:[%s4 + $0x18] sm:$0xff]
  %v532 = vld [vmem:[%s4 + $0x20] sm:$0xff]
  %v533 = vld [vmem:[%s4 + $0x28] sm:$0xff]
  %v534 = vld [vmem:[%s4 + $0x30] sm:$0xff]
  %v535 = vld [vmem:[%s4 + $0x38] sm:$0xff]
  %v536 = vld [vmem:[%s5] sm:$0xff]
  %v537 = vld [vmem:[%s5 + $0x8] sm:$0xff]
  %v538 = vld [vmem:[%s5 + $0x10] sm:$0xff]
  %v539 = vld [vmem:[%s5 + $0x18] sm:$0xff]
  %v540 = vld [vmem:[%s5 + $0x20] sm:$0xff]
  %v541 = vld [vmem:[%s5 + $0x28] sm:$0xff]
  %v542 = vld [vmem:[%s5 + $0x30] sm:$0xff]
  %v543 = vld [vmem:[%s5 + $0x38] sm:$0xff]
  %v544 = vld [vmem:[%s5 + $0x40] sm:$0xff]
  %v545 = vld [vmem:[%s5 + $0x48] sm:$0xff]
  %v546 = vld [vmem:[%s5 + $0x50] sm:$0xff]
  %v547 = vld [vmem:[%s5 + $0x58] sm:$0xff]
  %v548 = vld [vmem:[%s5 + $0x60] sm:$0xff]
  %v549 = vld [vmem:[%s5 + $0x68] sm:$0xff]
  %v550 = vld [vmem:[%s5 + $0x70] sm:$0xff]
  %v551 = vld [vmem:[%s5 + $0x78] sm:$0xff]
  %v552 = vld [vmem:[%s5 + $0x80] sm:$0xff]
  %v553 = vld [vmem:[%s5 + $0x88] sm:$0xff]
  %v554 = vld [vmem:[%s5 + $0x90] sm:$0xff]
  %v555 = vld [vmem:[%s5 + $0x98] sm:$0xff]
  %v556 = vld [vmem:[%s5 + $0xa0] sm:$0xff]
  %v557 = vld [vmem:[%s5 + $0xa8] sm:$0xff]
  %v558 = vld [vmem:[%s5 + $0xb0] sm:$0xff]
  %v559 = vld [vmem:[%s5 + $0xb8] sm:$0xff]
  %v560 = vld [vmem:[%s5 + $0xc0] sm:$0xff]
  %v561 = vld [vmem:[%s5 + $0xc8] sm:$0xff]
  %v562 = vld [vmem:[%s5 + $0xd0] sm:$0xff]
  %v563 = vld [vmem:[%s5 + $0xd8] sm:$0xff]
  %v564 = vld [vmem:[%s5 + $0xe0] sm:$0xff]
  %v565 = vld [vmem:[%s5 + $0xe8] sm:$0xff]
  %v566 = vld [vmem:[%s5 + $0xf0] sm:$0xff]
  %v567 = vld [vmem:[%s5 + $0xf8] sm:$0xff]
  %v568 = vld [vmem:[%s6] sm:$0xff]
  %v569 = vld [vmem:[%s6 + $0x8] sm:$0xff]
  %v570 = vld [vmem:[%s6 + $0x10] sm:$0xff]
  %v571 = vld [vmem:[%s6 + $0x18] sm:$0xff]
  %v572 = vld [vmem:[%s6 + $0x20] sm:$0xff]
  %v573 = vld [vmem:[%s6 + $0x28] sm:$0xff]
  %v574 = vld [vmem:[%s6 + $0x30] sm:$0xff]
  %v575 = vld [vmem:[%s6 + $0x38] sm:$0xff]
  %v576 = vld [vmem:[%s6 + $0x40] sm:$0xff]
  %v577 = vld [vmem:[%s6 + $0x48] sm:$0xff]
  %v578 = vld [vmem:[%s6 + $0x50] sm:$0xff]
  %v579 = vld [vmem:[%s6 + $0x58] sm:$0xff]
  %v580 = vld [vmem:[%s6 + $0x60] sm:$0xff]
  %v581 = vld [vmem:[%s6 + $0x68] sm:$0xff]
  %v582 = vld [vmem:[%s6 + $0x70] sm:$0xff]
  %v583 = vld [vmem:[%s6 + $0x78] sm:$0xff]
  %v584 = vld [vmem:[%s6 + $0x80] sm:$0xff]
  %v585 = vld [vmem:[%s6 + $0x88] sm:$0xff]
  %v586 = vld [vmem:[%s6 + $0x90] sm:$0xff]
  %v587 = vld [vmem:[%s6 + $0x98] sm:$0xff]
  %v588 = vld [vmem:[%s6 + $0xa0] sm:$0xff]
  %v589 = vld [vmem:[%s6 + $0xa8] sm:$0xff]
  %v590 = vld [vmem:[%s6 + $0xb0] sm:$0xff]
  %v591 = vld [vmem:[%s6 + $0xb8] sm:$0xff]
  %v592 = vld [vmem:[%s6 + $0xc0] sm:$0xff]
  %v593 = vld [vmem:[%s6 + $0xc8] sm:$0xff]
  %v594 = vld [vmem:[%s6 + $0xd0] sm:$0xff]
  %v595 = vld [vmem:[%s6 + $0xd8] sm:$0xff]
  %v596 = vld [vmem:[%s6 + $0xe0] sm:$0xff]
  %v597 = vld [vmem:[%s6 + $0xe8] sm:$0xff]
  %v598 = vld [vmem:[%s6 + $0xf0] sm:$0xff]
  %v599 = vld [vmem:[%s6 + $0xf8] sm:$0xff]
  %600 = vmatprep.subr.mxu0 0.0
  %601 = vmatpush1.msra.mxu0 %v488
  %602 = vmatprep.subr.mxu0 0.0
  %603 = vmatpush1.msra.mxu0 %v489
  %604 = vmatprep.subr.mxu0 0.0
  %605 = vmatpush1.msra.mxu0 %v490
  %606 = vmatprep.subr.mxu0 0.0
  %607 = vmatpush1.msra.mxu0 %v491
  %608 = vmatprep.subr.mxu0 0.0
  %609 = vmatpush1.msra.mxu0 %v492
  %610 = vmatprep.subr.mxu0 0.0
  %611 = vmatpush1.msra.mxu0 %v493
  %612 = vmatprep.subr.mxu0 0.0
  %613 = vmatpush1.msra.mxu0 %v494
  %614 = vmatprep.subr.mxu0 0.0
  %615 = vmatpush1.msra.mxu0 %v495
  %616 = vmatprep.subr.mxu0 0.0
  %617 = vmatpush1.msra.mxu0 %v496
  %618 = vmatprep.subr.mxu0 0.0
  %619 = vmatpush1.msra.mxu0 %v497
  %620 = vmatprep.subr.mxu0 0.0
  %621 = vmatpush1.msra.mxu0 %v498
  %622 = vmatprep.subr.mxu0 0.0
  %623 = vmatpush1.msra.mxu0 %v499
  %624 = vmatprep.subr.mxu0 0.0
  %625 = vmatpush1.msra.mxu0 %v500
  %626 = vmatprep.subr.mxu0 0.0
  %627 = vmatpush1.msra.mxu0 %v501
  %628 = vmatprep.subr.mxu0 0.0
  %629 = vmatpush1.msra.mxu0 %v502
  %630 = vmatprep.subr.mxu0 0.0
  %631 = vmatpush1.msra.mxu0 %v503
  %632 = vmatprep.subr.mxu0 0.0
  %633 = vmatpush1.msra.mxu0 %v504
  %634 = vmatprep.subr.mxu0 0.0
  %635 = vmatpush1.msra.mxu0 %v505
  %636 = vmatprep.subr.mxu0 0.0
  %637 = vmatpush1.msra.mxu0 %v506
  %638 = vmatprep.subr.mxu0 0.0
  %639 = vmatpush1.msra.mxu0 %v507
  %640 = vmatprep.subr.mxu0 0.0
  %641 = vmatpush1.msra.mxu0 %v508
  %642 = vmatprep.subr.mxu0 0.0
  %643 = vmatpush1.msra.mxu0 %v509
  %644 = vmatprep.subr.mxu0 0.0
  %645 = vmatpush1.msra.mxu0 %v510
  %646 = vmatprep.subr.mxu0 0.0
  %647 = vmatpush1.msra.mxu0 %v511
  %648 = vmatprep.subr.mxu0 0.0
  %649 = vmatpush1.msra.mxu0 %v512
  %650 = vmatprep.subr.mxu0 0.0
  %651 = vmatpush1.msra.mxu0 %v513
  %652 = vmatprep.subr.mxu0 0.0
  %653 = vmatpush1.msra.mxu0 %v514
  %654 = vmatprep.subr.mxu0 0.0
  %655 = vmatpush1.msra.mxu0 %v515
  %656 = vmatprep.subr.mxu0 0.0
  %657 = vmatpush1.msra.mxu0 %v516
  %658 = vmatprep.subr.mxu0 0.0
  %659 = vmatpush1.msra.mxu0 %v517
  %660 = vmatprep.subr.mxu0 0.0
  %661 = vmatpush1.msra.mxu0 %v518
  %662 = vmatprep.subr.mxu0 0.0
  %663 = vmatpush1.msra.mxu0 %v519
  %664 = vmatprep.mubr.f32.mxu0 %v521
  %665 = vmatmul.mubr.f32.gmra.mrb[0].mxu0 %v520
  %v666 = vpop.f32.mrb[0].mxu0
  %v667 = vadd.f32 0.0, %v666
  %v668 = vpop.f32.mrb[0].mxu0
  %669 = vmatprep.mubr.f32.mxu0 %v523
  %670 = vmatmul.mubr.f32.gmra.mrb[0].mxu0 %v522
  %v671 = vpop.f32.mrb[0].mxu0
  %v672 = vadd.f32 0.0, %v671
  %v673 = vpop.f32.mrb[0].mxu0
  %674 = vmatprep.mubr.f32.mxu0 %v525
  %675 = vmatmul.mubr.f32.gmra.mrb[0].mxu0 %v524
  %v676 = vpop.f32.mrb[0].mxu0
  %v677 = vadd.f32 0.0, %v676
  %v678 = vpop.f32.mrb[0].mxu0
  %679 = vmatprep.mubr.f32.mxu0 %v527
  %680 = vmatmul.mubr.f32.gmra.mrb[0].mxu0 %v526
  %v681 = vpop.f32.mrb[0].mxu0
  %v682 = vadd.f32 0.0, %v681
  %v683 = vpop.f32.mrb[0].mxu0
  %684 = vdwg.mxu0
  %685 = vmatprep.subr.mxu0 0.0
  %686 = vmatpush1.msra.mxu0 %v488
  %687 = vmatprep.subr.mxu0 0.0
  %688 = vmatpush1.msra.mxu0 %v489
  %689 = vmatprep.subr.mxu0 0.0
  %690 = vmatpush1.msra.mxu0 %v490
  %691 = vmatprep.subr.mxu0 0.0
  %692 = vmatpush1.msra.mxu0 %v491
  %693 = vmatprep.subr.mxu0 0.0
  %694 = vmatpush1.msra.mxu0 %v492
  %695 = vmatprep.subr.mxu0 0.0
  %696 = vmatpush1.msra.mxu0 %v493
  %697 = vmatprep.subr.mxu0 0.0
  %698 = vmatpush1.msra.mxu0 %v494
  %699 = vmatprep.subr.mxu0 0.0
  %700 = vmatpush1.msra.mxu0 %v495
  %701 = vmatprep.subr.mxu0 0.0
  %702 = vmatpush1.msra.mxu0 %v496
  %703 = vmatprep.subr.mxu0 0.0
  %704 = vmatpush1.msra.mxu0 %v497
  %705 = vmatprep.subr.mxu0 0.0
  %706 = vmatpush1.msra.mxu0 %v498
  %707 = vmatprep.subr.mxu0 0.0
  %708 = vmatpush1.msra.mxu0 %v499
  %709 = vmatprep.subr.mxu0 0.0
  %710 = vmatpush1.msra.mxu0 %v500
  %711 = vmatprep.subr.mxu0 0.0
  %712 = vmatpush1.msra.mxu0 %v501
  %713 = vmatprep.subr.mxu0 0.0
  %714 = vmatpush1.msra.mxu0 %v502
  %715 = vmatprep.subr.mxu0 0.0
  %716 = vmatpush1.msra.mxu0 %v503
  %717 = vmatprep.subr.mxu0 0.0
  %718 = vmatpush1.msra.mxu0 %v504
  %719 = vmatprep.subr.mxu0 0.0
  %720 = vmatpush1.msra.mxu0 %v505
  %721 = vmatprep.subr.mxu0 0.0
  %722 = vmatpush1.msra.mxu0 %v506
  %723 = vmatprep.subr.mxu0 0.0
  %724 = vmatpush1.msra.mxu0 %v507
  %725 = vmatprep.subr.mxu0 0.0
  %726 = vmatpush1.msra.mxu0 %v508
  %727 = vmatprep.subr.mxu0 0.0
  %728 = vmatpush1.msra.mxu0 %v509
  %729 = vmatprep.subr.mxu0 0.0
  %730 = vmatpush1.msra.mxu0 %v510
  %731 = vmatprep.subr.mxu0 0.0
  %732 = vmatpush1.msra.mxu0 %v511
  %733 = vmatprep.subr.mxu0 0.0
  %734 = vmatpush1.msra.mxu0 %v512
  %735 = vmatprep.subr.mxu0 0.0
  %736 = vmatpush1.msra.mxu0 %v513
  %737 = vmatprep.subr.mxu0 0.0
  %738 = vmatpush1.msra.mxu0 %v514
  %739 = vmatprep.subr.mxu0 0.0
  %740 = vmatpush1.msra.mxu0 %v515
  %741 = vmatprep.subr.mxu0 0.0
  %742 = vmatpush1.msra.mxu0 %v516
  %743 = vmatprep.subr.mxu0 0.0
  %744 = vmatpush1.msra.mxu0 %v517
  %745 = vmatprep.subr.mxu0 0.0
  %746 = vmatpush1.msra.mxu0 %v518
  %747 = vmatprep.subr.mxu0 0.0
  %748 = vmatpush1.msra.mxu0 %v519
  %749 = vmatprep.mubr.f32.mxu0 %v529
  %750 = vmatmul.mubr.f32.gmra.mrb[0].mxu0 %v528
  %v751 = vpop.f32.mrb[0].mxu0
  %v752 = vadd.f32 0.0, %v751
  %v753 = vpop.f32.mrb[0].mxu0
  %754 = vmatprep.mubr.f32.mxu0 %v531
  %755 = vmatmul.mubr.f32.gmra.mrb[0].mxu0 %v530
  %v756 = vpop.f32.mrb[0].mxu0
  %v757 = vadd.f32 0.0, %v756
  %v758 = vpop.f32.mrb[0].mxu0
  %759 = vmatprep.mubr.f32.mxu0 %v533
  %760 = vmatmul.mubr.f32.gmra.mrb[0].mxu0 %v532
  %v761 = vpop.f32.mrb[0].mxu0
  %v762 = vadd.f32 0.0, %v761
  %v763 = vpop.f32.mrb[0].mxu0
  %764 = vmatprep.mubr.f32.mxu0 %v535
  %765 = vmatmul.mubr.f32.gmra.mrb[0].mxu0 %v534
  %v766 = vpop.f32.mrb[0].mxu0
  %v767 = vadd.f32 0.0, %v766
  %v768 = vpop.f32.mrb[0].mxu0
  %769 = vdwg.mxu0
  %774 = vrot.lane.b32.xlu0 %v752, 32
  %v775 = vpop.permute.xlu0 %774
  %776 = vrot.lane.b32.xlu0 %v757, 32
  %v777 = vpop.permute.xlu0 %776
  %778 = vrot.lane.b32.xlu0 %v762, 32
  %v779 = vpop.permute.xlu0 %778
  %780 = vrot.lane.b32.xlu0 %v767, 32
  %v781 = vpop.permute.xlu0 %780
  %vm786 = vcmask 261120
  %v787 = vsel %vm786, %v667, %v775
  %v788 = vsel %vm786, %v672, %v777
  %v789 = vsel %vm786, %v677, %v779
  %v790 = vsel %vm786, %v682, %v781
  %v795 = vcombine.high %v787, %v787
  %v797 = vunpack.c.l.s4 1966171168
  %v798 = vunpack.c.0.s8 %v797
  %v799 = vlaneseq
  %v800 = vshrl.u32 %v799, 7
  %v801 = vsub.s32 %v798, %v800
  %v802 = vrot.slane %v787, %v801
  %v804 = vunpack.c.l.s4 1966171168
  %v805 = vunpack.c.0.s8 %v804
  %v806 = vlaneseq
  %v807 = vshrl.u32 %v806, 7
  %v808 = vsub.s32 %v805, %v807
  %v809 = vrot.slane %v795, %v808
  %v810 = vcombine.high %v802, %v802
  %v811 = vcombine.high %v809, %v809
  %v813 = vunpack.c.l.s4 1966171168
  %v814 = vunpack.c.0.s8 %v813
  %v815 = vlaneseq
  %v816 = vshrl.u32 %v815, 7
  %v817 = vsub.s32 %v814, %v816
  %v818 = vrot.slane %v802, %v817
  %v820 = vunpack.c.l.s4 1966171168
  %v821 = vunpack.c.0.s8 %v820
  %v822 = vlaneseq
  %v823 = vshrl.u32 %v822, 7
  %v824 = vsub.s32 %v821, %v823
  %v825 = vrot.slane %v809, %v824
  %v827 = vunpack.c.l.s4 1966171168
  %v828 = vunpack.c.0.s8 %v827
  %v829 = vlaneseq
  %v830 = vshrl.u32 %v829, 7
  %v831 = vsub.s32 %v828, %v830
  %v832 = vrot.slane %v810, %v831
  %v834 = vunpack.c.l.s4 1966171168
  %v835 = vunpack.c.0.s8 %v834
  %v836 = vlaneseq
  %v837 = vshrl.u32 %v836, 7
  %v838 = vsub.s32 %v835, %v837
  %v839 = vrot.slane %v811, %v838
  %v840 = vcombine.high %v818, %v818
  %v841 = vcombine.high %v825, %v825
  %v842 = vcombine.high %v832, %v832
  %v843 = vcombine.high %v839, %v839
  %v844 = vcombine.high %v788, %v788
  %v846 = vunpack.c.l.s4 1966171168
  %v847 = vunpack.c.0.s8 %v846
  %v848 = vlaneseq
  %v849 = vshrl.u32 %v848, 7
  %v850 = vsub.s32 %v847, %v849
  %v851 = vrot.slane %v788, %v850
  %v853 = vunpack.c.l.s4 1966171168
  %v854 = vunpack.c.0.s8 %v853
  %v855 = vlaneseq
  %v856 = vshrl.u32 %v855, 7
  %v857 = vsub.s32 %v854, %v856
  %v858 = vrot.slane %v844, %v857
  %v859 = vcombine.high %v851, %v851
  %v860 = vcombine.high %v858, %v858
  %v862 = vunpack.c.l.s4 1966171168
  %v863 = vunpack.c.0.s8 %v862
  %v864 = vlaneseq
  %v865 = vshrl.u32 %v864, 7
  %v866 = vsub.s32 %v863, %v865
  %v867 = vrot.slane %v851, %v866
  %v869 = vunpack.c.l.s4 1966171168
  %v870 = vunpack.c.0.s8 %v869
  %v871 = vlaneseq
  %v872 = vshrl.u32 %v871, 7
  %v873 = vsub.s32 %v870, %v872
  %v874 = vrot.slane %v858, %v873
  %v876 = vunpack.c.l.s4 1966171168
  %v877 = vunpack.c.0.s8 %v876
  %v878 = vlaneseq
  %v879 = vshrl.u32 %v878, 7
  %v880 = vsub.s32 %v877, %v879
  %v881 = vrot.slane %v859, %v880
  %v883 = vunpack.c.l.s4 1966171168
  %v884 = vunpack.c.0.s8 %v883
  %v885 = vlaneseq
  %v886 = vshrl.u32 %v885, 7
  %v887 = vsub.s32 %v884, %v886
  %v888 = vrot.slane %v860, %v887
  %v889 = vcombine.high %v867, %v867
  %v890 = vcombine.high %v874, %v874
  %v891 = vcombine.high %v881, %v881
  %v892 = vcombine.high %v888, %v888
  %v893 = vcombine.high %v789, %v789
  %v895 = vunpack.c.l.s4 1966171168
  %v896 = vunpack.c.0.s8 %v895
  %v897 = vlaneseq
  %v898 = vshrl.u32 %v897, 7
  %v899 = vsub.s32 %v896, %v898
  %v900 = vrot.slane %v789, %v899
  %v902 = vunpack.c.l.s4 1966171168
  %v903 = vunpack.c.0.s8 %v902
  %v904 = vlaneseq
  %v905 = vshrl.u32 %v904, 7
  %v906 = vsub.s32 %v903, %v905
  %v907 = vrot.slane %v893, %v906
  %v908 = vcombine.high %v900, %v900
  %v909 = vcombine.high %v907, %v907
  %v911 = vunpack.c.l.s4 1966171168
  %v912 = vunpack.c.0.s8 %v911
  %v913 = vlaneseq
  %v914 = vshrl.u32 %v913, 7
  %v915 = vsub.s32 %v912, %v914
  %v916 = vrot.slane %v900, %v915
  %v918 = vunpack.c.l.s4 1966171168
  %v919 = vunpack.c.0.s8 %v918
  %v920 = vlaneseq
  %v921 = vshrl.u32 %v920, 7
  %v922 = vsub.s32 %v919, %v921
  %v923 = vrot.slane %v907, %v922
  %v925 = vunpack.c.l.s4 1966171168
  %v926 = vunpack.c.0.s8 %v925
  %v927 = vlaneseq
  %v928 = vshrl.u32 %v927, 7
  %v929 = vsub.s32 %v926, %v928
  %v930 = vrot.slane %v908, %v929
  %v932 = vunpack.c.l.s4 1966171168
  %v933 = vunpack.c.0.s8 %v932
  %v934 = vlaneseq
  %v935 = vshrl.u32 %v934, 7
  %v936 = vsub.s32 %v933, %v935
  %v937 = vrot.slane %v909, %v936
  %v938 = vcombine.high %v916, %v916
  %v939 = vcombine.high %v923, %v923
  %v940 = vcombine.high %v930, %v930
  %v941 = vcombine.high %v937, %v937
  %v942 = vcombine.high %v790, %v790
  %v944 = vunpack.c.l.s4 1966171168
  %v945 = vunpack.c.0.s8 %v944
  %v946 = vlaneseq
  %v947 = vshrl.u32 %v946, 7
  %v948 = vsub.s32 %v945, %v947
  %v949 = vrot.slane %v790, %v948
  %v951 = vunpack.c.l.s4 1966171168
  %v952 = vunpack.c.0.s8 %v951
  %v953 = vlaneseq
  %v954 = vshrl.u32 %v953, 7
  %v955 = vsub.s32 %v952, %v954
  %v956 = vrot.slane %v942, %v955
  %v957 = vcombine.high %v949, %v949
  %v958 = vcombine.high %v956, %v956
  %v960 = vunpack.c.l.s4 1966171168
  %v961 = vunpack.c.0.s8 %v960
  %v962 = vlaneseq
  %v963 = vshrl.u32 %v962, 7
  %v964 = vsub.s32 %v961, %v963
  %v965 = vrot.slane %v949, %v964
  %v967 = vunpack.c.l.s4 1966171168
  %v968 = vunpack.c.0.s8 %v967
  %v969 = vlaneseq
  %v970 = vshrl.u32 %v969, 7
  %v971 = vsub.s32 %v968, %v970
  %v972 = vrot.slane %v956, %v971
  %v974 = vunpack.c.l.s4 1966171168
  %v975 = vunpack.c.0.s8 %v974
  %v976 = vlaneseq
  %v977 = vshrl.u32 %v976, 7
  %v978 = vsub.s32 %v975, %v977
  %v979 = vrot.slane %v957, %v978
  %v981 = vunpack.c.l.s4 1966171168
  %v982 = vunpack.c.0.s8 %v981
  %v983 = vlaneseq
  %v984 = vshrl.u32 %v983, 7
  %v985 = vsub.s32 %v982, %v984
  %v986 = vrot.slane %v958, %v985
  %v987 = vcombine.high %v965, %v965
  %v988 = vcombine.high %v972, %v972
  %v989 = vcombine.high %v979, %v979
  %v990 = vcombine.high %v986, %v986
  %v991 = vld [vmem:[%s7] sm:$0xff]
  %v992 = vld [vmem:[%s7 + $0x8] sm:$0xff]
  %v993 = vld [vmem:[%s7 + $0x10] sm:$0xff]
  %v994 = vld [vmem:[%s7 + $0x18] sm:$0xff]
  %v995 = vld [vmem:[%s7 + $0x20] sm:$0xff]
  %v996 = vld [vmem:[%s7 + $0x28] sm:$0xff]
  %v997 = vld [vmem:[%s7 + $0x30] sm:$0xff]
  %v998 = vld [vmem:[%s7 + $0x38] sm:$0xff]
  %v999 = vld [vmem:[%s7 + $0x40] sm:$0xff]
  %v1000 = vld [vmem:[%s7 + $0x48] sm:$0xff]
  %v1001 = vld [vmem:[%s7 + $0x50] sm:$0xff]
  %v1002 = vld [vmem:[%s7 + $0x58] sm:$0xff]
  %v1003 = vld [vmem:[%s7 + $0x60] sm:$0xff]
  %v1004 = vld [vmem:[%s7 + $0x68] sm:$0xff]
  %v1005 = vld [vmem:[%s7 + $0x70] sm:$0xff]
  %v1006 = vld [vmem:[%s7 + $0x78] sm:$0xff]
  %v1007 = vld [vmem:[%s7 + $0x80] sm:$0xff]
  %v1008 = vld [vmem:[%s7 + $0x88] sm:$0xff]
  %v1009 = vld [vmem:[%s7 + $0x90] sm:$0xff]
  %v1010 = vld [vmem:[%s7 + $0x98] sm:$0xff]
  %v1011 = vld [vmem:[%s7 + $0xa0] sm:$0xff]
  %v1012 = vld [vmem:[%s7 + $0xa8] sm:$0xff]
  %v1013 = vld [vmem:[%s7 + $0xb0] sm:$0xff]
  %v1014 = vld [vmem:[%s7 + $0xb8] sm:$0xff]
  %v1015 = vld [vmem:[%s7 + $0xc0] sm:$0xff]
  %v1016 = vld [vmem:[%s7 + $0xc8] sm:$0xff]
  %v1017 = vld [vmem:[%s7 + $0xd0] sm:$0xff]
  %v1018 = vld [vmem:[%s7 + $0xd8] sm:$0xff]
  %v1019 = vld [vmem:[%s7 + $0xe0] sm:$0xff]
  %v1020 = vld [vmem:[%s7 + $0xe8] sm:$0xff]
  %v1021 = vld [vmem:[%s7 + $0xf0] sm:$0xff]
  %v1022 = vld [vmem:[%s7 + $0xf8] sm:$0xff]
  %v1023 = vld [vmem:[%s7 + $0x100] sm:$0xff]
  %v1024 = vld [vmem:[%s7 + $0x108] sm:$0xff]
  %v1025 = vld [vmem:[%s7 + $0x110] sm:$0xff]
  %v1026 = vld [vmem:[%s7 + $0x118] sm:$0xff]
  %v1027 = vld [vmem:[%s7 + $0x120] sm:$0xff]
  %v1028 = vld [vmem:[%s7 + $0x128] sm:$0xff]
  %v1029 = vld [vmem:[%s7 + $0x130] sm:$0xff]
  %v1030 = vld [vmem:[%s7 + $0x138] sm:$0xff]
  %v1031 = vld [vmem:[%s7 + $0x140] sm:$0xff]
  %v1032 = vld [vmem:[%s7 + $0x148] sm:$0xff]
  %v1033 = vld [vmem:[%s7 + $0x150] sm:$0xff]
  %v1034 = vld [vmem:[%s7 + $0x158] sm:$0xff]
  %v1035 = vld [vmem:[%s7 + $0x160] sm:$0xff]
  %v1036 = vld [vmem:[%s7 + $0x168] sm:$0xff]
  %v1037 = vld [vmem:[%s7 + $0x170] sm:$0xff]
  %v1038 = vld [vmem:[%s7 + $0x178] sm:$0xff]
  %v1039 = vld [vmem:[%s7 + $0x180] sm:$0xff]
  %v1040 = vld [vmem:[%s7 + $0x188] sm:$0xff]
  %v1041 = vld [vmem:[%s7 + $0x190] sm:$0xff]
  %v1042 = vld [vmem:[%s7 + $0x198] sm:$0xff]
  %v1043 = vld [vmem:[%s7 + $0x1a0] sm:$0xff]
  %v1044 = vld [vmem:[%s7 + $0x1a8] sm:$0xff]
  %v1045 = vld [vmem:[%s7 + $0x1b0] sm:$0xff]
  %v1046 = vld [vmem:[%s7 + $0x1b8] sm:$0xff]
  %v1047 = vld [vmem:[%s7 + $0x1c0] sm:$0xff]
  %v1048 = vld [vmem:[%s7 + $0x1c8] sm:$0xff]
  %v1049 = vld [vmem:[%s7 + $0x1d0] sm:$0xff]
  %v1050 = vld [vmem:[%s7 + $0x1d8] sm:$0xff]
  %v1051 = vld [vmem:[%s7 + $0x1e0] sm:$0xff]
  %v1052 = vld [vmem:[%s7 + $0x1e8] sm:$0xff]
  %v1053 = vld [vmem:[%s7 + $0x1f0] sm:$0xff]
  %v1054 = vld [vmem:[%s7 + $0x1f8] sm:$0xff]
  %v1055 = vld [vmem:[%s7 + $0x200] sm:$0xff]
  %v1056 = vld [vmem:[%s7 + $0x208] sm:$0xff]
  %v1057 = vld [vmem:[%s7 + $0x210] sm:$0xff]
  %v1058 = vld [vmem:[%s7 + $0x218] sm:$0xff]
  %v1059 = vld [vmem:[%s7 + $0x220] sm:$0xff]
  %v1060 = vld [vmem:[%s7 + $0x228] sm:$0xff]
  %v1061 = vld [vmem:[%s7 + $0x230] sm:$0xff]
  %v1062 = vld [vmem:[%s7 + $0x238] sm:$0xff]
  %v1063 = vld [vmem:[%s7 + $0x240] sm:$0xff]
  %v1064 = vld [vmem:[%s7 + $0x248] sm:$0xff]
  %v1065 = vld [vmem:[%s7 + $0x250] sm:$0xff]
  %v1066 = vld [vmem:[%s7 + $0x258] sm:$0xff]
  %v1067 = vld [vmem:[%s7 + $0x260] sm:$0xff]
  %v1068 = vld [vmem:[%s7 + $0x268] sm:$0xff]
  %v1069 = vld [vmem:[%s7 + $0x270] sm:$0xff]
  %v1070 = vld [vmem:[%s7 + $0x278] sm:$0xff]
  %v1071 = vld [vmem:[%s7 + $0x280] sm:$0xff]
  %v1072 = vld [vmem:[%s7 + $0x288] sm:$0xff]
  %v1073 = vld [vmem:[%s7 + $0x290] sm:$0xff]
  %v1074 = vld [vmem:[%s7 + $0x298] sm:$0xff]
  %v1075 = vld [vmem:[%s7 + $0x2a0] sm:$0xff]
  %v1076 = vld [vmem:[%s7 + $0x2a8] sm:$0xff]
  %v1077 = vld [vmem:[%s7 + $0x2b0] sm:$0xff]
  %v1078 = vld [vmem:[%s7 + $0x2b8] sm:$0xff]
  %v1079 = vld [vmem:[%s7 + $0x2c0] sm:$0xff]
  %v1080 = vld [vmem:[%s7 + $0x2c8] sm:$0xff]
  %v1081 = vld [vmem:[%s7 + $0x2d0] sm:$0xff]
  %v1082 = vld [vmem:[%s7 + $0x2d8] sm:$0xff]
  %v1083 = vld [vmem:[%s7 + $0x2e0] sm:$0xff]
  %v1084 = vld [vmem:[%s7 + $0x2e8] sm:$0xff]
  %v1085 = vld [vmem:[%s7 + $0x2f0] sm:$0xff]
  %v1086 = vld [vmem:[%s7 + $0x2f8] sm:$0xff]
  %v1087 = vld [vmem:[%s7 + $0x300] sm:$0xff]
  %v1088 = vld [vmem:[%s7 + $0x308] sm:$0xff]
  %v1089 = vld [vmem:[%s7 + $0x310] sm:$0xff]
  %v1090 = vld [vmem:[%s7 + $0x318] sm:$0xff]
  %v1091 = vld [vmem:[%s7 + $0x320] sm:$0xff]
  %v1092 = vld [vmem:[%s7 + $0x328] sm:$0xff]
  %v1093 = vld [vmem:[%s7 + $0x330] sm:$0xff]
  %v1094 = vld [vmem:[%s7 + $0x338] sm:$0xff]
  %v1095 = vld [vmem:[%s7 + $0x340] sm:$0xff]
  %v1096 = vld [vmem:[%s7 + $0x348] sm:$0xff]
  %v1097 = vld [vmem:[%s7 + $0x350] sm:$0xff]
  %v1098 = vld [vmem:[%s7 + $0x358] sm:$0xff]
  %v1099 = vld [vmem:[%s7 + $0x360] sm:$0xff]
  %v1100 = vld [vmem:[%s7 + $0x368] sm:$0xff]
  %v1101 = vld [vmem:[%s7 + $0x370] sm:$0xff]
  %v1102 = vld [vmem:[%s7 + $0x378] sm:$0xff]
  %v1103 = vld [vmem:[%s7 + $0x380] sm:$0xff]
  %v1104 = vld [vmem:[%s7 + $0x388] sm:$0xff]
  %v1105 = vld [vmem:[%s7 + $0x390] sm:$0xff]
  %v1106 = vld [vmem:[%s7 + $0x398] sm:$0xff]
  %v1107 = vld [vmem:[%s7 + $0x3a0] sm:$0xff]
  %v1108 = vld [vmem:[%s7 + $0x3a8] sm:$0xff]
  %v1109 = vld [vmem:[%s7 + $0x3b0] sm:$0xff]
  %v1110 = vld [vmem:[%s7 + $0x3b8] sm:$0xff]
  %v1111 = vld [vmem:[%s7 + $0x3c0] sm:$0xff]
  %v1112 = vld [vmem:[%s7 + $0x3c8] sm:$0xff]
  %v1113 = vld [vmem:[%s7 + $0x3d0] sm:$0xff]
  %v1114 = vld [vmem:[%s7 + $0x3d8] sm:$0xff]
  %v1115 = vld [vmem:[%s7 + $0x3e0] sm:$0xff]
  %v1116 = vld [vmem:[%s7 + $0x3e8] sm:$0xff]
  %v1117 = vld [vmem:[%s7 + $0x3f0] sm:$0xff]
  %v1118 = vld [vmem:[%s7 + $0x3f8] sm:$0xff]
  %v1119 = vld [vmem:[%s7 + $0x400] sm:$0xff]
  %v1120 = vld [vmem:[%s7 + $0x408] sm:$0xff]
  %v1121 = vld [vmem:[%s7 + $0x410] sm:$0xff]
  %v1122 = vld [vmem:[%s7 + $0x418] sm:$0xff]
  %v1123 = vld [vmem:[%s7 + $0x420] sm:$0xff]
  %v1124 = vld [vmem:[%s7 + $0x428] sm:$0xff]
  %v1125 = vld [vmem:[%s7 + $0x430] sm:$0xff]
  %v1126 = vld [vmem:[%s7 + $0x438] sm:$0xff]
  %v1127 = vld [vmem:[%s7 + $0x440] sm:$0xff]
  %v1128 = vld [vmem:[%s7 + $0x448] sm:$0xff]
  %v1129 = vld [vmem:[%s7 + $0x450] sm:$0xff]
  %v1130 = vld [vmem:[%s7 + $0x458] sm:$0xff]
  %v1131 = vld [vmem:[%s7 + $0x460] sm:$0xff]
  %v1132 = vld [vmem:[%s7 + $0x468] sm:$0xff]
  %v1133 = vld [vmem:[%s7 + $0x470] sm:$0xff]
  %v1134 = vld [vmem:[%s7 + $0x478] sm:$0xff]
  %v1135 = vld [vmem:[%s7 + $0x480] sm:$0xff]
  %v1136 = vld [vmem:[%s7 + $0x488] sm:$0xff]
  %v1137 = vld [vmem:[%s7 + $0x490] sm:$0xff]
  %v1138 = vld [vmem:[%s7 + $0x498] sm:$0xff]
  %v1139 = vld [vmem:[%s7 + $0x4a0] sm:$0xff]
  %v1140 = vld [vmem:[%s7 + $0x4a8] sm:$0xff]
  %v1141 = vld [vmem:[%s7 + $0x4b0] sm:$0xff]
  %v1142 = vld [vmem:[%s7 + $0x4b8] sm:$0xff]
  %v1143 = vld [vmem:[%s7 + $0x4c0] sm:$0xff]
  %v1144 = vld [vmem:[%s7 + $0x4c8] sm:$0xff]
  %v1145 = vld [vmem:[%s7 + $0x4d0] sm:$0xff]
  %v1146 = vld [vmem:[%s7 + $0x4d8] sm:$0xff]
  %v1147 = vld [vmem:[%s7 + $0x4e0] sm:$0xff]
  %v1148 = vld [vmem:[%s7 + $0x4e8] sm:$0xff]
  %v1149 = vld [vmem:[%s7 + $0x4f0] sm:$0xff]
  %v1150 = vld [vmem:[%s7 + $0x4f8] sm:$0xff]
  %v1151 = vld [vmem:[%s7 + $0x500] sm:$0xff]
  %v1152 = vld [vmem:[%s7 + $0x508] sm:$0xff]
  %v1153 = vld [vmem:[%s7 + $0x510] sm:$0xff]
  %v1154 = vld [vmem:[%s7 + $0x518] sm:$0xff]
  %v1155 = vld [vmem:[%s7 + $0x520] sm:$0xff]
  %v1156 = vld [vmem:[%s7 + $0x528] sm:$0xff]
  %v1157 = vld [vmem:[%s7 + $0x530] sm:$0xff]
  %v1158 = vld [vmem:[%s7 + $0x538] sm:$0xff]
  %v1159 = vld [vmem:[%s7 + $0x540] sm:$0xff]
  %v1160 = vld [vmem:[%s7 + $0x548] sm:$0xff]
  %v1161 = vld [vmem:[%s7 + $0x550] sm:$0xff]
  %v1162 = vld [vmem:[%s7 + $0x558] sm:$0xff]
  %v1163 = vld [vmem:[%s7 + $0x560] sm:$0xff]
  %v1164 = vld [vmem:[%s7 + $0x568] sm:$0xff]
  %v1165 = vld [vmem:[%s7 + $0x570] sm:$0xff]
  %v1166 = vld [vmem:[%s7 + $0x578] sm:$0xff]
  %v1167 = vld [vmem:[%s7 + $0x580] sm:$0xff]
  %v1168 = vld [vmem:[%s7 + $0x588] sm:$0xff]
  %v1169 = vld [vmem:[%s7 + $0x590] sm:$0xff]
  %v1170 = vld [vmem:[%s7 + $0x598] sm:$0xff]
  %v1171 = vld [vmem:[%s7 + $0x5a0] sm:$0xff]
  %v1172 = vld [vmem:[%s7 + $0x5a8] sm:$0xff]
  %v1173 = vld [vmem:[%s7 + $0x5b0] sm:$0xff]
  %v1174 = vld [vmem:[%s7 + $0x5b8] sm:$0xff]
  %v1175 = vld [vmem:[%s7 + $0x5c0] sm:$0xff]
  %v1176 = vld [vmem:[%s7 + $0x5c8] sm:$0xff]
  %v1177 = vld [vmem:[%s7 + $0x5d0] sm:$0xff]
  %v1178 = vld [vmem:[%s7 + $0x5d8] sm:$0xff]
  %v1179 = vld [vmem:[%s7 + $0x5e0] sm:$0xff]
  %v1180 = vld [vmem:[%s7 + $0x5e8] sm:$0xff]
  %v1181 = vld [vmem:[%s7 + $0x5f0] sm:$0xff]
  %v1182 = vld [vmem:[%s7 + $0x5f8] sm:$0xff]
  %v1183 = vld [vmem:[%s7 + $0x600] sm:$0xff]
  %v1184 = vld [vmem:[%s7 + $0x608] sm:$0xff]
  %v1185 = vld [vmem:[%s7 + $0x610] sm:$0xff]
  %v1186 = vld [vmem:[%s7 + $0x618] sm:$0xff]
  %v1187 = vld [vmem:[%s7 + $0x620] sm:$0xff]
  %v1188 = vld [vmem:[%s7 + $0x628] sm:$0xff]
  %v1189 = vld [vmem:[%s7 + $0x630] sm:$0xff]
  %v1190 = vld [vmem:[%s7 + $0x638] sm:$0xff]
  %v1191 = vld [vmem:[%s7 + $0x640] sm:$0xff]
  %v1192 = vld [vmem:[%s7 + $0x648] sm:$0xff]
  %v1193 = vld [vmem:[%s7 + $0x650] sm:$0xff]
  %v1194 = vld [vmem:[%s7 + $0x658] sm:$0xff]
  %v1195 = vld [vmem:[%s7 + $0x660] sm:$0xff]
  %v1196 = vld [vmem:[%s7 + $0x668] sm:$0xff]
  %v1197 = vld [vmem:[%s7 + $0x670] sm:$0xff]
  %v1198 = vld [vmem:[%s7 + $0x678] sm:$0xff]
  %v1199 = vld [vmem:[%s7 + $0x680] sm:$0xff]
  %v1200 = vld [vmem:[%s7 + $0x688] sm:$0xff]
  %v1201 = vld [vmem:[%s7 + $0x690] sm:$0xff]
  %v1202 = vld [vmem:[%s7 + $0x698] sm:$0xff]
  %v1203 = vld [vmem:[%s7 + $0x6a0] sm:$0xff]
  %v1204 = vld [vmem:[%s7 + $0x6a8] sm:$0xff]
  %v1205 = vld [vmem:[%s7 + $0x6b0] sm:$0xff]
  %v1206 = vld [vmem:[%s7 + $0x6b8] sm:$0xff]
  %v1207 = vld [vmem:[%s7 + $0x6c0] sm:$0xff]
  %v1208 = vld [vmem:[%s7 + $0x6c8] sm:$0xff]
  %v1209 = vld [vmem:[%s7 + $0x6d0] sm:$0xff]
  %v1210 = vld [vmem:[%s7 + $0x6d8] sm:$0xff]
  %v1211 = vld [vmem:[%s7 + $0x6e0] sm:$0xff]
  %v1212 = vld [vmem:[%s7 + $0x6e8] sm:$0xff]
  %v1213 = vld [vmem:[%s7 + $0x6f0] sm:$0xff]
  %v1214 = vld [vmem:[%s7 + $0x6f8] sm:$0xff]
  %v1215 = vld [vmem:[%s7 + $0x700] sm:$0xff]
  %v1216 = vld [vmem:[%s7 + $0x708] sm:$0xff]
  %v1217 = vld [vmem:[%s7 + $0x710] sm:$0xff]
  %v1218 = vld [vmem:[%s7 + $0x718] sm:$0xff]
  %v1219 = vld [vmem:[%s7 + $0x720] sm:$0xff]
  %v1220 = vld [vmem:[%s7 + $0x728] sm:$0xff]
  %v1221 = vld [vmem:[%s7 + $0x730] sm:$0xff]
  %v1222 = vld [vmem:[%s7 + $0x738] sm:$0xff]
  %v1223 = vld [vmem:[%s7 + $0x740] sm:$0xff]
  %v1224 = vld [vmem:[%s7 + $0x748] sm:$0xff]
  %v1225 = vld [vmem:[%s7 + $0x750] sm:$0xff]
  %v1226 = vld [vmem:[%s7 + $0x758] sm:$0xff]
  %v1227 = vld [vmem:[%s7 + $0x760] sm:$0xff]
  %v1228 = vld [vmem:[%s7 + $0x768] sm:$0xff]
  %v1229 = vld [vmem:[%s7 + $0x770] sm:$0xff]
  %v1230 = vld [vmem:[%s7 + $0x778] sm:$0xff]
  %v1231 = vld [vmem:[%s7 + $0x780] sm:$0xff]
  %v1232 = vld [vmem:[%s7 + $0x788] sm:$0xff]
  %v1233 = vld [vmem:[%s7 + $0x790] sm:$0xff]
  %v1234 = vld [vmem:[%s7 + $0x798] sm:$0xff]
  %v1235 = vld [vmem:[%s7 + $0x7a0] sm:$0xff]
  %v1236 = vld [vmem:[%s7 + $0x7a8] sm:$0xff]
  %v1237 = vld [vmem:[%s7 + $0x7b0] sm:$0xff]
  %v1238 = vld [vmem:[%s7 + $0x7b8] sm:$0xff]
  %v1239 = vld [vmem:[%s7 + $0x7c0] sm:$0xff]
  %v1240 = vld [vmem:[%s7 + $0x7c8] sm:$0xff]
  %v1241 = vld [vmem:[%s7 + $0x7d0] sm:$0xff]
  %v1242 = vld [vmem:[%s7 + $0x7d8] sm:$0xff]
  %v1243 = vld [vmem:[%s7 + $0x7e0] sm:$0xff]
  %v1244 = vld [vmem:[%s7 + $0x7e8] sm:$0xff]
  %v1245 = vld [vmem:[%s7 + $0x7f0] sm:$0xff]
  %v1246 = vld [vmem:[%s7 + $0x7f8] sm:$0xff]
  %vm1247 = vcmask 523264
  %v1248 = vsel %vm1247, %v818, 0
  %v1251 = vsel %vm1247, %v991, 0
  %v1254 = vsel %vm1247, %v992, 0
  %v1257 = vsel %vm1247, %v993, 0
  %v1260 = vsel %vm1247, %v994, 0
  %v1263 = vsel %vm1247, %v995, 0
  %v1266 = vsel %vm1247, %v996, 0
  %v1269 = vsel %vm1247, %v997, 0
  %v1272 = vsel %vm1247, %v998, 0
  %1274 = vmatprep.subr.mxu0 0.0
  %1275 = vmatpush1.xpose.msra.mxu0 %v1251
  %1276 = vmatprep.subr.mxu0 0.0
  %1277 = vmatpush1.xpose.msra.mxu0 %v1254
  %1278 = vmatprep.subr.mxu0 0.0
  %1279 = vmatpush1.xpose.msra.mxu0 %v1257
  %1280 = vmatprep.subr.mxu0 0.0
  %1281 = vmatpush1.xpose.msra.mxu0 %v1260
  %1282 = vmatprep.subr.mxu0 0.0
  %1283 = vmatpush1.xpose.msra.mxu0 %v1263
  %1284 = vmatprep.subr.mxu0 0.0
  %1285 = vmatpush1.xpose.msra.mxu0 %v1266
  %1286 = vmatprep.subr.mxu0 0.0
  %1287 = vmatpush1.xpose.msra.mxu0 %v1269
  %1288 = vmatprep.subr.mxu0 0.0
  %1289 = vmatpush1.xpose.msra.mxu0 %v1272
  %1290 = vmatprep.subr.mxu0 0.0
  %1291 = vmatpush1.xpose.msra.mxu0 0.0
  %1292 = vmatprep.subr.mxu0 0.0
  %1293 = vmatpush1.xpose.msra.mxu0 0.0
  %1294 = vmatprep.subr.mxu0 0.0
  %1295 = vmatpush1.xpose.msra.mxu0 0.0
  %1296 = vmatprep.subr.mxu0 0.0
  %1297 = vmatpush1.xpose.msra.mxu0 0.0
  %1298 = vmatprep.subr.mxu0 0.0
  %1299 = vmatpush1.xpose.msra.mxu0 0.0
  %1300 = vmatprep.subr.mxu0 0.0
  %1301 = vmatpush1.xpose.msra.mxu0 0.0
  %1302 = vmatprep.subr.mxu0 0.0
  %1303 = vmatpush1.xpose.msra.mxu0 0.0
  %1304 = vmatprep.subr.mxu0 0.0
  %1305 = vmatpush1.xpose.msra.mxu0 0.0
  %1306 = vmatprep.subr.mxu0 0.0
  %1307 = vmatpush1.xpose.msra.mxu0 0.0
  %1308 = vmatprep.subr.mxu0 0.0
  %1309 = vmatpush1.xpose.msra.mxu0 0.0
  %1310 = vmatprep.subr.mxu0 0.0
  %1311 = vmatpush1.xpose.msra.mxu0 0.0
  %1312 = vmatprep.subr.mxu0 0.0
  %1313 = vmatpush1.xpose.msra.mxu0 0.0
  %1314 = vmatprep.subr.mxu0 0.0
  %1315 = vmatpush1.xpose.msra.mxu0 0.0
  %1316 = vmatprep.subr.mxu0 0.0
  %1317 = vmatpush1.xpose.msra.mxu0 0.0
  %1318 = vmatprep.subr.mxu0 0.0
  %1319 = vmatpush1.xpose.msra.mxu0 0.0
  %1320 = vmatprep.subr.mxu0 0.0
  %1321 = vmatpush1.xpose.msra.mxu0 0.0
  %1322 = vmatprep.subr.mxu0 0.0
  %1323 = vmatpush1.xpose.msra.mxu0 0.0
  %1324 = vmatprep.subr.mxu0 0.0
  %1325 = vmatpush1.xpose.msra.mxu0 0.0
  %1326 = vmatprep.subr.mxu0 0.0
  %1327 = vmatpush1.xpose.msra.mxu0 0.0
  %1328 = vmatprep.subr.mxu0 0.0
  %1329 = vmatpush1.xpose.msra.mxu0 0.0
  %1330 = vmatprep.subr.mxu0 0.0
  %1331 = vmatpush1.xpose.msra.mxu0 0.0
  %1332 = vmatprep.subr.mxu0 0.0
  %1333 = vmatpush1.xpose.msra.mxu0 0.0
  %1334 = vmatprep.subr.mxu0 0.0
  %1335 = vmatpush1.xpose.msra.mxu0 0.0
  %1336 = vmatprep.subr.mxu0 0.0
  %1337 = vmatpush1.xpose.msra.mxu0 0.0
  %1338 = vmatprep.mubr.f32.mxu0 0.0
  %1339 = vmatmul.mubr.f32.gmra.mrb[0].mxu0 %v1248
  %v1340 = vpop.f32.mrb[0].mxu0
  %v1341 = vadd.f32 0.0, %v1340
  %v1342 = vpop.f32.mrb[0].mxu0
  %1343 = vdwg.mxu0
  %v1344 = vsel %vm1247, %v832, 0
  %v1347 = vsel %vm1247, %v999, 0
  %v1350 = vsel %vm1247, %v1000, 0
  %v1353 = vsel %vm1247, %v1001, 0
  %v1356 = vsel %vm1247, %v1002, 0
  %v1359 = vsel %vm1247, %v1003, 0
  %v1362 = vsel %vm1247, %v1004, 0
  %v1365 = vsel %vm1247, %v1005, 0
  %v1368 = vsel %vm1247, %v1006, 0
  %1370 = vmatprep.subr.mxu0 0.0
  %1371 = vmatpush1.xpose.msra.mxu0 %v1347
  %1372 = vmatprep.subr.mxu0 0.0
  %1373 = vmatpush1.xpose.msra.mxu0 %v1350
  %1374 = vmatprep.subr.mxu0 0.0
  %1375 = vmatpush1.xpose.msra.mxu0 %v1353
  %1376 = vmatprep.subr.mxu0 0.0
  %1377 = vmatpush1.xpose.msra.mxu0 %v1356
  %1378 = vmatprep.subr.mxu0 0.0
  %1379 = vmatpush1.xpose.msra.mxu0 %v1359
  %1380 = vmatprep.subr.mxu0 0.0
  %1381 = vmatpush1.xpose.msra.mxu0 %v1362
  %1382 = vmatprep.subr.mxu0 0.0
  %1383 = vmatpush1.xpose.msra.mxu0 %v1365
  %1384 = vmatprep.subr.mxu0 0.0
  %1385 = vmatpush1.xpose.msra.mxu0 %v1368
  %1386 = vmatprep.subr.mxu0 0.0
  %1387 = vmatpush1.xpose.msra.mxu0 0.0
  %1388 = vmatprep.subr.mxu0 0.0
  %1389 = vmatpush1.xpose.msra.mxu0 0.0
  %1390 = vmatprep.subr.mxu0 0.0
  %1391 = vmatpush1.xpose.msra.mxu0 0.0
  %1392 = vmatprep.subr.mxu0 0.0
  %1393 = vmatpush1.xpose.msra.mxu0 0.0
  %1394 = vmatprep.subr.mxu0 0.0
  %1395 = vmatpush1.xpose.msra.mxu0 0.0
  %1396 = vmatprep.subr.mxu0 0.0
  %1397 = vmatpush1.xpose.msra.mxu0 0.0
  %1398 = vmatprep.subr.mxu0 0.0
  %1399 = vmatpush1.xpose.msra.mxu0 0.0
  %1400 = vmatprep.subr.mxu0 0.0
  %1401 = vmatpush1.xpose.msra.mxu0 0.0
  %1402 = vmatprep.subr.mxu0 0.0
  %1403 = vmatpush1.xpose.msra.mxu0 0.0
  %1404 = vmatprep.subr.mxu0 0.0
  %1405 = vmatpush1.xpose.msra.mxu0 0.0
  %1406 = vmatprep.subr.mxu0 0.0
  %1407 = vmatpush1.xpose.msra.mxu0 0.0
  %1408 = vmatprep.subr.mxu0 0.0
  %1409 = vmatpush1.xpose.msra.mxu0 0.0
  %1410 = vmatprep.subr.mxu0 0.0
  %1411 = vmatpush1.xpose.msra.mxu0 0.0
  %1412 = vmatprep.subr.mxu0 0.0
  %1413 = vmatpush1.xpose.msra.mxu0 0.0
  %1414 = vmatprep.subr.mxu0 0.0
  %1415 = vmatpush1.xpose.msra.mxu0 0.0
  %1416 = vmatprep.subr.mxu0 0.0
  %1417 = vmatpush1.xpose.msra.mxu0 0.0
  %1418 = vmatprep.subr.mxu0 0.0
  %1419 = vmatpush1.xpose.msra.mxu0 0.0
  %1420 = vmatprep.subr.mxu0 0.0
  %1421 = vmatpush1.xpose.msra.mxu0 0.0
  %1422 = vmatprep.subr.mxu0 0.0
  %1423 = vmatpush1.xpose.msra.mxu0 0.0
  %1424 = vmatprep.subr.mxu0 0.0
  %1425 = vmatpush1.xpose.msra.mxu0 0.0
  %1426 = vmatprep.subr.mxu0 0.0
  %1427 = vmatpush1.xpose.msra.mxu0 0.0
  %1428 = vmatprep.subr.mxu0 0.0
  %1429 = vmatpush1.xpose.msra.mxu0 0.0
  %1430 = vmatprep.subr.mxu0 0.0
  %1431 = vmatpush1.xpose.msra.mxu0 0.0
  %1432 = vmatprep.subr.mxu0 0.0
  %1433 = vmatpush1.xpose.msra.mxu0 0.0
  %1434 = vmatprep.mubr.f32.mxu0 0.0
  %1435 = vmatmul.mubr.f32.gmra.mrb[0].mxu0 %v1344
  %v1436 = vpop.f32.mrb[0].mxu0
  %v1437 = vadd.f32 0.0, %v1436
  %v1438 = vpop.f32.mrb[0].mxu0
  %1439 = vdwg.mxu0
  %v1440 = vsel %vm1247, %v840, 0
  %v1443 = vsel %vm1247, %v1007, 0
  %v1446 = vsel %vm1247, %v1008, 0
  %v1449 = vsel %vm1247, %v1009, 0
  %v1452 = vsel %vm1247, %v1010, 0
  %v1455 = vsel %vm1247, %v1011, 0
  %v1458 = vsel %vm1247, %v1012, 0
  %v1461 = vsel %vm1247, %v1013, 0
  %v1464 = vsel %vm1247, %v1014, 0
  %1466 = vmatprep.subr.mxu0 0.0
  %1467 = vmatpush1.xpose.msra.mxu0 %v1443
  %1468 = vmatprep.subr.mxu0 0.0
  %1469 = vmatpush1.xpose.msra.mxu0 %v1446
  %1470 = vmatprep.subr.mxu0 0.0
  %1471 = vmatpush1.xpose.msra.mxu0 %v1449
  %1472 = vmatprep.subr.mxu0 0.0
  %1473 = vmatpush1.xpose.msra.mxu0 %v1452
  %1474 = vmatprep.subr.mxu0 0.0
  %1475 = vmatpush1.xpose.msra.mxu0 %v1455
  %1476 = vmatprep.subr.mxu0 0.0
  %1477 = vmatpush1.xpose.msra.mxu0 %v1458
  %1478 = vmatprep.subr.mxu0 0.0
  %1479 = vmatpush1.xpose.msra.mxu0 %v1461
  %1480 = vmatprep.subr.mxu0 0.0
  %1481 = vmatpush1.xpose.msra.mxu0 %v1464
  %1482 = vmatprep.subr.mxu0 0.0
  %1483 = vmatpush1.xpose.msra.mxu0 0.0
  %1484 = vmatprep.subr.mxu0 0.0
  %1485 = vmatpush1.xpose.msra.mxu0 0.0
  %1486 = vmatprep.subr.mxu0 0.0
  %1487 = vmatpush1.xpose.msra.mxu0 0.0
  %1488 = vmatprep.subr.mxu0 0.0
  %1489 = vmatpush1.xpose.msra.mxu0 0.0
  %1490 = vmatprep.subr.mxu0 0.0
  %1491 = vmatpush1.xpose.msra.mxu0 0.0
  %1492 = vmatprep.subr.mxu0 0.0
  %1493 = vmatpush1.xpose.msra.mxu0 0.0
  %1494 = vmatprep.subr.mxu0 0.0
  %1495 = vmatpush1.xpose.msra.mxu0 0.0
  %1496 = vmatprep.subr.mxu0 0.0
  %1497 = vmatpush1.xpose.msra.mxu0 0.0
  %1498 = vmatprep.subr.mxu0 0.0
  %1499 = vmatpush1.xpose.msra.mxu0 0.0
  %1500 = vmatprep.subr.mxu0 0.0
  %1501 = vmatpush1.xpose.msra.mxu0 0.0
  %1502 = vmatprep.subr.mxu0 0.0
  %1503 = vmatpush1.xpose.msra.mxu0 0.0
  %1504 = vmatprep.subr.mxu0 0.0
  %1505 = vmatpush1.xpose.msra.mxu0 0.0
  %1506 = vmatprep.subr.mxu0 0.0
  %1507 = vmatpush1.xpose.msra.mxu0 0.0
  %1508 = vmatprep.subr.mxu0 0.0
  %1509 = vmatpush1.xpose.msra.mxu0 0.0
  %1510 = vmatprep.subr.mxu0 0.0
  %1511 = vmatpush1.xpose.msra.mxu0 0.0
  %1512 = vmatprep.subr.mxu0 0.0
  %1513 = vmatpush1.xpose.msra.mxu0 0.0
  %1514 = vmatprep.subr.mxu0 0.0
  %1515 = vmatpush1.xpose.msra.mxu0 0.0
  %1516 = vmatprep.subr.mxu0 0.0
  %1517 = vmatpush1.xpose.msra.mxu0 0.0
  %1518 = vmatprep.subr.mxu0 0.0
  %1519 = vmatpush1.xpose.msra.mxu0 0.0
  %1520 = vmatprep.subr.mxu0 0.0
  %1521 = vmatpush1.xpose.msra.mxu0 0.0
  %1522 = vmatprep.subr.mxu0 0.0
  %1523 = vmatpush1.xpose.msra.mxu0 0.0
  %1524 = vmatprep.subr.mxu0 0.0
  %1525 = vmatpush1.xpose.msra.mxu0 0.0
  %1526 = vmatprep.subr.mxu0 0.0
  %1527 = vmatpush1.xpose.msra.mxu0 0.0
  %1528 = vmatprep.subr.mxu0 0.0
  %1529 = vmatpush1.xpose.msra.mxu0 0.0
  %1530 = vmatprep.mubr.f32.mxu0 0.0
  %1531 = vmatmul.mubr.f32.gmra.mrb[0].mxu0 %v1440
  %v1532 = vpop.f32.mrb[0].mxu0
  %v1533 = vadd.f32 0.0, %v1532
  %v1534 = vpop.f32.mrb[0].mxu0
  %1535 = vdwg.mxu0
  %v1536 = vsel %vm1247, %v842, 0
  %v1539 = vsel %vm1247, %v1015, 0
  %v1542 = vsel %vm1247, %v1016, 0
  %v1545 = vsel %vm1247, %v1017, 0
  %v1548 = vsel %vm1247, %v1018, 0
  %v1551 = vsel %vm1247, %v1019, 0
  %v1554 = vsel %vm1247, %v1020, 0
  %v1557 = vsel %vm1247, %v1021, 0
  %v1560 = vsel %vm1247, %v1022, 0
  %1562 = vmatprep.subr.mxu0 0.0
  %1563 = vmatpush1.xpose.msra.mxu0 %v1539
  %1564 = vmatprep.subr.mxu0 0.0
  %1565 = vmatpush1.xpose.msra.mxu0 %v1542
  %1566 = vmatprep.subr.mxu0 0.0
  %1567 = vmatpush1.xpose.msra.mxu0 %v1545
  %1568 = vmatprep.subr.mxu0 0.0
  %1569 = vmatpush1.xpose.msra.mxu0 %v1548
  %1570 = vmatprep.subr.mxu0 0.0
  %1571 = vmatpush1.xpose.msra.mxu0 %v1551
  %1572 = vmatprep.subr.mxu0 0.0
  %1573 = vmatpush1.xpose.msra.mxu0 %v1554
  %1574 = vmatprep.subr.mxu0 0.0
  %1575 = vmatpush1.xpose.msra.mxu0 %v1557
  %1576 = vmatprep.subr.mxu0 0.0
  %1577 = vmatpush1.xpose.msra.mxu0 %v1560
  %1578 = vmatprep.subr.mxu0 0.0
  %1579 = vmatpush1.xpose.msra.mxu0 0.0
  %1580 = vmatprep.subr.mxu0 0.0
  %1581 = vmatpush1.xpose.msra.mxu0 0.0
  %1582 = vmatprep.subr.mxu0 0.0
  %1583 = vmatpush1.xpose.msra.mxu0 0.0
  %1584 = vmatprep.subr.mxu0 0.0
  %1585 = vmatpush1.xpose.msra.mxu0 0.0
  %1586 = vmatprep.subr.mxu0 0.0
  %1587 = vmatpush1.xpose.msra.mxu0 0.0
  %1588 = vmatprep.subr.mxu0 0.0
  %1589 = vmatpush1.xpose.msra.mxu0 0.0
  %1590 = vmatprep.subr.mxu0 0.0
  %1591 = vmatpush1.xpose.msra.mxu0 0.0
  %1592 = vmatprep.subr.mxu0 0.0
  %1593 = vmatpush1.xpose.msra.mxu0 0.0
  %1594 = vmatprep.subr.mxu0 0.0
  %1595 = vmatpush1.xpose.msra.mxu0 0.0
  %1596 = vmatprep.subr.mxu0 0.0
  %1597 = vmatpush1.xpose.msra.mxu0 0.0
  %1598 = vmatprep.subr.mxu0 0.0
  %1599 = vmatpush1.xpose.msra.mxu0 0.0
  %1600 = vmatprep.subr.mxu0 0.0
  %1601 = vmatpush1.xpose.msra.mxu0 0.0
  %1602 = vmatprep.subr.mxu0 0.0
  %1603 = vmatpush1.xpose.msra.mxu0 0.0
  %1604 = vmatprep.subr.mxu0 0.0
  %1605 = vmatpush1.xpose.msra.mxu0 0.0
  %1606 = vmatprep.subr.mxu0 0.0
  %1607 = vmatpush1.xpose.msra.mxu0 0.0
  %1608 = vmatprep.subr.mxu0 0.0
  %1609 = vmatpush1.xpose.msra.mxu0 0.0
  %1610 = vmatprep.subr.mxu0 0.0
  %1611 = vmatpush1.xpose.msra.mxu0 0.0
  %1612 = vmatprep.subr.mxu0 0.0
  %1613 = vmatpush1.xpose.msra.mxu0 0.0
  %1614 = vmatprep.subr.mxu0 0.0
  %1615 = vmatpush1.xpose.msra.mxu0 0.0
  %1616 = vmatprep.subr.mxu0 0.0
  %1617 = vmatpush1.xpose.msra.mxu0 0.0
  %1618 = vmatprep.subr.mxu0 0.0
  %1619 = vmatpush1.xpose.msra.mxu0 0.0
  %1620 = vmatprep.subr.mxu0 0.0
  %1621 = vmatpush1.xpose.msra.mxu0 0.0
  %1622 = vmatprep.subr.mxu0 0.0
  %1623 = vmatpush1.xpose.msra.mxu0 0.0
  %1624 = vmatprep.subr.mxu0 0.0
  %1625 = vmatpush1.xpose.msra.mxu0 0.0
  %1626 = vmatprep.mubr.f32.mxu0 0.0
  %1627 = vmatmul.mubr.f32.gmra.mrb[0].mxu0 %v1536
  %v1628 = vpop.f32.mrb[0].mxu0
  %v1629 = vadd.f32 0.0, %v1628
  %v1630 = vpop.f32.mrb[0].mxu0
  %1631 = vdwg.mxu0
  %v1632 = vsel %vm1247, %v825, 0
  %v1635 = vsel %vm1247, %v1023, 0
  %v1638 = vsel %vm1247, %v1024, 0
  %v1641 = vsel %vm1247, %v1025, 0
  %v1644 = vsel %vm1247, %v1026, 0
  %v1647 = vsel %vm1247, %v1027, 0
  %v1650 = vsel %vm1247, %v1028, 0
  %v1653 = vsel %vm1247, %v1029, 0
  %v1656 = vsel %vm1247, %v1030, 0
  %1658 = vmatprep.subr.mxu0 0.0
  %1659 = vmatpush1.xpose.msra.mxu0 %v1635
  %1660 = vmatprep.subr.mxu0 0.0
  %1661 = vmatpush1.xpose.msra.mxu0 %v1638
  %1662 = vmatprep.subr.mxu0 0.0
  %1663 = vmatpush1.xpose.msra.mxu0 %v1641
  %1664 = vmatprep.subr.mxu0 0.0
  %1665 = vmatpush1.xpose.msra.mxu0 %v1644
  %1666 = vmatprep.subr.mxu0 0.0
  %1667 = vmatpush1.xpose.msra.mxu0 %v1647
  %1668 = vmatprep.subr.mxu0 0.0
  %1669 = vmatpush1.xpose.msra.mxu0 %v1650
  %1670 = vmatprep.subr.mxu0 0.0
  %1671 = vmatpush1.xpose.msra.mxu0 %v1653
  %1672 = vmatprep.subr.mxu0 0.0
  %1673 = vmatpush1.xpose.msra.mxu0 %v1656
  %1674 = vmatprep.subr.mxu0 0.0
  %1675 = vmatpush1.xpose.msra.mxu0 0.0
  %1676 = vmatprep.subr.mxu0 0.0
  %1677 = vmatpush1.xpose.msra.mxu0 0.0
  %1678 = vmatprep.subr.mxu0 0.0
  %1679 = vmatpush1.xpose.msra.mxu0 0.0
  %1680 = vmatprep.subr.mxu0 0.0
  %1681 = vmatpush1.xpose.msra.mxu0 0.0
  %1682 = vmatprep.subr.mxu0 0.0
  %1683 = vmatpush1.xpose.msra.mxu0 0.0
  %1684 = vmatprep.subr.mxu0 0.0
  %1685 = vmatpush1.xpose.msra.mxu0 0.0
  %1686 = vmatprep.subr.mxu0 0.0
  %1687 = vmatpush1.xpose.msra.mxu0 0.0
  %1688 = vmatprep.subr.mxu0 0.0
  %1689 = vmatpush1.xpose.msra.mxu0 0.0
  %1690 = vmatprep.subr.mxu0 0.0
  %1691 = vmatpush1.xpose.msra.mxu0 0.0
  %1692 = vmatprep.subr.mxu0 0.0
  %1693 = vmatpush1.xpose.msra.mxu0 0.0
  %1694 = vmatprep.subr.mxu0 0.0
  %1695 = vmatpush1.xpose.msra.mxu0 0.0
  %1696 = vmatprep.subr.mxu0 0.0
  %1697 = vmatpush1.xpose.msra.mxu0 0.0
  %1698 = vmatprep.subr.mxu0 0.0
  %1699 = vmatpush1.xpose.msra.mxu0 0.0
  %1700 = vmatprep.subr.mxu0 0.0
  %1701 = vmatpush1.xpose.msra.mxu0 0.0
  %1702 = vmatprep.subr.mxu0 0.0
  %1703 = vmatpush1.xpose.msra.mxu0 0.0
  %1704 = vmatprep.subr.mxu0 0.0
  %1705 = vmatpush1.xpose.msra.mxu0 0.0
  %1706 = vmatprep.subr.mxu0 0.0
  %1707 = vmatpush1.xpose.msra.mxu0 0.0
  %1708 = vmatprep.subr.mxu0 0.0
  %1709 = vmatpush1.xpose.msra.mxu0 0.0
  %1710 = vmatprep.subr.mxu0 0.0
  %1711 = vmatpush1.xpose.msra.mxu0 0.0
  %1712 = vmatprep.subr.mxu0 0.0
  %1713 = vmatpush1.xpose.msra.mxu0 0.0
  %1714 = vmatprep.subr.mxu0 0.0
  %1715 = vmatpush1.xpose.msra.mxu0 0.0
  %1716 = vmatprep.subr.mxu0 0.0
  %1717 = vmatpush1.xpose.msra.mxu0 0.0
  %1718 = vmatprep.subr.mxu0 0.0
  %1719 = vmatpush1.xpose.msra.mxu0 0.0
  %1720 = vmatprep.subr.mxu0 0.0
  %1721 = vmatpush1.xpose.msra.mxu0 0.0
  %1722 = vmatprep.mubr.f32.mxu0 0.0
  %1723 = vmatmul.mubr.f32.gmra.mrb[0].mxu0 %v1632
  %v1724 = vpop.f32.mrb[0].mxu0
  %v1725 = vadd.f32 0.0, %v1724
  %v1726 = vpop.f32.mrb[0].mxu0
  %1727 = vdwg.mxu0
  %v1728 = vsel %vm1247, %v839, 0
  %v1731 = vsel %vm1247, %v1031, 0
  %v1734 = vsel %vm1247, %v1032, 0
  %v1737 = vsel %vm1247, %v1033, 0
  %v1740 = vsel %vm1247, %v1034, 0
  %v1743 = vsel %vm1247, %v1035, 0
  %v1746 = vsel %vm1247, %v1036, 0
  %v1749 = vsel %vm1247, %v1037, 0
  %v1752 = vsel %vm1247, %v1038, 0
  %1754 = vmatprep.subr.mxu0 0.0
  %1755 = vmatpush1.xpose.msra.mxu0 %v1731
  %1756 = vmatprep.subr.mxu0 0.0
  %1757 = vmatpush1.xpose.msra.mxu0 %v1734
  %1758 = vmatprep.subr.mxu0 0.0
  %1759 = vmatpush1.xpose.msra.mxu0 %v1737
  %1760 = vmatprep.subr.mxu0 0.0
  %1761 = vmatpush1.xpose.msra.mxu0 %v1740
  %1762 = vmatprep.subr.mxu0 0.0
  %1763 = vmatpush1.xpose.msra.mxu0 %v1743
  %1764 = vmatprep.subr.mxu0 0.0
  %1765 = vmatpush1.xpose.msra.mxu0 %v1746
  %1766 = vmatprep.subr.mxu0 0.0
  %1767 = vmatpush1.xpose.msra.mxu0 %v1749
  %1768 = vmatprep.subr.mxu0 0.0
  %1769 = vmatpush1.xpose.msra.mxu0 %v1752
  %1770 = vmatprep.subr.mxu0 0.0
  %1771 = vmatpush1.xpose.msra.mxu0 0.0
  %1772 = vmatprep.subr.mxu0 0.0
  %1773 = vmatpush1.xpose.msra.mxu0 0.0
  %1774 = vmatprep.subr.mxu0 0.0
  %1775 = vmatpush1.xpose.msra.mxu0 0.0
  %1776 = vmatprep.subr.mxu0 0.0
  %1777 = vmatpush1.xpose.msra.mxu0 0.0
  %1778 = vmatprep.subr.mxu0 0.0
  %1779 = vmatpush1.xpose.msra.mxu0 0.0
  %1780 = vmatprep.subr.mxu0 0.0
  %1781 = vmatpush1.xpose.msra.mxu0 0.0
  %1782 = vmatprep.subr.mxu0 0.0
  %1783 = vmatpush1.xpose.msra.mxu0 0.0
  %1784 = vmatprep.subr.mxu0 0.0
  %1785 = vmatpush1.xpose.msra.mxu0 0.0
  %1786 = vmatprep.subr.mxu0 0.0
  %1787 = vmatpush1.xpose.msra.mxu0 0.0
  %1788 = vmatprep.subr.mxu0 0.0
  %1789 = vmatpush1.xpose.msra.mxu0 0.0
  %1790 = vmatprep.subr.mxu0 0.0
  %1791 = vmatpush1.xpose.msra.mxu0 0.0
  %1792 = vmatprep.subr.mxu0 0.0
  %1793 = vmatpush1.xpose.msra.mxu0 0.0
  %1794 = vmatprep.subr.mxu0 0.0
  %1795 = vmatpush1.xpose.msra.mxu0 0.0
  %1796 = vmatprep.subr.mxu0 0.0
  %1797 = vmatpush1.xpose.msra.mxu0 0.0
  %1798 = vmatprep.subr.mxu0 0.0
  %1799 = vmatpush1.xpose.msra.mxu0 0.0
  %1800 = vmatprep.subr.mxu0 0.0
  %1801 = vmatpush1.xpose.msra.mxu0 0.0
  %1802 = vmatprep.subr.mxu0 0.0
  %1803 = vmatpush1.xpose.msra.mxu0 0.0
  %1804 = vmatprep.subr.mxu0 0.0
  %1805 = vmatpush1.xpose.msra.mxu0 0.0
  %1806 = vmatprep.subr.mxu0 0.0
  %1807 = vmatpush1.xpose.msra.mxu0 0.0
  %1808 = vmatprep.subr.mxu0 0.0
  %1809 = vmatpush1.xpose.msra.mxu0 0.0
  %1810 = vmatprep.subr.mxu0 0.0
  %1811 = vmatpush1.xpose.msra.mxu0 0.0
  %1812 = vmatprep.subr.mxu0 0.0
  %1813 = vmatpush1.xpose.msra.mxu0 0.0
  %1814 = vmatprep.subr.mxu0 0.0
  %1815 = vmatpush1.xpose.msra.mxu0 0.0
  %1816 = vmatprep.subr.mxu0 0.0
  %1817 = vmatpush1.xpose.msra.mxu0 0.0
  %1818 = vmatprep.mubr.f32.mxu0 0.0
  %1819 = vmatmul.mubr.f32.gmra.mrb[0].mxu0 %v1728
  %v1820 = vpop.f32.mrb[0].mxu0
  %v1821 = vadd.f32 0.0, %v1820
  %v1822 = vpop.f32.mrb[0].mxu0
  %1823 = vdwg.mxu0
  %v1824 = vsel %vm1247, %v841, 0
  %v1827 = vsel %vm1247, %v1039, 0
  %v1830 = vsel %vm1247, %v1040, 0
  %v1833 = vsel %vm1247, %v1041, 0
  %v1836 = vsel %vm1247, %v1042, 0
  %v1839 = vsel %vm1247, %v1043, 0
  %v1842 = vsel %vm1247, %v1044, 0
  %v1845 = vsel %vm1247, %v1045, 0
  %v1848 = vsel %vm1247, %v1046, 0
  %1850 = vmatprep.subr.mxu0 0.0
  %1851 = vmatpush1.xpose.msra.mxu0 %v1827
  %1852 = vmatprep.subr.mxu0 0.0
  %1853 = vmatpush1.xpose.msra.mxu0 %v1830
  %1854 = vmatprep.subr.mxu0 0.0
  %1855 = vmatpush1.xpose.msra.mxu0 %v1833
  %1856 = vmatprep.subr.mxu0 0.0
  %1857 = vmatpush1.xpose.msra.mxu0 %v1836
  %1858 = vmatprep.subr.mxu0 0.0
  %1859 = vmatpush1.xpose.msra.mxu0 %v1839
  %1860 = vmatprep.subr.mxu0 0.0
  %1861 = vmatpush1.xpose.msra.mxu0 %v1842
  %1862 = vmatprep.subr.mxu0 0.0
  %1863 = vmatpush1.xpose.msra.mxu0 %v1845
  %1864 = vmatprep.subr.mxu0 0.0
  %1865 = vmatpush1.xpose.msra.mxu0 %v1848
  %1866 = vmatprep.subr.mxu0 0.0
  %1867 = vmatpush1.xpose.msra.mxu0 0.0
  %1868 = vmatprep.subr.mxu0 0.0
  %1869 = vmatpush1.xpose.msra.mxu0 0.0
  %1870 = vmatprep.subr.mxu0 0.0
  %1871 = vmatpush1.xpose.msra.mxu0 0.0
  %1872 = vmatprep.subr.mxu0 0.0
  %1873 = vmatpush1.xpose.msra.mxu0 0.0
  %1874 = vmatprep.subr.mxu0 0.0
  %1875 = vmatpush1.xpose.msra.mxu0 0.0
  %1876 = vmatprep.subr.mxu0 0.0
  %1877 = vmatpush1.xpose.msra.mxu0 0.0
  %1878 = vmatprep.subr.mxu0 0.0
  %1879 = vmatpush1.xpose.msra.mxu0 0.0
  %1880 = vmatprep.subr.mxu0 0.0
  %1881 = vmatpush1.xpose.msra.mxu0 0.0
  %1882 = vmatprep.subr.mxu0 0.0
  %1883 = vmatpush1.xpose.msra.mxu0 0.0
  %1884 = vmatprep.subr.mxu0 0.0
  %1885 = vmatpush1.xpose.msra.mxu0 0.0
  %1886 = vmatprep.subr.mxu0 0.0
  %1887 = vmatpush1.xpose.msra.mxu0 0.0
  %1888 = vmatprep.subr.mxu0 0.0
  %1889 = vmatpush1.xpose.msra.mxu0 0.0
  %1890 = vmatprep.subr.mxu0 0.0
  %1891 = vmatpush1.xpose.msra.mxu0 0.0
  %1892 = vmatprep.subr.mxu0 0.0
  %1893 = vmatpush1.xpose.msra.mxu0 0.0
  %1894 = vmatprep.subr.mxu0 0.0
  %1895 = vmatpush1.xpose.msra.mxu0 0.0
  %1896 = vmatprep.subr.mxu0 0.0
  %1897 = vmatpush1.xpose.msra.mxu0 0.0
  %1898 = vmatprep.subr.mxu0 0.0
  %1899 = vmatpush1.xpose.msra.mxu0 0.0
  %1900 = vmatprep.subr.mxu0 0.0
  %1901 = vmatpush1.xpose.msra.mxu0 0.0
  %1902 = vmatprep.subr.mxu0 0.0
  %1903 = vmatpush1.xpose.msra.mxu0 0.0
  %1904 = vmatprep.subr.mxu0 0.0
  %1905 = vmatpush1.xpose.msra.mxu0 0.0
  %1906 = vmatprep.subr.mxu0 0.0
  %1907 = vmatpush1.xpose.msra.mxu0 0.0
  %1908 = vmatprep.subr.mxu0 0.0
  %1909 = vmatpush1.xpose.msra.mxu0 0.0
  %1910 = vmatprep.subr.mxu0 0.0
  %1911 = vmatpush1.xpose.msra.mxu0 0.0
  %1912 = vmatprep.subr.mxu0 0.0
  %1913 = vmatpush1.xpose.msra.mxu0 0.0
  %1914 = vmatprep.mubr.f32.mxu0 0.0
  %1915 = vmatmul.mubr.f32.gmra.mrb[0].mxu0 %v1824
  %v1916 = vpop.f32.mrb[0].mxu0
  %v1917 = vadd.f32 0.0, %v1916
  %v1918 = vpop.f32.mrb[0].mxu0
  %1919 = vdwg.mxu0
  %v1920 = vsel %vm1247, %v843, 0
  %v1923 = vsel %vm1247, %v1047, 0
  %v1926 = vsel %vm1247, %v1048, 0
  %v1929 = vsel %vm1247, %v1049, 0
  %v1932 = vsel %vm1247, %v1050, 0
  %v1935 = vsel %vm1247, %v1051, 0
  %v1938 = vsel %vm1247, %v1052, 0
  %v1941 = vsel %vm1247, %v1053, 0
  %v1944 = vsel %vm1247, %v1054, 0
  %1946 = vmatprep.subr.mxu0 0.0
  %1947 = vmatpush1.xpose.msra.mxu0 %v1923
  %1948 = vmatprep.subr.mxu0 0.0
  %1949 = vmatpush1.xpose.msra.mxu0 %v1926
  %1950 = vmatprep.subr.mxu0 0.0
  %1951 = vmatpush1.xpose.msra.mxu0 %v1929
  %1952 = vmatprep.subr.mxu0 0.0
  %1953 = vmatpush1.xpose.msra.mxu0 %v1932
  %1954 = vmatprep.subr.mxu0 0.0
  %1955 = vmatpush1.xpose.msra.mxu0 %v1935
  %1956 = vmatprep.subr.mxu0 0.0
  %1957 = vmatpush1.xpose.msra.mxu0 %v1938
  %1958 = vmatprep.subr.mxu0 0.0
  %1959 = vmatpush1.xpose.msra.mxu0 %v1941
  %1960 = vmatprep.subr.mxu0 0.0
  %1961 = vmatpush1.xpose.msra.mxu0 %v1944
  %1962 = vmatprep.subr.mxu0 0.0
  %1963 = vmatpush1.xpose.msra.mxu0 0.0
  %1964 = vmatprep.subr.mxu0 0.0
  %1965 = vmatpush1.xpose.msra.mxu0 0.0
  %1966 = vmatprep.subr.mxu0 0.0
  %1967 = vmatpush1.xpose.msra.mxu0 0.0
  %1968 = vmatprep.subr.mxu0 0.0
  %1969 = vmatpush1.xpose.msra.mxu0 0.0
  %1970 = vmatprep.subr.mxu0 0.0
  %1971 = vmatpush1.xpose.msra.mxu0 0.0
  %1972 = vmatprep.subr.mxu0 0.0
  %1973 = vmatpush1.xpose.msra.mxu0 0.0
  %1974 = vmatprep.subr.mxu0 0.0
  %1975 = vmatpush1.xpose.msra.mxu0 0.0
  %1976 = vmatprep.subr.mxu0 0.0
  %1977 = vmatpush1.xpose.msra.mxu0 0.0
  %1978 = vmatprep.subr.mxu0 0.0
  %1979 = vmatpush1.xpose.msra.mxu0 0.0
  %1980 = vmatprep.subr.mxu0 0.0
  %1981 = vmatpush1.xpose.msra.mxu0 0.0
  %1982 = vmatprep.subr.mxu0 0.0
  %1983 = vmatpush1.xpose.msra.mxu0 0.0
  %1984 = vmatprep.subr.mxu0 0.0
  %1985 = vmatpush1.xpose.msra.mxu0 0.0
  %1986 = vmatprep.subr.mxu0 0.0
  %1987 = vmatpush1.xpose.msra.mxu0 0.0
  %1988 = vmatprep.subr.mxu0 0.0
  %1989 = vmatpush1.xpose.msra.mxu0 0.0
  %1990 = vmatprep.subr.mxu0 0.0
  %1991 = vmatpush1.xpose.msra.mxu0 0.0
  %1992 = vmatprep.subr.mxu0 0.0
  %1993 = vmatpush1.xpose.msra.mxu0 0.0
  %1994 = vmatprep.subr.mxu0 0.0
  %1995 = vmatpush1.xpose.msra.mxu0 0.0
  %1996 = vmatprep.subr.mxu0 0.0
  %1997 = vmatpush1.xpose.msra.mxu0 0.0
  %1998 = vmatprep.subr.mxu0 0.0
  %1999 = vmatpush1.xpose.msra.mxu0 0.0
  %2000 = vmatprep.subr.mxu0 0.0
  %2001 = vmatpush1.xpose.msra.mxu0 0.0
  %2002 = vmatprep.subr.mxu0 0.0
  %2003 = vmatpush1.xpose.msra.mxu0 0.0
  %2004 = vmatprep.subr.mxu0 0.0
  %2005 = vmatpush1.xpose.msra.mxu0 0.0
  %2006 = vmatprep.subr.mxu0 0.0
  %2007 = vmatpush1.xpose.msra.mxu0 0.0
  %2008 = vmatprep.subr.mxu0 0.0
  %2009 = vmatpush1.xpose.msra.mxu0 0.0
  %2010 = vmatprep.mubr.f32.mxu0 0.0
  %2011 = vmatmul.mubr.f32.gmra.mrb[0].mxu0 %v1920
  %v2012 = vpop.f32.mrb[0].mxu0
  %v2013 = vadd.f32 0.0, %v2012
  %v2014 = vpop.f32.mrb[0].mxu0
  %2015 = vdwg.mxu0
  %v2016 = vsel %vm1247, %v867, 0
  %v2019 = vsel %vm1247, %v1055, 0
  %v2022 = vsel %vm1247, %v1056, 0
  %v2025 = vsel %vm1247, %v1057, 0
  %v2028 = vsel %vm1247, %v1058, 0
  %v2031 = vsel %vm1247, %v1059, 0
  %v2034 = vsel %vm1247, %v1060, 0
  %v2037 = vsel %vm1247, %v1061, 0
  %v2040 = vsel %vm1247, %v1062, 0
  %2042 = vmatprep.subr.mxu0 0.0
  %2043 = vmatpush1.xpose.msra.mxu0 %v2019
  %2044 = vmatprep.subr.mxu0 0.0
  %2045 = vmatpush1.xpose.msra.mxu0 %v2022
  %2046 = vmatprep.subr.mxu0 0.0
  %2047 = vmatpush1.xpose.msra.mxu0 %v2025
  %2048 = vmatprep.subr.mxu0 0.0
  %2049 = vmatpush1.xpose.msra.mxu0 %v2028
  %2050 = vmatprep.subr.mxu0 0.0
  %2051 = vmatpush1.xpose.msra.mxu0 %v2031
  %2052 = vmatprep.subr.mxu0 0.0
  %2053 = vmatpush1.xpose.msra.mxu0 %v2034
  %2054 = vmatprep.subr.mxu0 0.0
  %2055 = vmatpush1.xpose.msra.mxu0 %v2037
  %2056 = vmatprep.subr.mxu0 0.0
  %2057 = vmatpush1.xpose.msra.mxu0 %v2040
  %2058 = vmatprep.subr.mxu0 0.0
  %2059 = vmatpush1.xpose.msra.mxu0 0.0
  %2060 = vmatprep.subr.mxu0 0.0
  %2061 = vmatpush1.xpose.msra.mxu0 0.0
  %2062 = vmatprep.subr.mxu0 0.0
  %2063 = vmatpush1.xpose.msra.mxu0 0.0
  %2064 = vmatprep.subr.mxu0 0.0
  %2065 = vmatpush1.xpose.msra.mxu0 0.0
  %2066 = vmatprep.subr.mxu0 0.0
  %2067 = vmatpush1.xpose.msra.mxu0 0.0
  %2068 = vmatprep.subr.mxu0 0.0
  %2069 = vmatpush1.xpose.msra.mxu0 0.0
  %2070 = vmatprep.subr.mxu0 0.0
  %2071 = vmatpush1.xpose.msra.mxu0 0.0
  %2072 = vmatprep.subr.mxu0 0.0
  %2073 = vmatpush1.xpose.msra.mxu0 0.0
  %2074 = vmatprep.subr.mxu0 0.0
  %2075 = vmatpush1.xpose.msra.mxu0 0.0
  %2076 = vmatprep.subr.mxu0 0.0
  %2077 = vmatpush1.xpose.msra.mxu0 0.0
  %2078 = vmatprep.subr.mxu0 0.0
  %2079 = vmatpush1.xpose.msra.mxu0 0.0
  %2080 = vmatprep.subr.mxu0 0.0
  %2081 = vmatpush1.xpose.msra.mxu0 0.0
  %2082 = vmatprep.subr.mxu0 0.0
  %2083 = vmatpush1.xpose.msra.mxu0 0.0
  %2084 = vmatprep.subr.mxu0 0.0
  %2085 = vmatpush1.xpose.msra.mxu0 0.0
  %2086 = vmatprep.subr.mxu0 0.0
  %2087 = vmatpush1.xpose.msra.mxu0 0.0
  %2088 = vmatprep.subr.mxu0 0.0
  %2089 = vmatpush1.xpose.msra.mxu0 0.0
  %2090 = vmatprep.subr.mxu0 0.0
  %2091 = vmatpush1.xpose.msra.mxu0 0.0
  %2092 = vmatprep.subr.mxu0 0.0
  %2093 = vmatpush1.xpose.msra.mxu0 0.0
  %2094 = vmatprep.subr.mxu0 0.0
  %2095 = vmatpush1.xpose.msra.mxu0 0.0
  %2096 = vmatprep.subr.mxu0 0.0
  %2097 = vmatpush1.xpose.msra.mxu0 0.0
  %2098 = vmatprep.subr.mxu0 0.0
  %2099 = vmatpush1.xpose.msra.mxu0 0.0
  %2100 = vmatprep.subr.mxu0 0.0
  %2101 = vmatpush1.xpose.msra.mxu0 0.0
  %2102 = vmatprep.subr.mxu0 0.0
  %2103 = vmatpush1.xpose.msra.mxu0 0.0
  %2104 = vmatprep.subr.mxu0 0.0
  %2105 = vmatpush1.xpose.msra.mxu0 0.0
  %2106 = vmatprep.mubr.f32.mxu0 0.0
  %2107 = vmatmul.mubr.f32.gmra.mrb[0].mxu0 %v2016
  %v2108 = vpop.f32.mrb[0].mxu0
  %v2109 = vadd.f32 0.0, %v2108
  %v2110 = vpop.f32.mrb[0].mxu0
  %2111 = vdwg.mxu0
  %v2112 = vsel %vm1247, %v881, 0
  %v2115 = vsel %vm1247, %v1063, 0
  %v2118 = vsel %vm1247, %v1064, 0
  %v2121 = vsel %vm1247, %v1065, 0
  %v2124 = vsel %vm1247, %v1066, 0
  %v2127 = vsel %vm1247, %v1067, 0
  %v2130 = vsel %vm1247, %v1068, 0
  %v2133 = vsel %vm1247, %v1069, 0
  %v2136 = vsel %vm1247, %v1070, 0
  %2138 = vmatprep.subr.mxu0 0.0
  %2139 = vmatpush1.xpose.msra.mxu0 %v2115
  %2140 = vmatprep.subr.mxu0 0.0
  %2141 = vmatpush1.xpose.msra.mxu0 %v2118
  %2142 = vmatprep.subr.mxu0 0.0
  %2143 = vmatpush1.xpose.msra.mxu0 %v2121
  %2144 = vmatprep.subr.mxu0 0.0
  %2145 = vmatpush1.xpose.msra.mxu0 %v2124
  %2146 = vmatprep.subr.mxu0 0.0
  %2147 = vmatpush1.xpose.msra.mxu0 %v2127
  %2148 = vmatprep.subr.mxu0 0.0
  %2149 = vmatpush1.xpose.msra.mxu0 %v2130
  %2150 = vmatprep.subr.mxu0 0.0
  %2151 = vmatpush1.xpose.msra.mxu0 %v2133
  %2152 = vmatprep.subr.mxu0 0.0
  %2153 = vmatpush1.xpose.msra.mxu0 %v2136
  %2154 = vmatprep.subr.mxu0 0.0
  %2155 = vmatpush1.xpose.msra.mxu0 0.0
  %2156 = vmatprep.subr.mxu0 0.0
  %2157 = vmatpush1.xpose.msra.mxu0 0.0
  %2158 = vmatprep.subr.mxu0 0.0
  %2159 = vmatpush1.xpose.msra.mxu0 0.0
  %2160 = vmatprep.subr.mxu0 0.0
  %2161 = vmatpush1.xpose.msra.mxu0 0.0
  %2162 = vmatprep.subr.mxu0 0.0
  %2163 = vmatpush1.xpose.msra.mxu0 0.0
  %2164 = vmatprep.subr.mxu0 0.0
  %2165 = vmatpush1.xpose.msra.mxu0 0.0
  %2166 = vmatprep.subr.mxu0 0.0
  %2167 = vmatpush1.xpose.msra.mxu0 0.0
  %2168 = vmatprep.subr.mxu0 0.0
  %2169 = vmatpush1.xpose.msra.mxu0 0.0
  %2170 = vmatprep.subr.mxu0 0.0
  %2171 = vmatpush1.xpose.msra.mxu0 0.0
  %2172 = vmatprep.subr.mxu0 0.0
  %2173 = vmatpush1.xpose.msra.mxu0 0.0
  %2174 = vmatprep.subr.mxu0 0.0
  %2175 = vmatpush1.xpose.msra.mxu0 0.0
  %2176 = vmatprep.subr.mxu0 0.0
  %2177 = vmatpush1.xpose.msra.mxu0 0.0
  %2178 = vmatprep.subr.mxu0 0.0
  %2179 = vmatpush1.xpose.msra.mxu0 0.0
  %2180 = vmatprep.subr.mxu0 0.0
  %2181 = vmatpush1.xpose.msra.mxu0 0.0
  %2182 = vmatprep.subr.mxu0 0.0
  %2183 = vmatpush1.xpose.msra.mxu0 0.0
  %2184 = vmatprep.subr.mxu0 0.0
  %2185 = vmatpush1.xpose.msra.mxu0 0.0
  %2186 = vmatprep.subr.mxu0 0.0
  %2187 = vmatpush1.xpose.msra.mxu0 0.0
  %2188 = vmatprep.subr.mxu0 0.0
  %2189 = vmatpush1.xpose.msra.mxu0 0.0
  %2190 = vmatprep.subr.mxu0 0.0
  %2191 = vmatpush1.xpose.msra.mxu0 0.0
  %2192 = vmatprep.subr.mxu0 0.0
  %2193 = vmatpush1.xpose.msra.mxu0 0.0
  %2194 = vmatprep.subr.mxu0 0.0
  %2195 = vmatpush1.xpose.msra.mxu0 0.0
  %2196 = vmatprep.subr.mxu0 0.0
  %2197 = vmatpush1.xpose.msra.mxu0 0.0
  %2198 = vmatprep.subr.mxu0 0.0
  %2199 = vmatpush1.xpose.msra.mxu0 0.0
  %2200 = vmatprep.subr.mxu0 0.0
  %2201 = vmatpush1.xpose.msra.mxu0 0.0
  %2202 = vmatprep.mubr.f32.mxu0 0.0
  %2203 = vmatmul.mubr.f32.gmra.mrb[0].mxu0 %v2112
  %v2204 = vpop.f32.mrb[0].mxu0
  %v2205 = vadd.f32 0.0, %v2204
  %v2206 = vpop.f32.mrb[0].mxu0
  %2207 = vdwg.mxu0
  %v2208 = vsel %vm1247, %v889, 0
  %v2211 = vsel %vm1247, %v1071, 0
  %v2214 = vsel %vm1247, %v1072, 0
  %v2217 = vsel %vm1247, %v1073, 0
  %v2220 = vsel %vm1247, %v1074, 0
  %v2223 = vsel %vm1247, %v1075, 0
  %v2226 = vsel %vm1247, %v1076, 0
  %v2229 = vsel %vm1247, %v1077, 0
  %v2232 = vsel %vm1247, %v1078, 0
  %2234 = vmatprep.subr.mxu0 0.0
  %2235 = vmatpush1.xpose.msra.mxu0 %v2211
  %2236 = vmatprep.subr.mxu0 0.0
  %2237 = vmatpush1.xpose.msra.mxu0 %v2214
  %2238 = vmatprep.subr.mxu0 0.0
  %2239 = vmatpush1.xpose.msra.mxu0 %v2217
  %2240 = vmatprep.subr.mxu0 0.0
  %2241 = vmatpush1.xpose.msra.mxu0 %v2220
  %2242 = vmatprep.subr.mxu0 0.0
  %2243 = vmatpush1.xpose.msra.mxu0 %v2223
  %2244 = vmatprep.subr.mxu0 0.0
  %2245 = vmatpush1.xpose.msra.mxu0 %v2226
  %2246 = vmatprep.subr.mxu0 0.0
  %2247 = vmatpush1.xpose.msra.mxu0 %v2229
  %2248 = vmatprep.subr.mxu0 0.0
  %2249 = vmatpush1.xpose.msra.mxu0 %v2232
  %2250 = vmatprep.subr.mxu0 0.0
  %2251 = vmatpush1.xpose.msra.mxu0 0.0
  %2252 = vmatprep.subr.mxu0 0.0
  %2253 = vmatpush1.xpose.msra.mxu0 0.0
  %2254 = vmatprep.subr.mxu0 0.0
  %2255 = vmatpush1.xpose.msra.mxu0 0.0
  %2256 = vmatprep.subr.mxu0 0.0
  %2257 = vmatpush1.xpose.msra.mxu0 0.0
  %2258 = vmatprep.subr.mxu0 0.0
  %2259 = vmatpush1.xpose.msra.mxu0 0.0
  %2260 = vmatprep.subr.mxu0 0.0
  %2261 = vmatpush1.xpose.msra.mxu0 0.0
  %2262 = vmatprep.subr.mxu0 0.0
  %2263 = vmatpush1.xpose.msra.mxu0 0.0
  %2264 = vmatprep.subr.mxu0 0.0
  %2265 = vmatpush1.xpose.msra.mxu0 0.0
  %2266 = vmatprep.subr.mxu0 0.0
  %2267 = vmatpush1.xpose.msra.mxu0 0.0
  %2268 = vmatprep.subr.mxu0 0.0
  %2269 = vmatpush1.xpose.msra.mxu0 0.0
  %2270 = vmatprep.subr.mxu0 0.0
  %2271 = vmatpush1.xpose.msra.mxu0 0.0
  %2272 = vmatprep.subr.mxu0 0.0
  %2273 = vmatpush1.xpose.msra.mxu0 0.0
  %2274 = vmatprep.subr.mxu0 0.0
  %2275 = vmatpush1.xpose.msra.mxu0 0.0
  %2276 = vmatprep.subr.mxu0 0.0
  %2277 = vmatpush1.xpose.msra.mxu0 0.0
  %2278 = vmatprep.subr.mxu0 0.0
  %2279 = vmatpush1.xpose.msra.mxu0 0.0
  %2280 = vmatprep.subr.mxu0 0.0
  %2281 = vmatpush1.xpose.msra.mxu0 0.0
  %2282 = vmatprep.subr.mxu0 0.0
  %2283 = vmatpush1.xpose.msra.mxu0 0.0
  %2284 = vmatprep.subr.mxu0 0.0
  %2285 = vmatpush1.xpose.msra.mxu0 0.0
  %2286 = vmatprep.subr.mxu0 0.0
  %2287 = vmatpush1.xpose.msra.mxu0 0.0
  %2288 = vmatprep.subr.mxu0 0.0
  %2289 = vmatpush1.xpose.msra.mxu0 0.0
  %2290 = vmatprep.subr.mxu0 0.0
  %2291 = vmatpush1.xpose.msra.mxu0 0.0
  %2292 = vmatprep.subr.mxu0 0.0
  %2293 = vmatpush1.xpose.msra.mxu0 0.0
  %2294 = vmatprep.subr.mxu0 0.0
  %2295 = vmatpush1.xpose.msra.mxu0 0.0
  %2296 = vmatprep.subr.mxu0 0.0
  %2297 = vmatpush1.xpose.msra.mxu0 0.0
  %2298 = vmatprep.mubr.f32.mxu0 0.0
  %2299 = vmatmul.mubr.f32.gmra.mrb[0].mxu0 %v2208
  %v2300 = vpop.f32.mrb[0].mxu0
  %v2301 = vadd.f32 0.0, %v2300
  %v2302 = vpop.f32.mrb[0].mxu0
  %2303 = vdwg.mxu0
  %v2304 = vsel %vm1247, %v891, 0
  %v2307 = vsel %vm1247, %v1079, 0
  %v2310 = vsel %vm1247, %v1080, 0
  %v2313 = vsel %vm1247, %v1081, 0
  %v2316 = vsel %vm1247, %v1082, 0
  %v2319 = vsel %vm1247, %v1083, 0
  %v2322 = vsel %vm1247, %v1084, 0
  %v2325 = vsel %vm1247, %v1085, 0
  %v2328 = vsel %vm1247, %v1086, 0
  %2330 = vmatprep.subr.mxu0 0.0
  %2331 = vmatpush1.xpose.msra.mxu0 %v2307
  %2332 = vmatprep.subr.mxu0 0.0
  %2333 = vmatpush1.xpose.msra.mxu0 %v2310
  %2334 = vmatprep.subr.mxu0 0.0
  %2335 = vmatpush1.xpose.msra.mxu0 %v2313
  %2336 = vmatprep.subr.mxu0 0.0
  %2337 = vmatpush1.xpose.msra.mxu0 %v2316
  %2338 = vmatprep.subr.mxu0 0.0
  %2339 = vmatpush1.xpose.msra.mxu0 %v2319
  %2340 = vmatprep.subr.mxu0 0.0
  %2341 = vmatpush1.xpose.msra.mxu0 %v2322
  %2342 = vmatprep.subr.mxu0 0.0
  %2343 = vmatpush1.xpose.msra.mxu0 %v2325
  %2344 = vmatprep.subr.mxu0 0.0
  %2345 = vmatpush1.xpose.msra.mxu0 %v2328
  %2346 = vmatprep.subr.mxu0 0.0
  %2347 = vmatpush1.xpose.msra.mxu0 0.0
  %2348 = vmatprep.subr.mxu0 0.0
  %2349 = vmatpush1.xpose.msra.mxu0 0.0
  %2350 = vmatprep.subr.mxu0 0.0
  %2351 = vmatpush1.xpose.msra.mxu0 0.0
  %2352 = vmatprep.subr.mxu0 0.0
  %2353 = vmatpush1.xpose.msra.mxu0 0.0
  %2354 = vmatprep.subr.mxu0 0.0
  %2355 = vmatpush1.xpose.msra.mxu0 0.0
  %2356 = vmatprep.subr.mxu0 0.0
  %2357 = vmatpush1.xpose.msra.mxu0 0.0
  %2358 = vmatprep.subr.mxu0 0.0
  %2359 = vmatpush1.xpose.msra.mxu0 0.0
  %2360 = vmatprep.subr.mxu0 0.0
  %2361 = vmatpush1.xpose.msra.mxu0 0.0
  %2362 = vmatprep.subr.mxu0 0.0
  %2363 = vmatpush1.xpose.msra.mxu0 0.0
  %2364 = vmatprep.subr.mxu0 0.0
  %2365 = vmatpush1.xpose.msra.mxu0 0.0
  %2366 = vmatprep.subr.mxu0 0.0
  %2367 = vmatpush1.xpose.msra.mxu0 0.0
  %2368 = vmatprep.subr.mxu0 0.0
  %2369 = vmatpush1.xpose.msra.mxu0 0.0
  %2370 = vmatprep.subr.mxu0 0.0
  %2371 = vmatpush1.xpose.msra.mxu0 0.0
  %2372 = vmatprep.subr.mxu0 0.0
  %2373 = vmatpush1.xpose.msra.mxu0 0.0
  %2374 = vmatprep.subr.mxu0 0.0
  %2375 = vmatpush1.xpose.msra.mxu0 0.0
  %2376 = vmatprep.subr.mxu0 0.0
  %2377 = vmatpush1.xpose.msra.mxu0 0.0
  %2378 = vmatprep.subr.mxu0 0.0
  %2379 = vmatpush1.xpose.msra.mxu0 0.0
  %2380 = vmatprep.subr.mxu0 0.0
  %2381 = vmatpush1.xpose.msra.mxu0 0.0
  %2382 = vmatprep.subr.mxu0 0.0
  %2383 = vmatpush1.xpose.msra.mxu0 0.0
  %2384 = vmatprep.subr.mxu0 0.0
  %2385 = vmatpush1.xpose.msra.mxu0 0.0
  %2386 = vmatprep.subr.mxu0 0.0
  %2387 = vmatpush1.xpose.msra.mxu0 0.0
  %2388 = vmatprep.subr.mxu0 0.0
  %2389 = vmatpush1.xpose.msra.mxu0 0.0
  %2390 = vmatprep.subr.mxu0 0.0
  %2391 = vmatpush1.xpose.msra.mxu0 0.0
  %2392 = vmatprep.subr.mxu0 0.0
  %2393 = vmatpush1.xpose.msra.mxu0 0.0
  %2394 = vmatprep.mubr.f32.mxu0 0.0
  %2395 = vmatmul.mubr.f32.gmra.mrb[0].mxu0 %v2304
  %v2396 = vpop.f32.mrb[0].mxu0
  %v2397 = vadd.f32 0.0, %v2396
  %v2398 = vpop.f32.mrb[0].mxu0
  %2399 = vdwg.mxu0
  %v2400 = vsel %vm1247, %v874, 0
  %v2403 = vsel %vm1247, %v1087, 0
  %v2406 = vsel %vm1247, %v1088, 0
  %v2409 = vsel %vm1247, %v1089, 0
  %v2412 = vsel %vm1247, %v1090, 0
  %v2415 = vsel %vm1247, %v1091, 0
  %v2418 = vsel %vm1247, %v1092, 0
  %v2421 = vsel %vm1247, %v1093, 0
  %v2424 = vsel %vm1247, %v1094, 0
  %2426 = vmatprep.subr.mxu0 0.0
  %2427 = vmatpush1.xpose.msra.mxu0 %v2403
  %2428 = vmatprep.subr.mxu0 0.0
  %2429 = vmatpush1.xpose.msra.mxu0 %v2406
  %2430 = vmatprep.subr.mxu0 0.0
  %2431 = vmatpush1.xpose.msra.mxu0 %v2409
  %2432 = vmatprep.subr.mxu0 0.0
  %2433 = vmatpush1.xpose.msra.mxu0 %v2412
  %2434 = vmatprep.subr.mxu0 0.0
  %2435 = vmatpush1.xpose.msra.mxu0 %v2415
  %2436 = vmatprep.subr.mxu0 0.0
  %2437 = vmatpush1.xpose.msra.mxu0 %v2418
  %2438 = vmatprep.subr.mxu0 0.0
  %2439 = vmatpush1.xpose.msra.mxu0 %v2421
  %2440 = vmatprep.subr.mxu0 0.0
  %2441 = vmatpush1.xpose.msra.mxu0 %v2424
  %2442 = vmatprep.subr.mxu0 0.0
  %2443 = vmatpush1.xpose.msra.mxu0 0.0
  %2444 = vmatprep.subr.mxu0 0.0
  %2445 = vmatpush1.xpose.msra.mxu0 0.0
  %2446 = vmatprep.subr.mxu0 0.0
  %2447 = vmatpush1.xpose.msra.mxu0 0.0
  %2448 = vmatprep.subr.mxu0 0.0
  %2449 = vmatpush1.xpose.msra.mxu0 0.0
  %2450 = vmatprep.subr.mxu0 0.0
  %2451 = vmatpush1.xpose.msra.mxu0 0.0
  %2452 = vmatprep.subr.mxu0 0.0
  %2453 = vmatpush1.xpose.msra.mxu0 0.0
  %2454 = vmatprep.subr.mxu0 0.0
  %2455 = vmatpush1.xpose.msra.mxu0 0.0
  %2456 = vmatprep.subr.mxu0 0.0
  %2457 = vmatpush1.xpose.msra.mxu0 0.0
  %2458 = vmatprep.subr.mxu0 0.0
  %2459 = vmatpush1.xpose.msra.mxu0 0.0
  %2460 = vmatprep.subr.mxu0 0.0
  %2461 = vmatpush1.xpose.msra.mxu0 0.0
  %2462 = vmatprep.subr.mxu0 0.0
  %2463 = vmatpush1.xpose.msra.mxu0 0.0
  %2464 = vmatprep.subr.mxu0 0.0
  %2465 = vmatpush1.xpose.msra.mxu0 0.0
  %2466 = vmatprep.subr.mxu0 0.0
  %2467 = vmatpush1.xpose.msra.mxu0 0.0
  %2468 = vmatprep.subr.mxu0 0.0
  %2469 = vmatpush1.xpose.msra.mxu0 0.0
  %2470 = vmatprep.subr.mxu0 0.0
  %2471 = vmatpush1.xpose.msra.mxu0 0.0
  %2472 = vmatprep.subr.mxu0 0.0
  %2473 = vmatpush1.xpose.msra.mxu0 0.0
  %2474 = vmatprep.subr.mxu0 0.0
  %2475 = vmatpush1.xpose.msra.mxu0 0.0
  %2476 = vmatprep.subr.mxu0 0.0
  %2477 = vmatpush1.xpose.msra.mxu0 0.0
  %2478 = vmatprep.subr.mxu0 0.0
  %2479 = vmatpush1.xpose.msra.mxu0 0.0
  %2480 = vmatprep.subr.mxu0 0.0
  %2481 = vmatpush1.xpose.msra.mxu0 0.0
  %2482 = vmatprep.subr.mxu0 0.0
  %2483 = vmatpush1.xpose.msra.mxu0 0.0
  %2484 = vmatprep.subr.mxu0 0.0
  %2485 = vmatpush1.xpose.msra.mxu0 0.0
  %2486 = vmatprep.subr.mxu0 0.0
  %2487 = vmatpush1.xpose.msra.mxu0 0.0
  %2488 = vmatprep.subr.mxu0 0.0
  %2489 = vmatpush1.xpose.msra.mxu0 0.0
  %2490 = vmatprep.mubr.f32.mxu0 0.0
  %2491 = vmatmul.mubr.f32.gmra.mrb[0].mxu0 %v2400
  %v2492 = vpop.f32.mrb[0].mxu0
  %v2493 = vadd.f32 0.0, %v2492
  %v2494 = vpop.f32.mrb[0].mxu0
  %2495 = vdwg.mxu0
  %v2496 = vsel %vm1247, %v888, 0
  %v2499 = vsel %vm1247, %v1095, 0
  %v2502 = vsel %vm1247, %v1096, 0
  %v2505 = vsel %vm1247, %v1097, 0
  %v2508 = vsel %vm1247, %v1098, 0
  %v2511 = vsel %vm1247, %v1099, 0
  %v2514 = vsel %vm1247, %v1100, 0
  %v2517 = vsel %vm1247, %v1101, 0
  %v2520 = vsel %vm1247, %v1102, 0
  %2522 = vmatprep.subr.mxu0 0.0
  %2523 = vmatpush1.xpose.msra.mxu0 %v2499
  %2524 = vmatprep.subr.mxu0 0.0
  %2525 = vmatpush1.xpose.msra.mxu0 %v2502
  %2526 = vmatprep.subr.mxu0 0.0
  %2527 = vmatpush1.xpose.msra.mxu0 %v2505
  %2528 = vmatprep.subr.mxu0 0.0
  %2529 = vmatpush1.xpose.msra.mxu0 %v2508
  %2530 = vmatprep.subr.mxu0 0.0
  %2531 = vmatpush1.xpose.msra.mxu0 %v2511
  %2532 = vmatprep.subr.mxu0 0.0
  %2533 = vmatpush1.xpose.msra.mxu0 %v2514
  %2534 = vmatprep.subr.mxu0 0.0
  %2535 = vmatpush1.xpose.msra.mxu0 %v2517
  %2536 = vmatprep.subr.mxu0 0.0
  %2537 = vmatpush1.xpose.msra.mxu0 %v2520
  %2538 = vmatprep.subr.mxu0 0.0
  %2539 = vmatpush1.xpose.msra.mxu0 0.0
  %2540 = vmatprep.subr.mxu0 0.0
  %2541 = vmatpush1.xpose.msra.mxu0 0.0
  %2542 = vmatprep.subr.mxu0 0.0
  %2543 = vmatpush1.xpose.msra.mxu0 0.0
  %2544 = vmatprep.subr.mxu0 0.0
  %2545 = vmatpush1.xpose.msra.mxu0 0.0
  %2546 = vmatprep.subr.mxu0 0.0
  %2547 = vmatpush1.xpose.msra.mxu0 0.0
  %2548 = vmatprep.subr.mxu0 0.0
  %2549 = vmatpush1.xpose.msra.mxu0 0.0
  %2550 = vmatprep.subr.mxu0 0.0
  %2551 = vmatpush1.xpose.msra.mxu0 0.0
  %2552 = vmatprep.subr.mxu0 0.0
  %2553 = vmatpush1.xpose.msra.mxu0 0.0
  %2554 = vmatprep.subr.mxu0 0.0
  %2555 = vmatpush1.xpose.msra.mxu0 0.0
  %2556 = vmatprep.subr.mxu0 0.0
  %2557 = vmatpush1.xpose.msra.mxu0 0.0
  %2558 = vmatprep.subr.mxu0 0.0
  %2559 = vmatpush1.xpose.msra.mxu0 0.0
  %2560 = vmatprep.subr.mxu0 0.0
  %2561 = vmatpush1.xpose.msra.mxu0 0.0
  %2562 = vmatprep.subr.mxu0 0.0
  %2563 = vmatpush1.xpose.msra.mxu0 0.0
  %2564 = vmatprep.subr.mxu0 0.0
  %2565 = vmatpush1.xpose.msra.mxu0 0.0
  %2566 = vmatprep.subr.mxu0 0.0
  %2567 = vmatpush1.xpose.msra.mxu0 0.0
  %2568 = vmatprep.subr.mxu0 0.0
  %2569 = vmatpush1.xpose.msra.mxu0 0.0
  %2570 = vmatprep.subr.mxu0 0.0
  %2571 = vmatpush1.xpose.msra.mxu0 0.0
  %2572 = vmatprep.subr.mxu0 0.0
  %2573 = vmatpush1.xpose.msra.mxu0 0.0
  %2574 = vmatprep.subr.mxu0 0.0
  %2575 = vmatpush1.xpose.msra.mxu0 0.0
  %2576 = vmatprep.subr.mxu0 0.0
  %2577 = vmatpush1.xpose.msra.mxu0 0.0
  %2578 = vmatprep.subr.mxu0 0.0
  %2579 = vmatpush1.xpose.msra.mxu0 0.0
  %2580 = vmatprep.subr.mxu0 0.0
  %2581 = vmatpush1.xpose.msra.mxu0 0.0
  %2582 = vmatprep.subr.mxu0 0.0
  %2583 = vmatpush1.xpose.msra.mxu0 0.0
  %2584 = vmatprep.subr.mxu0 0.0
  %2585 = vmatpush1.xpose.msra.mxu0 0.0
  %2586 = vmatprep.mubr.f32.mxu0 0.0
  %2587 = vmatmul.mubr.f32.gmra.mrb[0].mxu0 %v2496
  %v2588 = vpop.f32.mrb[0].mxu0
  %v2589 = vadd.f32 0.0, %v2588
  %v2590 = vpop.f32.mrb[0].mxu0
  %2591 = vdwg.mxu0
  %v2592 = vsel %vm1247, %v890, 0
  %v2595 = vsel %vm1247, %v1103, 0
  %v2598 = vsel %vm1247, %v1104, 0
  %v2601 = vsel %vm1247, %v1105, 0
  %v2604 = vsel %vm1247, %v1106, 0
  %v2607 = vsel %vm1247, %v1107, 0
  %v2610 = vsel %vm1247, %v1108, 0
  %v2613 = vsel %vm1247, %v1109, 0
  %v2616 = vsel %vm1247, %v1110, 0
  %2618 = vmatprep.subr.mxu0 0.0
  %2619 = vmatpush1.xpose.msra.mxu0 %v2595
  %2620 = vmatprep.subr.mxu0 0.0
  %2621 = vmatpush1.xpose.msra.mxu0 %v2598
  %2622 = vmatprep.subr.mxu0 0.0
  %2623 = vmatpush1.xpose.msra.mxu0 %v2601
  %2624 = vmatprep.subr.mxu0 0.0
  %2625 = vmatpush1.xpose.msra.mxu0 %v2604
  %2626 = vmatprep.subr.mxu0 0.0
  %2627 = vmatpush1.xpose.msra.mxu0 %v2607
  %2628 = vmatprep.subr.mxu0 0.0
  %2629 = vmatpush1.xpose.msra.mxu0 %v2610
  %2630 = vmatprep.subr.mxu0 0.0
  %2631 = vmatpush1.xpose.msra.mxu0 %v2613
  %2632 = vmatprep.subr.mxu0 0.0
  %2633 = vmatpush1.xpose.msra.mxu0 %v2616
  %2634 = vmatprep.subr.mxu0 0.0
  %2635 = vmatpush1.xpose.msra.mxu0 0.0
  %2636 = vmatprep.subr.mxu0 0.0
  %2637 = vmatpush1.xpose.msra.mxu0 0.0
  %2638 = vmatprep.subr.mxu0 0.0
  %2639 = vmatpush1.xpose.msra.mxu0 0.0
  %2640 = vmatprep.subr.mxu0 0.0
  %2641 = vmatpush1.xpose.msra.mxu0 0.0
  %2642 = vmatprep.subr.mxu0 0.0
  %2643 = vmatpush1.xpose.msra.mxu0 0.0
  %2644 = vmatprep.subr.mxu0 0.0
  %2645 = vmatpush1.xpose.msra.mxu0 0.0
  %2646 = vmatprep.subr.mxu0 0.0
  %2647 = vmatpush1.xpose.msra.mxu0 0.0
  %2648 = vmatprep.subr.mxu0 0.0
  %2649 = vmatpush1.xpose.msra.mxu0 0.0
  %2650 = vmatprep.subr.mxu0 0.0
  %2651 = vmatpush1.xpose.msra.mxu0 0.0
  %2652 = vmatprep.subr.mxu0 0.0
  %2653 = vmatpush1.xpose.msra.mxu0 0.0
  %2654 = vmatprep.subr.mxu0 0.0
  %2655 = vmatpush1.xpose.msra.mxu0 0.0
  %2656 = vmatprep.subr.mxu0 0.0
  %2657 = vmatpush1.xpose.msra.mxu0 0.0
  %2658 = vmatprep.subr.mxu0 0.0
  %2659 = vmatpush1.xpose.msra.mxu0 0.0
  %2660 = vmatprep.subr.mxu0 0.0
  %2661 = vmatpush1.xpose.msra.mxu0 0.0
  %2662 = vmatprep.subr.mxu0 0.0
  %2663 = vmatpush1.xpose.msra.mxu0 0.0
  %2664 = vmatprep.subr.mxu0 0.0
  %2665 = vmatpush1.xpose.msra.mxu0 0.0
  %2666 = vmatprep.subr.mxu0 0.0
  %2667 = vmatpush1.xpose.msra.mxu0 0.0
  %2668 = vmatprep.subr.mxu0 0.0
  %2669 = vmatpush1.xpose.msra.mxu0 0.0
  %2670 = vmatprep.subr.mxu0 0.0
  %2671 = vmatpush1.xpose.msra.mxu0 0.0
  %2672 = vmatprep.subr.mxu0 0.0
  %2673 = vmatpush1.xpose.msra.mxu0 0.0
  %2674 = vmatprep.subr.mxu0 0.0
  %2675 = vmatpush1.xpose.msra.mxu0 0.0
  %2676 = vmatprep.subr.mxu0 0.0
  %2677 = vmatpush1.xpose.msra.mxu0 0.0
  %2678 = vmatprep.subr.mxu0 0.0
  %2679 = vmatpush1.xpose.msra.mxu0 0.0
  %2680 = vmatprep.subr.mxu0 0.0
  %2681 = vmatpush1.xpose.msra.mxu0 0.0
  %2682 = vmatprep.mubr.f32.mxu0 0.0
  %2683 = vmatmul.mubr.f32.gmra.mrb[0].mxu0 %v2592
  %v2684 = vpop.f32.mrb[0].mxu0
  %v2685 = vadd.f32 0.0, %v2684
  %v2686 = vpop.f32.mrb[0].mxu0
  %2687 = vdwg.mxu0
  %v2688 = vsel %vm1247, %v892, 0
  %v2691 = vsel %vm1247, %v1111, 0
  %v2694 = vsel %vm1247, %v1112, 0
  %v2697 = vsel %vm1247, %v1113, 0
  %v2700 = vsel %vm1247, %v1114, 0
  %v2703 = vsel %vm1247, %v1115, 0
  %v2706 = vsel %vm1247, %v1116, 0
  %v2709 = vsel %vm1247, %v1117, 0
  %v2712 = vsel %vm1247, %v1118, 0
  %2714 = vmatprep.subr.mxu0 0.0
  %2715 = vmatpush1.xpose.msra.mxu0 %v2691
  %2716 = vmatprep.subr.mxu0 0.0
  %2717 = vmatpush1.xpose.msra.mxu0 %v2694
  %2718 = vmatprep.subr.mxu0 0.0
  %2719 = vmatpush1.xpose.msra.mxu0 %v2697
  %2720 = vmatprep.subr.mxu0 0.0
  %2721 = vmatpush1.xpose.msra.mxu0 %v2700
  %2722 = vmatprep.subr.mxu0 0.0
  %2723 = vmatpush1.xpose.msra.mxu0 %v2703
  %2724 = vmatprep.subr.mxu0 0.0
  %2725 = vmatpush1.xpose.msra.mxu0 %v2706
  %2726 = vmatprep.subr.mxu0 0.0
  %2727 = vmatpush1.xpose.msra.mxu0 %v2709
  %2728 = vmatprep.subr.mxu0 0.0
  %2729 = vmatpush1.xpose.msra.mxu0 %v2712
  %2730 = vmatprep.subr.mxu0 0.0
  %2731 = vmatpush1.xpose.msra.mxu0 0.0
  %2732 = vmatprep.subr.mxu0 0.0
  %2733 = vmatpush1.xpose.msra.mxu0 0.0
  %2734 = vmatprep.subr.mxu0 0.0
  %2735 = vmatpush1.xpose.msra.mxu0 0.0
  %2736 = vmatprep.subr.mxu0 0.0
  %2737 = vmatpush1.xpose.msra.mxu0 0.0
  %2738 = vmatprep.subr.mxu0 0.0
  %2739 = vmatpush1.xpose.msra.mxu0 0.0
  %2740 = vmatprep.subr.mxu0 0.0
  %2741 = vmatpush1.xpose.msra.mxu0 0.0
  %2742 = vmatprep.subr.mxu0 0.0
  %2743 = vmatpush1.xpose.msra.mxu0 0.0
  %2744 = vmatprep.subr.mxu0 0.0
  %2745 = vmatpush1.xpose.msra.mxu0 0.0
  %2746 = vmatprep.subr.mxu0 0.0
  %2747 = vmatpush1.xpose.msra.mxu0 0.0
  %2748 = vmatprep.subr.mxu0 0.0
  %2749 = vmatpush1.xpose.msra.mxu0 0.0
  %2750 = vmatprep.subr.mxu0 0.0
  %2751 = vmatpush1.xpose.msra.mxu0 0.0
  %2752 = vmatprep.subr.mxu0 0.0
  %2753 = vmatpush1.xpose.msra.mxu0 0.0
  %2754 = vmatprep.subr.mxu0 0.0
  %2755 = vmatpush1.xpose.msra.mxu0 0.0
  %2756 = vmatprep.subr.mxu0 0.0
  %2757 = vmatpush1.xpose.msra.mxu0 0.0
  %2758 = vmatprep.subr.mxu0 0.0
  %2759 = vmatpush1.xpose.msra.mxu0 0.0
  %2760 = vmatprep.subr.mxu0 0.0
  %2761 = vmatpush1.xpose.msra.mxu0 0.0
  %2762 = vmatprep.subr.mxu0 0.0
  %2763 = vmatpush1.xpose.msra.mxu0 0.0
  %2764 = vmatprep.subr.mxu0 0.0
  %2765 = vmatpush1.xpose.msra.mxu0 0.0
  %2766 = vmatprep.subr.mxu0 0.0
  %2767 = vmatpush1.xpose.msra.mxu0 0.0
  %2768 = vmatprep.subr.mxu0 0.0
  %2769 = vmatpush1.xpose.msra.mxu0 0.0
  %2770 = vmatprep.subr.mxu0 0.0
  %2771 = vmatpush1.xpose.msra.mxu0 0.0
  %2772 = vmatprep.subr.mxu0 0.0
  %2773 = vmatpush1.xpose.msra.mxu0 0.0
  %2774 = vmatprep.subr.mxu0 0.0
  %2775 = vmatpush1.xpose.msra.mxu0 0.0
  %2776 = vmatprep.subr.mxu0 0.0
  %2777 = vmatpush1.xpose.msra.mxu0 0.0
  %2778 = vmatprep.mubr.f32.mxu0 0.0
  %2779 = vmatmul.mubr.f32.gmra.mrb[0].mxu0 %v2688
  %v2780 = vpop.f32.mrb[0].mxu0
  %v2781 = vadd.f32 0.0, %v2780
  %v2782 = vpop.f32.mrb[0].mxu0
  %2783 = vdwg.mxu0
  %v2784 = vsel %vm1247, %v916, 0
  %v2787 = vsel %vm1247, %v1119, 0
  %v2790 = vsel %vm1247, %v1120, 0
  %v2793 = vsel %vm1247, %v1121, 0
  %v2796 = vsel %vm1247, %v1122, 0
  %v2799 = vsel %vm1247, %v1123, 0
  %v2802 = vsel %vm1247, %v1124, 0
  %v2805 = vsel %vm1247, %v1125, 0
  %v2808 = vsel %vm1247, %v1126, 0
  %2810 = vmatprep.subr.mxu0 0.0
  %2811 = vmatpush1.xpose.msra.mxu0 %v2787
  %2812 = vmatprep.subr.mxu0 0.0
  %2813 = vmatpush1.xpose.msra.mxu0 %v2790
  %2814 = vmatprep.subr.mxu0 0.0
  %2815 = vmatpush1.xpose.msra.mxu0 %v2793
  %2816 = vmatprep.subr.mxu0 0.0
  %2817 = vmatpush1.xpose.msra.mxu0 %v2796
  %2818 = vmatprep.subr.mxu0 0.0
  %2819 = vmatpush1.xpose.msra.mxu0 %v2799
  %2820 = vmatprep.subr.mxu0 0.0
  %2821 = vmatpush1.xpose.msra.mxu0 %v2802
  %2822 = vmatprep.subr.mxu0 0.0
  %2823 = vmatpush1.xpose.msra.mxu0 %v2805
  %2824 = vmatprep.subr.mxu0 0.0
  %2825 = vmatpush1.xpose.msra.mxu0 %v2808
  %2826 = vmatprep.subr.mxu0 0.0
  %2827 = vmatpush1.xpose.msra.mxu0 0.0
  %2828 = vmatprep.subr.mxu0 0.0
  %2829 = vmatpush1.xpose.msra.mxu0 0.0
  %2830 = vmatprep.subr.mxu0 0.0
  %2831 = vmatpush1.xpose.msra.mxu0 0.0
  %2832 = vmatprep.subr.mxu0 0.0
  %2833 = vmatpush1.xpose.msra.mxu0 0.0
  %2834 = vmatprep.subr.mxu0 0.0
  %2835 = vmatpush1.xpose.msra.mxu0 0.0
  %2836 = vmatprep.subr.mxu0 0.0
  %2837 = vmatpush1.xpose.msra.mxu0 0.0
  %2838 = vmatprep.subr.mxu0 0.0
  %2839 = vmatpush1.xpose.msra.mxu0 0.0
  %2840 = vmatprep.subr.mxu0 0.0
  %2841 = vmatpush1.xpose.msra.mxu0 0.0
  %2842 = vmatprep.subr.mxu0 0.0
  %2843 = vmatpush1.xpose.msra.mxu0 0.0
  %2844 = vmatprep.subr.mxu0 0.0
  %2845 = vmatpush1.xpose.msra.mxu0 0.0
  %2846 = vmatprep.subr.mxu0 0.0
  %2847 = vmatpush1.xpose.msra.mxu0 0.0
  %2848 = vmatprep.subr.mxu0 0.0
  %2849 = vmatpush1.xpose.msra.mxu0 0.0
  %2850 = vmatprep.subr.mxu0 0.0
  %2851 = vmatpush1.xpose.msra.mxu0 0.0
  %2852 = vmatprep.subr.mxu0 0.0
  %2853 = vmatpush1.xpose.msra.mxu0 0.0
  %2854 = vmatprep.subr.mxu0 0.0
  %2855 = vmatpush1.xpose.msra.mxu0 0.0
  %2856 = vmatprep.subr.mxu0 0.0
  %2857 = vmatpush1.xpose.msra.mxu0 0.0
  %2858 = vmatprep.subr.mxu0 0.0
  %2859 = vmatpush1.xpose.msra.mxu0 0.0
  %2860 = vmatprep.subr.mxu0 0.0
  %2861 = vmatpush1.xpose.msra.mxu0 0.0
  %2862 = vmatprep.subr.mxu0 0.0
  %2863 = vmatpush1.xpose.msra.mxu0 0.0
  %2864 = vmatprep.subr.mxu0 0.0
  %2865 = vmatpush1.xpose.msra.mxu0 0.0
  %2866 = vmatprep.subr.mxu0 0.0
  %2867 = vmatpush1.xpose.msra.mxu0 0.0
  %2868 = vmatprep.subr.mxu0 0.0
  %2869 = vmatpush1.xpose.msra.mxu0 0.0
  %2870 = vmatprep.subr.mxu0 0.0
  %2871 = vmatpush1.xpose.msra.mxu0 0.0
  %2872 = vmatprep.subr.mxu0 0.0
  %2873 = vmatpush1.xpose.msra.mxu0 0.0
  %2874 = vmatprep.mubr.f32.mxu0 0.0
  %2875 = vmatmul.mubr.f32.gmra.mrb[0].mxu0 %v2784
  %v2876 = vpop.f32.mrb[0].mxu0
  %v2877 = vadd.f32 0.0, %v2876
  %v2878 = vpop.f32.mrb[0].mxu0
  %2879 = vdwg.mxu0
  %v2880 = vsel %vm1247, %v930, 0
  %v2883 = vsel %vm1247, %v1127, 0
  %v2886 = vsel %vm1247, %v1128, 0
  %v2889 = vsel %vm1247, %v1129, 0
  %v2892 = vsel %vm1247, %v1130, 0
  %v2895 = vsel %vm1247, %v1131, 0
  %v2898 = vsel %vm1247, %v1132, 0
  %v2901 = vsel %vm1247, %v1133, 0
  %v2904 = vsel %vm1247, %v1134, 0
  %2906 = vmatprep.subr.mxu0 0.0
  %2907 = vmatpush1.xpose.msra.mxu0 %v2883
  %2908 = vmatprep.subr.mxu0 0.0
  %2909 = vmatpush1.xpose.msra.mxu0 %v2886
  %2910 = vmatprep.subr.mxu0 0.0
  %2911 = vmatpush1.xpose.msra.mxu0 %v2889
  %2912 = vmatprep.subr.mxu0 0.0
  %2913 = vmatpush1.xpose.msra.mxu0 %v2892
  %2914 = vmatprep.subr.mxu0 0.0
  %2915 = vmatpush1.xpose.msra.mxu0 %v2895
  %2916 = vmatprep.subr.mxu0 0.0
  %2917 = vmatpush1.xpose.msra.mxu0 %v2898
  %2918 = vmatprep.subr.mxu0 0.0
  %2919 = vmatpush1.xpose.msra.mxu0 %v2901
  %2920 = vmatprep.subr.mxu0 0.0
  %2921 = vmatpush1.xpose.msra.mxu0 %v2904
  %2922 = vmatprep.subr.mxu0 0.0
  %2923 = vmatpush1.xpose.msra.mxu0 0.0
  %2924 = vmatprep.subr.mxu0 0.0
  %2925 = vmatpush1.xpose.msra.mxu0 0.0
  %2926 = vmatprep.subr.mxu0 0.0
  %2927 = vmatpush1.xpose.msra.mxu0 0.0
  %2928 = vmatprep.subr.mxu0 0.0
  %2929 = vmatpush1.xpose.msra.mxu0 0.0
  %2930 = vmatprep.subr.mxu0 0.0
  %2931 = vmatpush1.xpose.msra.mxu0 0.0
  %2932 = vmatprep.subr.mxu0 0.0
  %2933 = vmatpush1.xpose.msra.mxu0 0.0
  %2934 = vmatprep.subr.mxu0 0.0
  %2935 = vmatpush1.xpose.msra.mxu0 0.0
  %2936 = vmatprep.subr.mxu0 0.0
  %2937 = vmatpush1.xpose.msra.mxu0 0.0
  %2938 = vmatprep.subr.mxu0 0.0
  %2939 = vmatpush1.xpose.msra.mxu0 0.0
  %2940 = vmatprep.subr.mxu0 0.0
  %2941 = vmatpush1.xpose.msra.mxu0 0.0
  %2942 = vmatprep.subr.mxu0 0.0
  %2943 = vmatpush1.xpose.msra.mxu0 0.0
  %2944 = vmatprep.subr.mxu0 0.0
  %2945 = vmatpush1.xpose.msra.mxu0 0.0
  %2946 = vmatprep.subr.mxu0 0.0
  %2947 = vmatpush1.xpose.msra.mxu0 0.0
  %2948 = vmatprep.subr.mxu0 0.0
  %2949 = vmatpush1.xpose.msra.mxu0 0.0
  %2950 = vmatprep.subr.mxu0 0.0
  %2951 = vmatpush1.xpose.msra.mxu0 0.0
  %2952 = vmatprep.subr.mxu0 0.0
  %2953 = vmatpush1.xpose.msra.mxu0 0.0
  %2954 = vmatprep.subr.mxu0 0.0
  %2955 = vmatpush1.xpose.msra.mxu0 0.0
  %2956 = vmatprep.subr.mxu0 0.0
  %2957 = vmatpush1.xpose.msra.mxu0 0.0
  %2958 = vmatprep.subr.mxu0 0.0
  %2959 = vmatpush1.xpose.msra.mxu0 0.0
  %2960 = vmatprep.subr.mxu0 0.0
  %2961 = vmatpush1.xpose.msra.mxu0 0.0
  %2962 = vmatprep.subr.mxu0 0.0
  %2963 = vmatpush1.xpose.msra.mxu0 0.0
  %2964 = vmatprep.subr.mxu0 0.0
  %2965 = vmatpush1.xpose.msra.mxu0 0.0
  %2966 = vmatprep.subr.mxu0 0.0
  %2967 = vmatpush1.xpose.msra.mxu0 0.0
  %2968 = vmatprep.subr.mxu0 0.0
  %2969 = vmatpush1.xpose.msra.mxu0 0.0
  %2970 = vmatprep.mubr.f32.mxu0 0.0
  %2971 = vmatmul.mubr.f32.gmra.mrb[0].mxu0 %v2880
  %v2972 = vpop.f32.mrb[0].mxu0
  %v2973 = vadd.f32 0.0, %v2972
  %v2974 = vpop.f32.mrb[0].mxu0
  %2975 = vdwg.mxu0
  %v2976 = vsel %vm1247, %v938, 0
  %v2979 = vsel %vm1247, %v1135, 0
  %v2982 = vsel %vm1247, %v1136, 0
  %v2985 = vsel %vm1247, %v1137, 0
  %v2988 = vsel %vm1247, %v1138, 0
  %v2991 = vsel %vm1247, %v1139, 0
  %v2994 = vsel %vm1247, %v1140, 0
  %v2997 = vsel %vm1247, %v1141, 0
  %v3000 = vsel %vm1247, %v1142, 0
  %3002 = vmatprep.subr.mxu0 0.0
  %3003 = vmatpush1.xpose.msra.mxu0 %v2979
  %3004 = vmatprep.subr.mxu0 0.0
  %3005 = vmatpush1.xpose.msra.mxu0 %v2982
  %3006 = vmatprep.subr.mxu0 0.0
  %3007 = vmatpush1.xpose.msra.mxu0 %v2985
  %3008 = vmatprep.subr.mxu0 0.0
  %3009 = vmatpush1.xpose.msra.mxu0 %v2988
  %3010 = vmatprep.subr.mxu0 0.0
  %3011 = vmatpush1.xpose.msra.mxu0 %v2991
  %3012 = vmatprep.subr.mxu0 0.0
  %3013 = vmatpush1.xpose.msra.mxu0 %v2994
  %3014 = vmatprep.subr.mxu0 0.0
  %3015 = vmatpush1.xpose.msra.mxu0 %v2997
  %3016 = vmatprep.subr.mxu0 0.0
  %3017 = vmatpush1.xpose.msra.mxu0 %v3000
  %3018 = vmatprep.subr.mxu0 0.0
  %3019 = vmatpush1.xpose.msra.mxu0 0.0
  %3020 = vmatprep.subr.mxu0 0.0
  %3021 = vmatpush1.xpose.msra.mxu0 0.0
  %3022 = vmatprep.subr.mxu0 0.0
  %3023 = vmatpush1.xpose.msra.mxu0 0.0
  %3024 = vmatprep.subr.mxu0 0.0
  %3025 = vmatpush1.xpose.msra.mxu0 0.0
  %3026 = vmatprep.subr.mxu0 0.0
  %3027 = vmatpush1.xpose.msra.mxu0 0.0
  %3028 = vmatprep.subr.mxu0 0.0
  %3029 = vmatpush1.xpose.msra.mxu0 0.0
  %3030 = vmatprep.subr.mxu0 0.0
  %3031 = vmatpush1.xpose.msra.mxu0 0.0
  %3032 = vmatprep.subr.mxu0 0.0
  %3033 = vmatpush1.xpose.msra.mxu0 0.0
  %3034 = vmatprep.subr.mxu0 0.0
  %3035 = vmatpush1.xpose.msra.mxu0 0.0
  %3036 = vmatprep.subr.mxu0 0.0
  %3037 = vmatpush1.xpose.msra.mxu0 0.0
  %3038 = vmatprep.subr.mxu0 0.0
  %3039 = vmatpush1.xpose.msra.mxu0 0.0
  %3040 = vmatprep.subr.mxu0 0.0
  %3041 = vmatpush1.xpose.msra.mxu0 0.0
  %3042 = vmatprep.subr.mxu0 0.0
  %3043 = vmatpush1.xpose.msra.mxu0 0.0
  %3044 = vmatprep.subr.mxu0 0.0
  %3045 = vmatpush1.xpose.msra.mxu0 0.0
  %3046 = vmatprep.subr.mxu0 0.0
  %3047 = vmatpush1.xpose.msra.mxu0 0.0
  %3048 = vmatprep.subr.mxu0 0.0
  %3049 = vmatpush1.xpose.msra.mxu0 0.0
  %3050 = vmatprep.subr.mxu0 0.0
  %3051 = vmatpush1.xpose.msra.mxu0 0.0
  %3052 = vmatprep.subr.mxu0 0.0
  %3053 = vmatpush1.xpose.msra.mxu0 0.0
  %3054 = vmatprep.subr.mxu0 0.0
  %3055 = vmatpush1.xpose.msra.mxu0 0.0
  %3056 = vmatprep.subr.mxu0 0.0
  %3057 = vmatpush1.xpose.msra.mxu0 0.0
  %3058 = vmatprep.subr.mxu0 0.0
  %3059 = vmatpush1.xpose.msra.mxu0 0.0
  %3060 = vmatprep.subr.mxu0 0.0
  %3061 = vmatpush1.xpose.msra.mxu0 0.0
  %3062 = vmatprep.subr.mxu0 0.0
  %3063 = vmatpush1.xpose.msra.mxu0 0.0
  %3064 = vmatprep.subr.mxu0 0.0
  %3065 = vmatpush1.xpose.msra.mxu0 0.0
  %3066 = vmatprep.mubr.f32.mxu0 0.0
  %3067 = vmatmul.mubr.f32.gmra.mrb[0].mxu0 %v2976
  %v3068 = vpop.f32.mrb[0].mxu0
  %v3069 = vadd.f32 0.0, %v3068
  %v3070 = vpop.f32.mrb[0].mxu0
  %3071 = vdwg.mxu0
  %v3072 = vsel %vm1247, %v940, 0
  %v3075 = vsel %vm1247, %v1143, 0
  %v3078 = vsel %vm1247, %v1144, 0
  %v3081 = vsel %vm1247, %v1145, 0
  %v3084 = vsel %vm1247, %v1146, 0
  %v3087 = vsel %vm1247, %v1147, 0
  %v3090 = vsel %vm1247, %v1148, 0
  %v3093 = vsel %vm1247, %v1149, 0
  %v3096 = vsel %vm1247, %v1150, 0
  %3098 = vmatprep.subr.mxu0 0.0
  %3099 = vmatpush1.xpose.msra.mxu0 %v3075
  %3100 = vmatprep.subr.mxu0 0.0
  %3101 = vmatpush1.xpose.msra.mxu0 %v3078
  %3102 = vmatprep.subr.mxu0 0.0
  %3103 = vmatpush1.xpose.msra.mxu0 %v3081
  %3104 = vmatprep.subr.mxu0 0.0
  %3105 = vmatpush1.xpose.msra.mxu0 %v3084
  %3106 = vmatprep.subr.mxu0 0.0
  %3107 = vmatpush1.xpose.msra.mxu0 %v3087
  %3108 = vmatprep.subr.mxu0 0.0
  %3109 = vmatpush1.xpose.msra.mxu0 %v3090
  %3110 = vmatprep.subr.mxu0 0.0
  %3111 = vmatpush1.xpose.msra.mxu0 %v3093
  %3112 = vmatprep.subr.mxu0 0.0
  %3113 = vmatpush1.xpose.msra.mxu0 %v3096
  %3114 = vmatprep.subr.mxu0 0.0
  %3115 = vmatpush1.xpose.msra.mxu0 0.0
  %3116 = vmatprep.subr.mxu0 0.0
  %3117 = vmatpush1.xpose.msra.mxu0 0.0
  %3118 = vmatprep.subr.mxu0 0.0
  %3119 = vmatpush1.xpose.msra.mxu0 0.0
  %3120 = vmatprep.subr.mxu0 0.0
  %3121 = vmatpush1.xpose.msra.mxu0 0.0
  %3122 = vmatprep.subr.mxu0 0.0
  %3123 = vmatpush1.xpose.msra.mxu0 0.0
  %3124 = vmatprep.subr.mxu0 0.0
  %3125 = vmatpush1.xpose.msra.mxu0 0.0
  %3126 = vmatprep.subr.mxu0 0.0
  %3127 = vmatpush1.xpose.msra.mxu0 0.0
  %3128 = vmatprep.subr.mxu0 0.0
  %3129 = vmatpush1.xpose.msra.mxu0 0.0
  %3130 = vmatprep.subr.mxu0 0.0
  %3131 = vmatpush1.xpose.msra.mxu0 0.0
  %3132 = vmatprep.subr.mxu0 0.0
  %3133 = vmatpush1.xpose.msra.mxu0 0.0
  %3134 = vmatprep.subr.mxu0 0.0
  %3135 = vmatpush1.xpose.msra.mxu0 0.0
  %3136 = vmatprep.subr.mxu0 0.0
  %3137 = vmatpush1.xpose.msra.mxu0 0.0
  %3138 = vmatprep.subr.mxu0 0.0
  %3139 = vmatpush1.xpose.msra.mxu0 0.0
  %3140 = vmatprep.subr.mxu0 0.0
  %3141 = vmatpush1.xpose.msra.mxu0 0.0
  %3142 = vmatprep.subr.mxu0 0.0
  %3143 = vmatpush1.xpose.msra.mxu0 0.0
  %3144 = vmatprep.subr.mxu0 0.0
  %3145 = vmatpush1.xpose.msra.mxu0 0.0
  %3146 = vmatprep.subr.mxu0 0.0
  %3147 = vmatpush1.xpose.msra.mxu0 0.0
  %3148 = vmatprep.subr.mxu0 0.0
  %3149 = vmatpush1.xpose.msra.mxu0 0.0
  %3150 = vmatprep.subr.mxu0 0.0
  %3151 = vmatpush1.xpose.msra.mxu0 0.0
  %3152 = vmatprep.subr.mxu0 0.0
  %3153 = vmatpush1.xpose.msra.mxu0 0.0
  %3154 = vmatprep.subr.mxu0 0.0
  %3155 = vmatpush1.xpose.msra.mxu0 0.0
  %3156 = vmatprep.subr.mxu0 0.0
  %3157 = vmatpush1.xpose.msra.mxu0 0.0
  %3158 = vmatprep.subr.mxu0 0.0
  %3159 = vmatpush1.xpose.msra.mxu0 0.0
  %3160 = vmatprep.subr.mxu0 0.0
  %3161 = vmatpush1.xpose.msra.mxu0 0.0
  %3162 = vmatprep.mubr.f32.mxu0 0.0
  %3163 = vmatmul.mubr.f32.gmra.mrb[0].mxu0 %v3072
  %v3164 = vpop.f32.mrb[0].mxu0
  %v3165 = vadd.f32 0.0, %v3164
  %v3166 = vpop.f32.mrb[0].mxu0
  %3167 = vdwg.mxu0
  %v3168 = vsel %vm1247, %v923, 0
  %v3171 = vsel %vm1247, %v1151, 0
  %v3174 = vsel %vm1247, %v1152, 0
  %v3177 = vsel %vm1247, %v1153, 0
  %v3180 = vsel %vm1247, %v1154, 0
  %v3183 = vsel %vm1247, %v1155, 0
  %v3186 = vsel %vm1247, %v1156, 0
  %v3189 = vsel %vm1247, %v1157, 0
  %v3192 = vsel %vm1247, %v1158, 0
  %3194 = vmatprep.subr.mxu0 0.0
  %3195 = vmatpush1.xpose.msra.mxu0 %v3171
  %3196 = vmatprep.subr.mxu0 0.0
  %3197 = vmatpush1.xpose.msra.mxu0 %v3174
  %3198 = vmatprep.subr.mxu0 0.0
  %3199 = vmatpush1.xpose.msra.mxu0 %v3177
  %3200 = vmatprep.subr.mxu0 0.0
  %3201 = vmatpush1.xpose.msra.mxu0 %v3180
  %3202 = vmatprep.subr.mxu0 0.0
  %3203 = vmatpush1.xpose.msra.mxu0 %v3183
  %3204 = vmatprep.subr.mxu0 0.0
  %3205 = vmatpush1.xpose.msra.mxu0 %v3186
  %3206 = vmatprep.subr.mxu0 0.0
  %3207 = vmatpush1.xpose.msra.mxu0 %v3189
  %3208 = vmatprep.subr.mxu0 0.0
  %3209 = vmatpush1.xpose.msra.mxu0 %v3192
  %3210 = vmatprep.subr.mxu0 0.0
  %3211 = vmatpush1.xpose.msra.mxu0 0.0
  %3212 = vmatprep.subr.mxu0 0.0
  %3213 = vmatpush1.xpose.msra.mxu0 0.0
  %3214 = vmatprep.subr.mxu0 0.0
  %3215 = vmatpush1.xpose.msra.mxu0 0.0
  %3216 = vmatprep.subr.mxu0 0.0
  %3217 = vmatpush1.xpose.msra.mxu0 0.0
  %3218 = vmatprep.subr.mxu0 0.0
  %3219 = vmatpush1.xpose.msra.mxu0 0.0
  %3220 = vmatprep.subr.mxu0 0.0
  %3221 = vmatpush1.xpose.msra.mxu0 0.0
  %3222 = vmatprep.subr.mxu0 0.0
  %3223 = vmatpush1.xpose.msra.mxu0 0.0
  %3224 = vmatprep.subr.mxu0 0.0
  %3225 = vmatpush1.xpose.msra.mxu0 0.0
  %3226 = vmatprep.subr.mxu0 0.0
  %3227 = vmatpush1.xpose.msra.mxu0 0.0
  %3228 = vmatprep.subr.mxu0 0.0
  %3229 = vmatpush1.xpose.msra.mxu0 0.0
  %3230 = vmatprep.subr.mxu0 0.0
  %3231 = vmatpush1.xpose.msra.mxu0 0.0
  %3232 = vmatprep.subr.mxu0 0.0
  %3233 = vmatpush1.xpose.msra.mxu0 0.0
  %3234 = vmatprep.subr.mxu0 0.0
  %3235 = vmatpush1.xpose.msra.mxu0 0.0
  %3236 = vmatprep.subr.mxu0 0.0
  %3237 = vmatpush1.xpose.msra.mxu0 0.0
  %3238 = vmatprep.subr.mxu0 0.0
  %3239 = vmatpush1.xpose.msra.mxu0 0.0
  %3240 = vmatprep.subr.mxu0 0.0
  %3241 = vmatpush1.xpose.msra.mxu0 0.0
  %3242 = vmatprep.subr.mxu0 0.0
  %3243 = vmatpush1.xpose.msra.mxu0 0.0
  %3244 = vmatprep.subr.mxu0 0.0
  %3245 = vmatpush1.xpose.msra.mxu0 0.0
  %3246 = vmatprep.subr.mxu0 0.0
  %3247 = vmatpush1.xpose.msra.mxu0 0.0
  %3248 = vmatprep.subr.mxu0 0.0
  %3249 = vmatpush1.xpose.msra.mxu0 0.0
  %3250 = vmatprep.subr.mxu0 0.0
  %3251 = vmatpush1.xpose.msra.mxu0 0.0
  %3252 = vmatprep.subr.mxu0 0.0
  %3253 = vmatpush1.xpose.msra.mxu0 0.0
  %3254 = vmatprep.subr.mxu0 0.0
  %3255 = vmatpush1.xpose.msra.mxu0 0.0
  %3256 = vmatprep.subr.mxu0 0.0
  %3257 = vmatpush1.xpose.msra.mxu0 0.0
  %3258 = vmatprep.mubr.f32.mxu0 0.0
  %3259 = vmatmul.mubr.f32.gmra.mrb[0].mxu0 %v3168
  %v3260 = vpop.f32.mrb[0].mxu0
  %v3261 = vadd.f32 0.0, %v3260
  %v3262 = vpop.f32.mrb[0].mxu0
  %3263 = vdwg.mxu0
  %v3264 = vsel %vm1247, %v937, 0
  %v3267 = vsel %vm1247, %v1159, 0
  %v3270 = vsel %vm1247, %v1160, 0
  %v3273 = vsel %vm1247, %v1161, 0
  %v3276 = vsel %vm1247, %v1162, 0
  %v3279 = vsel %vm1247, %v1163, 0
  %v3282 = vsel %vm1247, %v1164, 0
  %v3285 = vsel %vm1247, %v1165, 0
  %v3288 = vsel %vm1247, %v1166, 0
  %3290 = vmatprep.subr.mxu0 0.0
  %3291 = vmatpush1.xpose.msra.mxu0 %v3267
  %3292 = vmatprep.subr.mxu0 0.0
  %3293 = vmatpush1.xpose.msra.mxu0 %v3270
  %3294 = vmatprep.subr.mxu0 0.0
  %3295 = vmatpush1.xpose.msra.mxu0 %v3273
  %3296 = vmatprep.subr.mxu0 0.0
  %3297 = vmatpush1.xpose.msra.mxu0 %v3276
  %3298 = vmatprep.subr.mxu0 0.0
  %3299 = vmatpush1.xpose.msra.mxu0 %v3279
  %3300 = vmatprep.subr.mxu0 0.0
  %3301 = vmatpush1.xpose.msra.mxu0 %v3282
  %3302 = vmatprep.subr.mxu0 0.0
  %3303 = vmatpush1.xpose.msra.mxu0 %v3285
  %3304 = vmatprep.subr.mxu0 0.0
  %3305 = vmatpush1.xpose.msra.mxu0 %v3288
  %3306 = vmatprep.subr.mxu0 0.0
  %3307 = vmatpush1.xpose.msra.mxu0 0.0
  %3308 = vmatprep.subr.mxu0 0.0
  %3309 = vmatpush1.xpose.msra.mxu0 0.0
  %3310 = vmatprep.subr.mxu0 0.0
  %3311 = vmatpush1.xpose.msra.mxu0 0.0
  %3312 = vmatprep.subr.mxu0 0.0
  %3313 = vmatpush1.xpose.msra.mxu0 0.0
  %3314 = vmatprep.subr.mxu0 0.0
  %3315 = vmatpush1.xpose.msra.mxu0 0.0
  %3316 = vmatprep.subr.mxu0 0.0
  %3317 = vmatpush1.xpose.msra.mxu0 0.0
  %3318 = vmatprep.subr.mxu0 0.0
  %3319 = vmatpush1.xpose.msra.mxu0 0.0
  %3320 = vmatprep.subr.mxu0 0.0
  %3321 = vmatpush1.xpose.msra.mxu0 0.0
  %3322 = vmatprep.subr.mxu0 0.0
  %3323 = vmatpush1.xpose.msra.mxu0 0.0
  %3324 = vmatprep.subr.mxu0 0.0
  %3325 = vmatpush1.xpose.msra.mxu0 0.0
  %3326 = vmatprep.subr.mxu0 0.0
  %3327 = vmatpush1.xpose.msra.mxu0 0.0
  %3328 = vmatprep.subr.mxu0 0.0
  %3329 = vmatpush1.xpose.msra.mxu0 0.0
  %3330 = vmatprep.subr.mxu0 0.0
  %3331 = vmatpush1.xpose.msra.mxu0 0.0
  %3332 = vmatprep.subr.mxu0 0.0
  %3333 = vmatpush1.xpose.msra.mxu0 0.0
  %3334 = vmatprep.subr.mxu0 0.0
  %3335 = vmatpush1.xpose.msra.mxu0 0.0
  %3336 = vmatprep.subr.mxu0 0.0
  %3337 = vmatpush1.xpose.msra.mxu0 0.0
  %3338 = vmatprep.subr.mxu0 0.0
  %3339 = vmatpush1.xpose.msra.mxu0 0.0
  %3340 = vmatprep.subr.mxu0 0.0
  %3341 = vmatpush1.xpose.msra.mxu0 0.0
  %3342 = vmatprep.subr.mxu0 0.0
  %3343 = vmatpush1.xpose.msra.mxu0 0.0
  %3344 = vmatprep.subr.mxu0 0.0
  %3345 = vmatpush1.xpose.msra.mxu0 0.0
  %3346 = vmatprep.subr.mxu0 0.0
  %3347 = vmatpush1.xpose.msra.mxu0 0.0
  %3348 = vmatprep.subr.mxu0 0.0
  %3349 = vmatpush1.xpose.msra.mxu0 0.0
  %3350 = vmatprep.subr.mxu0 0.0
  %3351 = vmatpush1.xpose.msra.mxu0 0.0
  %3352 = vmatprep.subr.mxu0 0.0
  %3353 = vmatpush1.xpose.msra.mxu0 0.0
  %3354 = vmatprep.mubr.f32.mxu0 0.0
  %3355 = vmatmul.mubr.f32.gmra.mrb[0].mxu0 %v3264
  %v3356 = vpop.f32.mrb[0].mxu0
  %v3357 = vadd.f32 0.0, %v3356
  %v3358 = vpop.f32.mrb[0].mxu0
  %3359 = vdwg.mxu0
  %v3360 = vsel %vm1247, %v939, 0
  %v3363 = vsel %vm1247, %v1167, 0
  %v3366 = vsel %vm1247, %v1168, 0
  %v3369 = vsel %vm1247, %v1169, 0
  %v3372 = vsel %vm1247, %v1170, 0
  %v3375 = vsel %vm1247, %v1171, 0
  %v3378 = vsel %vm1247, %v1172, 0
  %v3381 = vsel %vm1247, %v1173, 0
  %v3384 = vsel %vm1247, %v1174, 0
  %3386 = vmatprep.subr.mxu0 0.0
  %3387 = vmatpush1.xpose.msra.mxu0 %v3363
  %3388 = vmatprep.subr.mxu0 0.0
  %3389 = vmatpush1.xpose.msra.mxu0 %v3366
  %3390 = vmatprep.subr.mxu0 0.0
  %3391 = vmatpush1.xpose.msra.mxu0 %v3369
  %3392 = vmatprep.subr.mxu0 0.0
  %3393 = vmatpush1.xpose.msra.mxu0 %v3372
  %3394 = vmatprep.subr.mxu0 0.0
  %3395 = vmatpush1.xpose.msra.mxu0 %v3375
  %3396 = vmatprep.subr.mxu0 0.0
  %3397 = vmatpush1.xpose.msra.mxu0 %v3378
  %3398 = vmatprep.subr.mxu0 0.0
  %3399 = vmatpush1.xpose.msra.mxu0 %v3381
  %3400 = vmatprep.subr.mxu0 0.0
  %3401 = vmatpush1.xpose.msra.mxu0 %v3384
  %3402 = vmatprep.subr.mxu0 0.0
  %3403 = vmatpush1.xpose.msra.mxu0 0.0
  %3404 = vmatprep.subr.mxu0 0.0
  %3405 = vmatpush1.xpose.msra.mxu0 0.0
  %3406 = vmatprep.subr.mxu0 0.0
  %3407 = vmatpush1.xpose.msra.mxu0 0.0
  %3408 = vmatprep.subr.mxu0 0.0
  %3409 = vmatpush1.xpose.msra.mxu0 0.0
  %3410 = vmatprep.subr.mxu0 0.0
  %3411 = vmatpush1.xpose.msra.mxu0 0.0
  %3412 = vmatprep.subr.mxu0 0.0
  %3413 = vmatpush1.xpose.msra.mxu0 0.0
  %3414 = vmatprep.subr.mxu0 0.0
  %3415 = vmatpush1.xpose.msra.mxu0 0.0
  %3416 = vmatprep.subr.mxu0 0.0
  %3417 = vmatpush1.xpose.msra.mxu0 0.0
  %3418 = vmatprep.subr.mxu0 0.0
  %3419 = vmatpush1.xpose.msra.mxu0 0.0
  %3420 = vmatprep.subr.mxu0 0.0
  %3421 = vmatpush1.xpose.msra.mxu0 0.0
  %3422 = vmatprep.subr.mxu0 0.0
  %3423 = vmatpush1.xpose.msra.mxu0 0.0
  %3424 = vmatprep.subr.mxu0 0.0
  %3425 = vmatpush1.xpose.msra.mxu0 0.0
  %3426 = vmatprep.subr.mxu0 0.0
  %3427 = vmatpush1.xpose.msra.mxu0 0.0
  %3428 = vmatprep.subr.mxu0 0.0
  %3429 = vmatpush1.xpose.msra.mxu0 0.0
  %3430 = vmatprep.subr.mxu0 0.0
  %3431 = vmatpush1.xpose.msra.mxu0 0.0
  %3432 = vmatprep.subr.mxu0 0.0
  %3433 = vmatpush1.xpose.msra.mxu0 0.0
  %3434 = vmatprep.subr.mxu0 0.0
  %3435 = vmatpush1.xpose.msra.mxu0 0.0
  %3436 = vmatprep.subr.mxu0 0.0
  %3437 = vmatpush1.xpose.msra.mxu0 0.0
  %3438 = vmatprep.subr.mxu0 0.0
  %3439 = vmatpush1.xpose.msra.mxu0 0.0
  %3440 = vmatprep.subr.mxu0 0.0
  %3441 = vmatpush1.xpose.msra.mxu0 0.0
  %3442 = vmatprep.subr.mxu0 0.0
  %3443 = vmatpush1.xpose.msra.mxu0 0.0
  %3444 = vmatprep.subr.mxu0 0.0
  %3445 = vmatpush1.xpose.msra.mxu0 0.0
  %3446 = vmatprep.subr.mxu0 0.0
  %3447 = vmatpush1.xpose.msra.mxu0 0.0
  %3448 = vmatprep.subr.mxu0 0.0
  %3449 = vmatpush1.xpose.msra.mxu0 0.0
  %3450 = vmatprep.mubr.f32.mxu0 0.0
  %3451 = vmatmul.mubr.f32.gmra.mrb[0].mxu0 %v3360
  %v3452 = vpop.f32.mrb[0].mxu0
  %v3453 = vadd.f32 0.0, %v3452
  %v3454 = vpop.f32.mrb[0].mxu0
  %3455 = vdwg.mxu0
  %v3456 = vsel %vm1247, %v941, 0
  %v3459 = vsel %vm1247, %v1175, 0
  %v3462 = vsel %vm1247, %v1176, 0
  %v3465 = vsel %vm1247, %v1177, 0
  %v3468 = vsel %vm1247, %v1178, 0
  %v3471 = vsel %vm1247, %v1179, 0
  %v3474 = vsel %vm1247, %v1180, 0
  %v3477 = vsel %vm1247, %v1181, 0
  %v3480 = vsel %vm1247, %v1182, 0
  %3482 = vmatprep.subr.mxu0 0.0
  %3483 = vmatpush1.xpose.msra.mxu0 %v3459
  %3484 = vmatprep.subr.mxu0 0.0
  %3485 = vmatpush1.xpose.msra.mxu0 %v3462
  %3486 = vmatprep.subr.mxu0 0.0
  %3487 = vmatpush1.xpose.msra.mxu0 %v3465
  %3488 = vmatprep.subr.mxu0 0.0
  %3489 = vmatpush1.xpose.msra.mxu0 %v3468
  %3490 = vmatprep.subr.mxu0 0.0
  %3491 = vmatpush1.xpose.msra.mxu0 %v3471
  %3492 = vmatprep.subr.mxu0 0.0
  %3493 = vmatpush1.xpose.msra.mxu0 %v3474
  %3494 = vmatprep.subr.mxu0 0.0
  %3495 = vmatpush1.xpose.msra.mxu0 %v3477
  %3496 = vmatprep.subr.mxu0 0.0
  %3497 = vmatpush1.xpose.msra.mxu0 %v3480
  %3498 = vmatprep.subr.mxu0 0.0
  %3499 = vmatpush1.xpose.msra.mxu0 0.0
  %3500 = vmatprep.subr.mxu0 0.0
  %3501 = vmatpush1.xpose.msra.mxu0 0.0
  %3502 = vmatprep.subr.mxu0 0.0
  %3503 = vmatpush1.xpose.msra.mxu0 0.0
  %3504 = vmatprep.subr.mxu0 0.0
  %3505 = vmatpush1.xpose.msra.mxu0 0.0
  %3506 = vmatprep.subr.mxu0 0.0
  %3507 = vmatpush1.xpose.msra.mxu0 0.0
  %3508 = vmatprep.subr.mxu0 0.0
  %3509 = vmatpush1.xpose.msra.mxu0 0.0
  %3510 = vmatprep.subr.mxu0 0.0
  %3511 = vmatpush1.xpose.msra.mxu0 0.0
  %3512 = vmatprep.subr.mxu0 0.0
  %3513 = vmatpush1.xpose.msra.mxu0 0.0
  %3514 = vmatprep.subr.mxu0 0.0
  %3515 = vmatpush1.xpose.msra.mxu0 0.0
  %3516 = vmatprep.subr.mxu0 0.0
  %3517 = vmatpush1.xpose.msra.mxu0 0.0
  %3518 = vmatprep.subr.mxu0 0.0
  %3519 = vmatpush1.xpose.msra.mxu0 0.0
  %3520 = vmatprep.subr.mxu0 0.0
  %3521 = vmatpush1.xpose.msra.mxu0 0.0
  %3522 = vmatprep.subr.mxu0 0.0
  %3523 = vmatpush1.xpose.msra.mxu0 0.0
  %3524 = vmatprep.subr.mxu0 0.0
  %3525 = vmatpush1.xpose.msra.mxu0 0.0
  %3526 = vmatprep.subr.mxu0 0.0
  %3527 = vmatpush1.xpose.msra.mxu0 0.0
  %3528 = vmatprep.subr.mxu0 0.0
  %3529 = vmatpush1.xpose.msra.mxu0 0.0
  %3530 = vmatprep.subr.mxu0 0.0
  %3531 = vmatpush1.xpose.msra.mxu0 0.0
  %3532 = vmatprep.subr.mxu0 0.0
  %3533 = vmatpush1.xpose.msra.mxu0 0.0
  %3534 = vmatprep.subr.mxu0 0.0
  %3535 = vmatpush1.xpose.msra.mxu0 0.0
  %3536 = vmatprep.subr.mxu0 0.0
  %3537 = vmatpush1.xpose.msra.mxu0 0.0
  %3538 = vmatprep.subr.mxu0 0.0
  %3539 = vmatpush1.xpose.msra.mxu0 0.0
  %3540 = vmatprep.subr.mxu0 0.0
  %3541 = vmatpush1.xpose.msra.mxu0 0.0
  %3542 = vmatprep.subr.mxu0 0.0
  %3543 = vmatpush1.xpose.msra.mxu0 0.0
  %3544 = vmatprep.subr.mxu0 0.0
  %3545 = vmatpush1.xpose.msra.mxu0 0.0
  %3546 = vmatprep.mubr.f32.mxu0 0.0
  %3547 = vmatmul.mubr.f32.gmra.mrb[0].mxu0 %v3456
  %v3548 = vpop.f32.mrb[0].mxu0
  %v3549 = vadd.f32 0.0, %v3548
  %v3550 = vpop.f32.mrb[0].mxu0
  %3551 = vdwg.mxu0
  %v3552 = vsel %vm1247, %v965, 0
  %v3555 = vsel %vm1247, %v1183, 0
  %v3558 = vsel %vm1247, %v1184, 0
  %v3561 = vsel %vm1247, %v1185, 0
  %v3564 = vsel %vm1247, %v1186, 0
  %v3567 = vsel %vm1247, %v1187, 0
  %v3570 = vsel %vm1247, %v1188, 0
  %v3573 = vsel %vm1247, %v1189, 0
  %v3576 = vsel %vm1247, %v1190, 0
  %3578 = vmatprep.subr.mxu0 0.0
  %3579 = vmatpush1.xpose.msra.mxu0 %v3555
  %3580 = vmatprep.subr.mxu0 0.0
  %3581 = vmatpush1.xpose.msra.mxu0 %v3558
  %3582 = vmatprep.subr.mxu0 0.0
  %3583 = vmatpush1.xpose.msra.mxu0 %v3561
  %3584 = vmatprep.subr.mxu0 0.0
  %3585 = vmatpush1.xpose.msra.mxu0 %v3564
  %3586 = vmatprep.subr.mxu0 0.0
  %3587 = vmatpush1.xpose.msra.mxu0 %v3567
  %3588 = vmatprep.subr.mxu0 0.0
  %3589 = vmatpush1.xpose.msra.mxu0 %v3570
  %3590 = vmatprep.subr.mxu0 0.0
  %3591 = vmatpush1.xpose.msra.mxu0 %v3573
  %3592 = vmatprep.subr.mxu0 0.0
  %3593 = vmatpush1.xpose.msra.mxu0 %v3576
  %3594 = vmatprep.subr.mxu0 0.0
  %3595 = vmatpush1.xpose.msra.mxu0 0.0
  %3596 = vmatprep.subr.mxu0 0.0
  %3597 = vmatpush1.xpose.msra.mxu0 0.0
  %3598 = vmatprep.subr.mxu0 0.0
  %3599 = vmatpush1.xpose.msra.mxu0 0.0
  %3600 = vmatprep.subr.mxu0 0.0
  %3601 = vmatpush1.xpose.msra.mxu0 0.0
  %3602 = vmatprep.subr.mxu0 0.0
  %3603 = vmatpush1.xpose.msra.mxu0 0.0
  %3604 = vmatprep.subr.mxu0 0.0
  %3605 = vmatpush1.xpose.msra.mxu0 0.0
  %3606 = vmatprep.subr.mxu0 0.0
  %3607 = vmatpush1.xpose.msra.mxu0 0.0
  %3608 = vmatprep.subr.mxu0 0.0
  %3609 = vmatpush1.xpose.msra.mxu0 0.0
  %3610 = vmatprep.subr.mxu0 0.0
  %3611 = vmatpush1.xpose.msra.mxu0 0.0
  %3612 = vmatprep.subr.mxu0 0.0
  %3613 = vmatpush1.xpose.msra.mxu0 0.0
  %3614 = vmatprep.subr.mxu0 0.0
  %3615 = vmatpush1.xpose.msra.mxu0 0.0
  %3616 = vmatprep.subr.mxu0 0.0
  %3617 = vmatpush1.xpose.msra.mxu0 0.0
  %3618 = vmatprep.subr.mxu0 0.0
  %3619 = vmatpush1.xpose.msra.mxu0 0.0
  %3620 = vmatprep.subr.mxu0 0.0
  %3621 = vmatpush1.xpose.msra.mxu0 0.0
  %3622 = vmatprep.subr.mxu0 0.0
  %3623 = vmatpush1.xpose.msra.mxu0 0.0
  %3624 = vmatprep.subr.mxu0 0.0
  %3625 = vmatpush1.xpose.msra.mxu0 0.0
  %3626 = vmatprep.subr.mxu0 0.0
  %3627 = vmatpush1.xpose.msra.mxu0 0.0
  %3628 = vmatprep.subr.mxu0 0.0
  %3629 = vmatpush1.xpose.msra.mxu0 0.0
  %3630 = vmatprep.subr.mxu0 0.0
  %3631 = vmatpush1.xpose.msra.mxu0 0.0
  %3632 = vmatprep.subr.mxu0 0.0
  %3633 = vmatpush1.xpose.msra.mxu0 0.0
  %3634 = vmatprep.subr.mxu0 0.0
  %3635 = vmatpush1.xpose.msra.mxu0 0.0
  %3636 = vmatprep.subr.mxu0 0.0
  %3637 = vmatpush1.xpose.msra.mxu0 0.0
  %3638 = vmatprep.subr.mxu0 0.0
  %3639 = vmatpush1.xpose.msra.mxu0 0.0
  %3640 = vmatprep.subr.mxu0 0.0
  %3641 = vmatpush1.xpose.msra.mxu0 0.0
  %3642 = vmatprep.mubr.f32.mxu0 0.0
  %3643 = vmatmul.mubr.f32.gmra.mrb[0].mxu0 %v3552
  %v3644 = vpop.f32.mrb[0].mxu0
  %v3645 = vadd.f32 0.0, %v3644
  %v3646 = vpop.f32.mrb[0].mxu0
  %3647 = vdwg.mxu0
  %v3648 = vsel %vm1247, %v979, 0
  %v3651 = vsel %vm1247, %v1191, 0
  %v3654 = vsel %vm1247, %v1192, 0
  %v3657 = vsel %vm1247, %v1193, 0
  %v3660 = vsel %vm1247, %v1194, 0
  %v3663 = vsel %vm1247, %v1195, 0
  %v3666 = vsel %vm1247, %v1196, 0
  %v3669 = vsel %vm1247, %v1197, 0
  %v3672 = vsel %vm1247, %v1198, 0
  %3674 = vmatprep.subr.mxu0 0.0
  %3675 = vmatpush1.xpose.msra.mxu0 %v3651
  %3676 = vmatprep.subr.mxu0 0.0
  %3677 = vmatpush1.xpose.msra.mxu0 %v3654
  %3678 = vmatprep.subr.mxu0 0.0
  %3679 = vmatpush1.xpose.msra.mxu0 %v3657
  %3680 = vmatprep.subr.mxu0 0.0
  %3681 = vmatpush1.xpose.msra.mxu0 %v3660
  %3682 = vmatprep.subr.mxu0 0.0
  %3683 = vmatpush1.xpose.msra.mxu0 %v3663
  %3684 = vmatprep.subr.mxu0 0.0
  %3685 = vmatpush1.xpose.msra.mxu0 %v3666
  %3686 = vmatprep.subr.mxu0 0.0
  %3687 = vmatpush1.xpose.msra.mxu0 %v3669
  %3688 = vmatprep.subr.mxu0 0.0
  %3689 = vmatpush1.xpose.msra.mxu0 %v3672
  %3690 = vmatprep.subr.mxu0 0.0
  %3691 = vmatpush1.xpose.msra.mxu0 0.0
  %3692 = vmatprep.subr.mxu0 0.0
  %3693 = vmatpush1.xpose.msra.mxu0 0.0
  %3694 = vmatprep.subr.mxu0 0.0
  %3695 = vmatpush1.xpose.msra.mxu0 0.0
  %3696 = vmatprep.subr.mxu0 0.0
  %3697 = vmatpush1.xpose.msra.mxu0 0.0
  %3698 = vmatprep.subr.mxu0 0.0
  %3699 = vmatpush1.xpose.msra.mxu0 0.0
  %3700 = vmatprep.subr.mxu0 0.0
  %3701 = vmatpush1.xpose.msra.mxu0 0.0
  %3702 = vmatprep.subr.mxu0 0.0
  %3703 = vmatpush1.xpose.msra.mxu0 0.0
  %3704 = vmatprep.subr.mxu0 0.0
  %3705 = vmatpush1.xpose.msra.mxu0 0.0
  %3706 = vmatprep.subr.mxu0 0.0
  %3707 = vmatpush1.xpose.msra.mxu0 0.0
  %3708 = vmatprep.subr.mxu0 0.0
  %3709 = vmatpush1.xpose.msra.mxu0 0.0
  %3710 = vmatprep.subr.mxu0 0.0
  %3711 = vmatpush1.xpose.msra.mxu0 0.0
  %3712 = vmatprep.subr.mxu0 0.0
  %3713 = vmatpush1.xpose.msra.mxu0 0.0
  %3714 = vmatprep.subr.mxu0 0.0
  %3715 = vmatpush1.xpose.msra.mxu0 0.0
  %3716 = vmatprep.subr.mxu0 0.0
  %3717 = vmatpush1.xpose.msra.mxu0 0.0
  %3718 = vmatprep.subr.mxu0 0.0
  %3719 = vmatpush1.xpose.msra.mxu0 0.0
  %3720 = vmatprep.subr.mxu0 0.0
  %3721 = vmatpush1.xpose.msra.mxu0 0.0
  %3722 = vmatprep.subr.mxu0 0.0
  %3723 = vmatpush1.xpose.msra.mxu0 0.0
  %3724 = vmatprep.subr.mxu0 0.0
  %3725 = vmatpush1.xpose.msra.mxu0 0.0
  %3726 = vmatprep.subr.mxu0 0.0
  %3727 = vmatpush1.xpose.msra.mxu0 0.0
  %3728 = vmatprep.subr.mxu0 0.0
  %3729 = vmatpush1.xpose.msra.mxu0 0.0
  %3730 = vmatprep.subr.mxu0 0.0
  %3731 = vmatpush1.xpose.msra.mxu0 0.0
  %3732 = vmatprep.subr.mxu0 0.0
  %3733 = vmatpush1.xpose.msra.mxu0 0.0
  %3734 = vmatprep.subr.mxu0 0.0
  %3735 = vmatpush1.xpose.msra.mxu0 0.0
  %3736 = vmatprep.subr.mxu0 0.0
  %3737 = vmatpush1.xpose.msra.mxu0 0.0
  %3738 = vmatprep.mubr.f32.mxu0 0.0
  %3739 = vmatmul.mubr.f32.gmra.mrb[0].mxu0 %v3648
  %v3740 = vpop.f32.mrb[0].mxu0
  %v3741 = vadd.f32 0.0, %v3740
  %v3742 = vpop.f32.mrb[0].mxu0
  %3743 = vdwg.mxu0
  %v3744 = vsel %vm1247, %v987, 0
  %v3747 = vsel %vm1247, %v1199, 0
  %v3750 = vsel %vm1247, %v1200, 0
  %v3753 = vsel %vm1247, %v1201, 0
  %v3756 = vsel %vm1247, %v1202, 0
  %v3759 = vsel %vm1247, %v1203, 0
  %v3762 = vsel %vm1247, %v1204, 0
  %v3765 = vsel %vm1247, %v1205, 0
  %v3768 = vsel %vm1247, %v1206, 0
  %3770 = vmatprep.subr.mxu0 0.0
  %3771 = vmatpush1.xpose.msra.mxu0 %v3747
  %3772 = vmatprep.subr.mxu0 0.0
  %3773 = vmatpush1.xpose.msra.mxu0 %v3750
  %3774 = vmatprep.subr.mxu0 0.0
  %3775 = vmatpush1.xpose.msra.mxu0 %v3753
  %3776 = vmatprep.subr.mxu0 0.0
  %3777 = vmatpush1.xpose.msra.mxu0 %v3756
  %3778 = vmatprep.subr.mxu0 0.0
  %3779 = vmatpush1.xpose.msra.mxu0 %v3759
  %3780 = vmatprep.subr.mxu0 0.0
  %3781 = vmatpush1.xpose.msra.mxu0 %v3762
  %3782 = vmatprep.subr.mxu0 0.0
  %3783 = vmatpush1.xpose.msra.mxu0 %v3765
  %3784 = vmatprep.subr.mxu0 0.0
  %3785 = vmatpush1.xpose.msra.mxu0 %v3768
  %3786 = vmatprep.subr.mxu0 0.0
  %3787 = vmatpush1.xpose.msra.mxu0 0.0
  %3788 = vmatprep.subr.mxu0 0.0
  %3789 = vmatpush1.xpose.msra.mxu0 0.0
  %3790 = vmatprep.subr.mxu0 0.0
  %3791 = vmatpush1.xpose.msra.mxu0 0.0
  %3792 = vmatprep.subr.mxu0 0.0
  %3793 = vmatpush1.xpose.msra.mxu0 0.0
  %3794 = vmatprep.subr.mxu0 0.0
  %3795 = vmatpush1.xpose.msra.mxu0 0.0
  %3796 = vmatprep.subr.mxu0 0.0
  %3797 = vmatpush1.xpose.msra.mxu0 0.0
  %3798 = vmatprep.subr.mxu0 0.0
  %3799 = vmatpush1.xpose.msra.mxu0 0.0
  %3800 = vmatprep.subr.mxu0 0.0
  %3801 = vmatpush1.xpose.msra.mxu0 0.0
  %3802 = vmatprep.subr.mxu0 0.0
  %3803 = vmatpush1.xpose.msra.mxu0 0.0
  %3804 = vmatprep.subr.mxu0 0.0
  %3805 = vmatpush1.xpose.msra.mxu0 0.0
  %3806 = vmatprep.subr.mxu0 0.0
  %3807 = vmatpush1.xpose.msra.mxu0 0.0
  %3808 = vmatprep.subr.mxu0 0.0
  %3809 = vmatpush1.xpose.msra.mxu0 0.0
  %3810 = vmatprep.subr.mxu0 0.0
  %3811 = vmatpush1.xpose.msra.mxu0 0.0
  %3812 = vmatprep.subr.mxu0 0.0
  %3813 = vmatpush1.xpose.msra.mxu0 0.0
  %3814 = vmatprep.subr.mxu0 0.0
  %3815 = vmatpush1.xpose.msra.mxu0 0.0
  %3816 = vmatprep.subr.mxu0 0.0
  %3817 = vmatpush1.xpose.msra.mxu0 0.0
  %3818 = vmatprep.subr.mxu0 0.0
  %3819 = vmatpush1.xpose.msra.mxu0 0.0
  %3820 = vmatprep.subr.mxu0 0.0
  %3821 = vmatpush1.xpose.msra.mxu0 0.0
  %3822 = vmatprep.subr.mxu0 0.0
  %3823 = vmatpush1.xpose.msra.mxu0 0.0
  %3824 = vmatprep.subr.mxu0 0.0
  %3825 = vmatpush1.xpose.msra.mxu0 0.0
  %3826 = vmatprep.subr.mxu0 0.0
  %3827 = vmatpush1.xpose.msra.mxu0 0.0
  %3828 = vmatprep.subr.mxu0 0.0
  %3829 = vmatpush1.xpose.msra.mxu0 0.0
  %3830 = vmatprep.subr.mxu0 0.0
  %3831 = vmatpush1.xpose.msra.mxu0 0.0
  %3832 = vmatprep.subr.mxu0 0.0
  %3833 = vmatpush1.xpose.msra.mxu0 0.0
  %3834 = vmatprep.mubr.f32.mxu0 0.0
  %3835 = vmatmul.mubr.f32.gmra.mrb[0].mxu0 %v3744
  %v3836 = vpop.f32.mrb[0].mxu0
  %v3837 = vadd.f32 0.0, %v3836
  %v3838 = vpop.f32.mrb[0].mxu0
  %3839 = vdwg.mxu0
  %v3840 = vsel %vm1247, %v989, 0
  %v3843 = vsel %vm1247, %v1207, 0
  %v3846 = vsel %vm1247, %v1208, 0
  %v3849 = vsel %vm1247, %v1209, 0
  %v3852 = vsel %vm1247, %v1210, 0
  %v3855 = vsel %vm1247, %v1211, 0
  %v3858 = vsel %vm1247, %v1212, 0
  %v3861 = vsel %vm1247, %v1213, 0
  %v3864 = vsel %vm1247, %v1214, 0
  %3866 = vmatprep.subr.mxu0 0.0
  %3867 = vmatpush1.xpose.msra.mxu0 %v3843
  %3868 = vmatprep.subr.mxu0 0.0
  %3869 = vmatpush1.xpose.msra.mxu0 %v3846
  %3870 = vmatprep.subr.mxu0 0.0
  %3871 = vmatpush1.xpose.msra.mxu0 %v3849
  %3872 = vmatprep.subr.mxu0 0.0
  %3873 = vmatpush1.xpose.msra.mxu0 %v3852
  %3874 = vmatprep.subr.mxu0 0.0
  %3875 = vmatpush1.xpose.msra.mxu0 %v3855
  %3876 = vmatprep.subr.mxu0 0.0
  %3877 = vmatpush1.xpose.msra.mxu0 %v3858
  %3878 = vmatprep.subr.mxu0 0.0
  %3879 = vmatpush1.xpose.msra.mxu0 %v3861
  %3880 = vmatprep.subr.mxu0 0.0
  %3881 = vmatpush1.xpose.msra.mxu0 %v3864
  %3882 = vmatprep.subr.mxu0 0.0
  %3883 = vmatpush1.xpose.msra.mxu0 0.0
  %3884 = vmatprep.subr.mxu0 0.0
  %3885 = vmatpush1.xpose.msra.mxu0 0.0
  %3886 = vmatprep.subr.mxu0 0.0
  %3887 = vmatpush1.xpose.msra.mxu0 0.0
  %3888 = vmatprep.subr.mxu0 0.0
  %3889 = vmatpush1.xpose.msra.mxu0 0.0
  %3890 = vmatprep.subr.mxu0 0.0
  %3891 = vmatpush1.xpose.msra.mxu0 0.0
  %3892 = vmatprep.subr.mxu0 0.0
  %3893 = vmatpush1.xpose.msra.mxu0 0.0
  %3894 = vmatprep.subr.mxu0 0.0
  %3895 = vmatpush1.xpose.msra.mxu0 0.0
  %3896 = vmatprep.subr.mxu0 0.0
  %3897 = vmatpush1.xpose.msra.mxu0 0.0
  %3898 = vmatprep.subr.mxu0 0.0
  %3899 = vmatpush1.xpose.msra.mxu0 0.0
  %3900 = vmatprep.subr.mxu0 0.0
  %3901 = vmatpush1.xpose.msra.mxu0 0.0
  %3902 = vmatprep.subr.mxu0 0.0
  %3903 = vmatpush1.xpose.msra.mxu0 0.0
  %3904 = vmatprep.subr.mxu0 0.0
  %3905 = vmatpush1.xpose.msra.mxu0 0.0
  %3906 = vmatprep.subr.mxu0 0.0
  %3907 = vmatpush1.xpose.msra.mxu0 0.0
  %3908 = vmatprep.subr.mxu0 0.0
  %3909 = vmatpush1.xpose.msra.mxu0 0.0
  %3910 = vmatprep.subr.mxu0 0.0
  %3911 = vmatpush1.xpose.msra.mxu0 0.0
  %3912 = vmatprep.subr.mxu0 0.0
  %3913 = vmatpush1.xpose.msra.mxu0 0.0
  %3914 = vmatprep.subr.mxu0 0.0
  %3915 = vmatpush1.xpose.msra.mxu0 0.0
  %3916 = vmatprep.subr.mxu0 0.0
  %3917 = vmatpush1.xpose.msra.mxu0 0.0
  %3918 = vmatprep.subr.mxu0 0.0
  %3919 = vmatpush1.xpose.msra.mxu0 0.0
  %3920 = vmatprep.subr.mxu0 0.0
  %3921 = vmatpush1.xpose.msra.mxu0 0.0
  %3922 = vmatprep.subr.mxu0 0.0
  %3923 = vmatpush1.xpose.msra.mxu0 0.0
  %3924 = vmatprep.subr.mxu0 0.0
  %3925 = vmatpush1.xpose.msra.mxu0 0.0
  %3926 = vmatprep.subr.mxu0 0.0
  %3927 = vmatpush1.xpose.msra.mxu0 0.0
  %3928 = vmatprep.subr.mxu0 0.0
  %3929 = vmatpush1.xpose.msra.mxu0 0.0
  %3930 = vmatprep.mubr.f32.mxu0 0.0
  %3931 = vmatmul.mubr.f32.gmra.mrb[0].mxu0 %v3840
  %v3932 = vpop.f32.mrb[0].mxu0
  %v3933 = vadd.f32 0.0, %v3932
  %v3934 = vpop.f32.mrb[0].mxu0
  %3935 = vdwg.mxu0
  %v3936 = vsel %vm1247, %v972, 0
  %v3939 = vsel %vm1247, %v1215, 0
  %v3942 = vsel %vm1247, %v1216, 0
  %v3945 = vsel %vm1247, %v1217, 0
  %v3948 = vsel %vm1247, %v1218, 0
  %v3951 = vsel %vm1247, %v1219, 0
  %v3954 = vsel %vm1247, %v1220, 0
  %v3957 = vsel %vm1247, %v1221, 0
  %v3960 = vsel %vm1247, %v1222, 0
  %3962 = vmatprep.subr.mxu0 0.0
  %3963 = vmatpush1.xpose.msra.mxu0 %v3939
  %3964 = vmatprep.subr.mxu0 0.0
  %3965 = vmatpush1.xpose.msra.mxu0 %v3942
  %3966 = vmatprep.subr.mxu0 0.0
  %3967 = vmatpush1.xpose.msra.mxu0 %v3945
  %3968 = vmatprep.subr.mxu0 0.0
  %3969 = vmatpush1.xpose.msra.mxu0 %v3948
  %3970 = vmatprep.subr.mxu0 0.0
  %3971 = vmatpush1.xpose.msra.mxu0 %v3951
  %3972 = vmatprep.subr.mxu0 0.0
  %3973 = vmatpush1.xpose.msra.mxu0 %v3954
  %3974 = vmatprep.subr.mxu0 0.0
  %3975 = vmatpush1.xpose.msra.mxu0 %v3957
  %3976 = vmatprep.subr.mxu0 0.0
  %3977 = vmatpush1.xpose.msra.mxu0 %v3960
  %3978 = vmatprep.subr.mxu0 0.0
  %3979 = vmatpush1.xpose.msra.mxu0 0.0
  %3980 = vmatprep.subr.mxu0 0.0
  %3981 = vmatpush1.xpose.msra.mxu0 0.0
  %3982 = vmatprep.subr.mxu0 0.0
  %3983 = vmatpush1.xpose.msra.mxu0 0.0
  %3984 = vmatprep.subr.mxu0 0.0
  %3985 = vmatpush1.xpose.msra.mxu0 0.0
  %3986 = vmatprep.subr.mxu0 0.0
  %3987 = vmatpush1.xpose.msra.mxu0 0.0
  %3988 = vmatprep.subr.mxu0 0.0
  %3989 = vmatpush1.xpose.msra.mxu0 0.0
  %3990 = vmatprep.subr.mxu0 0.0
  %3991 = vmatpush1.xpose.msra.mxu0 0.0
  %3992 = vmatprep.subr.mxu0 0.0
  %3993 = vmatpush1.xpose.msra.mxu0 0.0
  %3994 = vmatprep.subr.mxu0 0.0
  %3995 = vmatpush1.xpose.msra.mxu0 0.0
  %3996 = vmatprep.subr.mxu0 0.0
  %3997 = vmatpush1.xpose.msra.mxu0 0.0
  %3998 = vmatprep.subr.mxu0 0.0
  %3999 = vmatpush1.xpose.msra.mxu0 0.0
  %4000 = vmatprep.subr.mxu0 0.0
  %4001 = vmatpush1.xpose.msra.mxu0 0.0
  %4002 = vmatprep.subr.mxu0 0.0
  %4003 = vmatpush1.xpose.msra.mxu0 0.0
  %4004 = vmatprep.subr.mxu0 0.0
  %4005 = vmatpush1.xpose.msra.mxu0 0.0
  %4006 = vmatprep.subr.mxu0 0.0
  %4007 = vmatpush1.xpose.msra.mxu0 0.0
  %4008 = vmatprep.subr.mxu0 0.0
  %4009 = vmatpush1.xpose.msra.mxu0 0.0
  %4010 = vmatprep.subr.mxu0 0.0
  %4011 = vmatpush1.xpose.msra.mxu0 0.0
  %4012 = vmatprep.subr.mxu0 0.0
  %4013 = vmatpush1.xpose.msra.mxu0 0.0
  %4014 = vmatprep.subr.mxu0 0.0
  %4015 = vmatpush1.xpose.msra.mxu0 0.0
  %4016 = vmatprep.subr.mxu0 0.0
  %4017 = vmatpush1.xpose.msra.mxu0 0.0
  %4018 = vmatprep.subr.mxu0 0.0
  %4019 = vmatpush1.xpose.msra.mxu0 0.0
  %4020 = vmatprep.subr.mxu0 0.0
  %4021 = vmatpush1.xpose.msra.mxu0 0.0
  %4022 = vmatprep.subr.mxu0 0.0
  %4023 = vmatpush1.xpose.msra.mxu0 0.0
  %4024 = vmatprep.subr.mxu0 0.0
  %4025 = vmatpush1.xpose.msra.mxu0 0.0
  %4026 = vmatprep.mubr.f32.mxu0 0.0
  %4027 = vmatmul.mubr.f32.gmra.mrb[0].mxu0 %v3936
  %v4028 = vpop.f32.mrb[0].mxu0
  %v4029 = vadd.f32 0.0, %v4028
  %v4030 = vpop.f32.mrb[0].mxu0
  %4031 = vdwg.mxu0
  %v4032 = vsel %vm1247, %v986, 0
  %v4035 = vsel %vm1247, %v1223, 0
  %v4038 = vsel %vm1247, %v1224, 0
  %v4041 = vsel %vm1247, %v1225, 0
  %v4044 = vsel %vm1247, %v1226, 0
  %v4047 = vsel %vm1247, %v1227, 0
  %v4050 = vsel %vm1247, %v1228, 0
  %v4053 = vsel %vm1247, %v1229, 0
  %v4056 = vsel %vm1247, %v1230, 0
  %4058 = vmatprep.subr.mxu0 0.0
  %4059 = vmatpush1.xpose.msra.mxu0 %v4035
  %4060 = vmatprep.subr.mxu0 0.0
  %4061 = vmatpush1.xpose.msra.mxu0 %v4038
  %4062 = vmatprep.subr.mxu0 0.0
  %4063 = vmatpush1.xpose.msra.mxu0 %v4041
  %4064 = vmatprep.subr.mxu0 0.0
  %4065 = vmatpush1.xpose.msra.mxu0 %v4044
  %4066 = vmatprep.subr.mxu0 0.0
  %4067 = vmatpush1.xpose.msra.mxu0 %v4047
  %4068 = vmatprep.subr.mxu0 0.0
  %4069 = vmatpush1.xpose.msra.mxu0 %v4050
  %4070 = vmatprep.subr.mxu0 0.0
  %4071 = vmatpush1.xpose.msra.mxu0 %v4053
  %4072 = vmatprep.subr.mxu0 0.0
  %4073 = vmatpush1.xpose.msra.mxu0 %v4056
  %4074 = vmatprep.subr.mxu0 0.0
  %4075 = vmatpush1.xpose.msra.mxu0 0.0
  %4076 = vmatprep.subr.mxu0 0.0
  %4077 = vmatpush1.xpose.msra.mxu0 0.0
  %4078 = vmatprep.subr.mxu0 0.0
  %4079 = vmatpush1.xpose.msra.mxu0 0.0
  %4080 = vmatprep.subr.mxu0 0.0
  %4081 = vmatpush1.xpose.msra.mxu0 0.0
  %4082 = vmatprep.subr.mxu0 0.0
  %4083 = vmatpush1.xpose.msra.mxu0 0.0
  %4084 = vmatprep.subr.mxu0 0.0
  %4085 = vmatpush1.xpose.msra.mxu0 0.0
  %4086 = vmatprep.subr.mxu0 0.0
  %4087 = vmatpush1.xpose.msra.mxu0 0.0
  %4088 = vmatprep.subr.mxu0 0.0
  %4089 = vmatpush1.xpose.msra.mxu0 0.0
  %4090 = vmatprep.subr.mxu0 0.0
  %4091 = vmatpush1.xpose.msra.mxu0 0.0
  %4092 = vmatprep.subr.mxu0 0.0
  %4093 = vmatpush1.xpose.msra.mxu0 0.0
  %4094 = vmatprep.subr.mxu0 0.0
  %4095 = vmatpush1.xpose.msra.mxu0 0.0
  %4096 = vmatprep.subr.mxu0 0.0
  %4097 = vmatpush1.xpose.msra.mxu0 0.0
  %4098 = vmatprep.subr.mxu0 0.0
  %4099 = vmatpush1.xpose.msra.mxu0 0.0
  %4100 = vmatprep.subr.mxu0 0.0
  %4101 = vmatpush1.xpose.msra.mxu0 0.0
  %4102 = vmatprep.subr.mxu0 0.0
  %4103 = vmatpush1.xpose.msra.mxu0 0.0
  %4104 = vmatprep.subr.mxu0 0.0
  %4105 = vmatpush1.xpose.msra.mxu0 0.0
  %4106 = vmatprep.subr.mxu0 0.0
  %4107 = vmatpush1.xpose.msra.mxu0 0.0
  %4108 = vmatprep.subr.mxu0 0.0
  %4109 = vmatpush1.xpose.msra.mxu0 0.0
  %4110 = vmatprep.subr.mxu0 0.0
  %4111 = vmatpush1.xpose.msra.mxu0 0.0
  %4112 = vmatprep.subr.mxu0 0.0
  %4113 = vmatpush1.xpose.msra.mxu0 0.0
  %4114 = vmatprep.subr.mxu0 0.0
  %4115 = vmatpush1.xpose.msra.mxu0 0.0
  %4116 = vmatprep.subr.mxu0 0.0
  %4117 = vmatpush1.xpose.msra.mxu0 0.0
  %4118 = vmatprep.subr.mxu0 0.0
  %4119 = vmatpush1.xpose.msra.mxu0 0.0
  %4120 = vmatprep.subr.mxu0 0.0
  %4121 = vmatpush1.xpose.msra.mxu0 0.0
  %4122 = vmatprep.mubr.f32.mxu0 0.0
  %4123 = vmatmul.mubr.f32.gmra.mrb[0].mxu0 %v4032
  %v4124 = vpop.f32.mrb[0].mxu0
  %v4125 = vadd.f32 0.0, %v4124
  %v4126 = vpop.f32.mrb[0].mxu0
  %4127 = vdwg.mxu0
  %v4128 = vsel %vm1247, %v988, 0
  %v4131 = vsel %vm1247, %v1231, 0
  %v4134 = vsel %vm1247, %v1232, 0
  %v4137 = vsel %vm1247, %v1233, 0
  %v4140 = vsel %vm1247, %v1234, 0
  %v4143 = vsel %vm1247, %v1235, 0
  %v4146 = vsel %vm1247, %v1236, 0
  %v4149 = vsel %vm1247, %v1237, 0
  %v4152 = vsel %vm1247, %v1238, 0
  %4154 = vmatprep.subr.mxu0 0.0
  %4155 = vmatpush1.xpose.msra.mxu0 %v4131
  %4156 = vmatprep.subr.mxu0 0.0
  %4157 = vmatpush1.xpose.msra.mxu0 %v4134
  %4158 = vmatprep.subr.mxu0 0.0
  %4159 = vmatpush1.xpose.msra.mxu0 %v4137
  %4160 = vmatprep.subr.mxu0 0.0
  %4161 = vmatpush1.xpose.msra.mxu0 %v4140
  %4162 = vmatprep.subr.mxu0 0.0
  %4163 = vmatpush1.xpose.msra.mxu0 %v4143
  %4164 = vmatprep.subr.mxu0 0.0
  %4165 = vmatpush1.xpose.msra.mxu0 %v4146
  %4166 = vmatprep.subr.mxu0 0.0
  %4167 = vmatpush1.xpose.msra.mxu0 %v4149
  %4168 = vmatprep.subr.mxu0 0.0
  %4169 = vmatpush1.xpose.msra.mxu0 %v4152
  %4170 = vmatprep.subr.mxu0 0.0
  %4171 = vmatpush1.xpose.msra.mxu0 0.0
  %4172 = vmatprep.subr.mxu0 0.0
  %4173 = vmatpush1.xpose.msra.mxu0 0.0
  %4174 = vmatprep.subr.mxu0 0.0
  %4175 = vmatpush1.xpose.msra.mxu0 0.0
  %4176 = vmatprep.subr.mxu0 0.0
  %4177 = vmatpush1.xpose.msra.mxu0 0.0
  %4178 = vmatprep.subr.mxu0 0.0
  %4179 = vmatpush1.xpose.msra.mxu0 0.0
  %4180 = vmatprep.subr.mxu0 0.0
  %4181 = vmatpush1.xpose.msra.mxu0 0.0
  %4182 = vmatprep.subr.mxu0 0.0
  %4183 = vmatpush1.xpose.msra.mxu0 0.0
  %4184 = vmatprep.subr.mxu0 0.0
  %4185 = vmatpush1.xpose.msra.mxu0 0.0
  %4186 = vmatprep.subr.mxu0 0.0
  %4187 = vmatpush1.xpose.msra.mxu0 0.0
  %4188 = vmatprep.subr.mxu0 0.0
  %4189 = vmatpush1.xpose.msra.mxu0 0.0
  %4190 = vmatprep.subr.mxu0 0.0
  %4191 = vmatpush1.xpose.msra.mxu0 0.0
  %4192 = vmatprep.subr.mxu0 0.0
  %4193 = vmatpush1.xpose.msra.mxu0 0.0
  %4194 = vmatprep.subr.mxu0 0.0
  %4195 = vmatpush1.xpose.msra.mxu0 0.0
  %4196 = vmatprep.subr.mxu0 0.0
  %4197 = vmatpush1.xpose.msra.mxu0 0.0
  %4198 = vmatprep.subr.mxu0 0.0
  %4199 = vmatpush1.xpose.msra.mxu0 0.0
  %4200 = vmatprep.subr.mxu0 0.0
  %4201 = vmatpush1.xpose.msra.mxu0 0.0
  %4202 = vmatprep.subr.mxu0 0.0
  %4203 = vmatpush1.xpose.msra.mxu0 0.0
  %4204 = vmatprep.subr.mxu0 0.0
  %4205 = vmatpush1.xpose.msra.mxu0 0.0
  %4206 = vmatprep.subr.mxu0 0.0
  %4207 = vmatpush1.xpose.msra.mxu0 0.0
  %4208 = vmatprep.subr.mxu0 0.0
  %4209 = vmatpush1.xpose.msra.mxu0 0.0
  %4210 = vmatprep.subr.mxu0 0.0
  %4211 = vmatpush1.xpose.msra.mxu0 0.0
  %4212 = vmatprep.subr.mxu0 0.0
  %4213 = vmatpush1.xpose.msra.mxu0 0.0
  %4214 = vmatprep.subr.mxu0 0.0
  %4215 = vmatpush1.xpose.msra.mxu0 0.0
  %4216 = vmatprep.subr.mxu0 0.0
  %4217 = vmatpush1.xpose.msra.mxu0 0.0
  %4218 = vmatprep.mubr.f32.mxu0 0.0
  %4219 = vmatmul.mubr.f32.gmra.mrb[0].mxu0 %v4128
  %v4220 = vpop.f32.mrb[0].mxu0
  %v4221 = vadd.f32 0.0, %v4220
  %v4222 = vpop.f32.mrb[0].mxu0
  %4223 = vdwg.mxu0
  %v4224 = vsel %vm1247, %v990, 0
  %v4227 = vsel %vm1247, %v1239, 0
  %v4230 = vsel %vm1247, %v1240, 0
  %v4233 = vsel %vm1247, %v1241, 0
  %v4236 = vsel %vm1247, %v1242, 0
  %v4239 = vsel %vm1247, %v1243, 0
  %v4242 = vsel %vm1247, %v1244, 0
  %v4245 = vsel %vm1247, %v1245, 0
  %v4248 = vsel %vm1247, %v1246, 0
  %4250 = vmatprep.subr.mxu0 0.0
  %4251 = vmatpush1.xpose.msra.mxu0 %v4227
  %4252 = vmatprep.subr.mxu0 0.0
  %4253 = vmatpush1.xpose.msra.mxu0 %v4230
  %4254 = vmatprep.subr.mxu0 0.0
  %4255 = vmatpush1.xpose.msra.mxu0 %v4233
  %4256 = vmatprep.subr.mxu0 0.0
  %4257 = vmatpush1.xpose.msra.mxu0 %v4236
  %4258 = vmatprep.subr.mxu0 0.0
  %4259 = vmatpush1.xpose.msra.mxu0 %v4239
  %4260 = vmatprep.subr.mxu0 0.0
  %4261 = vmatpush1.xpose.msra.mxu0 %v4242
  %4262 = vmatprep.subr.mxu0 0.0
  %4263 = vmatpush1.xpose.msra.mxu0 %v4245
  %4264 = vmatprep.subr.mxu0 0.0
  %4265 = vmatpush1.xpose.msra.mxu0 %v4248
  %4266 = vmatprep.subr.mxu0 0.0
  %4267 = vmatpush1.xpose.msra.mxu0 0.0
  %4268 = vmatprep.subr.mxu0 0.0
  %4269 = vmatpush1.xpose.msra.mxu0 0.0
  %4270 = vmatprep.subr.mxu0 0.0
  %4271 = vmatpush1.xpose.msra.mxu0 0.0
  %4272 = vmatprep.subr.mxu0 0.0
  %4273 = vmatpush1.xpose.msra.mxu0 0.0
  %4274 = vmatprep.subr.mxu0 0.0
  %4275 = vmatpush1.xpose.msra.mxu0 0.0
  %4276 = vmatprep.subr.mxu0 0.0
  %4277 = vmatpush1.xpose.msra.mxu0 0.0
  %4278 = vmatprep.subr.mxu0 0.0
  %4279 = vmatpush1.xpose.msra.mxu0 0.0
  %4280 = vmatprep.subr.mxu0 0.0
  %4281 = vmatpush1.xpose.msra.mxu0 0.0
  %4282 = vmatprep.subr.mxu0 0.0
  %4283 = vmatpush1.xpose.msra.mxu0 0.0
  %4284 = vmatprep.subr.mxu0 0.0
  %4285 = vmatpush1.xpose.msra.mxu0 0.0
  %4286 = vmatprep.subr.mxu0 0.0
  %4287 = vmatpush1.xpose.msra.mxu0 0.0
  %4288 = vmatprep.subr.mxu0 0.0
  %4289 = vmatpush1.xpose.msra.mxu0 0.0
  %4290 = vmatprep.subr.mxu0 0.0
  %4291 = vmatpush1.xpose.msra.mxu0 0.0
  %4292 = vmatprep.subr.mxu0 0.0
  %4293 = vmatpush1.xpose.msra.mxu0 0.0
  %4294 = vmatprep.subr.mxu0 0.0
  %4295 = vmatpush1.xpose.msra.mxu0 0.0
  %4296 = vmatprep.subr.mxu0 0.0
  %4297 = vmatpush1.xpose.msra.mxu0 0.0
  %4298 = vmatprep.subr.mxu0 0.0
  %4299 = vmatpush1.xpose.msra.mxu0 0.0
  %4300 = vmatprep.subr.mxu0 0.0
  %4301 = vmatpush1.xpose.msra.mxu0 0.0
  %4302 = vmatprep.subr.mxu0 0.0
  %4303 = vmatpush1.xpose.msra.mxu0 0.0
  %4304 = vmatprep.subr.mxu0 0.0
  %4305 = vmatpush1.xpose.msra.mxu0 0.0
  %4306 = vmatprep.subr.mxu0 0.0
  %4307 = vmatpush1.xpose.msra.mxu0 0.0
  %4308 = vmatprep.subr.mxu0 0.0
  %4309 = vmatpush1.xpose.msra.mxu0 0.0
  %4310 = vmatprep.subr.mxu0 0.0
  %4311 = vmatpush1.xpose.msra.mxu0 0.0
  %4312 = vmatprep.subr.mxu0 0.0
  %4313 = vmatpush1.xpose.msra.mxu0 0.0
  %4314 = vmatprep.mubr.f32.mxu0 0.0
  %4315 = vmatmul.mubr.f32.gmra.mrb[0].mxu0 %v4224
  %v4316 = vpop.f32.mrb[0].mxu0
  %v4317 = vadd.f32 0.0, %v4316
  %v4318 = vpop.f32.mrb[0].mxu0
  %4319 = vdwg.mxu0
  %v4352 = vrot.slane %v1437, 7
  %vm4353 = vcmask 1041409
  %v4354 = vsel %vm4353, %v4352, %v1341
  %v4355 = vrot.slane %v1533, 6
  %vm4356 = vcmask 1042434
  %v4357 = vsel %vm4356, %v4355, %v4354
  %v4358 = vrot.slane %v1629, 5
  %vm4359 = vcmask 1043459
  %v4360 = vsel %vm4359, %v4358, %v4357
  %v4361 = vrot.slane %v1725, 4
  %vm4362 = vcmask 1044484
  %v4363 = vsel %vm4362, %v4361, %v4360
  %v4364 = vrot.slane %v1821, 3
  %vm4365 = vcmask 1045509
  %v4366 = vsel %vm4365, %v4364, %v4363
  %v4367 = vrot.slane %v1917, 2
  %vm4368 = vcmask 1046534
  %v4369 = vsel %vm4368, %v4367, %v4366
  %v4370 = vrot.slane %v2013, 1
  %vm4371 = vcmask 1047559
  %v4372 = vsel %vm4371, %v4370, %v4369
  %v4373 = vrot.slane %v2205, 7
  %v4374 = vsel %vm4353, %v4373, %v2109
  %v4375 = vrot.slane %v2301, 6
  %v4376 = vsel %vm4356, %v4375, %v4374
  %v4377 = vrot.slane %v2397, 5
  %v4378 = vsel %vm4359, %v4377, %v4376
  %v4379 = vrot.slane %v2493, 4
  %v4380 = vsel %vm4362, %v4379, %v4378
  %v4381 = vrot.slane %v2589, 3
  %v4382 = vsel %vm4365, %v4381, %v4380
  %v4383 = vrot.slane %v2685, 2
  %v4384 = vsel %vm4368, %v4383, %v4382
  %v4385 = vrot.slane %v2781, 1
  %v4386 = vsel %vm4371, %v4385, %v4384
  %v4387 = vrot.slane %v2973, 7
  %v4388 = vsel %vm4353, %v4387, %v2877
  %v4389 = vrot.slane %v3069, 6
  %v4390 = vsel %vm4356, %v4389, %v4388
  %v4391 = vrot.slane %v3165, 5
  %v4392 = vsel %vm4359, %v4391, %v4390
  %v4393 = vrot.slane %v3261, 4
  %v4394 = vsel %vm4362, %v4393, %v4392
  %v4395 = vrot.slane %v3357, 3
  %v4396 = vsel %vm4365, %v4395, %v4394
  %v4397 = vrot.slane %v3453, 2
  %v4398 = vsel %vm4368, %v4397, %v4396
  %v4399 = vrot.slane %v3549, 1
  %v4400 = vsel %vm4371, %v4399, %v4398
  %v4401 = vrot.slane %v3741, 7
  %v4402 = vsel %vm4353, %v4401, %v3645
  %v4403 = vrot.slane %v3837, 6
  %v4404 = vsel %vm4356, %v4403, %v4402
  %v4405 = vrot.slane %v3933, 5
  %v4406 = vsel %vm4359, %v4405, %v4404
  %v4407 = vrot.slane %v4029, 4
  %v4408 = vsel %vm4362, %v4407, %v4406
  %v4409 = vrot.slane %v4125, 3
  %v4410 = vsel %vm4365, %v4409, %v4408
  %v4411 = vrot.slane %v4221, 2
  %v4412 = vsel %vm4368, %v4411, %v4410
  %v4413 = vrot.slane %v4317, 1
  %v4414 = vsel %vm4371, %v4413, %v4412
  %4415 = vrot.lane.b32.xlu0 %v4372, 96
  %v4416 = vpop.permute.xlu0 %4415
  %4417 = vrot.lane.b32.xlu0 %v4386, 96
  %v4418 = vpop.permute.xlu0 %4417
  %4419 = vrot.lane.b32.xlu0 %v4400, 96
  %v4420 = vpop.permute.xlu0 %4419
  %4421 = vrot.lane.b32.xlu0 %v4414, 96
  %v4422 = vpop.permute.xlu0 %4421
  %v4428 = vsel %vm786, %v568, 0
  %v4431 = vsel %vm786, %v569, 0
  %v4434 = vsel %vm786, %v570, 0
  %v4437 = vsel %vm786, %v571, 0
  %v4440 = vsel %vm786, %v572, 0
  %v4443 = vsel %vm786, %v573, 0
  %v4446 = vsel %vm786, %v574, 0
  %v4449 = vsel %vm786, %v575, 0
  %v4452 = vsel %vm786, %v576, 0
  %v4455 = vsel %vm786, %v577, 0
  %v4458 = vsel %vm786, %v578, 0
  %v4461 = vsel %vm786, %v579, 0
  %v4464 = vsel %vm786, %v580, 0
  %v4467 = vsel %vm786, %v581, 0
  %v4470 = vsel %vm786, %v582, 0
  %v4473 = vsel %vm786, %v583, 0
  %v4476 = vsel %vm786, %v584, 0
  %v4479 = vsel %vm786, %v585, 0
  %v4482 = vsel %vm786, %v586, 0
  %v4485 = vsel %vm786, %v587, 0
  %v4488 = vsel %vm786, %v588, 0
  %v4491 = vsel %vm786, %v589, 0
  %v4494 = vsel %vm786, %v590, 0
  %v4497 = vsel %vm786, %v591, 0
  %v4500 = vsel %vm786, %v592, 0
  %v4503 = vsel %vm786, %v593, 0
  %v4506 = vsel %vm786, %v594, 0
  %v4509 = vsel %vm786, %v595, 0
  %v4512 = vsel %vm786, %v596, 0
  %v4515 = vsel %vm786, %v597, 0
  %v4518 = vsel %vm786, %v598, 0
  %v4521 = vsel %vm786, %v599, 0
  %4523 = vmatprep.subr.mxu0 0.0
  %4524 = vmatpush1.msra.mxu0 %v4416
  %4525 = vmatprep.subr.mxu0 0.0
  %4526 = vmatpush1.msra.mxu0 %v4418
  %4527 = vmatprep.subr.mxu0 0.0
  %4528 = vmatpush1.msra.mxu0 %v4420
  %4529 = vmatprep.subr.mxu0 0.0
  %4530 = vmatpush1.msra.mxu0 %v4422
  %4531 = vmatprep.subr.mxu0 0.0
  %4532 = vmatpush1.msra.mxu0 0.0
  %4533 = vmatprep.subr.mxu0 0.0
  %4534 = vmatpush1.msra.mxu0 0.0
  %4535 = vmatprep.subr.mxu0 0.0
  %4536 = vmatpush1.msra.mxu0 0.0
  %4537 = vmatprep.subr.mxu0 0.0
  %4538 = vmatpush1.msra.mxu0 0.0
  %4539 = vmatprep.subr.mxu0 0.0
  %4540 = vmatpush1.msra.mxu0 0.0
  %4541 = vmatprep.subr.mxu0 0.0
  %4542 = vmatpush1.msra.mxu0 0.0
  %4543 = vmatprep.subr.mxu0 0.0
  %4544 = vmatpush1.msra.mxu0 0.0
  %4545 = vmatprep.subr.mxu0 0.0
  %4546 = vmatpush1.msra.mxu0 0.0
  %4547 = vmatprep.subr.mxu0 0.0
  %4548 = vmatpush1.msra.mxu0 0.0
  %4549 = vmatprep.subr.mxu0 0.0
  %4550 = vmatpush1.msra.mxu0 0.0
  %4551 = vmatprep.subr.mxu0 0.0
  %4552 = vmatpush1.msra.mxu0 0.0
  %4553 = vmatprep.subr.mxu0 0.0
  %4554 = vmatpush1.msra.mxu0 0.0
  %4555 = vmatprep.subr.mxu0 0.0
  %4556 = vmatpush1.msra.mxu0 0.0
  %4557 = vmatprep.subr.mxu0 0.0
  %4558 = vmatpush1.msra.mxu0 0.0
  %4559 = vmatprep.subr.mxu0 0.0
  %4560 = vmatpush1.msra.mxu0 0.0
  %4561 = vmatprep.subr.mxu0 0.0
  %4562 = vmatpush1.msra.mxu0 0.0
  %4563 = vmatprep.subr.mxu0 0.0
  %4564 = vmatpush1.msra.mxu0 0.0
  %4565 = vmatprep.subr.mxu0 0.0
  %4566 = vmatpush1.msra.mxu0 0.0
  %4567 = vmatprep.subr.mxu0 0.0
  %4568 = vmatpush1.msra.mxu0 0.0
  %4569 = vmatprep.subr.mxu0 0.0
  %4570 = vmatpush1.msra.mxu0 0.0
  %4571 = vmatprep.subr.mxu0 0.0
  %4572 = vmatpush1.msra.mxu0 0.0
  %4573 = vmatprep.subr.mxu0 0.0
  %4574 = vmatpush1.msra.mxu0 0.0
  %4575 = vmatprep.subr.mxu0 0.0
  %4576 = vmatpush1.msra.mxu0 0.0
  %4577 = vmatprep.subr.mxu0 0.0
  %4578 = vmatpush1.msra.mxu0 0.0
  %4579 = vmatprep.subr.mxu0 0.0
  %4580 = vmatpush1.msra.mxu0 0.0
  %4581 = vmatprep.subr.mxu0 0.0
  %4582 = vmatpush1.msra.mxu0 0.0
  %4583 = vmatprep.subr.mxu0 0.0
  %4584 = vmatpush1.msra.mxu0 0.0
  %4585 = vmatprep.subr.mxu0 0.0
  %4586 = vmatpush1.msra.mxu0 0.0
  %4587 = vmatprep.mubr.f32.mxu0 0.0
  %4588 = vmatmul.mubr.f32.gmra.mrb[0].mxu0 %v4428
  %v4589 = vpop.f32.mrb[0].mxu0
  %v4590 = vadd.f32 0.0, %v4589
  %v4591 = vpop.f32.mrb[0].mxu0
  %4592 = vmatprep.mubr.f32.mxu0 0.0
  %4593 = vmatmul.mubr.f32.gmra.mrb[0].mxu0 %v4431
  %v4594 = vpop.f32.mrb[0].mxu0
  %v4595 = vadd.f32 0.0, %v4594
  %v4596 = vpop.f32.mrb[0].mxu0
  %4597 = vmatprep.mubr.f32.mxu0 0.0
  %4598 = vmatmul.mubr.f32.gmra.mrb[0].mxu0 %v4434
  %v4599 = vpop.f32.mrb[0].mxu0
  %v4600 = vadd.f32 0.0, %v4599
  %v4601 = vpop.f32.mrb[0].mxu0
  %4602 = vmatprep.mubr.f32.mxu0 0.0
  %4603 = vmatmul.mubr.f32.gmra.mrb[0].mxu0 %v4437
  %v4604 = vpop.f32.mrb[0].mxu0
  %v4605 = vadd.f32 0.0, %v4604
  %v4606 = vpop.f32.mrb[0].mxu0
  %4607 = vmatprep.mubr.f32.mxu0 0.0
  %4608 = vmatmul.mubr.f32.gmra.mrb[0].mxu0 %v4440
  %v4609 = vpop.f32.mrb[0].mxu0
  %v4610 = vadd.f32 0.0, %v4609
  %v4611 = vpop.f32.mrb[0].mxu0
  %4612 = vmatprep.mubr.f32.mxu0 0.0
  %4613 = vmatmul.mubr.f32.gmra.mrb[0].mxu0 %v4443
  %v4614 = vpop.f32.mrb[0].mxu0
  %v4615 = vadd.f32 0.0, %v4614
  %v4616 = vpop.f32.mrb[0].mxu0
  %4617 = vmatprep.mubr.f32.mxu0 0.0
  %4618 = vmatmul.mubr.f32.gmra.mrb[0].mxu0 %v4446
  %v4619 = vpop.f32.mrb[0].mxu0
  %v4620 = vadd.f32 0.0, %v4619
  %v4621 = vpop.f32.mrb[0].mxu0
  %4622 = vmatprep.mubr.f32.mxu0 0.0
  %4623 = vmatmul.mubr.f32.gmra.mrb[0].mxu0 %v4449
  %v4624 = vpop.f32.mrb[0].mxu0
  %v4625 = vadd.f32 0.0, %v4624
  %v4626 = vpop.f32.mrb[0].mxu0
  %4627 = vmatprep.mubr.f32.mxu0 0.0
  %4628 = vmatmul.mubr.f32.gmra.mrb[0].mxu0 %v4452
  %v4629 = vpop.f32.mrb[0].mxu0
  %v4630 = vadd.f32 0.0, %v4629
  %v4631 = vpop.f32.mrb[0].mxu0
  %4632 = vmatprep.mubr.f32.mxu0 0.0
  %4633 = vmatmul.mubr.f32.gmra.mrb[0].mxu0 %v4455
  %v4634 = vpop.f32.mrb[0].mxu0
  %v4635 = vadd.f32 0.0, %v4634
  %v4636 = vpop.f32.mrb[0].mxu0
  %4637 = vmatprep.mubr.f32.mxu0 0.0
  %4638 = vmatmul.mubr.f32.gmra.mrb[0].mxu0 %v4458
  %v4639 = vpop.f32.mrb[0].mxu0
  %v4640 = vadd.f32 0.0, %v4639
  %v4641 = vpop.f32.mrb[0].mxu0
  %4642 = vmatprep.mubr.f32.mxu0 0.0
  %4643 = vmatmul.mubr.f32.gmra.mrb[0].mxu0 %v4461
  %v4644 = vpop.f32.mrb[0].mxu0
  %v4645 = vadd.f32 0.0, %v4644
  %v4646 = vpop.f32.mrb[0].mxu0
  %4647 = vmatprep.mubr.f32.mxu0 0.0
  %4648 = vmatmul.mubr.f32.gmra.mrb[0].mxu0 %v4464
  %v4649 = vpop.f32.mrb[0].mxu0
  %v4650 = vadd.f32 0.0, %v4649
  %v4651 = vpop.f32.mrb[0].mxu0
  %4652 = vmatprep.mubr.f32.mxu0 0.0
  %4653 = vmatmul.mubr.f32.gmra.mrb[0].mxu0 %v4467
  %v4654 = vpop.f32.mrb[0].mxu0
  %v4655 = vadd.f32 0.0, %v4654
  %v4656 = vpop.f32.mrb[0].mxu0
  %4657 = vmatprep.mubr.f32.mxu0 0.0
  %4658 = vmatmul.mubr.f32.gmra.mrb[0].mxu0 %v4470
  %v4659 = vpop.f32.mrb[0].mxu0
  %v4660 = vadd.f32 0.0, %v4659
  %v4661 = vpop.f32.mrb[0].mxu0
  %4662 = vmatprep.mubr.f32.mxu0 0.0
  %4663 = vmatmul.mubr.f32.gmra.mrb[0].mxu0 %v4473
  %v4664 = vpop.f32.mrb[0].mxu0
  %v4665 = vadd.f32 0.0, %v4664
  %v4666 = vpop.f32.mrb[0].mxu0
  %4667 = vmatprep.mubr.f32.mxu0 0.0
  %4668 = vmatmul.mubr.f32.gmra.mrb[0].mxu0 %v4476
  %v4669 = vpop.f32.mrb[0].mxu0
  %v4670 = vadd.f32 0.0, %v4669
  %v4671 = vpop.f32.mrb[0].mxu0
  %4672 = vmatprep.mubr.f32.mxu0 0.0
  %4673 = vmatmul.mubr.f32.gmra.mrb[0].mxu0 %v4479
  %v4674 = vpop.f32.mrb[0].mxu0
  %v4675 = vadd.f32 0.0, %v4674
  %v4676 = vpop.f32.mrb[0].mxu0
  %4677 = vmatprep.mubr.f32.mxu0 0.0
  %4678 = vmatmul.mubr.f32.gmra.mrb[0].mxu0 %v4482
  %v4679 = vpop.f32.mrb[0].mxu0
  %v4680 = vadd.f32 0.0, %v4679
  %v4681 = vpop.f32.mrb[0].mxu0
  %4682 = vmatprep.mubr.f32.mxu0 0.0
  %4683 = vmatmul.mubr.f32.gmra.mrb[0].mxu0 %v4485
  %v4684 = vpop.f32.mrb[0].mxu0
  %v4685 = vadd.f32 0.0, %v4684
  %v4686 = vpop.f32.mrb[0].mxu0
  %4687 = vmatprep.mubr.f32.mxu0 0.0
  %4688 = vmatmul.mubr.f32.gmra.mrb[0].mxu0 %v4488
  %v4689 = vpop.f32.mrb[0].mxu0
  %v4690 = vadd.f32 0.0, %v4689
  %v4691 = vpop.f32.mrb[0].mxu0
  %4692 = vmatprep.mubr.f32.mxu0 0.0
  %4693 = vmatmul.mubr.f32.gmra.mrb[0].mxu0 %v4491
  %v4694 = vpop.f32.mrb[0].mxu0
  %v4695 = vadd.f32 0.0, %v4694
  %v4696 = vpop.f32.mrb[0].mxu0
  %4697 = vmatprep.mubr.f32.mxu0 0.0
  %4698 = vmatmul.mubr.f32.gmra.mrb[0].mxu0 %v4494
  %v4699 = vpop.f32.mrb[0].mxu0
  %v4700 = vadd.f32 0.0, %v4699
  %v4701 = vpop.f32.mrb[0].mxu0
  %4702 = vmatprep.mubr.f32.mxu0 0.0
  %4703 = vmatmul.mubr.f32.gmra.mrb[0].mxu0 %v4497
  %v4704 = vpop.f32.mrb[0].mxu0
  %v4705 = vadd.f32 0.0, %v4704
  %v4706 = vpop.f32.mrb[0].mxu0
  %4707 = vmatprep.mubr.f32.mxu0 0.0
  %4708 = vmatmul.mubr.f32.gmra.mrb[0].mxu0 %v4500
  %v4709 = vpop.f32.mrb[0].mxu0
  %v4710 = vadd.f32 0.0, %v4709
  %v4711 = vpop.f32.mrb[0].mxu0
  %4712 = vmatprep.mubr.f32.mxu0 0.0
  %4713 = vmatmul.mubr.f32.gmra.mrb[0].mxu0 %v4503
  %v4714 = vpop.f32.mrb[0].mxu0
  %v4715 = vadd.f32 0.0, %v4714
  %v4716 = vpop.f32.mrb[0].mxu0
  %4717 = vmatprep.mubr.f32.mxu0 0.0
  %4718 = vmatmul.mubr.f32.gmra.mrb[0].mxu0 %v4506
  %v4719 = vpop.f32.mrb[0].mxu0
  %v4720 = vadd.f32 0.0, %v4719
  %v4721 = vpop.f32.mrb[0].mxu0
  %4722 = vmatprep.mubr.f32.mxu0 0.0
  %4723 = vmatmul.mubr.f32.gmra.mrb[0].mxu0 %v4509
  %v4724 = vpop.f32.mrb[0].mxu0
  %v4725 = vadd.f32 0.0, %v4724
  %v4726 = vpop.f32.mrb[0].mxu0
  %4727 = vmatprep.mubr.f32.mxu0 0.0
  %4728 = vmatmul.mubr.f32.gmra.mrb[0].mxu0 %v4512
  %v4729 = vpop.f32.mrb[0].mxu0
  %v4730 = vadd.f32 0.0, %v4729
  %v4731 = vpop.f32.mrb[0].mxu0
  %4732 = vmatprep.mubr.f32.mxu0 0.0
  %4733 = vmatmul.mubr.f32.gmra.mrb[0].mxu0 %v4515
  %v4734 = vpop.f32.mrb[0].mxu0
  %v4735 = vadd.f32 0.0, %v4734
  %v4736 = vpop.f32.mrb[0].mxu0
  %4737 = vmatprep.mubr.f32.mxu0 0.0
  %4738 = vmatmul.mubr.f32.gmra.mrb[0].mxu0 %v4518
  %v4739 = vpop.f32.mrb[0].mxu0
  %v4740 = vadd.f32 0.0, %v4739
  %v4741 = vpop.f32.mrb[0].mxu0
  %4742 = vmatprep.mubr.f32.mxu0 0.0
  %4743 = vmatmul.mubr.f32.gmra.mrb[0].mxu0 %v4521
  %v4744 = vpop.f32.mrb[0].mxu0
  %v4745 = vadd.f32 0.0, %v4744
  %v4746 = vpop.f32.mrb[0].mxu0
  %4747 = vdwg.mxu0
  %v4753 = vsel %vm786, %v536, 0
  %v4756 = vsel %vm786, %v537, 0
  %v4759 = vsel %vm786, %v538, 0
  %v4762 = vsel %vm786, %v539, 0
  %v4765 = vsel %vm786, %v540, 0
  %v4768 = vsel %vm786, %v541, 0
  %v4771 = vsel %vm786, %v542, 0
  %v4774 = vsel %vm786, %v543, 0
  %v4777 = vsel %vm786, %v544, 0
  %v4780 = vsel %vm786, %v545, 0
  %v4783 = vsel %vm786, %v546, 0
  %v4786 = vsel %vm786, %v547, 0
  %v4789 = vsel %vm786, %v548, 0
  %v4792 = vsel %vm786, %v549, 0
  %v4795 = vsel %vm786, %v550, 0
  %v4798 = vsel %vm786, %v551, 0
  %v4801 = vsel %vm786, %v552, 0
  %v4804 = vsel %vm786, %v553, 0
  %v4807 = vsel %vm786, %v554, 0
  %v4810 = vsel %vm786, %v555, 0
  %v4813 = vsel %vm786, %v556, 0
  %v4816 = vsel %vm786, %v557, 0
  %v4819 = vsel %vm786, %v558, 0
  %v4822 = vsel %vm786, %v559, 0
  %v4825 = vsel %vm786, %v560, 0
  %v4828 = vsel %vm786, %v561, 0
  %v4831 = vsel %vm786, %v562, 0
  %v4834 = vsel %vm786, %v563, 0
  %v4837 = vsel %vm786, %v564, 0
  %v4840 = vsel %vm786, %v565, 0
  %v4843 = vsel %vm786, %v566, 0
  %v4846 = vsel %vm786, %v567, 0
  %4848 = vmatprep.subr.mxu0 0.0
  %4849 = vmatpush1.msra.mxu0 %v4372
  %4850 = vmatprep.subr.mxu0 0.0
  %4851 = vmatpush1.msra.mxu0 %v4386
  %4852 = vmatprep.subr.mxu0 0.0
  %4853 = vmatpush1.msra.mxu0 %v4400
  %4854 = vmatprep.subr.mxu0 0.0
  %4855 = vmatpush1.msra.mxu0 %v4414
  %4856 = vmatprep.subr.mxu0 0.0
  %4857 = vmatpush1.msra.mxu0 0.0
  %4858 = vmatprep.subr.mxu0 0.0
  %4859 = vmatpush1.msra.mxu0 0.0
  %4860 = vmatprep.subr.mxu0 0.0
  %4861 = vmatpush1.msra.mxu0 0.0
  %4862 = vmatprep.subr.mxu0 0.0
  %4863 = vmatpush1.msra.mxu0 0.0
  %4864 = vmatprep.subr.mxu0 0.0
  %4865 = vmatpush1.msra.mxu0 0.0
  %4866 = vmatprep.subr.mxu0 0.0
  %4867 = vmatpush1.msra.mxu0 0.0
  %4868 = vmatprep.subr.mxu0 0.0
  %4869 = vmatpush1.msra.mxu0 0.0
  %4870 = vmatprep.subr.mxu0 0.0
  %4871 = vmatpush1.msra.mxu0 0.0
  %4872 = vmatprep.subr.mxu0 0.0
  %4873 = vmatpush1.msra.mxu0 0.0
  %4874 = vmatprep.subr.mxu0 0.0
  %4875 = vmatpush1.msra.mxu0 0.0
  %4876 = vmatprep.subr.mxu0 0.0
  %4877 = vmatpush1.msra.mxu0 0.0
  %4878 = vmatprep.subr.mxu0 0.0
  %4879 = vmatpush1.msra.mxu0 0.0
  %4880 = vmatprep.subr.mxu0 0.0
  %4881 = vmatpush1.msra.mxu0 0.0
  %4882 = vmatprep.subr.mxu0 0.0
  %4883 = vmatpush1.msra.mxu0 0.0
  %4884 = vmatprep.subr.mxu0 0.0
  %4885 = vmatpush1.msra.mxu0 0.0
  %4886 = vmatprep.subr.mxu0 0.0
  %4887 = vmatpush1.msra.mxu0 0.0
  %4888 = vmatprep.subr.mxu0 0.0
  %4889 = vmatpush1.msra.mxu0 0.0
  %4890 = vmatprep.subr.mxu0 0.0
  %4891 = vmatpush1.msra.mxu0 0.0
  %4892 = vmatprep.subr.mxu0 0.0
  %4893 = vmatpush1.msra.mxu0 0.0
  %4894 = vmatprep.subr.mxu0 0.0
  %4895 = vmatpush1.msra.mxu0 0.0
  %4896 = vmatprep.subr.mxu0 0.0
  %4897 = vmatpush1.msra.mxu0 0.0
  %4898 = vmatprep.subr.mxu0 0.0
  %4899 = vmatpush1.msra.mxu0 0.0
  %4900 = vmatprep.subr.mxu0 0.0
  %4901 = vmatpush1.msra.mxu0 0.0
  %4902 = vmatprep.subr.mxu0 0.0
  %4903 = vmatpush1.msra.mxu0 0.0
  %4904 = vmatprep.subr.mxu0 0.0
  %4905 = vmatpush1.msra.mxu0 0.0
  %4906 = vmatprep.subr.mxu0 0.0
  %4907 = vmatpush1.msra.mxu0 0.0
  %4908 = vmatprep.subr.mxu0 0.0
  %4909 = vmatpush1.msra.mxu0 0.0
  %4910 = vmatprep.subr.mxu0 0.0
  %4911 = vmatpush1.msra.mxu0 0.0
  %4912 = vmatprep.mubr.f32.mxu0 0.0
  %4913 = vmatmul.mubr.f32.gmra.mrb[0].mxu0 %v4753
  %v4914 = vpop.f32.mrb[0].mxu0
  %v4915 = vadd.f32 %v4590, %v4914
  %v4916 = vpop.f32.mrb[0].mxu0
  %4917 = vmatprep.mubr.f32.mxu0 0.0
  %4918 = vmatmul.mubr.f32.gmra.mrb[0].mxu0 %v4756
  %v4919 = vpop.f32.mrb[0].mxu0
  %v4920 = vadd.f32 %v4595, %v4919
  %v4921 = vpop.f32.mrb[0].mxu0
  %4922 = vmatprep.mubr.f32.mxu0 0.0
  %4923 = vmatmul.mubr.f32.gmra.mrb[0].mxu0 %v4759
  %v4924 = vpop.f32.mrb[0].mxu0
  %v4925 = vadd.f32 %v4600, %v4924
  %v4926 = vpop.f32.mrb[0].mxu0
  %4927 = vmatprep.mubr.f32.mxu0 0.0
  %4928 = vmatmul.mubr.f32.gmra.mrb[0].mxu0 %v4762
  %v4929 = vpop.f32.mrb[0].mxu0
  %v4930 = vadd.f32 %v4605, %v4929
  %v4931 = vpop.f32.mrb[0].mxu0
  %4932 = vmatprep.mubr.f32.mxu0 0.0
  %4933 = vmatmul.mubr.f32.gmra.mrb[0].mxu0 %v4765
  %v4934 = vpop.f32.mrb[0].mxu0
  %v4935 = vadd.f32 %v4610, %v4934
  %v4936 = vpop.f32.mrb[0].mxu0
  %4937 = vmatprep.mubr.f32.mxu0 0.0
  %4938 = vmatmul.mubr.f32.gmra.mrb[0].mxu0 %v4768
  %v4939 = vpop.f32.mrb[0].mxu0
  %v4940 = vadd.f32 %v4615, %v4939
  %v4941 = vpop.f32.mrb[0].mxu0
  %4942 = vmatprep.mubr.f32.mxu0 0.0
  %4943 = vmatmul.mubr.f32.gmra.mrb[0].mxu0 %v4771
  %v4944 = vpop.f32.mrb[0].mxu0
  %v4945 = vadd.f32 %v4620, %v4944
  %v4946 = vpop.f32.mrb[0].mxu0
  %4947 = vmatprep.mubr.f32.mxu0 0.0
  %4948 = vmatmul.mubr.f32.gmra.mrb[0].mxu0 %v4774
  %v4949 = vpop.f32.mrb[0].mxu0
  %v4950 = vadd.f32 %v4625, %v4949
  %v4951 = vpop.f32.mrb[0].mxu0
  %4952 = vmatprep.mubr.f32.mxu0 0.0
  %4953 = vmatmul.mubr.f32.gmra.mrb[0].mxu0 %v4777
  %v4954 = vpop.f32.mrb[0].mxu0
  %v4955 = vadd.f32 %v4630, %v4954
  %v4956 = vpop.f32.mrb[0].mxu0
  %4957 = vmatprep.mubr.f32.mxu0 0.0
  %4958 = vmatmul.mubr.f32.gmra.mrb[0].mxu0 %v4780
  %v4959 = vpop.f32.mrb[0].mxu0
  %v4960 = vadd.f32 %v4635, %v4959
  %v4961 = vpop.f32.mrb[0].mxu0
  %4962 = vmatprep.mubr.f32.mxu0 0.0
  %4963 = vmatmul.mubr.f32.gmra.mrb[0].mxu0 %v4783
  %v4964 = vpop.f32.mrb[0].mxu0
  %v4965 = vadd.f32 %v4640, %v4964
  %v4966 = vpop.f32.mrb[0].mxu0
  %4967 = vmatprep.mubr.f32.mxu0 0.0
  %4968 = vmatmul.mubr.f32.gmra.mrb[0].mxu0 %v4786
  %v4969 = vpop.f32.mrb[0].mxu0
  %v4970 = vadd.f32 %v4645, %v4969
  %v4971 = vpop.f32.mrb[0].mxu0
  %4972 = vmatprep.mubr.f32.mxu0 0.0
  %4973 = vmatmul.mubr.f32.gmra.mrb[0].mxu0 %v4789
  %v4974 = vpop.f32.mrb[0].mxu0
  %v4975 = vadd.f32 %v4650, %v4974
  %v4976 = vpop.f32.mrb[0].mxu0
  %4977 = vmatprep.mubr.f32.mxu0 0.0
  %4978 = vmatmul.mubr.f32.gmra.mrb[0].mxu0 %v4792
  %v4979 = vpop.f32.mrb[0].mxu0
  %v4980 = vadd.f32 %v4655, %v4979
  %v4981 = vpop.f32.mrb[0].mxu0
  %4982 = vmatprep.mubr.f32.mxu0 0.0
  %4983 = vmatmul.mubr.f32.gmra.mrb[0].mxu0 %v4795
  %v4984 = vpop.f32.mrb[0].mxu0
  %v4985 = vadd.f32 %v4660, %v4984
  %v4986 = vpop.f32.mrb[0].mxu0
  %4987 = vmatprep.mubr.f32.mxu0 0.0
  %4988 = vmatmul.mubr.f32.gmra.mrb[0].mxu0 %v4798
  %v4989 = vpop.f32.mrb[0].mxu0
  %v4990 = vadd.f32 %v4665, %v4989
  %v4991 = vpop.f32.mrb[0].mxu0
  %4992 = vmatprep.mubr.f32.mxu0 0.0
  %4993 = vmatmul.mubr.f32.gmra.mrb[0].mxu0 %v4801
  %v4994 = vpop.f32.mrb[0].mxu0
  %v4995 = vadd.f32 %v4670, %v4994
  %v4996 = vpop.f32.mrb[0].mxu0
  %4997 = vmatprep.mubr.f32.mxu0 0.0
  %4998 = vmatmul.mubr.f32.gmra.mrb[0].mxu0 %v4804
  %v4999 = vpop.f32.mrb[0].mxu0
  %v5000 = vadd.f32 %v4675, %v4999
  %v5001 = vpop.f32.mrb[0].mxu0
  %5002 = vmatprep.mubr.f32.mxu0 0.0
  %5003 = vmatmul.mubr.f32.gmra.mrb[0].mxu0 %v4807
  %v5004 = vpop.f32.mrb[0].mxu0
  %v5005 = vadd.f32 %v4680, %v5004
  %v5006 = vpop.f32.mrb[0].mxu0
  %5007 = vmatprep.mubr.f32.mxu0 0.0
  %5008 = vmatmul.mubr.f32.gmra.mrb[0].mxu0 %v4810
  %v5009 = vpop.f32.mrb[0].mxu0
  %v5010 = vadd.f32 %v4685, %v5009
  %v5011 = vpop.f32.mrb[0].mxu0
  %5012 = vmatprep.mubr.f32.mxu0 0.0
  %5013 = vmatmul.mubr.f32.gmra.mrb[0].mxu0 %v4813
  %v5014 = vpop.f32.mrb[0].mxu0
  %v5015 = vadd.f32 %v4690, %v5014
  %v5016 = vpop.f32.mrb[0].mxu0
  %5017 = vmatprep.mubr.f32.mxu0 0.0
  %5018 = vmatmul.mubr.f32.gmra.mrb[0].mxu0 %v4816
  %v5019 = vpop.f32.mrb[0].mxu0
  %v5020 = vadd.f32 %v4695, %v5019
  %v5021 = vpop.f32.mrb[0].mxu0
  %5022 = vmatprep.mubr.f32.mxu0 0.0
  %5023 = vmatmul.mubr.f32.gmra.mrb[0].mxu0 %v4819
  %v5024 = vpop.f32.mrb[0].mxu0
  %v5025 = vadd.f32 %v4700, %v5024
  %v5026 = vpop.f32.mrb[0].mxu0
  %5027 = vmatprep.mubr.f32.mxu0 0.0
  %5028 = vmatmul.mubr.f32.gmra.mrb[0].mxu0 %v4822
  %v5029 = vpop.f32.mrb[0].mxu0
  %v5030 = vadd.f32 %v4705, %v5029
  %v5031 = vpop.f32.mrb[0].mxu0
  %5032 = vmatprep.mubr.f32.mxu0 0.0
  %5033 = vmatmul.mubr.f32.gmra.mrb[0].mxu0 %v4825
  %v5034 = vpop.f32.mrb[0].mxu0
  %v5035 = vadd.f32 %v4710, %v5034
  %v5036 = vpop.f32.mrb[0].mxu0
  %5037 = vmatprep.mubr.f32.mxu0 0.0
  %5038 = vmatmul.mubr.f32.gmra.mrb[0].mxu0 %v4828
  %v5039 = vpop.f32.mrb[0].mxu0
  %v5040 = vadd.f32 %v4715, %v5039
  %v5041 = vpop.f32.mrb[0].mxu0
  %5042 = vmatprep.mubr.f32.mxu0 0.0
  %5043 = vmatmul.mubr.f32.gmra.mrb[0].mxu0 %v4831
  %v5044 = vpop.f32.mrb[0].mxu0
  %v5045 = vadd.f32 %v4720, %v5044
  %v5046 = vpop.f32.mrb[0].mxu0
  %5047 = vmatprep.mubr.f32.mxu0 0.0
  %5048 = vmatmul.mubr.f32.gmra.mrb[0].mxu0 %v4834
  %v5049 = vpop.f32.mrb[0].mxu0
  %v5050 = vadd.f32 %v4725, %v5049
  %v5051 = vpop.f32.mrb[0].mxu0
  %5052 = vmatprep.mubr.f32.mxu0 0.0
  %5053 = vmatmul.mubr.f32.gmra.mrb[0].mxu0 %v4837
  %v5054 = vpop.f32.mrb[0].mxu0
  %v5055 = vadd.f32 %v4730, %v5054
  %v5056 = vpop.f32.mrb[0].mxu0
  %5057 = vmatprep.mubr.f32.mxu0 0.0
  %5058 = vmatmul.mubr.f32.gmra.mrb[0].mxu0 %v4840
  %v5059 = vpop.f32.mrb[0].mxu0
  %v5060 = vadd.f32 %v4735, %v5059
  %v5061 = vpop.f32.mrb[0].mxu0
  %5062 = vmatprep.mubr.f32.mxu0 0.0
  %5063 = vmatmul.mubr.f32.gmra.mrb[0].mxu0 %v4843
  %v5064 = vpop.f32.mrb[0].mxu0
  %v5065 = vadd.f32 %v4740, %v5064
  %v5066 = vpop.f32.mrb[0].mxu0
  %5067 = vmatprep.mubr.f32.mxu0 0.0
  %5068 = vmatmul.mubr.f32.gmra.mrb[0].mxu0 %v4846
  %v5069 = vpop.f32.mrb[0].mxu0
  %v5070 = vadd.f32 %v4745, %v5069
  %v5071 = vpop.f32.mrb[0].mxu0
  %5072 = vdwg.mxu0
  %v5073 = vld [vmem:[%s8] sm:$0xff]
  %v5074 = vld [vmem:[%s8 + $0x8] sm:$0xff]
  %v5075 = vld [vmem:[%s8 + $0x10] sm:$0xff]
  %v5076 = vld [vmem:[%s8 + $0x18] sm:$0xff]
  %v5078 = vsel %vm786, %v488, 0
  %v5081 = vsel %vm786, %v489, 0
  %v5084 = vsel %vm786, %v490, 0
  %v5087 = vsel %vm786, %v491, 0
  %v5090 = vsel %vm786, %v492, 0
  %v5093 = vsel %vm786, %v493, 0
  %v5096 = vsel %vm786, %v494, 0
  %v5099 = vsel %vm786, %v495, 0
  %v5102 = vsel %vm786, %v496, 0
  %v5105 = vsel %vm786, %v497, 0
  %v5108 = vsel %vm786, %v498, 0
  %v5111 = vsel %vm786, %v499, 0
  %v5114 = vsel %vm786, %v500, 0
  %v5117 = vsel %vm786, %v501, 0
  %v5120 = vsel %vm786, %v502, 0
  %v5123 = vsel %vm786, %v503, 0
  %v5126 = vsel %vm786, %v504, 0
  %v5129 = vsel %vm786, %v505, 0
  %v5132 = vsel %vm786, %v506, 0
  %v5135 = vsel %vm786, %v507, 0
  %v5138 = vsel %vm786, %v508, 0
  %v5141 = vsel %vm786, %v509, 0
  %v5144 = vsel %vm786, %v510, 0
  %v5147 = vsel %vm786, %v511, 0
  %v5150 = vsel %vm786, %v512, 0
  %v5153 = vsel %vm786, %v513, 0
  %v5156 = vsel %vm786, %v514, 0
  %v5159 = vsel %vm786, %v515, 0
  %v5162 = vsel %vm786, %v516, 0
  %v5165 = vsel %vm786, %v517, 0
  %v5168 = vsel %vm786, %v518, 0
  %v5171 = vsel %vm786, %v519, 0
  %5173 = vmatprep.subr.mxu0 0.0
  %5174 = vmatpush1.msra.mxu0 %v5073
  %5175 = vmatprep.subr.mxu0 0.0
  %5176 = vmatpush1.msra.mxu0 %v5074
  %5177 = vmatprep.subr.mxu0 0.0
  %5178 = vmatpush1.msra.mxu0 %v5075
  %5179 = vmatprep.subr.mxu0 0.0
  %5180 = vmatpush1.msra.mxu0 %v5076
  %5181 = vmatprep.subr.mxu0 0.0
  %5182 = vmatpush1.msra.mxu0 0.0
  %5183 = vmatprep.subr.mxu0 0.0
  %5184 = vmatpush1.msra.mxu0 0.0
  %5185 = vmatprep.subr.mxu0 0.0
  %5186 = vmatpush1.msra.mxu0 0.0
  %5187 = vmatprep.subr.mxu0 0.0
  %5188 = vmatpush1.msra.mxu0 0.0
  %5189 = vmatprep.subr.mxu0 0.0
  %5190 = vmatpush1.msra.mxu0 0.0
  %5191 = vmatprep.subr.mxu0 0.0
  %5192 = vmatpush1.msra.mxu0 0.0
  %5193 = vmatprep.subr.mxu0 0.0
  %5194 = vmatpush1.msra.mxu0 0.0
  %5195 = vmatprep.subr.mxu0 0.0
  %5196 = vmatpush1.msra.mxu0 0.0
  %5197 = vmatprep.subr.mxu0 0.0
  %5198 = vmatpush1.msra.mxu0 0.0
  %5199 = vmatprep.subr.mxu0 0.0
  %5200 = vmatpush1.msra.mxu0 0.0
  %5201 = vmatprep.subr.mxu0 0.0
  %5202 = vmatpush1.msra.mxu0 0.0
  %5203 = vmatprep.subr.mxu0 0.0
  %5204 = vmatpush1.msra.mxu0 0.0
  %5205 = vmatprep.subr.mxu0 0.0
  %5206 = vmatpush1.msra.mxu0 0.0
  %5207 = vmatprep.subr.mxu0 0.0
  %5208 = vmatpush1.msra.mxu0 0.0
  %5209 = vmatprep.subr.mxu0 0.0
  %5210 = vmatpush1.msra.mxu0 0.0
  %5211 = vmatprep.subr.mxu0 0.0
  %5212 = vmatpush1.msra.mxu0 0.0
  %5213 = vmatprep.subr.mxu0 0.0
  %5214 = vmatpush1.msra.mxu0 0.0
  %5215 = vmatprep.subr.mxu0 0.0
  %5216 = vmatpush1.msra.mxu0 0.0
  %5217 = vmatprep.subr.mxu0 0.0
  %5218 = vmatpush1.msra.mxu0 0.0
  %5219 = vmatprep.subr.mxu0 0.0
  %5220 = vmatpush1.msra.mxu0 0.0
  %5221 = vmatprep.subr.mxu0 0.0
  %5222 = vmatpush1.msra.mxu0 0.0
  %5223 = vmatprep.subr.mxu0 0.0
  %5224 = vmatpush1.msra.mxu0 0.0
  %5225 = vmatprep.subr.mxu0 0.0
  %5226 = vmatpush1.msra.mxu0 0.0
  %5227 = vmatprep.subr.mxu0 0.0
  %5228 = vmatpush1.msra.mxu0 0.0
  %5229 = vmatprep.subr.mxu0 0.0
  %5230 = vmatpush1.msra.mxu0 0.0
  %5231 = vmatprep.subr.mxu0 0.0
  %5232 = vmatpush1.msra.mxu0 0.0
  %5233 = vmatprep.subr.mxu0 0.0
  %5234 = vmatpush1.msra.mxu0 0.0
  %5235 = vmatprep.subr.mxu0 0.0
  %5236 = vmatpush1.msra.mxu0 0.0
  %5237 = vmatprep.mubr.f32.mxu0 0.0
  %5238 = vmatmul.mubr.f32.gmra.mrb[0].mxu0 %v5078
  %v5239 = vpop.f32.mrb[0].mxu0
  %v5240 = vadd.f32 0.0, %v5239
  %v5241 = vpop.f32.mrb[0].mxu0
  %5242 = vmatprep.mubr.f32.mxu0 0.0
  %5243 = vmatmul.mubr.f32.gmra.mrb[0].mxu0 %v5081
  %v5244 = vpop.f32.mrb[0].mxu0
  %v5245 = vadd.f32 0.0, %v5244
  %v5246 = vpop.f32.mrb[0].mxu0
  %5247 = vmatprep.mubr.f32.mxu0 0.0
  %5248 = vmatmul.mubr.f32.gmra.mrb[0].mxu0 %v5084
  %v5249 = vpop.f32.mrb[0].mxu0
  %v5250 = vadd.f32 0.0, %v5249
  %v5251 = vpop.f32.mrb[0].mxu0
  %5252 = vmatprep.mubr.f32.mxu0 0.0
  %5253 = vmatmul.mubr.f32.gmra.mrb[0].mxu0 %v5087
  %v5254 = vpop.f32.mrb[0].mxu0
  %v5255 = vadd.f32 0.0, %v5254
  %v5256 = vpop.f32.mrb[0].mxu0
  %5257 = vmatprep.mubr.f32.mxu0 0.0
  %5258 = vmatmul.mubr.f32.gmra.mrb[0].mxu0 %v5090
  %v5259 = vpop.f32.mrb[0].mxu0
  %v5260 = vadd.f32 0.0, %v5259
  %v5261 = vpop.f32.mrb[0].mxu0
  %5262 = vmatprep.mubr.f32.mxu0 0.0
  %5263 = vmatmul.mubr.f32.gmra.mrb[0].mxu0 %v5093
  %v5264 = vpop.f32.mrb[0].mxu0
  %v5265 = vadd.f32 0.0, %v5264
  %v5266 = vpop.f32.mrb[0].mxu0
  %5267 = vmatprep.mubr.f32.mxu0 0.0
  %5268 = vmatmul.mubr.f32.gmra.mrb[0].mxu0 %v5096
  %v5269 = vpop.f32.mrb[0].mxu0
  %v5270 = vadd.f32 0.0, %v5269
  %v5271 = vpop.f32.mrb[0].mxu0
  %5272 = vmatprep.mubr.f32.mxu0 0.0
  %5273 = vmatmul.mubr.f32.gmra.mrb[0].mxu0 %v5099
  %v5274 = vpop.f32.mrb[0].mxu0
  %v5275 = vadd.f32 0.0, %v5274
  %v5276 = vpop.f32.mrb[0].mxu0
  %5277 = vmatprep.mubr.f32.mxu0 0.0
  %5278 = vmatmul.mubr.f32.gmra.mrb[0].mxu0 %v5102
  %v5279 = vpop.f32.mrb[0].mxu0
  %v5280 = vadd.f32 0.0, %v5279
  %v5281 = vpop.f32.mrb[0].mxu0
  %5282 = vmatprep.mubr.f32.mxu0 0.0
  %5283 = vmatmul.mubr.f32.gmra.mrb[0].mxu0 %v5105
  %v5284 = vpop.f32.mrb[0].mxu0
  %v5285 = vadd.f32 0.0, %v5284
  %v5286 = vpop.f32.mrb[0].mxu0
  %5287 = vmatprep.mubr.f32.mxu0 0.0
  %5288 = vmatmul.mubr.f32.gmra.mrb[0].mxu0 %v5108
  %v5289 = vpop.f32.mrb[0].mxu0
  %v5290 = vadd.f32 0.0, %v5289
  %v5291 = vpop.f32.mrb[0].mxu0
  %5292 = vmatprep.mubr.f32.mxu0 0.0
  %5293 = vmatmul.mubr.f32.gmra.mrb[0].mxu0 %v5111
  %v5294 = vpop.f32.mrb[0].mxu0
  %v5295 = vadd.f32 0.0, %v5294
  %v5296 = vpop.f32.mrb[0].mxu0
  %5297 = vmatprep.mubr.f32.mxu0 0.0
  %5298 = vmatmul.mubr.f32.gmra.mrb[0].mxu0 %v5114
  %v5299 = vpop.f32.mrb[0].mxu0
  %v5300 = vadd.f32 0.0, %v5299
  %v5301 = vpop.f32.mrb[0].mxu0
  %5302 = vmatprep.mubr.f32.mxu0 0.0
  %5303 = vmatmul.mubr.f32.gmra.mrb[0].mxu0 %v5117
  %v5304 = vpop.f32.mrb[0].mxu0
  %v5305 = vadd.f32 0.0, %v5304
  %v5306 = vpop.f32.mrb[0].mxu0
  %5307 = vmatprep.mubr.f32.mxu0 0.0
  %5308 = vmatmul.mubr.f32.gmra.mrb[0].mxu0 %v5120
  %v5309 = vpop.f32.mrb[0].mxu0
  %v5310 = vadd.f32 0.0, %v5309
  %v5311 = vpop.f32.mrb[0].mxu0
  %5312 = vmatprep.mubr.f32.mxu0 0.0
  %5313 = vmatmul.mubr.f32.gmra.mrb[0].mxu0 %v5123
  %v5314 = vpop.f32.mrb[0].mxu0
  %v5315 = vadd.f32 0.0, %v5314
  %v5316 = vpop.f32.mrb[0].mxu0
  %5317 = vmatprep.mubr.f32.mxu0 0.0
  %5318 = vmatmul.mubr.f32.gmra.mrb[0].mxu0 %v5126
  %v5319 = vpop.f32.mrb[0].mxu0
  %v5320 = vadd.f32 0.0, %v5319
  %v5321 = vpop.f32.mrb[0].mxu0
  %5322 = vmatprep.mubr.f32.mxu0 0.0
  %5323 = vmatmul.mubr.f32.gmra.mrb[0].mxu0 %v5129
  %v5324 = vpop.f32.mrb[0].mxu0
  %v5325 = vadd.f32 0.0, %v5324
  %v5326 = vpop.f32.mrb[0].mxu0
  %5327 = vmatprep.mubr.f32.mxu0 0.0
  %5328 = vmatmul.mubr.f32.gmra.mrb[0].mxu0 %v5132
  %v5329 = vpop.f32.mrb[0].mxu0
  %v5330 = vadd.f32 0.0, %v5329
  %v5331 = vpop.f32.mrb[0].mxu0
  %5332 = vmatprep.mubr.f32.mxu0 0.0
  %5333 = vmatmul.mubr.f32.gmra.mrb[0].mxu0 %v5135
  %v5334 = vpop.f32.mrb[0].mxu0
  %v5335 = vadd.f32 0.0, %v5334
  %v5336 = vpop.f32.mrb[0].mxu0
  %5337 = vmatprep.mubr.f32.mxu0 0.0
  %5338 = vmatmul.mubr.f32.gmra.mrb[0].mxu0 %v5138
  %v5339 = vpop.f32.mrb[0].mxu0
  %v5340 = vadd.f32 0.0, %v5339
  %v5341 = vpop.f32.mrb[0].mxu0
  %5342 = vmatprep.mubr.f32.mxu0 0.0
  %5343 = vmatmul.mubr.f32.gmra.mrb[0].mxu0 %v5141
  %v5344 = vpop.f32.mrb[0].mxu0
  %v5345 = vadd.f32 0.0, %v5344
  %v5346 = vpop.f32.mrb[0].mxu0
  %5347 = vmatprep.mubr.f32.mxu0 0.0
  %5348 = vmatmul.mubr.f32.gmra.mrb[0].mxu0 %v5144
  %v5349 = vpop.f32.mrb[0].mxu0
  %v5350 = vadd.f32 0.0, %v5349
  %v5351 = vpop.f32.mrb[0].mxu0
  %5352 = vmatprep.mubr.f32.mxu0 0.0
  %5353 = vmatmul.mubr.f32.gmra.mrb[0].mxu0 %v5147
  %v5354 = vpop.f32.mrb[0].mxu0
  %v5355 = vadd.f32 0.0, %v5354
  %v5356 = vpop.f32.mrb[0].mxu0
  %5357 = vmatprep.mubr.f32.mxu0 0.0
  %5358 = vmatmul.mubr.f32.gmra.mrb[0].mxu0 %v5150
  %v5359 = vpop.f32.mrb[0].mxu0
  %v5360 = vadd.f32 0.0, %v5359
  %v5361 = vpop.f32.mrb[0].mxu0
  %5362 = vmatprep.mubr.f32.mxu0 0.0
  %5363 = vmatmul.mubr.f32.gmra.mrb[0].mxu0 %v5153
  %v5364 = vpop.f32.mrb[0].mxu0
  %v5365 = vadd.f32 0.0, %v5364
  %v5366 = vpop.f32.mrb[0].mxu0
  %5367 = vmatprep.mubr.f32.mxu0 0.0
  %5368 = vmatmul.mubr.f32.gmra.mrb[0].mxu0 %v5156
  %v5369 = vpop.f32.mrb[0].mxu0
  %v5370 = vadd.f32 0.0, %v5369
  %v5371 = vpop.f32.mrb[0].mxu0
  %5372 = vmatprep.mubr.f32.mxu0 0.0
  %5373 = vmatmul.mubr.f32.gmra.mrb[0].mxu0 %v5159
  %v5374 = vpop.f32.mrb[0].mxu0
  %v5375 = vadd.f32 0.0, %v5374
  %v5376 = vpop.f32.mrb[0].mxu0
  %5377 = vmatprep.mubr.f32.mxu0 0.0
  %5378 = vmatmul.mubr.f32.gmra.mrb[0].mxu0 %v5162
  %v5379 = vpop.f32.mrb[0].mxu0
  %v5380 = vadd.f32 0.0, %v5379
  %v5381 = vpop.f32.mrb[0].mxu0
  %5382 = vmatprep.mubr.f32.mxu0 0.0
  %5383 = vmatmul.mubr.f32.gmra.mrb[0].mxu0 %v5165
  %v5384 = vpop.f32.mrb[0].mxu0
  %v5385 = vadd.f32 0.0, %v5384
  %v5386 = vpop.f32.mrb[0].mxu0
  %5387 = vmatprep.mubr.f32.mxu0 0.0
  %5388 = vmatmul.mubr.f32.gmra.mrb[0].mxu0 %v5168
  %v5389 = vpop.f32.mrb[0].mxu0
  %v5390 = vadd.f32 0.0, %v5389
  %v5391 = vpop.f32.mrb[0].mxu0
  %5392 = vmatprep.mubr.f32.mxu0 0.0
  %5393 = vmatmul.mubr.f32.gmra.mrb[0].mxu0 %v5171
  %v5394 = vpop.f32.mrb[0].mxu0
  %v5395 = vadd.f32 0.0, %v5394
  %v5396 = vpop.f32.mrb[0].mxu0
  %5397 = vdwg.mxu0
  %v5398 = vadd.f32 %v4915, %v5240
  %v5399 = vadd.f32 %v4920, %v5245
  %v5400 = vadd.f32 %v4925, %v5250
  %v5401 = vadd.f32 %v4930, %v5255
  %v5402 = vadd.f32 %v4935, %v5260
  %v5403 = vadd.f32 %v4940, %v5265
  %v5404 = vadd.f32 %v4945, %v5270
  %v5405 = vadd.f32 %v4950, %v5275
  %v5406 = vadd.f32 %v4955, %v5280
  %v5407 = vadd.f32 %v4960, %v5285
  %v5408 = vadd.f32 %v4965, %v5290
  %v5409 = vadd.f32 %v4970, %v5295
  %v5410 = vadd.f32 %v4975, %v5300
  %v5411 = vadd.f32 %v4980, %v5305
  %v5412 = vadd.f32 %v4985, %v5310
  %v5413 = vadd.f32 %v4990, %v5315
  %v5414 = vadd.f32 %v4995, %v5320
  %v5415 = vadd.f32 %v5000, %v5325
  %v5416 = vadd.f32 %v5005, %v5330
  %v5417 = vadd.f32 %v5010, %v5335
  %v5418 = vadd.f32 %v5015, %v5340
  %v5419 = vadd.f32 %v5020, %v5345
  %v5420 = vadd.f32 %v5025, %v5350
  %v5421 = vadd.f32 %v5030, %v5355
  %v5422 = vadd.f32 %v5035, %v5360
  %v5423 = vadd.f32 %v5040, %v5365
  %v5424 = vadd.f32 %v5045, %v5370
  %v5425 = vadd.f32 %v5050, %v5375
  %v5426 = vadd.f32 %v5055, %v5380
  %v5427 = vadd.f32 %v5060, %v5385
  %v5428 = vadd.f32 %v5065, %v5390
  %v5429 = vadd.f32 %v5070, %v5395
  %v5430 = vld [vmem:[%s9] sm:$0x1]
  %v5432 = vlaneseq
  %v5433 = vshrl.u32 %v5432, 7
  %v5434 = vsub.s32 0, %v5433
  %v5435 = vrot.slane %v5430, %v5434
  %v5437 = vadd.f32 %v5398, %v5435
  %v5438 = vadd.f32 %v5399, %v5435
  %v5439 = vadd.f32 %v5400, %v5435
  %v5440 = vadd.f32 %v5401, %v5435
  %v5441 = vadd.f32 %v5402, %v5435
  %v5442 = vadd.f32 %v5403, %v5435
  %v5443 = vadd.f32 %v5404, %v5435
  %v5444 = vadd.f32 %v5405, %v5435
  %v5445 = vadd.f32 %v5406, %v5435
  %v5446 = vadd.f32 %v5407, %v5435
  %v5447 = vadd.f32 %v5408, %v5435
  %v5448 = vadd.f32 %v5409, %v5435
  %v5449 = vadd.f32 %v5410, %v5435
  %v5450 = vadd.f32 %v5411, %v5435
  %v5451 = vadd.f32 %v5412, %v5435
  %v5452 = vadd.f32 %v5413, %v5435
  %v5453 = vadd.f32 %v5414, %v5435
  %v5454 = vadd.f32 %v5415, %v5435
  %v5455 = vadd.f32 %v5416, %v5435
  %v5456 = vadd.f32 %v5417, %v5435
  %v5457 = vadd.f32 %v5418, %v5435
  %v5458 = vadd.f32 %v5419, %v5435
  %v5459 = vadd.f32 %v5420, %v5435
  %v5460 = vadd.f32 %v5421, %v5435
  %v5461 = vadd.f32 %v5422, %v5435
  %v5462 = vadd.f32 %v5423, %v5435
  %v5463 = vadd.f32 %v5424, %v5435
  %v5464 = vadd.f32 %v5425, %v5435
  %v5465 = vadd.f32 %v5426, %v5435
  %v5466 = vadd.f32 %v5427, %v5435
  %v5467 = vadd.f32 %v5428, %v5435
  %v5468 = vadd.f32 %v5429, %v5435
  %v5469 = vmul.f32 %v5437, 0.5
  %v5470 = vmul.f32 %v5438, 0.5
  %v5471 = vmul.f32 %v5439, 0.5
  %v5472 = vmul.f32 %v5440, 0.5
  %v5473 = vmul.f32 %v5441, 0.5
  %v5474 = vmul.f32 %v5442, 0.5
  %v5475 = vmul.f32 %v5443, 0.5
  %v5476 = vmul.f32 %v5444, 0.5
  %v5477 = vmul.f32 %v5445, 0.5
  %v5478 = vmul.f32 %v5446, 0.5
  %v5479 = vmul.f32 %v5447, 0.5
  %v5480 = vmul.f32 %v5448, 0.5
  %v5481 = vmul.f32 %v5449, 0.5
  %v5482 = vmul.f32 %v5450, 0.5
  %v5483 = vmul.f32 %v5451, 0.5
  %v5484 = vmul.f32 %v5452, 0.5
  %v5485 = vmul.f32 %v5453, 0.5
  %v5486 = vmul.f32 %v5454, 0.5
  %v5487 = vmul.f32 %v5455, 0.5
  %v5488 = vmul.f32 %v5456, 0.5
  %v5489 = vmul.f32 %v5457, 0.5
  %v5490 = vmul.f32 %v5458, 0.5
  %v5491 = vmul.f32 %v5459, 0.5
  %v5492 = vmul.f32 %v5460, 0.5
  %v5493 = vmul.f32 %v5461, 0.5
  %v5494 = vmul.f32 %v5462, 0.5
  %v5495 = vmul.f32 %v5463, 0.5
  %v5496 = vmul.f32 %v5464, 0.5
  %v5497 = vmul.f32 %v5465, 0.5
  %v5498 = vmul.f32 %v5466, 0.5
  %v5499 = vmul.f32 %v5467, 0.5
  %v5500 = vmul.f32 %v5468, 0.5
  %v5501 = vmul.f32 %v5437, 0.044715
  %v5502 = vmul.f32 %v5438, 0.044715
  %v5503 = vmul.f32 %v5439, 0.044715
  %v5504 = vmul.f32 %v5440, 0.044715
  %v5505 = vmul.f32 %v5441, 0.044715
  %v5506 = vmul.f32 %v5442, 0.044715
  %v5507 = vmul.f32 %v5443, 0.044715
  %v5508 = vmul.f32 %v5444, 0.044715
  %v5509 = vmul.f32 %v5445, 0.044715
  %v5510 = vmul.f32 %v5446, 0.044715
  %v5511 = vmul.f32 %v5447, 0.044715
  %v5512 = vmul.f32 %v5448, 0.044715
  %v5513 = vmul.f32 %v5449, 0.044715
  %v5514 = vmul.f32 %v5450, 0.044715
  %v5515 = vmul.f32 %v5451, 0.044715
  %v5516 = vmul.f32 %v5452, 0.044715
  %v5517 = vmul.f32 %v5453, 0.044715
  %v5518 = vmul.f32 %v5454, 0.044715
  %v5519 = vmul.f32 %v5455, 0.044715
  %v5520 = vmul.f32 %v5456, 0.044715
  %v5521 = vmul.f32 %v5457, 0.044715
  %v5522 = vmul.f32 %v5458, 0.044715
  %v5523 = vmul.f32 %v5459, 0.044715
  %v5524 = vmul.f32 %v5460, 0.044715
  %v5525 = vmul.f32 %v5461, 0.044715
  %v5526 = vmul.f32 %v5462, 0.044715
  %v5527 = vmul.f32 %v5463, 0.044715
  %v5528 = vmul.f32 %v5464, 0.044715
  %v5529 = vmul.f32 %v5465, 0.044715
  %v5530 = vmul.f32 %v5466, 0.044715
  %v5531 = vmul.f32 %v5467, 0.044715
  %v5532 = vmul.f32 %v5468, 0.044715
  %v5533 = vmul.f32 %v5501, %v5437
  %v5534 = vmul.f32 %v5502, %v5438
  %v5535 = vmul.f32 %v5503, %v5439
  %v5536 = vmul.f32 %v5504, %v5440
  %v5537 = vmul.f32 %v5505, %v5441
  %v5538 = vmul.f32 %v5506, %v5442
  %v5539 = vmul.f32 %v5507, %v5443
  %v5540 = vmul.f32 %v5508, %v5444
  %v5541 = vmul.f32 %v5509, %v5445
  %v5542 = vmul.f32 %v5510, %v5446
  %v5543 = vmul.f32 %v5511, %v5447
  %v5544 = vmul.f32 %v5512, %v5448
  %v5545 = vmul.f32 %v5513, %v5449
  %v5546 = vmul.f32 %v5514, %v5450
  %v5547 = vmul.f32 %v5515, %v5451
  %v5548 = vmul.f32 %v5516, %v5452
  %v5549 = vmul.f32 %v5517, %v5453
  %v5550 = vmul.f32 %v5518, %v5454
  %v5551 = vmul.f32 %v5519, %v5455
  %v5552 = vmul.f32 %v5520, %v5456
  %v5553 = vmul.f32 %v5521, %v5457
  %v5554 = vmul.f32 %v5522, %v5458
  %v5555 = vmul.f32 %v5523, %v5459
  %v5556 = vmul.f32 %v5524, %v5460
  %v5557 = vmul.f32 %v5525, %v5461
  %v5558 = vmul.f32 %v5526, %v5462
  %v5559 = vmul.f32 %v5527, %v5463
  %v5560 = vmul.f32 %v5528, %v5464
  %v5561 = vmul.f32 %v5529, %v5465
  %v5562 = vmul.f32 %v5530, %v5466
  %v5563 = vmul.f32 %v5531, %v5467
  %v5564 = vmul.f32 %v5532, %v5468
  %v5565 = vmul.f32 %v5533, %v5437
  %v5566 = vmul.f32 %v5534, %v5438
  %v5567 = vmul.f32 %v5535, %v5439
  %v5568 = vmul.f32 %v5536, %v5440
  %v5569 = vmul.f32 %v5537, %v5441
  %v5570 = vmul.f32 %v5538, %v5442
  %v5571 = vmul.f32 %v5539, %v5443
  %v5572 = vmul.f32 %v5540, %v5444
  %v5573 = vmul.f32 %v5541, %v5445
  %v5574 = vmul.f32 %v5542, %v5446
  %v5575 = vmul.f32 %v5543, %v5447
  %v5576 = vmul.f32 %v5544, %v5448
  %v5577 = vmul.f32 %v5545, %v5449
  %v5578 = vmul.f32 %v5546, %v5450
  %v5579 = vmul.f32 %v5547, %v5451
  %v5580 = vmul.f32 %v5548, %v5452
  %v5581 = vmul.f32 %v5549, %v5453
  %v5582 = vmul.f32 %v5550, %v5454
  %v5583 = vmul.f32 %v5551, %v5455
  %v5584 = vmul.f32 %v5552, %v5456
  %v5585 = vmul.f32 %v5553, %v5457
  %v5586 = vmul.f32 %v5554, %v5458
  %v5587 = vmul.f32 %v5555, %v5459
  %v5588 = vmul.f32 %v5556, %v5460
  %v5589 = vmul.f32 %v5557, %v5461
  %v5590 = vmul.f32 %v5558, %v5462
  %v5591 = vmul.f32 %v5559, %v5463
  %v5592 = vmul.f32 %v5560, %v5464
  %v5593 = vmul.f32 %v5561, %v5465
  %v5594 = vmul.f32 %v5562, %v5466
  %v5595 = vmul.f32 %v5563, %v5467
  %v5596 = vmul.f32 %v5564, %v5468
  %v5597 = vadd.f32 %v5437, %v5565
  %v5598 = vadd.f32 %v5438, %v5566
  %v5599 = vadd.f32 %v5439, %v5567
  %v5600 = vadd.f32 %v5440, %v5568
  %v5601 = vadd.f32 %v5441, %v5569
  %v5602 = vadd.f32 %v5442, %v5570
  %v5603 = vadd.f32 %v5443, %v5571
  %v5604 = vadd.f32 %v5444, %v5572
  %v5605 = vadd.f32 %v5445, %v5573
  %v5606 = vadd.f32 %v5446, %v5574
  %v5607 = vadd.f32 %v5447, %v5575
  %v5608 = vadd.f32 %v5448, %v5576
  %v5609 = vadd.f32 %v5449, %v5577
  %v5610 = vadd.f32 %v5450, %v5578
  %v5611 = vadd.f32 %v5451, %v5579
  %v5612 = vadd.f32 %v5452, %v5580
  %v5613 = vadd.f32 %v5453, %v5581
  %v5614 = vadd.f32 %v5454, %v5582
  %v5615 = vadd.f32 %v5455, %v5583
  %v5616 = vadd.f32 %v5456, %v5584
  %v5617 = vadd.f32 %v5457, %v5585
  %v5618 = vadd.f32 %v5458, %v5586
  %v5619 = vadd.f32 %v5459, %v5587
  %v5620 = vadd.f32 %v5460, %v5588
  %v5621 = vadd.f32 %v5461, %v5589
  %v5622 = vadd.f32 %v5462, %v5590
  %v5623 = vadd.f32 %v5463, %v5591
  %v5624 = vadd.f32 %v5464, %v5592
  %v5625 = vadd.f32 %v5465, %v5593
  %v5626 = vadd.f32 %v5466, %v5594
  %v5627 = vadd.f32 %v5467, %v5595
  %v5628 = vadd.f32 %v5468, %v5596
  %v5629 = vmul.f32 %v5597, 0.7978846
  %v5630 = vmul.f32 %v5598, 0.7978846
  %v5631 = vmul.f32 %v5599, 0.7978846
  %v5632 = vmul.f32 %v5600, 0.7978846
  %v5633 = vmul.f32 %v5601, 0.7978846
  %v5634 = vmul.f32 %v5602, 0.7978846
  %v5635 = vmul.f32 %v5603, 0.7978846
  %v5636 = vmul.f32 %v5604, 0.7978846
  %v5637 = vmul.f32 %v5605, 0.7978846
  %v5638 = vmul.f32 %v5606, 0.7978846
  %v5639 = vmul.f32 %v5607, 0.7978846
  %v5640 = vmul.f32 %v5608, 0.7978846
  %v5641 = vmul.f32 %v5609, 0.7978846
  %v5642 = vmul.f32 %v5610, 0.7978846
  %v5643 = vmul.f32 %v5611, 0.7978846
  %v5644 = vmul.f32 %v5612, 0.7978846
  %v5645 = vmul.f32 %v5613, 0.7978846
  %v5646 = vmul.f32 %v5614, 0.7978846
  %v5647 = vmul.f32 %v5615, 0.7978846
  %v5648 = vmul.f32 %v5616, 0.7978846
  %v5649 = vmul.f32 %v5617, 0.7978846
  %v5650 = vmul.f32 %v5618, 0.7978846
  %v5651 = vmul.f32 %v5619, 0.7978846
  %v5652 = vmul.f32 %v5620, 0.7978846
  %v5653 = vmul.f32 %v5621, 0.7978846
  %v5654 = vmul.f32 %v5622, 0.7978846
  %v5655 = vmul.f32 %v5623, 0.7978846
  %v5656 = vmul.f32 %v5624, 0.7978846
  %v5657 = vmul.f32 %v5625, 0.7978846
  %v5658 = vmul.f32 %v5626, 0.7978846
  %v5659 = vmul.f32 %v5627, 0.7978846
  %v5660 = vmul.f32 %v5628, 0.7978846
  %v5661 = vtanh.pop %v5629
  %v5662 = vtanh.pop %v5630
  %v5663 = vtanh.pop %v5631
  %v5664 = vtanh.pop %v5632
  %v5665 = vtanh.pop %v5633
  %v5666 = vtanh.pop %v5634
  %v5667 = vtanh.pop %v5635
  %v5668 = vtanh.pop %v5636
  %v5669 = vtanh.pop %v5637
  %v5670 = vtanh.pop %v5638
  %v5671 = vtanh.pop %v5639
  %v5672 = vtanh.pop %v5640
  %v5673 = vtanh.pop %v5641
  %v5674 = vtanh.pop %v5642
  %v5675 = vtanh.pop %v5643
  %v5676 = vtanh.pop %v5644
  %v5677 = vtanh.pop %v5645
  %v5678 = vtanh.pop %v5646
  %v5679 = vtanh.pop %v5647
  %v5680 = vtanh.pop %v5648
  %v5681 = vtanh.pop %v5649
  %v5682 = vtanh.pop %v5650
  %v5683 = vtanh.pop %v5651
  %v5684 = vtanh.pop %v5652
  %v5685 = vtanh.pop %v5653
  %v5686 = vtanh.pop %v5654
  %v5687 = vtanh.pop %v5655
  %v5688 = vtanh.pop %v5656
  %v5689 = vtanh.pop %v5657
  %v5690 = vtanh.pop %v5658
  %v5691 = vtanh.pop %v5659
  %v5692 = vtanh.pop %v5660
  %v5693 = vadd.f32 %v5661, 1.0
  %v5694 = vadd.f32 %v5662, 1.0
  %v5695 = vadd.f32 %v5663, 1.0
  %v5696 = vadd.f32 %v5664, 1.0
  %v5697 = vadd.f32 %v5665, 1.0
  %v5698 = vadd.f32 %v5666, 1.0
  %v5699 = vadd.f32 %v5667, 1.0
  %v5700 = vadd.f32 %v5668, 1.0
  %v5701 = vadd.f32 %v5669, 1.0
  %v5702 = vadd.f32 %v5670, 1.0
  %v5703 = vadd.f32 %v5671, 1.0
  %v5704 = vadd.f32 %v5672, 1.0
  %v5705 = vadd.f32 %v5673, 1.0
  %v5706 = vadd.f32 %v5674, 1.0
  %v5707 = vadd.f32 %v5675, 1.0
  %v5708 = vadd.f32 %v5676, 1.0
  %v5709 = vadd.f32 %v5677, 1.0
  %v5710 = vadd.f32 %v5678, 1.0
  %v5711 = vadd.f32 %v5679, 1.0
  %v5712 = vadd.f32 %v5680, 1.0
  %v5713 = vadd.f32 %v5681, 1.0
  %v5714 = vadd.f32 %v5682, 1.0
  %v5715 = vadd.f32 %v5683, 1.0
  %v5716 = vadd.f32 %v5684, 1.0
  %v5717 = vadd.f32 %v5685, 1.0
  %v5718 = vadd.f32 %v5686, 1.0
  %v5719 = vadd.f32 %v5687, 1.0
  %v5720 = vadd.f32 %v5688, 1.0
  %v5721 = vadd.f32 %v5689, 1.0
  %v5722 = vadd.f32 %v5690, 1.0
  %v5723 = vadd.f32 %v5691, 1.0
  %v5724 = vadd.f32 %v5692, 1.0
  %v5725 = vmul.f32 %v5469, %v5693
  %v5726 = vmul.f32 %v5470, %v5694
  %v5727 = vmul.f32 %v5471, %v5695
  %v5728 = vmul.f32 %v5472, %v5696
  %v5729 = vmul.f32 %v5473, %v5697
  %v5730 = vmul.f32 %v5474, %v5698
  %v5731 = vmul.f32 %v5475, %v5699
  %v5732 = vmul.f32 %v5476, %v5700
  %v5733 = vmul.f32 %v5477, %v5701
  %v5734 = vmul.f32 %v5478, %v5702
  %v5735 = vmul.f32 %v5479, %v5703
  %v5736 = vmul.f32 %v5480, %v5704
  %v5737 = vmul.f32 %v5481, %v5705
  %v5738 = vmul.f32 %v5482, %v5706
  %v5739 = vmul.f32 %v5483, %v5707
  %v5740 = vmul.f32 %v5484, %v5708
  %v5741 = vmul.f32 %v5485, %v5709
  %v5742 = vmul.f32 %v5486, %v5710
  %v5743 = vmul.f32 %v5487, %v5711
  %v5744 = vmul.f32 %v5488, %v5712
  %v5745 = vmul.f32 %v5489, %v5713
  %v5746 = vmul.f32 %v5490, %v5714
  %v5747 = vmul.f32 %v5491, %v5715
  %v5748 = vmul.f32 %v5492, %v5716
  %v5749 = vmul.f32 %v5493, %v5717
  %v5750 = vmul.f32 %v5494, %v5718
  %v5751 = vmul.f32 %v5495, %v5719
  %v5752 = vmul.f32 %v5496, %v5720
  %v5753 = vmul.f32 %v5497, %v5721
  %v5754 = vmul.f32 %v5498, %v5722
  %v5755 = vmul.f32 %v5499, %v5723
  %v5756 = vmul.f32 %v5500, %v5724
  %5757 = vmatprep.subr.mxu0 0.0
  %5758 = vmatpush1.msra.mxu0 %v5725
  %5759 = vmatprep.subr.mxu0 0.0
  %5760 = vmatpush1.msra.mxu0 %v5726
  %5761 = vmatprep.subr.mxu0 0.0
  %5762 = vmatpush1.msra.mxu0 %v5727
  %5763 = vmatprep.subr.mxu0 0.0
  %5764 = vmatpush1.msra.mxu0 %v5728
  %5765 = vmatprep.subr.mxu0 0.0
  %5766 = vmatpush1.msra.mxu0 %v5729
  %5767 = vmatprep.subr.mxu0 0.0
  %5768 = vmatpush1.msra.mxu0 %v5730
  %5769 = vmatprep.subr.mxu0 0.0
  %5770 = vmatpush1.msra.mxu0 %v5731
  %5771 = vmatprep.subr.mxu0 0.0
  %5772 = vmatpush1.msra.mxu0 %v5732
  %5773 = vmatprep.subr.mxu0 0.0
  %5774 = vmatpush1.msra.mxu0 %v5733
  %5775 = vmatprep.subr.mxu0 0.0
  %5776 = vmatpush1.msra.mxu0 %v5734
  %5777 = vmatprep.subr.mxu0 0.0
  %5778 = vmatpush1.msra.mxu0 %v5735
  %5779 = vmatprep.subr.mxu0 0.0
  %5780 = vmatpush1.msra.mxu0 %v5736
  %5781 = vmatprep.subr.mxu0 0.0
  %5782 = vmatpush1.msra.mxu0 %v5737
  %5783 = vmatprep.subr.mxu0 0.0
  %5784 = vmatpush1.msra.mxu0 %v5738
  %5785 = vmatprep.subr.mxu0 0.0
  %5786 = vmatpush1.msra.mxu0 %v5739
  %5787 = vmatprep.subr.mxu0 0.0
  %5788 = vmatpush1.msra.mxu0 %v5740
  %5789 = vmatprep.subr.mxu0 0.0
  %5790 = vmatpush1.msra.mxu0 %v5741
  %5791 = vmatprep.subr.mxu0 0.0
  %5792 = vmatpush1.msra.mxu0 %v5742
  %5793 = vmatprep.subr.mxu0 0.0
  %5794 = vmatpush1.msra.mxu0 %v5743
  %5795 = vmatprep.subr.mxu0 0.0
  %5796 = vmatpush1.msra.mxu0 %v5744
  %5797 = vmatprep.subr.mxu0 0.0
  %5798 = vmatpush1.msra.mxu0 %v5745
  %5799 = vmatprep.subr.mxu0 0.0
  %5800 = vmatpush1.msra.mxu0 %v5746
  %5801 = vmatprep.subr.mxu0 0.0
  %5802 = vmatpush1.msra.mxu0 %v5747
  %5803 = vmatprep.subr.mxu0 0.0
  %5804 = vmatpush1.msra.mxu0 %v5748
  %5805 = vmatprep.subr.mxu0 0.0
  %5806 = vmatpush1.msra.mxu0 %v5749
  %5807 = vmatprep.subr.mxu0 0.0
  %5808 = vmatpush1.msra.mxu0 %v5750
  %5809 = vmatprep.subr.mxu0 0.0
  %5810 = vmatpush1.msra.mxu0 %v5751
  %5811 = vmatprep.subr.mxu0 0.0
  %5812 = vmatpush1.msra.mxu0 %v5752
  %5813 = vmatprep.subr.mxu0 0.0
  %5814 = vmatpush1.msra.mxu0 %v5753
  %5815 = vmatprep.subr.mxu0 0.0
  %5816 = vmatpush1.msra.mxu0 %v5754
  %5817 = vmatprep.subr.mxu0 0.0
  %5818 = vmatpush1.msra.mxu0 %v5755
  %5819 = vmatprep.subr.mxu0 0.0
  %5820 = vmatpush1.msra.mxu0 %v5756
  %5821 = vmatprep.mubr.f32.mxu0 %v521
  %5822 = vmatmul.mubr.f32.gmra.mrb[0].mxu0 %v520
  %v5823 = vpop.f32.mrb[0].mxu0
  %v5824 = vadd.f32 0.0, %v5823
  %v5825 = vpop.f32.mrb[0].mxu0
  %5826 = vmatprep.mubr.f32.mxu0 %v523
  %5827 = vmatmul.mubr.f32.gmra.mrb[0].mxu0 %v522
  %v5828 = vpop.f32.mrb[0].mxu0
  %v5829 = vadd.f32 0.0, %v5828
  %v5830 = vpop.f32.mrb[0].mxu0
  %5831 = vmatprep.mubr.f32.mxu0 %v525
  %5832 = vmatmul.mubr.f32.gmra.mrb[0].mxu0 %v524
  %v5833 = vpop.f32.mrb[0].mxu0
  %v5834 = vadd.f32 0.0, %v5833
  %v5835 = vpop.f32.mrb[0].mxu0
  %5836 = vmatprep.mubr.f32.mxu0 %v527
  %5837 = vmatmul.mubr.f32.gmra.mrb[0].mxu0 %v526
  %v5838 = vpop.f32.mrb[0].mxu0
  %v5839 = vadd.f32 0.0, %v5838
  %v5840 = vpop.f32.mrb[0].mxu0
  %5841 = vdwg.mxu0
  %5842 = vmatprep.subr.mxu0 0.0
  %5843 = vmatpush1.msra.mxu0 %v5725
  %5844 = vmatprep.subr.mxu0 0.0
  %5845 = vmatpush1.msra.mxu0 %v5726
  %5846 = vmatprep.subr.mxu0 0.0
  %5847 = vmatpush1.msra.mxu0 %v5727
  %5848 = vmatprep.subr.mxu0 0.0
  %5849 = vmatpush1.msra.mxu0 %v5728
  %5850 = vmatprep.subr.mxu0 0.0
  %5851 = vmatpush1.msra.mxu0 %v5729
  %5852 = vmatprep.subr.mxu0 0.0
  %5853 = vmatpush1.msra.mxu0 %v5730
  %5854 = vmatprep.subr.mxu0 0.0
  %5855 = vmatpush1.msra.mxu0 %v5731
  %5856 = vmatprep.subr.mxu0 0.0
  %5857 = vmatpush1.msra.mxu0 %v5732
  %5858 = vmatprep.subr.mxu0 0.0
  %5859 = vmatpush1.msra.mxu0 %v5733
  %5860 = vmatprep.subr.mxu0 0.0
  %5861 = vmatpush1.msra.mxu0 %v5734
  %5862 = vmatprep.subr.mxu0 0.0
  %5863 = vmatpush1.msra.mxu0 %v5735
  %5864 = vmatprep.subr.mxu0 0.0
  %5865 = vmatpush1.msra.mxu0 %v5736
  %5866 = vmatprep.subr.mxu0 0.0
  %5867 = vmatpush1.msra.mxu0 %v5737
  %5868 = vmatprep.subr.mxu0 0.0
  %5869 = vmatpush1.msra.mxu0 %v5738
  %5870 = vmatprep.subr.mxu0 0.0
  %5871 = vmatpush1.msra.mxu0 %v5739
  %5872 = vmatprep.subr.mxu0 0.0
  %5873 = vmatpush1.msra.mxu0 %v5740
  %5874 = vmatprep.subr.mxu0 0.0
  %5875 = vmatpush1.msra.mxu0 %v5741
  %5876 = vmatprep.subr.mxu0 0.0
  %5877 = vmatpush1.msra.mxu0 %v5742
  %5878 = vmatprep.subr.mxu0 0.0
  %5879 = vmatpush1.msra.mxu0 %v5743
  %5880 = vmatprep.subr.mxu0 0.0
  %5881 = vmatpush1.msra.mxu0 %v5744
  %5882 = vmatprep.subr.mxu0 0.0
  %5883 = vmatpush1.msra.mxu0 %v5745
  %5884 = vmatprep.subr.mxu0 0.0
  %5885 = vmatpush1.msra.mxu0 %v5746
  %5886 = vmatprep.subr.mxu0 0.0
  %5887 = vmatpush1.msra.mxu0 %v5747
  %5888 = vmatprep.subr.mxu0 0.0
  %5889 = vmatpush1.msra.mxu0 %v5748
  %5890 = vmatprep.subr.mxu0 0.0
  %5891 = vmatpush1.msra.mxu0 %v5749
  %5892 = vmatprep.subr.mxu0 0.0
  %5893 = vmatpush1.msra.mxu0 %v5750
  %5894 = vmatprep.subr.mxu0 0.0
  %5895 = vmatpush1.msra.mxu0 %v5751
  %5896 = vmatprep.subr.mxu0 0.0
  %5897 = vmatpush1.msra.mxu0 %v5752
  %5898 = vmatprep.subr.mxu0 0.0
  %5899 = vmatpush1.msra.mxu0 %v5753
  %5900 = vmatprep.subr.mxu0 0.0
  %5901 = vmatpush1.msra.mxu0 %v5754
  %5902 = vmatprep.subr.mxu0 0.0
  %5903 = vmatpush1.msra.mxu0 %v5755
  %5904 = vmatprep.subr.mxu0 0.0
  %5905 = vmatpush1.msra.mxu0 %v5756
  %5906 = vmatprep.mubr.f32.mxu0 %v529
  %5907 = vmatmul.mubr.f32.gmra.mrb[0].mxu0 %v528
  %v5908 = vpop.f32.mrb[0].mxu0
  %v5909 = vadd.f32 0.0, %v5908
  %v5910 = vpop.f32.mrb[0].mxu0
  %5911 = vmatprep.mubr.f32.mxu0 %v531
  %5912 = vmatmul.mubr.f32.gmra.mrb[0].mxu0 %v530
  %v5913 = vpop.f32.mrb[0].mxu0
  %v5914 = vadd.f32 0.0, %v5913
  %v5915 = vpop.f32.mrb[0].mxu0
  %5916 = vmatprep.mubr.f32.mxu0 %v533
  %5917 = vmatmul.mubr.f32.gmra.mrb[0].mxu0 %v532
  %v5918 = vpop.f32.mrb[0].mxu0
  %v5919 = vadd.f32 0.0, %v5918
  %v5920 = vpop.f32.mrb[0].mxu0
  %5921 = vmatprep.mubr.f32.mxu0 %v535
  %5922 = vmatmul.mubr.f32.gmra.mrb[0].mxu0 %v534
  %v5923 = vpop.f32.mrb[0].mxu0
  %v5924 = vadd.f32 0.0, %v5923
  %v5925 = vpop.f32.mrb[0].mxu0
  %5926 = vdwg.mxu0
  %5931 = vrot.lane.b32.xlu0 %v5909, 32
  %v5932 = vpop.permute.xlu0 %5931
  %5933 = vrot.lane.b32.xlu0 %v5914, 32
  %v5934 = vpop.permute.xlu0 %5933
  %5935 = vrot.lane.b32.xlu0 %v5919, 32
  %v5936 = vpop.permute.xlu0 %5935
  %5937 = vrot.lane.b32.xlu0 %v5924, 32
  %v5938 = vpop.permute.xlu0 %5937
  %v5943 = vsel %vm786, %v5824, %v5932
  %v5944 = vsel %vm786, %v5829, %v5934
  %v5945 = vsel %vm786, %v5834, %v5936
  %v5946 = vsel %vm786, %v5839, %v5938
  %v5951 = vcombine.high %v5943, %v5943
  %v5953 = vunpack.c.l.s4 1966171168
  %v5954 = vunpack.c.0.s8 %v5953
  %v5955 = vlaneseq
  %v5956 = vshrl.u32 %v5955, 7
  %v5957 = vsub.s32 %v5954, %v5956
  %v5958 = vrot.slane %v5943, %v5957
  %v5960 = vunpack.c.l.s4 1966171168
  %v5961 = vunpack.c.0.s8 %v5960
  %v5962 = vlaneseq
  %v5963 = vshrl.u32 %v5962, 7
  %v5964 = vsub.s32 %v5961, %v5963
  %v5965 = vrot.slane %v5951, %v5964
  %v5966 = vcombine.high %v5958, %v5958
  %v5967 = vcombine.high %v5965, %v5965
  %v5969 = vunpack.c.l.s4 1966171168
  %v5970 = vunpack.c.0.s8 %v5969
  %v5971 = vlaneseq
  %v5972 = vshrl.u32 %v5971, 7
  %v5973 = vsub.s32 %v5970, %v5972
  %v5974 = vrot.slane %v5958, %v5973
  %v5976 = vunpack.c.l.s4 1966171168
  %v5977 = vunpack.c.0.s8 %v5976
  %v5978 = vlaneseq
  %v5979 = vshrl.u32 %v5978, 7
  %v5980 = vsub.s32 %v5977, %v5979
  %v5981 = vrot.slane %v5965, %v5980
  %v5983 = vunpack.c.l.s4 1966171168
  %v5984 = vunpack.c.0.s8 %v5983
  %v5985 = vlaneseq
  %v5986 = vshrl.u32 %v5985, 7
  %v5987 = vsub.s32 %v5984, %v5986
  %v5988 = vrot.slane %v5966, %v5987
  %v5990 = vunpack.c.l.s4 1966171168
  %v5991 = vunpack.c.0.s8 %v5990
  %v5992 = vlaneseq
  %v5993 = vshrl.u32 %v5992, 7
  %v5994 = vsub.s32 %v5991, %v5993
  %v5995 = vrot.slane %v5967, %v5994
  %v5996 = vcombine.high %v5974, %v5974
  %v5997 = vcombine.high %v5981, %v5981
  %v5998 = vcombine.high %v5988, %v5988
  %v5999 = vcombine.high %v5995, %v5995
  %v6000 = vcombine.high %v5944, %v5944
  %v6002 = vunpack.c.l.s4 1966171168
  %v6003 = vunpack.c.0.s8 %v6002
  %v6004 = vlaneseq
  %v6005 = vshrl.u32 %v6004, 7
  %v6006 = vsub.s32 %v6003, %v6005
  %v6007 = vrot.slane %v5944, %v6006
  %v6009 = vunpack.c.l.s4 1966171168
  %v6010 = vunpack.c.0.s8 %v6009
  %v6011 = vlaneseq
  %v6012 = vshrl.u32 %v6011, 7
  %v6013 = vsub.s32 %v6010, %v6012
  %v6014 = vrot.slane %v6000, %v6013
  %v6015 = vcombine.high %v6007, %v6007
  %v6016 = vcombine.high %v6014, %v6014
  %v6018 = vunpack.c.l.s4 1966171168
  %v6019 = vunpack.c.0.s8 %v6018
  %v6020 = vlaneseq
  %v6021 = vshrl.u32 %v6020, 7
  %v6022 = vsub.s32 %v6019, %v6021
  %v6023 = vrot.slane %v6007, %v6022
  %v6025 = vunpack.c.l.s4 1966171168
  %v6026 = vunpack.c.0.s8 %v6025
  %v6027 = vlaneseq
  %v6028 = vshrl.u32 %v6027, 7
  %v6029 = vsub.s32 %v6026, %v6028
  %v6030 = vrot.slane %v6014, %v6029
  %v6032 = vunpack.c.l.s4 1966171168
  %v6033 = vunpack.c.0.s8 %v6032
  %v6034 = vlaneseq
  %v6035 = vshrl.u32 %v6034, 7
  %v6036 = vsub.s32 %v6033, %v6035
  %v6037 = vrot.slane %v6015, %v6036
  %v6039 = vunpack.c.l.s4 1966171168
  %v6040 = vunpack.c.0.s8 %v6039
  %v6041 = vlaneseq
  %v6042 = vshrl.u32 %v6041, 7
  %v6043 = vsub.s32 %v6040, %v6042
  %v6044 = vrot.slane %v6016, %v6043
  %v6045 = vcombine.high %v6023, %v6023
  %v6046 = vcombine.high %v6030, %v6030
  %v6047 = vcombine.high %v6037, %v6037
  %v6048 = vcombine.high %v6044, %v6044
  %v6049 = vcombine.high %v5945, %v5945
  %v6051 = vunpack.c.l.s4 1966171168
  %v6052 = vunpack.c.0.s8 %v6051
  %v6053 = vlaneseq
  %v6054 = vshrl.u32 %v6053, 7
  %v6055 = vsub.s32 %v6052, %v6054
  %v6056 = vrot.slane %v5945, %v6055
  %v6058 = vunpack.c.l.s4 1966171168
  %v6059 = vunpack.c.0.s8 %v6058
  %v6060 = vlaneseq
  %v6061 = vshrl.u32 %v6060, 7
  %v6062 = vsub.s32 %v6059, %v6061
  %v6063 = vrot.slane %v6049, %v6062
  %v6064 = vcombine.high %v6056, %v6056
  %v6065 = vcombine.high %v6063, %v6063
  %v6067 = vunpack.c.l.s4 1966171168
  %v6068 = vunpack.c.0.s8 %v6067
  %v6069 = vlaneseq
  %v6070 = vshrl.u32 %v6069, 7
  %v6071 = vsub.s32 %v6068, %v6070
  %v6072 = vrot.slane %v6056, %v6071
  %v6074 = vunpack.c.l.s4 1966171168
  %v6075 = vunpack.c.0.s8 %v6074
  %v6076 = vlaneseq
  %v6077 = vshrl.u32 %v6076, 7
  %v6078 = vsub.s32 %v6075, %v6077
  %v6079 = vrot.slane %v6063, %v6078
  %v6081 = vunpack.c.l.s4 1966171168
  %v6082 = vunpack.c.0.s8 %v6081
  %v6083 = vlaneseq
  %v6084 = vshrl.u32 %v6083, 7
  %v6085 = vsub.s32 %v6082, %v6084
  %v6086 = vrot.slane %v6064, %v6085
  %v6088 = vunpack.c.l.s4 1966171168
  %v6089 = vunpack.c.0.s8 %v6088
  %v6090 = vlaneseq
  %v6091 = vshrl.u32 %v6090, 7
  %v6092 = vsub.s32 %v6089, %v6091
  %v6093 = vrot.slane %v6065, %v6092
  %v6094 = vcombine.high %v6072, %v6072
  %v6095 = vcombine.high %v6079, %v6079
  %v6096 = vcombine.high %v6086, %v6086
  %v6097 = vcombine.high %v6093, %v6093
  %v6098 = vcombine.high %v5946, %v5946
  %v6100 = vunpack.c.l.s4 1966171168
  %v6101 = vunpack.c.0.s8 %v6100
  %v6102 = vlaneseq
  %v6103 = vshrl.u32 %v6102, 7
  %v6104 = vsub.s32 %v6101, %v6103
  %v6105 = vrot.slane %v5946, %v6104
  %v6107 = vunpack.c.l.s4 1966171168
  %v6108 = vunpack.c.0.s8 %v6107
  %v6109 = vlaneseq
  %v6110 = vshrl.u32 %v6109, 7
  %v6111 = vsub.s32 %v6108, %v6110
  %v6112 = vrot.slane %v6098, %v6111
  %v6113 = vcombine.high %v6105, %v6105
  %v6114 = vcombine.high %v6112, %v6112
  %v6116 = vunpack.c.l.s4 1966171168
  %v6117 = vunpack.c.0.s8 %v6116
  %v6118 = vlaneseq
  %v6119 = vshrl.u32 %v6118, 7
  %v6120 = vsub.s32 %v6117, %v6119
  %v6121 = vrot.slane %v6105, %v6120
  %v6123 = vunpack.c.l.s4 1966171168
  %v6124 = vunpack.c.0.s8 %v6123
  %v6125 = vlaneseq
  %v6126 = vshrl.u32 %v6125, 7
  %v6127 = vsub.s32 %v6124, %v6126
  %v6128 = vrot.slane %v6112, %v6127
  %v6130 = vunpack.c.l.s4 1966171168
  %v6131 = vunpack.c.0.s8 %v6130
  %v6132 = vlaneseq
  %v6133 = vshrl.u32 %v6132, 7
  %v6134 = vsub.s32 %v6131, %v6133
  %v6135 = vrot.slane %v6113, %v6134
  %v6137 = vunpack.c.l.s4 1966171168
  %v6138 = vunpack.c.0.s8 %v6137
  %v6139 = vlaneseq
  %v6140 = vshrl.u32 %v6139, 7
  %v6141 = vsub.s32 %v6138, %v6140
  %v6142 = vrot.slane %v6114, %v6141
  %v6143 = vcombine.high %v6121, %v6121
  %v6144 = vcombine.high %v6128, %v6128
  %v6145 = vcombine.high %v6135, %v6135
  %v6146 = vcombine.high %v6142, %v6142
  %v6147 = vld [vmem:[%s10] sm:$0xff]
  %v6148 = vld [vmem:[%s10 + $0x8] sm:$0xff]
  %v6149 = vld [vmem:[%s10 + $0x10] sm:$0xff]
  %v6150 = vld [vmem:[%s10 + $0x18] sm:$0xff]
  %v6151 = vld [vmem:[%s10 + $0x20] sm:$0xff]
  %v6152 = vld [vmem:[%s10 + $0x28] sm:$0xff]
  %v6153 = vld [vmem:[%s10 + $0x30] sm:$0xff]
  %v6154 = vld [vmem:[%s10 + $0x38] sm:$0xff]
  %v6155 = vld [vmem:[%s10 + $0x40] sm:$0xff]
  %v6156 = vld [vmem:[%s10 + $0x48] sm:$0xff]
  %v6157 = vld [vmem:[%s10 + $0x50] sm:$0xff]
  %v6158 = vld [vmem:[%s10 + $0x58] sm:$0xff]
  %v6159 = vld [vmem:[%s10 + $0x60] sm:$0xff]
  %v6160 = vld [vmem:[%s10 + $0x68] sm:$0xff]
  %v6161 = vld [vmem:[%s10 + $0x70] sm:$0xff]
  %v6162 = vld [vmem:[%s10 + $0x78] sm:$0xff]
  %v6163 = vld [vmem:[%s10 + $0x80] sm:$0xff]
  %v6164 = vld [vmem:[%s10 + $0x88] sm:$0xff]
  %v6165 = vld [vmem:[%s10 + $0x90] sm:$0xff]
  %v6166 = vld [vmem:[%s10 + $0x98] sm:$0xff]
  %v6167 = vld [vmem:[%s10 + $0xa0] sm:$0xff]
  %v6168 = vld [vmem:[%s10 + $0xa8] sm:$0xff]
  %v6169 = vld [vmem:[%s10 + $0xb0] sm:$0xff]
  %v6170 = vld [vmem:[%s10 + $0xb8] sm:$0xff]
  %v6171 = vld [vmem:[%s10 + $0xc0] sm:$0xff]
  %v6172 = vld [vmem:[%s10 + $0xc8] sm:$0xff]
  %v6173 = vld [vmem:[%s10 + $0xd0] sm:$0xff]
  %v6174 = vld [vmem:[%s10 + $0xd8] sm:$0xff]
  %v6175 = vld [vmem:[%s10 + $0xe0] sm:$0xff]
  %v6176 = vld [vmem:[%s10 + $0xe8] sm:$0xff]
  %v6177 = vld [vmem:[%s10 + $0xf0] sm:$0xff]
  %v6178 = vld [vmem:[%s10 + $0xf8] sm:$0xff]
  %v6179 = vld [vmem:[%s10 + $0x100] sm:$0xff]
  %v6180 = vld [vmem:[%s10 + $0x108] sm:$0xff]
  %v6181 = vld [vmem:[%s10 + $0x110] sm:$0xff]
  %v6182 = vld [vmem:[%s10 + $0x118] sm:$0xff]
  %v6183 = vld [vmem:[%s10 + $0x120] sm:$0xff]
  %v6184 = vld [vmem:[%s10 + $0x128] sm:$0xff]
  %v6185 = vld [vmem:[%s10 + $0x130] sm:$0xff]
  %v6186 = vld [vmem:[%s10 + $0x138] sm:$0xff]
  %v6187 = vld [vmem:[%s10 + $0x140] sm:$0xff]
  %v6188 = vld [vmem:[%s10 + $0x148] sm:$0xff]
  %v6189 = vld [vmem:[%s10 + $0x150] sm:$0xff]
  %v6190 = vld [vmem:[%s10 + $0x158] sm:$0xff]
  %v6191 = vld [vmem:[%s10 + $0x160] sm:$0xff]
  %v6192 = vld [vmem:[%s10 + $0x168] sm:$0xff]
  %v6193 = vld [vmem:[%s10 + $0x170] sm:$0xff]
  %v6194 = vld [vmem:[%s10 + $0x178] sm:$0xff]
  %v6195 = vld [vmem:[%s10 + $0x180] sm:$0xff]
  %v6196 = vld [vmem:[%s10 + $0x188] sm:$0xff]
  %v6197 = vld [vmem:[%s10 + $0x190] sm:$0xff]
  %v6198 = vld [vmem:[%s10 + $0x198] sm:$0xff]
  %v6199 = vld [vmem:[%s10 + $0x1a0] sm:$0xff]
  %v6200 = vld [vmem:[%s10 + $0x1a8] sm:$0xff]
  %v6201 = vld [vmem:[%s10 + $0x1b0] sm:$0xff]
  %v6202 = vld [vmem:[%s10 + $0x1b8] sm:$0xff]
  %v6203 = vld [vmem:[%s10 + $0x1c0] sm:$0xff]
  %v6204 = vld [vmem:[%s10 + $0x1c8] sm:$0xff]
  %v6205 = vld [vmem:[%s10 + $0x1d0] sm:$0xff]
  %v6206 = vld [vmem:[%s10 + $0x1d8] sm:$0xff]
  %v6207 = vld [vmem:[%s10 + $0x1e0] sm:$0xff]
  %v6208 = vld [vmem:[%s10 + $0x1e8] sm:$0xff]
  %v6209 = vld [vmem:[%s10 + $0x1f0] sm:$0xff]
  %v6210 = vld [vmem:[%s10 + $0x1f8] sm:$0xff]
  %v6211 = vld [vmem:[%s10 + $0x200] sm:$0xff]
  %v6212 = vld [vmem:[%s10 + $0x208] sm:$0xff]
  %v6213 = vld [vmem:[%s10 + $0x210] sm:$0xff]
  %v6214 = vld [vmem:[%s10 + $0x218] sm:$0xff]
  %v6215 = vld [vmem:[%s10 + $0x220] sm:$0xff]
  %v6216 = vld [vmem:[%s10 + $0x228] sm:$0xff]
  %v6217 = vld [vmem:[%s10 + $0x230] sm:$0xff]
  %v6218 = vld [vmem:[%s10 + $0x238] sm:$0xff]
  %v6219 = vld [vmem:[%s10 + $0x240] sm:$0xff]
  %v6220 = vld [vmem:[%s10 + $0x248] sm:$0xff]
  %v6221 = vld [vmem:[%s10 + $0x250] sm:$0xff]
  %v6222 = vld [vmem:[%s10 + $0x258] sm:$0xff]
  %v6223 = vld [vmem:[%s10 + $0x260] sm:$0xff]
  %v6224 = vld [vmem:[%s10 + $0x268] sm:$0xff]
  %v6225 = vld [vmem:[%s10 + $0x270] sm:$0xff]
  %v6226 = vld [vmem:[%s10 + $0x278] sm:$0xff]
  %v6227 = vld [vmem:[%s10 + $0x280] sm:$0xff]
  %v6228 = vld [vmem:[%s10 + $0x288] sm:$0xff]
  %v6229 = vld [vmem:[%s10 + $0x290] sm:$0xff]
  %v6230 = vld [vmem:[%s10 + $0x298] sm:$0xff]
  %v6231 = vld [vmem:[%s10 + $0x2a0] sm:$0xff]
  %v6232 = vld [vmem:[%s10 + $0x2a8] sm:$0xff]
  %v6233 = vld [vmem:[%s10 + $0x2b0] sm:$0xff]
  %v6234 = vld [vmem:[%s10 + $0x2b8] sm:$0xff]
  %v6235 = vld [vmem:[%s10 + $0x2c0] sm:$0xff]
  %v6236 = vld [vmem:[%s10 + $0x2c8] sm:$0xff]
  %v6237 = vld [vmem:[%s10 + $0x2d0] sm:$0xff]
  %v6238 = vld [vmem:[%s10 + $0x2d8] sm:$0xff]
  %v6239 = vld [vmem:[%s10 + $0x2e0] sm:$0xff]
  %v6240 = vld [vmem:[%s10 + $0x2e8] sm:$0xff]
  %v6241 = vld [vmem:[%s10 + $0x2f0] sm:$0xff]
  %v6242 = vld [vmem:[%s10 + $0x2f8] sm:$0xff]
  %v6243 = vld [vmem:[%s10 + $0x300] sm:$0xff]
  %v6244 = vld [vmem:[%s10 + $0x308] sm:$0xff]
  %v6245 = vld [vmem:[%s10 + $0x310] sm:$0xff]
  %v6246 = vld [vmem:[%s10 + $0x318] sm:$0xff]
  %v6247 = vld [vmem:[%s10 + $0x320] sm:$0xff]
  %v6248 = vld [vmem:[%s10 + $0x328] sm:$0xff]
  %v6249 = vld [vmem:[%s10 + $0x330] sm:$0xff]
  %v6250 = vld [vmem:[%s10 + $0x338] sm:$0xff]
  %v6251 = vld [vmem:[%s10 + $0x340] sm:$0xff]
  %v6252 = vld [vmem:[%s10 + $0x348] sm:$0xff]
  %v6253 = vld [vmem:[%s10 + $0x350] sm:$0xff]
  %v6254 = vld [vmem:[%s10 + $0x358] sm:$0xff]
  %v6255 = vld [vmem:[%s10 + $0x360] sm:$0xff]
  %v6256 = vld [vmem:[%s10 + $0x368] sm:$0xff]
  %v6257 = vld [vmem:[%s10 + $0x370] sm:$0xff]
  %v6258 = vld [vmem:[%s10 + $0x378] sm:$0xff]
  %v6259 = vld [vmem:[%s10 + $0x380] sm:$0xff]
  %v6260 = vld [vmem:[%s10 + $0x388] sm:$0xff]
  %v6261 = vld [vmem:[%s10 + $0x390] sm:$0xff]
  %v6262 = vld [vmem:[%s10 + $0x398] sm:$0xff]
  %v6263 = vld [vmem:[%s10 + $0x3a0] sm:$0xff]
  %v6264 = vld [vmem:[%s10 + $0x3a8] sm:$0xff]
  %v6265 = vld [vmem:[%s10 + $0x3b0] sm:$0xff]
  %v6266 = vld [vmem:[%s10 + $0x3b8] sm:$0xff]
  %v6267 = vld [vmem:[%s10 + $0x3c0] sm:$0xff]
  %v6268 = vld [vmem:[%s10 + $0x3c8] sm:$0xff]
  %v6269 = vld [vmem:[%s10 + $0x3d0] sm:$0xff]
  %v6270 = vld [vmem:[%s10 + $0x3d8] sm:$0xff]
  %v6271 = vld [vmem:[%s10 + $0x3e0] sm:$0xff]
  %v6272 = vld [vmem:[%s10 + $0x3e8] sm:$0xff]
  %v6273 = vld [vmem:[%s10 + $0x3f0] sm:$0xff]
  %v6274 = vld [vmem:[%s10 + $0x3f8] sm:$0xff]
  %v6275 = vld [vmem:[%s10 + $0x400] sm:$0xff]
  %v6276 = vld [vmem:[%s10 + $0x408] sm:$0xff]
  %v6277 = vld [vmem:[%s10 + $0x410] sm:$0xff]
  %v6278 = vld [vmem:[%s10 + $0x418] sm:$0xff]
  %v6279 = vld [vmem:[%s10 + $0x420] sm:$0xff]
  %v6280 = vld [vmem:[%s10 + $0x428] sm:$0xff]
  %v6281 = vld [vmem:[%s10 + $0x430] sm:$0xff]
  %v6282 = vld [vmem:[%s10 + $0x438] sm:$0xff]
  %v6283 = vld [vmem:[%s10 + $0x440] sm:$0xff]
  %v6284 = vld [vmem:[%s10 + $0x448] sm:$0xff]
  %v6285 = vld [vmem:[%s10 + $0x450] sm:$0xff]
  %v6286 = vld [vmem:[%s10 + $0x458] sm:$0xff]
  %v6287 = vld [vmem:[%s10 + $0x460] sm:$0xff]
  %v6288 = vld [vmem:[%s10 + $0x468] sm:$0xff]
  %v6289 = vld [vmem:[%s10 + $0x470] sm:$0xff]
  %v6290 = vld [vmem:[%s10 + $0x478] sm:$0xff]
  %v6291 = vld [vmem:[%s10 + $0x480] sm:$0xff]
  %v6292 = vld [vmem:[%s10 + $0x488] sm:$0xff]
  %v6293 = vld [vmem:[%s10 + $0x490] sm:$0xff]
  %v6294 = vld [vmem:[%s10 + $0x498] sm:$0xff]
  %v6295 = vld [vmem:[%s10 + $0x4a0] sm:$0xff]
  %v6296 = vld [vmem:[%s10 + $0x4a8] sm:$0xff]
  %v6297 = vld [vmem:[%s10 + $0x4b0] sm:$0xff]
  %v6298 = vld [vmem:[%s10 + $0x4b8] sm:$0xff]
  %v6299 = vld [vmem:[%s10 + $0x4c0] sm:$0xff]
  %v6300 = vld [vmem:[%s10 + $0x4c8] sm:$0xff]
  %v6301 = vld [vmem:[%s10 + $0x4d0] sm:$0xff]
  %v6302 = vld [vmem:[%s10 + $0x4d8] sm:$0xff]
  %v6303 = vld [vmem:[%s10 + $0x4e0] sm:$0xff]
  %v6304 = vld [vmem:[%s10 + $0x4e8] sm:$0xff]
  %v6305 = vld [vmem:[%s10 + $0x4f0] sm:$0xff]
  %v6306 = vld [vmem:[%s10 + $0x4f8] sm:$0xff]
  %v6307 = vld [vmem:[%s10 + $0x500] sm:$0xff]
  %v6308 = vld [vmem:[%s10 + $0x508] sm:$0xff]
  %v6309 = vld [vmem:[%s10 + $0x510] sm:$0xff]
  %v6310 = vld [vmem:[%s10 + $0x518] sm:$0xff]
  %v6311 = vld [vmem:[%s10 + $0x520] sm:$0xff]
  %v6312 = vld [vmem:[%s10 + $0x528] sm:$0xff]
  %v6313 = vld [vmem:[%s10 + $0x530] sm:$0xff]
  %v6314 = vld [vmem:[%s10 + $0x538] sm:$0xff]
  %v6315 = vld [vmem:[%s10 + $0x540] sm:$0xff]
  %v6316 = vld [vmem:[%s10 + $0x548] sm:$0xff]
  %v6317 = vld [vmem:[%s10 + $0x550] sm:$0xff]
  %v6318 = vld [vmem:[%s10 + $0x558] sm:$0xff]
  %v6319 = vld [vmem:[%s10 + $0x560] sm:$0xff]
  %v6320 = vld [vmem:[%s10 + $0x568] sm:$0xff]
  %v6321 = vld [vmem:[%s10 + $0x570] sm:$0xff]
  %v6322 = vld [vmem:[%s10 + $0x578] sm:$0xff]
  %v6323 = vld [vmem:[%s10 + $0x580] sm:$0xff]
  %v6324 = vld [vmem:[%s10 + $0x588] sm:$0xff]
  %v6325 = vld [vmem:[%s10 + $0x590] sm:$0xff]
  %v6326 = vld [vmem:[%s10 + $0x598] sm:$0xff]
  %v6327 = vld [vmem:[%s10 + $0x5a0] sm:$0xff]
  %v6328 = vld [vmem:[%s10 + $0x5a8] sm:$0xff]
  %v6329 = vld [vmem:[%s10 + $0x5b0] sm:$0xff]
  %v6330 = vld [vmem:[%s10 + $0x5b8] sm:$0xff]
  %v6331 = vld [vmem:[%s10 + $0x5c0] sm:$0xff]
  %v6332 = vld [vmem:[%s10 + $0x5c8] sm:$0xff]
  %v6333 = vld [vmem:[%s10 + $0x5d0] sm:$0xff]
  %v6334 = vld [vmem:[%s10 + $0x5d8] sm:$0xff]
  %v6335 = vld [vmem:[%s10 + $0x5e0] sm:$0xff]
  %v6336 = vld [vmem:[%s10 + $0x5e8] sm:$0xff]
  %v6337 = vld [vmem:[%s10 + $0x5f0] sm:$0xff]
  %v6338 = vld [vmem:[%s10 + $0x5f8] sm:$0xff]
  %v6339 = vld [vmem:[%s10 + $0x600] sm:$0xff]
  %v6340 = vld [vmem:[%s10 + $0x608] sm:$0xff]
  %v6341 = vld [vmem:[%s10 + $0x610] sm:$0xff]
  %v6342 = vld [vmem:[%s10 + $0x618] sm:$0xff]
  %v6343 = vld [vmem:[%s10 + $0x620] sm:$0xff]
  %v6344 = vld [vmem:[%s10 + $0x628] sm:$0xff]
  %v6345 = vld [vmem:[%s10 + $0x630] sm:$0xff]
  %v6346 = vld [vmem:[%s10 + $0x638] sm:$0xff]
  %v6347 = vld [vmem:[%s10 + $0x640] sm:$0xff]
  %v6348 = vld [vmem:[%s10 + $0x648] sm:$0xff]
  %v6349 = vld [vmem:[%s10 + $0x650] sm:$0xff]
  %v6350 = vld [vmem:[%s10 + $0x658] sm:$0xff]
  %v6351 = vld [vmem:[%s10 + $0x660] sm:$0xff]
  %v6352 = vld [vmem:[%s10 + $0x668] sm:$0xff]
  %v6353 = vld [vmem:[%s10 + $0x670] sm:$0xff]
  %v6354 = vld [vmem:[%s10 + $0x678] sm:$0xff]
  %v6355 = vld [vmem:[%s10 + $0x680] sm:$0xff]
  %v6356 = vld [vmem:[%s10 + $0x688] sm:$0xff]
  %v6357 = vld [vmem:[%s10 + $0x690] sm:$0xff]
  %v6358 = vld [vmem:[%s10 + $0x698] sm:$0xff]
  %v6359 = vld [vmem:[%s10 + $0x6a0] sm:$0xff]
  %v6360 = vld [vmem:[%s10 + $0x6a8] sm:$0xff]
  %v6361 = vld [vmem:[%s10 + $0x6b0] sm:$0xff]
  %v6362 = vld [vmem:[%s10 + $0x6b8] sm:$0xff]
  %v6363 = vld [vmem:[%s10 + $0x6c0] sm:$0xff]
  %v6364 = vld [vmem:[%s10 + $0x6c8] sm:$0xff]
  %v6365 = vld [vmem:[%s10 + $0x6d0] sm:$0xff]
  %v6366 = vld [vmem:[%s10 + $0x6d8] sm:$0xff]
  %v6367 = vld [vmem:[%s10 + $0x6e0] sm:$0xff]
  %v6368 = vld [vmem:[%s10 + $0x6e8] sm:$0xff]
  %v6369 = vld [vmem:[%s10 + $0x6f0] sm:$0xff]
  %v6370 = vld [vmem:[%s10 + $0x6f8] sm:$0xff]
  %v6371 = vld [vmem:[%s10 + $0x700] sm:$0xff]
  %v6372 = vld [vmem:[%s10 + $0x708] sm:$0xff]
  %v6373 = vld [vmem:[%s10 + $0x710] sm:$0xff]
  %v6374 = vld [vmem:[%s10 + $0x718] sm:$0xff]
  %v6375 = vld [vmem:[%s10 + $0x720] sm:$0xff]
  %v6376 = vld [vmem:[%s10 + $0x728] sm:$0xff]
  %v6377 = vld [vmem:[%s10 + $0x730] sm:$0xff]
  %v6378 = vld [vmem:[%s10 + $0x738] sm:$0xff]
  %v6379 = vld [vmem:[%s10 + $0x740] sm:$0xff]
  %v6380 = vld [vmem:[%s10 + $0x748] sm:$0xff]
  %v6381 = vld [vmem:[%s10 + $0x750] sm:$0xff]
  %v6382 = vld [vmem:[%s10 + $0x758] sm:$0xff]
  %v6383 = vld [vmem:[%s10 + $0x760] sm:$0xff]
  %v6384 = vld [vmem:[%s10 + $0x768] sm:$0xff]
  %v6385 = vld [vmem:[%s10 + $0x770] sm:$0xff]
  %v6386 = vld [vmem:[%s10 + $0x778] sm:$0xff]
  %v6387 = vld [vmem:[%s10 + $0x780] sm:$0xff]
  %v6388 = vld [vmem:[%s10 + $0x788] sm:$0xff]
  %v6389 = vld [vmem:[%s10 + $0x790] sm:$0xff]
  %v6390 = vld [vmem:[%s10 + $0x798] sm:$0xff]
  %v6391 = vld [vmem:[%s10 + $0x7a0] sm:$0xff]
  %v6392 = vld [vmem:[%s10 + $0x7a8] sm:$0xff]
  %v6393 = vld [vmem:[%s10 + $0x7b0] sm:$0xff]
  %v6394 = vld [vmem:[%s10 + $0x7b8] sm:$0xff]
  %v6395 = vld [vmem:[%s10 + $0x7c0] sm:$0xff]
  %v6396 = vld [vmem:[%s10 + $0x7c8] sm:$0xff]
  %v6397 = vld [vmem:[%s10 + $0x7d0] sm:$0xff]
  %v6398 = vld [vmem:[%s10 + $0x7d8] sm:$0xff]
  %v6399 = vld [vmem:[%s10 + $0x7e0] sm:$0xff]
  %v6400 = vld [vmem:[%s10 + $0x7e8] sm:$0xff]
  %v6401 = vld [vmem:[%s10 + $0x7f0] sm:$0xff]
  %v6402 = vld [vmem:[%s10 + $0x7f8] sm:$0xff]
  %v6403 = vsel %vm1247, %v5974, 0
  %v6406 = vsel %vm1247, %v6147, 0
  %v6409 = vsel %vm1247, %v6148, 0
  %v6412 = vsel %vm1247, %v6149, 0
  %v6415 = vsel %vm1247, %v6150, 0
  %v6418 = vsel %vm1247, %v6151, 0
  %v6421 = vsel %vm1247, %v6152, 0
  %v6424 = vsel %vm1247, %v6153, 0
  %v6427 = vsel %vm1247, %v6154, 0
  %6429 = vmatprep.subr.mxu0 0.0
  %6430 = vmatpush1.xpose.msra.mxu0 %v6406
  %6431 = vmatprep.subr.mxu0 0.0
  %6432 = vmatpush1.xpose.msra.mxu0 %v6409
  %6433 = vmatprep.subr.mxu0 0.0
  %6434 = vmatpush1.xpose.msra.mxu0 %v6412
  %6435 = vmatprep.subr.mxu0 0.0
  %6436 = vmatpush1.xpose.msra.mxu0 %v6415
  %6437 = vmatprep.subr.mxu0 0.0
  %6438 = vmatpush1.xpose.msra.mxu0 %v6418
  %6439 = vmatprep.subr.mxu0 0.0
  %6440 = vmatpush1.xpose.msra.mxu0 %v6421
  %6441 = vmatprep.subr.mxu0 0.0
  %6442 = vmatpush1.xpose.msra.mxu0 %v6424
  %6443 = vmatprep.subr.mxu0 0.0
  %6444 = vmatpush1.xpose.msra.mxu0 %v6427
  %6445 = vmatprep.subr.mxu0 0.0
  %6446 = vmatpush1.xpose.msra.mxu0 0.0
  %6447 = vmatprep.subr.mxu0 0.0
  %6448 = vmatpush1.xpose.msra.mxu0 0.0
  %6449 = vmatprep.subr.mxu0 0.0
  %6450 = vmatpush1.xpose.msra.mxu0 0.0
  %6451 = vmatprep.subr.mxu0 0.0
  %6452 = vmatpush1.xpose.msra.mxu0 0.0
  %6453 = vmatprep.subr.mxu0 0.0
  %6454 = vmatpush1.xpose.msra.mxu0 0.0
  %6455 = vmatprep.subr.mxu0 0.0
  %6456 = vmatpush1.xpose.msra.mxu0 0.0
  %6457 = vmatprep.subr.mxu0 0.0
  %6458 = vmatpush1.xpose.msra.mxu0 0.0
  %6459 = vmatprep.subr.mxu0 0.0
  %6460 = vmatpush1.xpose.msra.mxu0 0.0
  %6461 = vmatprep.subr.mxu0 0.0
  %6462 = vmatpush1.xpose.msra.mxu0 0.0
  %6463 = vmatprep.subr.mxu0 0.0
  %6464 = vmatpush1.xpose.msra.mxu0 0.0
  %6465 = vmatprep.subr.mxu0 0.0
  %6466 = vmatpush1.xpose.msra.mxu0 0.0
  %6467 = vmatprep.subr.mxu0 0.0
  %6468 = vmatpush1.xpose.msra.mxu0 0.0
  %6469 = vmatprep.subr.mxu0 0.0
  %6470 = vmatpush1.xpose.msra.mxu0 0.0
  %6471 = vmatprep.subr.mxu0 0.0
  %6472 = vmatpush1.xpose.msra.mxu0 0.0
  %6473 = vmatprep.subr.mxu0 0.0
  %6474 = vmatpush1.xpose.msra.mxu0 0.0
  %6475 = vmatprep.subr.mxu0 0.0
  %6476 = vmatpush1.xpose.msra.mxu0 0.0
  %6477 = vmatprep.subr.mxu0 0.0
  %6478 = vmatpush1.xpose.msra.mxu0 0.0
  %6479 = vmatprep.subr.mxu0 0.0
  %6480 = vmatpush1.xpose.msra.mxu0 0.0
  %6481 = vmatprep.subr.mxu0 0.0
  %6482 = vmatpush1.xpose.msra.mxu0 0.0
  %6483 = vmatprep.subr.mxu0 0.0
  %6484 = vmatpush1.xpose.msra.mxu0 0.0
  %6485 = vmatprep.subr.mxu0 0.0
  %6486 = vmatpush1.xpose.msra.mxu0 0.0
  %6487 = vmatprep.subr.mxu0 0.0
  %6488 = vmatpush1.xpose.msra.mxu0 0.0
  %6489 = vmatprep.subr.mxu0 0.0
  %6490 = vmatpush1.xpose.msra.mxu0 0.0
  %6491 = vmatprep.subr.mxu0 0.0
  %6492 = vmatpush1.xpose.msra.mxu0 0.0
  %6493 = vmatprep.mubr.f32.mxu0 0.0
  %6494 = vmatmul.mubr.f32.gmra.mrb[0].mxu0 %v6403
  %v6495 = vpop.f32.mrb[0].mxu0
  %v6496 = vadd.f32 0.0, %v6495
  %v6497 = vpop.f32.mrb[0].mxu0
  %6498 = vdwg.mxu0
  %v6499 = vsel %vm1247, %v5988, 0
  %v6502 = vsel %vm1247, %v6155, 0
  %v6505 = vsel %vm1247, %v6156, 0
  %v6508 = vsel %vm1247, %v6157, 0
  %v6511 = vsel %vm1247, %v6158, 0
  %v6514 = vsel %vm1247, %v6159, 0
  %v6517 = vsel %vm1247, %v6160, 0
  %v6520 = vsel %vm1247, %v6161, 0
  %v6523 = vsel %vm1247, %v6162, 0
  %6525 = vmatprep.subr.mxu0 0.0
  %6526 = vmatpush1.xpose.msra.mxu0 %v6502
  %6527 = vmatprep.subr.mxu0 0.0
  %6528 = vmatpush1.xpose.msra.mxu0 %v6505
  %6529 = vmatprep.subr.mxu0 0.0
  %6530 = vmatpush1.xpose.msra.mxu0 %v6508
  %6531 = vmatprep.subr.mxu0 0.0
  %6532 = vmatpush1.xpose.msra.mxu0 %v6511
  %6533 = vmatprep.subr.mxu0 0.0
  %6534 = vmatpush1.xpose.msra.mxu0 %v6514
  %6535 = vmatprep.subr.mxu0 0.0
  %6536 = vmatpush1.xpose.msra.mxu0 %v6517
  %6537 = vmatprep.subr.mxu0 0.0
  %6538 = vmatpush1.xpose.msra.mxu0 %v6520
  %6539 = vmatprep.subr.mxu0 0.0
  %6540 = vmatpush1.xpose.msra.mxu0 %v6523
  %6541 = vmatprep.subr.mxu0 0.0
  %6542 = vmatpush1.xpose.msra.mxu0 0.0
  %6543 = vmatprep.subr.mxu0 0.0
  %6544 = vmatpush1.xpose.msra.mxu0 0.0
  %6545 = vmatprep.subr.mxu0 0.0
  %6546 = vmatpush1.xpose.msra.mxu0 0.0
  %6547 = vmatprep.subr.mxu0 0.0
  %6548 = vmatpush1.xpose.msra.mxu0 0.0
  %6549 = vmatprep.subr.mxu0 0.0
  %6550 = vmatpush1.xpose.msra.mxu0 0.0
  %6551 = vmatprep.subr.mxu0 0.0
  %6552 = vmatpush1.xpose.msra.mxu0 0.0
  %6553 = vmatprep.subr.mxu0 0.0
  %6554 = vmatpush1.xpose.msra.mxu0 0.0
  %6555 = vmatprep.subr.mxu0 0.0
  %6556 = vmatpush1.xpose.msra.mxu0 0.0
  %6557 = vmatprep.subr.mxu0 0.0
  %6558 = vmatpush1.xpose.msra.mxu0 0.0
  %6559 = vmatprep.subr.mxu0 0.0
  %6560 = vmatpush1.xpose.msra.mxu0 0.0
  %6561 = vmatprep.subr.mxu0 0.0
  %6562 = vmatpush1.xpose.msra.mxu0 0.0
  %6563 = vmatprep.subr.mxu0 0.0
  %6564 = vmatpush1.xpose.msra.mxu0 0.0
  %6565 = vmatprep.subr.mxu0 0.0
  %6566 = vmatpush1.xpose.msra.mxu0 0.0
  %6567 = vmatprep.subr.mxu0 0.0
  %6568 = vmatpush1.xpose.msra.mxu0 0.0
  %6569 = vmatprep.subr.mxu0 0.0
  %6570 = vmatpush1.xpose.msra.mxu0 0.0
  %6571 = vmatprep.subr.mxu0 0.0
  %6572 = vmatpush1.xpose.msra.mxu0 0.0
  %6573 = vmatprep.subr.mxu0 0.0
  %6574 = vmatpush1.xpose.msra.mxu0 0.0
  %6575 = vmatprep.subr.mxu0 0.0
  %6576 = vmatpush1.xpose.msra.mxu0 0.0
  %6577 = vmatprep.subr.mxu0 0.0
  %6578 = vmatpush1.xpose.msra.mxu0 0.0
  %6579 = vmatprep.subr.mxu0 0.0
  %6580 = vmatpush1.xpose.msra.mxu0 0.0
  %6581 = vmatprep.subr.mxu0 0.0
  %6582 = vmatpush1.xpose.msra.mxu0 0.0
  %6583 = vmatprep.subr.mxu0 0.0
  %6584 = vmatpush1.xpose.msra.mxu0 0.0
  %6585 = vmatprep.subr.mxu0 0.0
  %6586 = vmatpush1.xpose.msra.mxu0 0.0
  %6587 = vmatprep.subr.mxu0 0.0
  %6588 = vmatpush1.xpose.msra.mxu0 0.0
  %6589 = vmatprep.mubr.f32.mxu0 0.0
  %6590 = vmatmul.mubr.f32.gmra.mrb[0].mxu0 %v6499
  %v6591 = vpop.f32.mrb[0].mxu0
  %v6592 = vadd.f32 0.0, %v6591
  %v6593 = vpop.f32.mrb[0].mxu0
  %6594 = vdwg.mxu0
  %v6595 = vsel %vm1247, %v5996, 0
  %v6598 = vsel %vm1247, %v6163, 0
  %v6601 = vsel %vm1247, %v6164, 0
  %v6604 = vsel %vm1247, %v6165, 0
  %v6607 = vsel %vm1247, %v6166, 0
  %v6610 = vsel %vm1247, %v6167, 0
  %v6613 = vsel %vm1247, %v6168, 0
  %v6616 = vsel %vm1247, %v6169, 0
  %v6619 = vsel %vm1247, %v6170, 0
  %6621 = vmatprep.subr.mxu0 0.0
  %6622 = vmatpush1.xpose.msra.mxu0 %v6598
  %6623 = vmatprep.subr.mxu0 0.0
  %6624 = vmatpush1.xpose.msra.mxu0 %v6601
  %6625 = vmatprep.subr.mxu0 0.0
  %6626 = vmatpush1.xpose.msra.mxu0 %v6604
  %6627 = vmatprep.subr.mxu0 0.0
  %6628 = vmatpush1.xpose.msra.mxu0 %v6607
  %6629 = vmatprep.subr.mxu0 0.0
  %6630 = vmatpush1.xpose.msra.mxu0 %v6610
  %6631 = vmatprep.subr.mxu0 0.0
  %6632 = vmatpush1.xpose.msra.mxu0 %v6613
  %6633 = vmatprep.subr.mxu0 0.0
  %6634 = vmatpush1.xpose.msra.mxu0 %v6616
  %6635 = vmatprep.subr.mxu0 0.0
  %6636 = vmatpush1.xpose.msra.mxu0 %v6619
  %6637 = vmatprep.subr.mxu0 0.0
  %6638 = vmatpush1.xpose.msra.mxu0 0.0
  %6639 = vmatprep.subr.mxu0 0.0
  %6640 = vmatpush1.xpose.msra.mxu0 0.0
  %6641 = vmatprep.subr.mxu0 0.0
  %6642 = vmatpush1.xpose.msra.mxu0 0.0
  %6643 = vmatprep.subr.mxu0 0.0
  %6644 = vmatpush1.xpose.msra.mxu0 0.0
  %6645 = vmatprep.subr.mxu0 0.0
  %6646 = vmatpush1.xpose.msra.mxu0 0.0
  %6647 = vmatprep.subr.mxu0 0.0
  %6648 = vmatpush1.xpose.msra.mxu0 0.0
  %6649 = vmatprep.subr.mxu0 0.0
  %6650 = vmatpush1.xpose.msra.mxu0 0.0
  %6651 = vmatprep.subr.mxu0 0.0
  %6652 = vmatpush1.xpose.msra.mxu0 0.0
  %6653 = vmatprep.subr.mxu0 0.0
  %6654 = vmatpush1.xpose.msra.mxu0 0.0
  %6655 = vmatprep.subr.mxu0 0.0
  %6656 = vmatpush1.xpose.msra.mxu0 0.0
  %6657 = vmatprep.subr.mxu0 0.0
  %6658 = vmatpush1.xpose.msra.mxu0 0.0
  %6659 = vmatprep.subr.mxu0 0.0
  %6660 = vmatpush1.xpose.msra.mxu0 0.0
  %6661 = vmatprep.subr.mxu0 0.0
  %6662 = vmatpush1.xpose.msra.mxu0 0.0
  %6663 = vmatprep.subr.mxu0 0.0
  %6664 = vmatpush1.xpose.msra.mxu0 0.0
  %6665 = vmatprep.subr.mxu0 0.0
  %6666 = vmatpush1.xpose.msra.mxu0 0.0
  %6667 = vmatprep.subr.mxu0 0.0
  %6668 = vmatpush1.xpose.msra.mxu0 0.0
  %6669 = vmatprep.subr.mxu0 0.0
  %6670 = vmatpush1.xpose.msra.mxu0 0.0
  %6671 = vmatprep.subr.mxu0 0.0
  %6672 = vmatpush1.xpose.msra.mxu0 0.0
  %6673 = vmatprep.subr.mxu0 0.0
  %6674 = vmatpush1.xpose.msra.mxu0 0.0
  %6675 = vmatprep.subr.mxu0 0.0
  %6676 = vmatpush1.xpose.msra.mxu0 0.0
  %6677 = vmatprep.subr.mxu0 0.0
  %6678 = vmatpush1.xpose.msra.mxu0 0.0
  %6679 = vmatprep.subr.mxu0 0.0
  %6680 = vmatpush1.xpose.msra.mxu0 0.0
  %6681 = vmatprep.subr.mxu0 0.0
  %6682 = vmatpush1.xpose.msra.mxu0 0.0
  %6683 = vmatprep.subr.mxu0 0.0
  %6684 = vmatpush1.xpose.msra.mxu0 0.0
  %6685 = vmatprep.mubr.f32.mxu0 0.0
  %6686 = vmatmul.mubr.f32.gmra.mrb[0].mxu0 %v6595
  %v6687 = vpop.f32.mrb[0].mxu0
  %v6688 = vadd.f32 0.0, %v6687
  %v6689 = vpop.f32.mrb[0].mxu0
  %6690 = vdwg.mxu0
  %v6691 = vsel %vm1247, %v5998, 0
  %v6694 = vsel %vm1247, %v6171, 0
  %v6697 = vsel %vm1247, %v6172, 0
  %v6700 = vsel %vm1247, %v6173, 0
  %v6703 = vsel %vm1247, %v6174, 0
  %v6706 = vsel %vm1247, %v6175, 0
  %v6709 = vsel %vm1247, %v6176, 0
  %v6712 = vsel %vm1247, %v6177, 0
  %v6715 = vsel %vm1247, %v6178, 0
  %6717 = vmatprep.subr.mxu0 0.0
  %6718 = vmatpush1.xpose.msra.mxu0 %v6694
  %6719 = vmatprep.subr.mxu0 0.0
  %6720 = vmatpush1.xpose.msra.mxu0 %v6697
  %6721 = vmatprep.subr.mxu0 0.0
  %6722 = vmatpush1.xpose.msra.mxu0 %v6700
  %6723 = vmatprep.subr.mxu0 0.0
  %6724 = vmatpush1.xpose.msra.mxu0 %v6703
  %6725 = vmatprep.subr.mxu0 0.0
  %6726 = vmatpush1.xpose.msra.mxu0 %v6706
  %6727 = vmatprep.subr.mxu0 0.0
  %6728 = vmatpush1.xpose.msra.mxu0 %v6709
  %6729 = vmatprep.subr.mxu0 0.0
  %6730 = vmatpush1.xpose.msra.mxu0 %v6712
  %6731 = vmatprep.subr.mxu0 0.0
  %6732 = vmatpush1.xpose.msra.mxu0 %v6715
  %6733 = vmatprep.subr.mxu0 0.0
  %6734 = vmatpush1.xpose.msra.mxu0 0.0
  %6735 = vmatprep.subr.mxu0 0.0
  %6736 = vmatpush1.xpose.msra.mxu0 0.0
  %6737 = vmatprep.subr.mxu0 0.0
  %6738 = vmatpush1.xpose.msra.mxu0 0.0
  %6739 = vmatprep.subr.mxu0 0.0
  %6740 = vmatpush1.xpose.msra.mxu0 0.0
  %6741 = vmatprep.subr.mxu0 0.0
  %6742 = vmatpush1.xpose.msra.mxu0 0.0
  %6743 = vmatprep.subr.mxu0 0.0
  %6744 = vmatpush1.xpose.msra.mxu0 0.0
  %6745 = vmatprep.subr.mxu0 0.0
  %6746 = vmatpush1.xpose.msra.mxu0 0.0
  %6747 = vmatprep.subr.mxu0 0.0
  %6748 = vmatpush1.xpose.msra.mxu0 0.0
  %6749 = vmatprep.subr.mxu0 0.0
  %6750 = vmatpush1.xpose.msra.mxu0 0.0
  %6751 = vmatprep.subr.mxu0 0.0
  %6752 = vmatpush1.xpose.msra.mxu0 0.0
  %6753 = vmatprep.subr.mxu0 0.0
  %6754 = vmatpush1.xpose.msra.mxu0 0.0
  %6755 = vmatprep.subr.mxu0 0.0
  %6756 = vmatpush1.xpose.msra.mxu0 0.0
  %6757 = vmatprep.subr.mxu0 0.0
  %6758 = vmatpush1.xpose.msra.mxu0 0.0
  %6759 = vmatprep.subr.mxu0 0.0
  %6760 = vmatpush1.xpose.msra.mxu0 0.0
  %6761 = vmatprep.subr.mxu0 0.0
  %6762 = vmatpush1.xpose.msra.mxu0 0.0
  %6763 = vmatprep.subr.mxu0 0.0
  %6764 = vmatpush1.xpose.msra.mxu0 0.0
  %6765 = vmatprep.subr.mxu0 0.0
  %6766 = vmatpush1.xpose.msra.mxu0 0.0
  %6767 = vmatprep.subr.mxu0 0.0
  %6768 = vmatpush1.xpose.msra.mxu0 0.0
  %6769 = vmatprep.subr.mxu0 0.0
  %6770 = vmatpush1.xpose.msra.mxu0 0.0
  %6771 = vmatprep.subr.mxu0 0.0
  %6772 = vmatpush1.xpose.msra.mxu0 0.0
  %6773 = vmatprep.subr.mxu0 0.0
  %6774 = vmatpush1.xpose.msra.mxu0 0.0
  %6775 = vmatprep.subr.mxu0 0.0
  %6776 = vmatpush1.xpose.msra.mxu0 0.0
  %6777 = vmatprep.subr.mxu0 0.0
  %6778 = vmatpush1.xpose.msra.mxu0 0.0
  %6779 = vmatprep.subr.mxu0 0.0
  %6780 = vmatpush1.xpose.msra.mxu0 0.0
  %6781 = vmatprep.mubr.f32.mxu0 0.0
  %6782 = vmatmul.mubr.f32.gmra.mrb[0].mxu0 %v6691
  %v6783 = vpop.f32.mrb[0].mxu0
  %v6784 = vadd.f32 0.0, %v6783
  %v6785 = vpop.f32.mrb[0].mxu0
  %6786 = vdwg.mxu0
  %v6787 = vsel %vm1247, %v5981, 0
  %v6790 = vsel %vm1247, %v6179, 0
  %v6793 = vsel %vm1247, %v6180, 0
  %v6796 = vsel %vm1247, %v6181, 0
  %v6799 = vsel %vm1247, %v6182, 0
  %v6802 = vsel %vm1247, %v6183, 0
  %v6805 = vsel %vm1247, %v6184, 0
  %v6808 = vsel %vm1247, %v6185, 0
  %v6811 = vsel %vm1247, %v6186, 0
  %6813 = vmatprep.subr.mxu0 0.0
  %6814 = vmatpush1.xpose.msra.mxu0 %v6790
  %6815 = vmatprep.subr.mxu0 0.0
  %6816 = vmatpush1.xpose.msra.mxu0 %v6793
  %6817 = vmatprep.subr.mxu0 0.0
  %6818 = vmatpush1.xpose.msra.mxu0 %v6796
  %6819 = vmatprep.subr.mxu0 0.0
  %6820 = vmatpush1.xpose.msra.mxu0 %v6799
  %6821 = vmatprep.subr.mxu0 0.0
  %6822 = vmatpush1.xpose.msra.mxu0 %v6802
  %6823 = vmatprep.subr.mxu0 0.0
  %6824 = vmatpush1.xpose.msra.mxu0 %v6805
  %6825 = vmatprep.subr.mxu0 0.0
  %6826 = vmatpush1.xpose.msra.mxu0 %v6808
  %6827 = vmatprep.subr.mxu0 0.0
  %6828 = vmatpush1.xpose.msra.mxu0 %v6811
  %6829 = vmatprep.subr.mxu0 0.0
  %6830 = vmatpush1.xpose.msra.mxu0 0.0
  %6831 = vmatprep.subr.mxu0 0.0
  %6832 = vmatpush1.xpose.msra.mxu0 0.0
  %6833 = vmatprep.subr.mxu0 0.0
  %6834 = vmatpush1.xpose.msra.mxu0 0.0
  %6835 = vmatprep.subr.mxu0 0.0
  %6836 = vmatpush1.xpose.msra.mxu0 0.0
  %6837 = vmatprep.subr.mxu0 0.0
  %6838 = vmatpush1.xpose.msra.mxu0 0.0
  %6839 = vmatprep.subr.mxu0 0.0
  %6840 = vmatpush1.xpose.msra.mxu0 0.0
  %6841 = vmatprep.subr.mxu0 0.0
  %6842 = vmatpush1.xpose.msra.mxu0 0.0
  %6843 = vmatprep.subr.mxu0 0.0
  %6844 = vmatpush1.xpose.msra.mxu0 0.0
  %6845 = vmatprep.subr.mxu0 0.0
  %6846 = vmatpush1.xpose.msra.mxu0 0.0
  %6847 = vmatprep.subr.mxu0 0.0
  %6848 = vmatpush1.xpose.msra.mxu0 0.0
  %6849 = vmatprep.subr.mxu0 0.0
  %6850 = vmatpush1.xpose.msra.mxu0 0.0
  %6851 = vmatprep.subr.mxu0 0.0
  %6852 = vmatpush1.xpose.msra.mxu0 0.0
  %6853 = vmatprep.subr.mxu0 0.0
  %6854 = vmatpush1.xpose.msra.mxu0 0.0
  %6855 = vmatprep.subr.mxu0 0.0
  %6856 = vmatpush1.xpose.msra.mxu0 0.0
  %6857 = vmatprep.subr.mxu0 0.0
  %6858 = vmatpush1.xpose.msra.mxu0 0.0
  %6859 = vmatprep.subr.mxu0 0.0
  %6860 = vmatpush1.xpose.msra.mxu0 0.0
  %6861 = vmatprep.subr.mxu0 0.0
  %6862 = vmatpush1.xpose.msra.mxu0 0.0
  %6863 = vmatprep.subr.mxu0 0.0
  %6864 = vmatpush1.xpose.msra.mxu0 0.0
  %6865 = vmatprep.subr.mxu0 0.0
  %6866 = vmatpush1.xpose.msra.mxu0 0.0
  %6867 = vmatprep.subr.mxu0 0.0
  %6868 = vmatpush1.xpose.msra.mxu0 0.0
  %6869 = vmatprep.subr.mxu0 0.0
  %6870 = vmatpush1.xpose.msra.mxu0 0.0
  %6871 = vmatprep.subr.mxu0 0.0
  %6872 = vmatpush1.xpose.msra.mxu0 0.0
  %6873 = vmatprep.subr.mxu0 0.0
  %6874 = vmatpush1.xpose.msra.mxu0 0.0
  %6875 = vmatprep.subr.mxu0 0.0
  %6876 = vmatpush1.xpose.msra.mxu0 0.0
  %6877 = vmatprep.mubr.f32.mxu0 0.0
  %6878 = vmatmul.mubr.f32.gmra.mrb[0].mxu0 %v6787
  %v6879 = vpop.f32.mrb[0].mxu0
  %v6880 = vadd.f32 0.0, %v6879
  %v6881 = vpop.f32.mrb[0].mxu0
  %6882 = vdwg.mxu0
  %v6883 = vsel %vm1247, %v5995, 0
  %v6886 = vsel %vm1247, %v6187, 0
  %v6889 = vsel %vm1247, %v6188, 0
  %v6892 = vsel %vm1247, %v6189, 0
  %v6895 = vsel %vm1247, %v6190, 0
  %v6898 = vsel %vm1247, %v6191, 0
  %v6901 = vsel %vm1247, %v6192, 0
  %v6904 = vsel %vm1247, %v6193, 0
  %v6907 = vsel %vm1247, %v6194, 0
  %6909 = vmatprep.subr.mxu0 0.0
  %6910 = vmatpush1.xpose.msra.mxu0 %v6886
  %6911 = vmatprep.subr.mxu0 0.0
  %6912 = vmatpush1.xpose.msra.mxu0 %v6889
  %6913 = vmatprep.subr.mxu0 0.0
  %6914 = vmatpush1.xpose.msra.mxu0 %v6892
  %6915 = vmatprep.subr.mxu0 0.0
  %6916 = vmatpush1.xpose.msra.mxu0 %v6895
  %6917 = vmatprep.subr.mxu0 0.0
  %6918 = vmatpush1.xpose.msra.mxu0 %v6898
  %6919 = vmatprep.subr.mxu0 0.0
  %6920 = vmatpush1.xpose.msra.mxu0 %v6901
  %6921 = vmatprep.subr.mxu0 0.0
  %6922 = vmatpush1.xpose.msra.mxu0 %v6904
  %6923 = vmatprep.subr.mxu0 0.0
  %6924 = vmatpush1.xpose.msra.mxu0 %v6907
  %6925 = vmatprep.subr.mxu0 0.0
  %6926 = vmatpush1.xpose.msra.mxu0 0.0
  %6927 = vmatprep.subr.mxu0 0.0
  %6928 = vmatpush1.xpose.msra.mxu0 0.0
  %6929 = vmatprep.subr.mxu0 0.0
  %6930 = vmatpush1.xpose.msra.mxu0 0.0
  %6931 = vmatprep.subr.mxu0 0.0
  %6932 = vmatpush1.xpose.msra.mxu0 0.0
  %6933 = vmatprep.subr.mxu0 0.0
  %6934 = vmatpush1.xpose.msra.mxu0 0.0
  %6935 = vmatprep.subr.mxu0 0.0
  %6936 = vmatpush1.xpose.msra.mxu0 0.0
  %6937 = vmatprep.subr.mxu0 0.0
  %6938 = vmatpush1.xpose.msra.mxu0 0.0
  %6939 = vmatprep.subr.mxu0 0.0
  %6940 = vmatpush1.xpose.msra.mxu0 0.0
  %6941 = vmatprep.subr.mxu0 0.0
  %6942 = vmatpush1.xpose.msra.mxu0 0.0
  %6943 = vmatprep.subr.mxu0 0.0
  %6944 = vmatpush1.xpose.msra.mxu0 0.0
  %6945 = vmatprep.subr.mxu0 0.0
  %6946 = vmatpush1.xpose.msra.mxu0 0.0
  %6947 = vmatprep.subr.mxu0 0.0
  %6948 = vmatpush1.xpose.msra.mxu0 0.0
  %6949 = vmatprep.subr.mxu0 0.0
  %6950 = vmatpush1.xpose.msra.mxu0 0.0
  %6951 = vmatprep.subr.mxu0 0.0
  %6952 = vmatpush1.xpose.msra.mxu0 0.0
  %6953 = vmatprep.subr.mxu0 0.0
  %6954 = vmatpush1.xpose.msra.mxu0 0.0
  %6955 = vmatprep.subr.mxu0 0.0
  %6956 = vmatpush1.xpose.msra.mxu0 0.0
  %6957 = vmatprep.subr.mxu0 0.0
  %6958 = vmatpush1.xpose.msra.mxu0 0.0
  %6959 = vmatprep.subr.mxu0 0.0
  %6960 = vmatpush1.xpose.msra.mxu0 0.0
  %6961 = vmatprep.subr.mxu0 0.0
  %6962 = vmatpush1.xpose.msra.mxu0 0.0
  %6963 = vmatprep.subr.mxu0 0.0
  %6964 = vmatpush1.xpose.msra.mxu0 0.0
  %6965 = vmatprep.subr.mxu0 0.0
  %6966 = vmatpush1.xpose.msra.mxu0 0.0
  %6967 = vmatprep.subr.mxu0 0.0
  %6968 = vmatpush1.xpose.msra.mxu0 0.0
  %6969 = vmatprep.subr.mxu0 0.0
  %6970 = vmatpush1.xpose.msra.mxu0 0.0
  %6971 = vmatprep.subr.mxu0 0.0
  %6972 = vmatpush1.xpose.msra.mxu0 0.0
  %6973 = vmatprep.mubr.f32.mxu0 0.0
  %6974 = vmatmul.mubr.f32.gmra.mrb[0].mxu0 %v6883
  %v6975 = vpop.f32.mrb[0].mxu0
  %v6976 = vadd.f32 0.0, %v6975
  %v6977 = vpop.f32.mrb[0].mxu0
  %6978 = vdwg.mxu0
  %v6979 = vsel %vm1247, %v5997, 0
  %v6982 = vsel %vm1247, %v6195, 0
  %v6985 = vsel %vm1247, %v6196, 0
  %v6988 = vsel %vm1247, %v6197, 0
  %v6991 = vsel %vm1247, %v6198, 0
  %v6994 = vsel %vm1247, %v6199, 0
  %v6997 = vsel %vm1247, %v6200, 0
  %v7000 = vsel %vm1247, %v6201, 0
  %v7003 = vsel %vm1247, %v6202, 0
  %7005 = vmatprep.subr.mxu0 0.0
  %7006 = vmatpush1.xpose.msra.mxu0 %v6982
  %7007 = vmatprep.subr.mxu0 0.0
  %7008 = vmatpush1.xpose.msra.mxu0 %v6985
  %7009 = vmatprep.subr.mxu0 0.0
  %7010 = vmatpush1.xpose.msra.mxu0 %v6988
  %7011 = vmatprep.subr.mxu0 0.0
  %7012 = vmatpush1.xpose.msra.mxu0 %v6991
  %7013 = vmatprep.subr.mxu0 0.0
  %7014 = vmatpush1.xpose.msra.mxu0 %v6994
  %7015 = vmatprep.subr.mxu0 0.0
  %7016 = vmatpush1.xpose.msra.mxu0 %v6997
  %7017 = vmatprep.subr.mxu0 0.0
  %7018 = vmatpush1.xpose.msra.mxu0 %v7000
  %7019 = vmatprep.subr.mxu0 0.0
  %7020 = vmatpush1.xpose.msra.mxu0 %v7003
  %7021 = vmatprep.subr.mxu0 0.0
  %7022 = vmatpush1.xpose.msra.mxu0 0.0
  %7023 = vmatprep.subr.mxu0 0.0
  %7024 = vmatpush1.xpose.msra.mxu0 0.0
  %7025 = vmatprep.subr.mxu0 0.0
  %7026 = vmatpush1.xpose.msra.mxu0 0.0
  %7027 = vmatprep.subr.mxu0 0.0
  %7028 = vmatpush1.xpose.msra.mxu0 0.0
  %7029 = vmatprep.subr.mxu0 0.0
  %7030 = vmatpush1.xpose.msra.mxu0 0.0
  %7031 = vmatprep.subr.mxu0 0.0
  %7032 = vmatpush1.xpose.msra.mxu0 0.0
  %7033 = vmatprep.subr.mxu0 0.0
  %7034 = vmatpush1.xpose.msra.mxu0 0.0
  %7035 = vmatprep.subr.mxu0 0.0
  %7036 = vmatpush1.xpose.msra.mxu0 0.0
  %7037 = vmatprep.subr.mxu0 0.0
  %7038 = vmatpush1.xpose.msra.mxu0 0.0
  %7039 = vmatprep.subr.mxu0 0.0
  %7040 = vmatpush1.xpose.msra.mxu0 0.0
  %7041 = vmatprep.subr.mxu0 0.0
  %7042 = vmatpush1.xpose.msra.mxu0 0.0
  %7043 = vmatprep.subr.mxu0 0.0
  %7044 = vmatpush1.xpose.msra.mxu0 0.0
  %7045 = vmatprep.subr.mxu0 0.0
  %7046 = vmatpush1.xpose.msra.mxu0 0.0
  %7047 = vmatprep.subr.mxu0 0.0
  %7048 = vmatpush1.xpose.msra.mxu0 0.0
  %7049 = vmatprep.subr.mxu0 0.0
  %7050 = vmatpush1.xpose.msra.mxu0 0.0
  %7051 = vmatprep.subr.mxu0 0.0
  %7052 = vmatpush1.xpose.msra.mxu0 0.0
  %7053 = vmatprep.subr.mxu0 0.0
  %7054 = vmatpush1.xpose.msra.mxu0 0.0
  %7055 = vmatprep.subr.mxu0 0.0
  %7056 = vmatpush1.xpose.msra.mxu0 0.0
  %7057 = vmatprep.subr.mxu0 0.0
  %7058 = vmatpush1.xpose.msra.mxu0 0.0
  %7059 = vmatprep.subr.mxu0 0.0
  %7060 = vmatpush1.xpose.msra.mxu0 0.0
  %7061 = vmatprep.subr.mxu0 0.0
  %7062 = vmatpush1.xpose.msra.mxu0 0.0
  %7063 = vmatprep.subr.mxu0 0.0
  %7064 = vmatpush1.xpose.msra.mxu0 0.0
  %7065 = vmatprep.subr.mxu0 0.0
  %7066 = vmatpush1.xpose.msra.mxu0 0.0
  %7067 = vmatprep.subr.mxu0 0.0
  %7068 = vmatpush1.xpose.msra.mxu0 0.0
  %7069 = vmatprep.mubr.f32.mxu0 0.0
  %7070 = vmatmul.mubr.f32.gmra.mrb[0].mxu0 %v6979
  %v7071 = vpop.f32.mrb[0].mxu0
  %v7072 = vadd.f32 0.0, %v7071
  %v7073 = vpop.f32.mrb[0].mxu0
  %7074 = vdwg.mxu0
  %v7075 = vsel %vm1247, %v5999, 0
  %v7078 = vsel %vm1247, %v6203, 0
  %v7081 = vsel %vm1247, %v6204, 0
  %v7084 = vsel %vm1247, %v6205, 0
  %v7087 = vsel %vm1247, %v6206, 0
  %v7090 = vsel %vm1247, %v6207, 0
  %v7093 = vsel %vm1247, %v6208, 0
  %v7096 = vsel %vm1247, %v6209, 0
  %v7099 = vsel %vm1247, %v6210, 0
  %7101 = vmatprep.subr.mxu0 0.0
  %7102 = vmatpush1.xpose.msra.mxu0 %v7078
  %7103 = vmatprep.subr.mxu0 0.0
  %7104 = vmatpush1.xpose.msra.mxu0 %v7081
  %7105 = vmatprep.subr.mxu0 0.0
  %7106 = vmatpush1.xpose.msra.mxu0 %v7084
  %7107 = vmatprep.subr.mxu0 0.0
  %7108 = vmatpush1.xpose.msra.mxu0 %v7087
  %7109 = vmatprep.subr.mxu0 0.0
  %7110 = vmatpush1.xpose.msra.mxu0 %v7090
  %7111 = vmatprep.subr.mxu0 0.0
  %7112 = vmatpush1.xpose.msra.mxu0 %v7093
  %7113 = vmatprep.subr.mxu0 0.0
  %7114 = vmatpush1.xpose.msra.mxu0 %v7096
  %7115 = vmatprep.subr.mxu0 0.0
  %7116 = vmatpush1.xpose.msra.mxu0 %v7099
  %7117 = vmatprep.subr.mxu0 0.0
  %7118 = vmatpush1.xpose.msra.mxu0 0.0
  %7119 = vmatprep.subr.mxu0 0.0
  %7120 = vmatpush1.xpose.msra.mxu0 0.0
  %7121 = vmatprep.subr.mxu0 0.0
  %7122 = vmatpush1.xpose.msra.mxu0 0.0
  %7123 = vmatprep.subr.mxu0 0.0
  %7124 = vmatpush1.xpose.msra.mxu0 0.0
  %7125 = vmatprep.subr.mxu0 0.0
  %7126 = vmatpush1.xpose.msra.mxu0 0.0
  %7127 = vmatprep.subr.mxu0 0.0
  %7128 = vmatpush1.xpose.msra.mxu0 0.0
  %7129 = vmatprep.subr.mxu0 0.0
  %7130 = vmatpush1.xpose.msra.mxu0 0.0
  %7131 = vmatprep.subr.mxu0 0.0
  %7132 = vmatpush1.xpose.msra.mxu0 0.0
  %7133 = vmatprep.subr.mxu0 0.0
  %7134 = vmatpush1.xpose.msra.mxu0 0.0
  %7135 = vmatprep.subr.mxu0 0.0
  %7136 = vmatpush1.xpose.msra.mxu0 0.0
  %7137 = vmatprep.subr.mxu0 0.0
  %7138 = vmatpush1.xpose.msra.mxu0 0.0
  %7139 = vmatprep.subr.mxu0 0.0
  %7140 = vmatpush1.xpose.msra.mxu0 0.0
  %7141 = vmatprep.subr.mxu0 0.0
  %7142 = vmatpush1.xpose.msra.mxu0 0.0
  %7143 = vmatprep.subr.mxu0 0.0
  %7144 = vmatpush1.xpose.msra.mxu0 0.0
  %7145 = vmatprep.subr.mxu0 0.0
  %7146 = vmatpush1.xpose.msra.mxu0 0.0
  %7147 = vmatprep.subr.mxu0 0.0
  %7148 = vmatpush1.xpose.msra.mxu0 0.0
  %7149 = vmatprep.subr.mxu0 0.0
  %7150 = vmatpush1.xpose.msra.mxu0 0.0
  %7151 = vmatprep.subr.mxu0 0.0
  %7152 = vmatpush1.xpose.msra.mxu0 0.0
  %7153 = vmatprep.subr.mxu0 0.0
  %7154 = vmatpush1.xpose.msra.mxu0 0.0
  %7155 = vmatprep.subr.mxu0 0.0
  %7156 = vmatpush1.xpose.msra.mxu0 0.0
  %7157 = vmatprep.subr.mxu0 0.0
  %7158 = vmatpush1.xpose.msra.mxu0 0.0
  %7159 = vmatprep.subr.mxu0 0.0
  %7160 = vmatpush1.xpose.msra.mxu0 0.0
  %7161 = vmatprep.subr.mxu0 0.0
  %7162 = vmatpush1.xpose.msra.mxu0 0.0
  %7163 = vmatprep.subr.mxu0 0.0
  %7164 = vmatpush1.xpose.msra.mxu0 0.0
  %7165 = vmatprep.mubr.f32.mxu0 0.0
  %7166 = vmatmul.mubr.f32.gmra.mrb[0].mxu0 %v7075
  %v7167 = vpop.f32.mrb[0].mxu0
  %v7168 = vadd.f32 0.0, %v7167
  %v7169 = vpop.f32.mrb[0].mxu0
  %7170 = vdwg.mxu0
  %v7171 = vsel %vm1247, %v6023, 0
  %v7174 = vsel %vm1247, %v6211, 0
  %v7177 = vsel %vm1247, %v6212, 0
  %v7180 = vsel %vm1247, %v6213, 0
  %v7183 = vsel %vm1247, %v6214, 0
  %v7186 = vsel %vm1247, %v6215, 0
  %v7189 = vsel %vm1247, %v6216, 0
  %v7192 = vsel %vm1247, %v6217, 0
  %v7195 = vsel %vm1247, %v6218, 0
  %7197 = vmatprep.subr.mxu0 0.0
  %7198 = vmatpush1.xpose.msra.mxu0 %v7174
  %7199 = vmatprep.subr.mxu0 0.0
  %7200 = vmatpush1.xpose.msra.mxu0 %v7177
  %7201 = vmatprep.subr.mxu0 0.0
  %7202 = vmatpush1.xpose.msra.mxu0 %v7180
  %7203 = vmatprep.subr.mxu0 0.0
  %7204 = vmatpush1.xpose.msra.mxu0 %v7183
  %7205 = vmatprep.subr.mxu0 0.0
  %7206 = vmatpush1.xpose.msra.mxu0 %v7186
  %7207 = vmatprep.subr.mxu0 0.0
  %7208 = vmatpush1.xpose.msra.mxu0 %v7189
  %7209 = vmatprep.subr.mxu0 0.0
  %7210 = vmatpush1.xpose.msra.mxu0 %v7192
  %7211 = vmatprep.subr.mxu0 0.0
  %7212 = vmatpush1.xpose.msra.mxu0 %v7195
  %7213 = vmatprep.subr.mxu0 0.0
  %7214 = vmatpush1.xpose.msra.mxu0 0.0
  %7215 = vmatprep.subr.mxu0 0.0
  %7216 = vmatpush1.xpose.msra.mxu0 0.0
  %7217 = vmatprep.subr.mxu0 0.0
  %7218 = vmatpush1.xpose.msra.mxu0 0.0
  %7219 = vmatprep.subr.mxu0 0.0
  %7220 = vmatpush1.xpose.msra.mxu0 0.0
  %7221 = vmatprep.subr.mxu0 0.0
  %7222 = vmatpush1.xpose.msra.mxu0 0.0
  %7223 = vmatprep.subr.mxu0 0.0
  %7224 = vmatpush1.xpose.msra.mxu0 0.0
  %7225 = vmatprep.subr.mxu0 0.0
  %7226 = vmatpush1.xpose.msra.mxu0 0.0
  %7227 = vmatprep.subr.mxu0 0.0
  %7228 = vmatpush1.xpose.msra.mxu0 0.0
  %7229 = vmatprep.subr.mxu0 0.0
  %7230 = vmatpush1.xpose.msra.mxu0 0.0
  %7231 = vmatprep.subr.mxu0 0.0
  %7232 = vmatpush1.xpose.msra.mxu0 0.0
  %7233 = vmatprep.subr.mxu0 0.0
  %7234 = vmatpush1.xpose.msra.mxu0 0.0
  %7235 = vmatprep.subr.mxu0 0.0
  %7236 = vmatpush1.xpose.msra.mxu0 0.0
  %7237 = vmatprep.subr.mxu0 0.0
  %7238 = vmatpush1.xpose.msra.mxu0 0.0
  %7239 = vmatprep.subr.mxu0 0.0
  %7240 = vmatpush1.xpose.msra.mxu0 0.0
  %7241 = vmatprep.subr.mxu0 0.0
  %7242 = vmatpush1.xpose.msra.mxu0 0.0
  %7243 = vmatprep.subr.mxu0 0.0
  %7244 = vmatpush1.xpose.msra.mxu0 0.0
  %7245 = vmatprep.subr.mxu0 0.0
  %7246 = vmatpush1.xpose.msra.mxu0 0.0
  %7247 = vmatprep.subr.mxu0 0.0
  %7248 = vmatpush1.xpose.msra.mxu0 0.0
  %7249 = vmatprep.subr.mxu0 0.0
  %7250 = vmatpush1.xpose.msra.mxu0 0.0
  %7251 = vmatprep.subr.mxu0 0.0
  %7252 = vmatpush1.xpose.msra.mxu0 0.0
  %7253 = vmatprep.subr.mxu0 0.0
  %7254 = vmatpush1.xpose.msra.mxu0 0.0
  %7255 = vmatprep.subr.mxu0 0.0
  %7256 = vmatpush1.xpose.msra.mxu0 0.0
  %7257 = vmatprep.subr.mxu0 0.0
  %7258 = vmatpush1.xpose.msra.mxu0 0.0
  %7259 = vmatprep.subr.mxu0 0.0
  %7260 = vmatpush1.xpose.msra.mxu0 0.0
  %7261 = vmatprep.mubr.f32.mxu0 0.0
  %7262 = vmatmul.mubr.f32.gmra.mrb[0].mxu0 %v7171
  %v7263 = vpop.f32.mrb[0].mxu0
  %v7264 = vadd.f32 0.0, %v7263
  %v7265 = vpop.f32.mrb[0].mxu0
  %7266 = vdwg.mxu0
  %v7267 = vsel %vm1247, %v6037, 0
  %v7270 = vsel %vm1247, %v6219, 0
  %v7273 = vsel %vm1247, %v6220, 0
  %v7276 = vsel %vm1247, %v6221, 0
  %v7279 = vsel %vm1247, %v6222, 0
  %v7282 = vsel %vm1247, %v6223, 0
  %v7285 = vsel %vm1247, %v6224, 0
  %v7288 = vsel %vm1247, %v6225, 0
  %v7291 = vsel %vm1247, %v6226, 0
  %7293 = vmatprep.subr.mxu0 0.0
  %7294 = vmatpush1.xpose.msra.mxu0 %v7270
  %7295 = vmatprep.subr.mxu0 0.0
  %7296 = vmatpush1.xpose.msra.mxu0 %v7273
  %7297 = vmatprep.subr.mxu0 0.0
  %7298 = vmatpush1.xpose.msra.mxu0 %v7276
  %7299 = vmatprep.subr.mxu0 0.0
  %7300 = vmatpush1.xpose.msra.mxu0 %v7279
  %7301 = vmatprep.subr.mxu0 0.0
  %7302 = vmatpush1.xpose.msra.mxu0 %v7282
  %7303 = vmatprep.subr.mxu0 0.0
  %7304 = vmatpush1.xpose.msra.mxu0 %v7285
  %7305 = vmatprep.subr.mxu0 0.0
  %7306 = vmatpush1.xpose.msra.mxu0 %v7288
  %7307 = vmatprep.subr.mxu0 0.0
  %7308 = vmatpush1.xpose.msra.mxu0 %v7291
  %7309 = vmatprep.subr.mxu0 0.0
  %7310 = vmatpush1.xpose.msra.mxu0 0.0
  %7311 = vmatprep.subr.mxu0 0.0
  %7312 = vmatpush1.xpose.msra.mxu0 0.0
  %7313 = vmatprep.subr.mxu0 0.0
  %7314 = vmatpush1.xpose.msra.mxu0 0.0
  %7315 = vmatprep.subr.mxu0 0.0
  %7316 = vmatpush1.xpose.msra.mxu0 0.0
  %7317 = vmatprep.subr.mxu0 0.0
  %7318 = vmatpush1.xpose.msra.mxu0 0.0
  %7319 = vmatprep.subr.mxu0 0.0
  %7320 = vmatpush1.xpose.msra.mxu0 0.0
  %7321 = vmatprep.subr.mxu0 0.0
  %7322 = vmatpush1.xpose.msra.mxu0 0.0
  %7323 = vmatprep.subr.mxu0 0.0
  %7324 = vmatpush1.xpose.msra.mxu0 0.0
  %7325 = vmatprep.subr.mxu0 0.0
  %7326 = vmatpush1.xpose.msra.mxu0 0.0
  %7327 = vmatprep.subr.mxu0 0.0
  %7328 = vmatpush1.xpose.msra.mxu0 0.0
  %7329 = vmatprep.subr.mxu0 0.0
  %7330 = vmatpush1.xpose.msra.mxu0 0.0
  %7331 = vmatprep.subr.mxu0 0.0
  %7332 = vmatpush1.xpose.msra.mxu0 0.0
  %7333 = vmatprep.subr.mxu0 0.0
  %7334 = vmatpush1.xpose.msra.mxu0 0.0
  %7335 = vmatprep.subr.mxu0 0.0
  %7336 = vmatpush1.xpose.msra.mxu0 0.0
  %7337 = vmatprep.subr.mxu0 0.0
  %7338 = vmatpush1.xpose.msra.mxu0 0.0
  %7339 = vmatprep.subr.mxu0 0.0
  %7340 = vmatpush1.xpose.msra.mxu0 0.0
  %7341 = vmatprep.subr.mxu0 0.0
  %7342 = vmatpush1.xpose.msra.mxu0 0.0
  %7343 = vmatprep.subr.mxu0 0.0
  %7344 = vmatpush1.xpose.msra.mxu0 0.0
  %7345 = vmatprep.subr.mxu0 0.0
  %7346 = vmatpush1.xpose.msra.mxu0 0.0
  %7347 = vmatprep.subr.mxu0 0.0
  %7348 = vmatpush1.xpose.msra.mxu0 0.0
  %7349 = vmatprep.subr.mxu0 0.0
  %7350 = vmatpush1.xpose.msra.mxu0 0.0
  %7351 = vmatprep.subr.mxu0 0.0
  %7352 = vmatpush1.xpose.msra.mxu0 0.0
  %7353 = vmatprep.subr.mxu0 0.0
  %7354 = vmatpush1.xpose.msra.mxu0 0.0
  %7355 = vmatprep.subr.mxu0 0.0
  %7356 = vmatpush1.xpose.msra.mxu0 0.0
  %7357 = vmatprep.mubr.f32.mxu0 0.0
  %7358 = vmatmul.mubr.f32.gmra.mrb[0].mxu0 %v7267
  %v7359 = vpop.f32.mrb[0].mxu0
  %v7360 = vadd.f32 0.0, %v7359
  %v7361 = vpop.f32.mrb[0].mxu0
  %7362 = vdwg.mxu0
  %v7363 = vsel %vm1247, %v6045, 0
  %v7366 = vsel %vm1247, %v6227, 0
  %v7369 = vsel %vm1247, %v6228, 0
  %v7372 = vsel %vm1247, %v6229, 0
  %v7375 = vsel %vm1247, %v6230, 0
  %v7378 = vsel %vm1247, %v6231, 0
  %v7381 = vsel %vm1247, %v6232, 0
  %v7384 = vsel %vm1247, %v6233, 0
  %v7387 = vsel %vm1247, %v6234, 0
  %7389 = vmatprep.subr.mxu0 0.0
  %7390 = vmatpush1.xpose.msra.mxu0 %v7366
  %7391 = vmatprep.subr.mxu0 0.0
  %7392 = vmatpush1.xpose.msra.mxu0 %v7369
  %7393 = vmatprep.subr.mxu0 0.0
  %7394 = vmatpush1.xpose.msra.mxu0 %v7372
  %7395 = vmatprep.subr.mxu0 0.0
  %7396 = vmatpush1.xpose.msra.mxu0 %v7375
  %7397 = vmatprep.subr.mxu0 0.0
  %7398 = vmatpush1.xpose.msra.mxu0 %v7378
  %7399 = vmatprep.subr.mxu0 0.0
  %7400 = vmatpush1.xpose.msra.mxu0 %v7381
  %7401 = vmatprep.subr.mxu0 0.0
  %7402 = vmatpush1.xpose.msra.mxu0 %v7384
  %7403 = vmatprep.subr.mxu0 0.0
  %7404 = vmatpush1.xpose.msra.mxu0 %v7387
  %7405 = vmatprep.subr.mxu0 0.0
  %7406 = vmatpush1.xpose.msra.mxu0 0.0
  %7407 = vmatprep.subr.mxu0 0.0
  %7408 = vmatpush1.xpose.msra.mxu0 0.0
  %7409 = vmatprep.subr.mxu0 0.0
  %7410 = vmatpush1.xpose.msra.mxu0 0.0
  %7411 = vmatprep.subr.mxu0 0.0
  %7412 = vmatpush1.xpose.msra.mxu0 0.0
  %7413 = vmatprep.subr.mxu0 0.0
  %7414 = vmatpush1.xpose.msra.mxu0 0.0
  %7415 = vmatprep.subr.mxu0 0.0
  %7416 = vmatpush1.xpose.msra.mxu0 0.0
  %7417 = vmatprep.subr.mxu0 0.0
  %7418 = vmatpush1.xpose.msra.mxu0 0.0
  %7419 = vmatprep.subr.mxu0 0.0
  %7420 = vmatpush1.xpose.msra.mxu0 0.0
  %7421 = vmatprep.subr.mxu0 0.0
  %7422 = vmatpush1.xpose.msra.mxu0 0.0
  %7423 = vmatprep.subr.mxu0 0.0
  %7424 = vmatpush1.xpose.msra.mxu0 0.0
  %7425 = vmatprep.subr.mxu0 0.0
  %7426 = vmatpush1.xpose.msra.mxu0 0.0
  %7427 = vmatprep.subr.mxu0 0.0
  %7428 = vmatpush1.xpose.msra.mxu0 0.0
  %7429 = vmatprep.subr.mxu0 0.0
  %7430 = vmatpush1.xpose.msra.mxu0 0.0
  %7431 = vmatprep.subr.mxu0 0.0
  %7432 = vmatpush1.xpose.msra.mxu0 0.0
  %7433 = vmatprep.subr.mxu0 0.0
  %7434 = vmatpush1.xpose.msra.mxu0 0.0
  %7435 = vmatprep.subr.mxu0 0.0
  %7436 = vmatpush1.xpose.msra.mxu0 0.0
  %7437 = vmatprep.subr.mxu0 0.0
  %7438 = vmatpush1.xpose.msra.mxu0 0.0
  %7439 = vmatprep.subr.mxu0 0.0
  %7440 = vmatpush1.xpose.msra.mxu0 0.0
  %7441 = vmatprep.subr.mxu0 0.0
  %7442 = vmatpush1.xpose.msra.mxu0 0.0
  %7443 = vmatprep.subr.mxu0 0.0
  %7444 = vmatpush1.xpose.msra.mxu0 0.0
  %7445 = vmatprep.subr.mxu0 0.0
  %7446 = vmatpush1.xpose.msra.mxu0 0.0
  %7447 = vmatprep.subr.mxu0 0.0
  %7448 = vmatpush1.xpose.msra.mxu0 0.0
  %7449 = vmatprep.subr.mxu0 0.0
  %7450 = vmatpush1.xpose.msra.mxu0 0.0
  %7451 = vmatprep.subr.mxu0 0.0
  %7452 = vmatpush1.xpose.msra.mxu0 0.0
  %7453 = vmatprep.mubr.f32.mxu0 0.0
  %7454 = vmatmul.mubr.f32.gmra.mrb[0].mxu0 %v7363
  %v7455 = vpop.f32.mrb[0].mxu0
  %v7456 = vadd.f32 0.0, %v7455
  %v7457 = vpop.f32.mrb[0].mxu0
  %7458 = vdwg.mxu0
  %v7459 = vsel %vm1247, %v6047, 0
  %v7462 = vsel %vm1247, %v6235, 0
  %v7465 = vsel %vm1247, %v6236, 0
  %v7468 = vsel %vm1247, %v6237, 0
  %v7471 = vsel %vm1247, %v6238, 0
  %v7474 = vsel %vm1247, %v6239, 0
  %v7477 = vsel %vm1247, %v6240, 0
  %v7480 = vsel %vm1247, %v6241, 0
  %v7483 = vsel %vm1247, %v6242, 0
  %7485 = vmatprep.subr.mxu0 0.0
  %7486 = vmatpush1.xpose.msra.mxu0 %v7462
  %7487 = vmatprep.subr.mxu0 0.0
  %7488 = vmatpush1.xpose.msra.mxu0 %v7465
  %7489 = vmatprep.subr.mxu0 0.0
  %7490 = vmatpush1.xpose.msra.mxu0 %v7468
  %7491 = vmatprep.subr.mxu0 0.0
  %7492 = vmatpush1.xpose.msra.mxu0 %v7471
  %7493 = vmatprep.subr.mxu0 0.0
  %7494 = vmatpush1.xpose.msra.mxu0 %v7474
  %7495 = vmatprep.subr.mxu0 0.0
  %7496 = vmatpush1.xpose.msra.mxu0 %v7477
  %7497 = vmatprep.subr.mxu0 0.0
  %7498 = vmatpush1.xpose.msra.mxu0 %v7480
  %7499 = vmatprep.subr.mxu0 0.0
  %7500 = vmatpush1.xpose.msra.mxu0 %v7483
  %7501 = vmatprep.subr.mxu0 0.0
  %7502 = vmatpush1.xpose.msra.mxu0 0.0
  %7503 = vmatprep.subr.mxu0 0.0
  %7504 = vmatpush1.xpose.msra.mxu0 0.0
  %7505 = vmatprep.subr.mxu0 0.0
  %7506 = vmatpush1.xpose.msra.mxu0 0.0
  %7507 = vmatprep.subr.mxu0 0.0
  %7508 = vmatpush1.xpose.msra.mxu0 0.0
  %7509 = vmatprep.subr.mxu0 0.0
  %7510 = vmatpush1.xpose.msra.mxu0 0.0
  %7511 = vmatprep.subr.mxu0 0.0
  %7512 = vmatpush1.xpose.msra.mxu0 0.0
  %7513 = vmatprep.subr.mxu0 0.0
  %7514 = vmatpush1.xpose.msra.mxu0 0.0
  %7515 = vmatprep.subr.mxu0 0.0
  %7516 = vmatpush1.xpose.msra.mxu0 0.0
  %7517 = vmatprep.subr.mxu0 0.0
  %7518 = vmatpush1.xpose.msra.mxu0 0.0
  %7519 = vmatprep.subr.mxu0 0.0
  %7520 = vmatpush1.xpose.msra.mxu0 0.0
  %7521 = vmatprep.subr.mxu0 0.0
  %7522 = vmatpush1.xpose.msra.mxu0 0.0
  %7523 = vmatprep.subr.mxu0 0.0
  %7524 = vmatpush1.xpose.msra.mxu0 0.0
  %7525 = vmatprep.subr.mxu0 0.0
  %7526 = vmatpush1.xpose.msra.mxu0 0.0
  %7527 = vmatprep.subr.mxu0 0.0
  %7528 = vmatpush1.xpose.msra.mxu0 0.0
  %7529 = vmatprep.subr.mxu0 0.0
  %7530 = vmatpush1.xpose.msra.mxu0 0.0
  %7531 = vmatprep.subr.mxu0 0.0
  %7532 = vmatpush1.xpose.msra.mxu0 0.0
  %7533 = vmatprep.subr.mxu0 0.0
  %7534 = vmatpush1.xpose.msra.mxu0 0.0
  %7535 = vmatprep.subr.mxu0 0.0
  %7536 = vmatpush1.xpose.msra.mxu0 0.0
  %7537 = vmatprep.subr.mxu0 0.0
  %7538 = vmatpush1.xpose.msra.mxu0 0.0
  %7539 = vmatprep.subr.mxu0 0.0
  %7540 = vmatpush1.xpose.msra.mxu0 0.0
  %7541 = vmatprep.subr.mxu0 0.0
  %7542 = vmatpush1.xpose.msra.mxu0 0.0
  %7543 = vmatprep.subr.mxu0 0.0
  %7544 = vmatpush1.xpose.msra.mxu0 0.0
  %7545 = vmatprep.subr.mxu0 0.0
  %7546 = vmatpush1.xpose.msra.mxu0 0.0
  %7547 = vmatprep.subr.mxu0 0.0
  %7548 = vmatpush1.xpose.msra.mxu0 0.0
  %7549 = vmatprep.mubr.f32.mxu0 0.0
  %7550 = vmatmul.mubr.f32.gmra.mrb[0].mxu0 %v7459
  %v7551 = vpop.f32.mrb[0].mxu0
  %v7552 = vadd.f32 0.0, %v7551
  %v7553 = vpop.f32.mrb[0].mxu0
  %7554 = vdwg.mxu0
  %v7555 = vsel %vm1247, %v6030, 0
  %v7558 = vsel %vm1247, %v6243, 0
  %v7561 = vsel %vm1247, %v6244, 0
  %v7564 = vsel %vm1247, %v6245, 0
  %v7567 = vsel %vm1247, %v6246, 0
  %v7570 = vsel %vm1247, %v6247, 0
  %v7573 = vsel %vm1247, %v6248, 0
  %v7576 = vsel %vm1247, %v6249, 0
  %v7579 = vsel %vm1247, %v6250, 0
  %7581 = vmatprep.subr.mxu0 0.0
  %7582 = vmatpush1.xpose.msra.mxu0 %v7558
  %7583 = vmatprep.subr.mxu0 0.0
  %7584 = vmatpush1.xpose.msra.mxu0 %v7561
  %7585 = vmatprep.subr.mxu0 0.0
  %7586 = vmatpush1.xpose.msra.mxu0 %v7564
  %7587 = vmatprep.subr.mxu0 0.0
  %7588 = vmatpush1.xpose.msra.mxu0 %v7567
  %7589 = vmatprep.subr.mxu0 0.0
  %7590 = vmatpush1.xpose.msra.mxu0 %v7570
  %7591 = vmatprep.subr.mxu0 0.0
  %7592 = vmatpush1.xpose.msra.mxu0 %v7573
  %7593 = vmatprep.subr.mxu0 0.0
  %7594 = vmatpush1.xpose.msra.mxu0 %v7576
  %7595 = vmatprep.subr.mxu0 0.0
  %7596 = vmatpush1.xpose.msra.mxu0 %v7579
  %7597 = vmatprep.subr.mxu0 0.0
  %7598 = vmatpush1.xpose.msra.mxu0 0.0
  %7599 = vmatprep.subr.mxu0 0.0
  %7600 = vmatpush1.xpose.msra.mxu0 0.0
  %7601 = vmatprep.subr.mxu0 0.0
  %7602 = vmatpush1.xpose.msra.mxu0 0.0
  %7603 = vmatprep.subr.mxu0 0.0
  %7604 = vmatpush1.xpose.msra.mxu0 0.0
  %7605 = vmatprep.subr.mxu0 0.0
  %7606 = vmatpush1.xpose.msra.mxu0 0.0
  %7607 = vmatprep.subr.mxu0 0.0
  %7608 = vmatpush1.xpose.msra.mxu0 0.0
  %7609 = vmatprep.subr.mxu0 0.0
  %7610 = vmatpush1.xpose.msra.mxu0 0.0
  %7611 = vmatprep.subr.mxu0 0.0
  %7612 = vmatpush1.xpose.msra.mxu0 0.0
  %7613 = vmatprep.subr.mxu0 0.0
  %7614 = vmatpush1.xpose.msra.mxu0 0.0
  %7615 = vmatprep.subr.mxu0 0.0
  %7616 = vmatpush1.xpose.msra.mxu0 0.0
  %7617 = vmatprep.subr.mxu0 0.0
  %7618 = vmatpush1.xpose.msra.mxu0 0.0
  %7619 = vmatprep.subr.mxu0 0.0
  %7620 = vmatpush1.xpose.msra.mxu0 0.0
  %7621 = vmatprep.subr.mxu0 0.0
  %7622 = vmatpush1.xpose.msra.mxu0 0.0
  %7623 = vmatprep.subr.mxu0 0.0
  %7624 = vmatpush1.xpose.msra.mxu0 0.0
  %7625 = vmatprep.subr.mxu0 0.0
  %7626 = vmatpush1.xpose.msra.mxu0 0.0
  %7627 = vmatprep.subr.mxu0 0.0
  %7628 = vmatpush1.xpose.msra.mxu0 0.0
  %7629 = vmatprep.subr.mxu0 0.0
  %7630 = vmatpush1.xpose.msra.mxu0 0.0
  %7631 = vmatprep.subr.mxu0 0.0
  %7632 = vmatpush1.xpose.msra.mxu0 0.0
  %7633 = vmatprep.subr.mxu0 0.0
  %7634 = vmatpush1.xpose.msra.mxu0 0.0
  %7635 = vmatprep.subr.mxu0 0.0
  %7636 = vmatpush1.xpose.msra.mxu0 0.0
  %7637 = vmatprep.subr.mxu0 0.0
  %7638 = vmatpush1.xpose.msra.mxu0 0.0
  %7639 = vmatprep.subr.mxu0 0.0
  %7640 = vmatpush1.xpose.msra.mxu0 0.0
  %7641 = vmatprep.subr.mxu0 0.0
  %7642 = vmatpush1.xpose.msra.mxu0 0.0
  %7643 = vmatprep.subr.mxu0 0.0
  %7644 = vmatpush1.xpose.msra.mxu0 0.0
  %7645 = vmatprep.mubr.f32.mxu0 0.0
  %7646 = vmatmul.mubr.f32.gmra.mrb[0].mxu0 %v7555
  %v7647 = vpop.f32.mrb[0].mxu0
  %v7648 = vadd.f32 0.0, %v7647
  %v7649 = vpop.f32.mrb[0].mxu0
  %7650 = vdwg.mxu0
  %v7651 = vsel %vm1247, %v6044, 0
  %v7654 = vsel %vm1247, %v6251, 0
  %v7657 = vsel %vm1247, %v6252, 0
  %v7660 = vsel %vm1247, %v6253, 0
  %v7663 = vsel %vm1247, %v6254, 0
  %v7666 = vsel %vm1247, %v6255, 0
  %v7669 = vsel %vm1247, %v6256, 0
  %v7672 = vsel %vm1247, %v6257, 0
  %v7675 = vsel %vm1247, %v6258, 0
  %7677 = vmatprep.subr.mxu0 0.0
  %7678 = vmatpush1.xpose.msra.mxu0 %v7654
  %7679 = vmatprep.subr.mxu0 0.0
  %7680 = vmatpush1.xpose.msra.mxu0 %v7657
  %7681 = vmatprep.subr.mxu0 0.0
  %7682 = vmatpush1.xpose.msra.mxu0 %v7660
  %7683 = vmatprep.subr.mxu0 0.0
  %7684 = vmatpush1.xpose.msra.mxu0 %v7663
  %7685 = vmatprep.subr.mxu0 0.0
  %7686 = vmatpush1.xpose.msra.mxu0 %v7666
  %7687 = vmatprep.subr.mxu0 0.0
  %7688 = vmatpush1.xpose.msra.mxu0 %v7669
  %7689 = vmatprep.subr.mxu0 0.0
  %7690 = vmatpush1.xpose.msra.mxu0 %v7672
  %7691 = vmatprep.subr.mxu0 0.0
  %7692 = vmatpush1.xpose.msra.mxu0 %v7675
  %7693 = vmatprep.subr.mxu0 0.0
  %7694 = vmatpush1.xpose.msra.mxu0 0.0
  %7695 = vmatprep.subr.mxu0 0.0
  %7696 = vmatpush1.xpose.msra.mxu0 0.0
  %7697 = vmatprep.subr.mxu0 0.0
  %7698 = vmatpush1.xpose.msra.mxu0 0.0
  %7699 = vmatprep.subr.mxu0 0.0
  %7700 = vmatpush1.xpose.msra.mxu0 0.0
  %7701 = vmatprep.subr.mxu0 0.0
  %7702 = vmatpush1.xpose.msra.mxu0 0.0
  %7703 = vmatprep.subr.mxu0 0.0
  %7704 = vmatpush1.xpose.msra.mxu0 0.0
  %7705 = vmatprep.subr.mxu0 0.0
  %7706 = vmatpush1.xpose.msra.mxu0 0.0
  %7707 = vmatprep.subr.mxu0 0.0
  %7708 = vmatpush1.xpose.msra.mxu0 0.0
  %7709 = vmatprep.subr.mxu0 0.0
  %7710 = vmatpush1.xpose.msra.mxu0 0.0
  %7711 = vmatprep.subr.mxu0 0.0
  %7712 = vmatpush1.xpose.msra.mxu0 0.0
  %7713 = vmatprep.subr.mxu0 0.0
  %7714 = vmatpush1.xpose.msra.mxu0 0.0
  %7715 = vmatprep.subr.mxu0 0.0
  %7716 = vmatpush1.xpose.msra.mxu0 0.0
  %7717 = vmatprep.subr.mxu0 0.0
  %7718 = vmatpush1.xpose.msra.mxu0 0.0
  %7719 = vmatprep.subr.mxu0 0.0
  %7720 = vmatpush1.xpose.msra.mxu0 0.0
  %7721 = vmatprep.subr.mxu0 0.0
  %7722 = vmatpush1.xpose.msra.mxu0 0.0
  %7723 = vmatprep.subr.mxu0 0.0
  %7724 = vmatpush1.xpose.msra.mxu0 0.0
  %7725 = vmatprep.subr.mxu0 0.0
  %7726 = vmatpush1.xpose.msra.mxu0 0.0
  %7727 = vmatprep.subr.mxu0 0.0
  %7728 = vmatpush1.xpose.msra.mxu0 0.0
  %7729 = vmatprep.subr.mxu0 0.0
  %7730 = vmatpush1.xpose.msra.mxu0 0.0
  %7731 = vmatprep.subr.mxu0 0.0
  %7732 = vmatpush1.xpose.msra.mxu0 0.0
  %7733 = vmatprep.subr.mxu0 0.0
  %7734 = vmatpush1.xpose.msra.mxu0 0.0
  %7735 = vmatprep.subr.mxu0 0.0
  %7736 = vmatpush1.xpose.msra.mxu0 0.0
  %7737 = vmatprep.subr.mxu0 0.0
  %7738 = vmatpush1.xpose.msra.mxu0 0.0
  %7739 = vmatprep.subr.mxu0 0.0
  %7740 = vmatpush1.xpose.msra.mxu0 0.0
  %7741 = vmatprep.mubr.f32.mxu0 0.0
  %7742 = vmatmul.mubr.f32.gmra.mrb[0].mxu0 %v7651
  %v7743 = vpop.f32.mrb[0].mxu0
  %v7744 = vadd.f32 0.0, %v7743
  %v7745 = vpop.f32.mrb[0].mxu0
  %7746 = vdwg.mxu0
  %v7747 = vsel %vm1247, %v6046, 0
  %v7750 = vsel %vm1247, %v6259, 0
  %v7753 = vsel %vm1247, %v6260, 0
  %v7756 = vsel %vm1247, %v6261, 0
  %v7759 = vsel %vm1247, %v6262, 0
  %v7762 = vsel %vm1247, %v6263, 0
  %v7765 = vsel %vm1247, %v6264, 0
  %v7768 = vsel %vm1247, %v6265, 0
  %v7771 = vsel %vm1247, %v6266, 0
  %7773 = vmatprep.subr.mxu0 0.0
  %7774 = vmatpush1.xpose.msra.mxu0 %v7750
  %7775 = vmatprep.subr.mxu0 0.0
  %7776 = vmatpush1.xpose.msra.mxu0 %v7753
  %7777 = vmatprep.subr.mxu0 0.0
  %7778 = vmatpush1.xpose.msra.mxu0 %v7756
  %7779 = vmatprep.subr.mxu0 0.0
  %7780 = vmatpush1.xpose.msra.mxu0 %v7759
  %7781 = vmatprep.subr.mxu0 0.0
  %7782 = vmatpush1.xpose.msra.mxu0 %v7762
  %7783 = vmatprep.subr.mxu0 0.0
  %7784 = vmatpush1.xpose.msra.mxu0 %v7765
  %7785 = vmatprep.subr.mxu0 0.0
  %7786 = vmatpush1.xpose.msra.mxu0 %v7768
  %7787 = vmatprep.subr.mxu0 0.0
  %7788 = vmatpush1.xpose.msra.mxu0 %v7771
  %7789 = vmatprep.subr.mxu0 0.0
  %7790 = vmatpush1.xpose.msra.mxu0 0.0
  %7791 = vmatprep.subr.mxu0 0.0
  %7792 = vmatpush1.xpose.msra.mxu0 0.0
  %7793 = vmatprep.subr.mxu0 0.0
  %7794 = vmatpush1.xpose.msra.mxu0 0.0
  %7795 = vmatprep.subr.mxu0 0.0
  %7796 = vmatpush1.xpose.msra.mxu0 0.0
  %7797 = vmatprep.subr.mxu0 0.0
  %7798 = vmatpush1.xpose.msra.mxu0 0.0
  %7799 = vmatprep.subr.mxu0 0.0
  %7800 = vmatpush1.xpose.msra.mxu0 0.0
  %7801 = vmatprep.subr.mxu0 0.0
  %7802 = vmatpush1.xpose.msra.mxu0 0.0
  %7803 = vmatprep.subr.mxu0 0.0
  %7804 = vmatpush1.xpose.msra.mxu0 0.0
  %7805 = vmatprep.subr.mxu0 0.0
  %7806 = vmatpush1.xpose.msra.mxu0 0.0
  %7807 = vmatprep.subr.mxu0 0.0
  %7808 = vmatpush1.xpose.msra.mxu0 0.0
  %7809 = vmatprep.subr.mxu0 0.0
  %7810 = vmatpush1.xpose.msra.mxu0 0.0
  %7811 = vmatprep.subr.mxu0 0.0
  %7812 = vmatpush1.xpose.msra.mxu0 0.0
  %7813 = vmatprep.subr.mxu0 0.0
  %7814 = vmatpush1.xpose.msra.mxu0 0.0
  %7815 = vmatprep.subr.mxu0 0.0
  %7816 = vmatpush1.xpose.msra.mxu0 0.0
  %7817 = vmatprep.subr.mxu0 0.0
  %7818 = vmatpush1.xpose.msra.mxu0 0.0
  %7819 = vmatprep.subr.mxu0 0.0
  %7820 = vmatpush1.xpose.msra.mxu0 0.0
  %7821 = vmatprep.subr.mxu0 0.0
  %7822 = vmatpush1.xpose.msra.mxu0 0.0
  %7823 = vmatprep.subr.mxu0 0.0
  %7824 = vmatpush1.xpose.msra.mxu0 0.0
  %7825 = vmatprep.subr.mxu0 0.0
  %7826 = vmatpush1.xpose.msra.mxu0 0.0
  %7827 = vmatprep.subr.mxu0 0.0
  %7828 = vmatpush1.xpose.msra.mxu0 0.0
  %7829 = vmatprep.subr.mxu0 0.0
  %7830 = vmatpush1.xpose.msra.mxu0 0.0
  %7831 = vmatprep.subr.mxu0 0.0
  %7832 = vmatpush1.xpose.msra.mxu0 0.0
  %7833 = vmatprep.subr.mxu0 0.0
  %7834 = vmatpush1.xpose.msra.mxu0 0.0
  %7835 = vmatprep.subr.mxu0 0.0
  %7836 = vmatpush1.xpose.msra.mxu0 0.0
  %7837 = vmatprep.mubr.f32.mxu0 0.0
  %7838 = vmatmul.mubr.f32.gmra.mrb[0].mxu0 %v7747
  %v7839 = vpop.f32.mrb[0].mxu0
  %v7840 = vadd.f32 0.0, %v7839
  %v7841 = vpop.f32.mrb[0].mxu0
  %7842 = vdwg.mxu0
  %v7843 = vsel %vm1247, %v6048, 0
  %v7846 = vsel %vm1247, %v6267, 0
  %v7849 = vsel %vm1247, %v6268, 0
  %v7852 = vsel %vm1247, %v6269, 0
  %v7855 = vsel %vm1247, %v6270, 0
  %v7858 = vsel %vm1247, %v6271, 0
  %v7861 = vsel %vm1247, %v6272, 0
  %v7864 = vsel %vm1247, %v6273, 0
  %v7867 = vsel %vm1247, %v6274, 0
  %7869 = vmatprep.subr.mxu0 0.0
  %7870 = vmatpush1.xpose.msra.mxu0 %v7846
  %7871 = vmatprep.subr.mxu0 0.0
  %7872 = vmatpush1.xpose.msra.mxu0 %v7849
  %7873 = vmatprep.subr.mxu0 0.0
  %7874 = vmatpush1.xpose.msra.mxu0 %v7852
  %7875 = vmatprep.subr.mxu0 0.0
  %7876 = vmatpush1.xpose.msra.mxu0 %v7855
  %7877 = vmatprep.subr.mxu0 0.0
  %7878 = vmatpush1.xpose.msra.mxu0 %v7858
  %7879 = vmatprep.subr.mxu0 0.0
  %7880 = vmatpush1.xpose.msra.mxu0 %v7861
  %7881 = vmatprep.subr.mxu0 0.0
  %7882 = vmatpush1.xpose.msra.mxu0 %v7864
  %7883 = vmatprep.subr.mxu0 0.0
  %7884 = vmatpush1.xpose.msra.mxu0 %v7867
  %7885 = vmatprep.subr.mxu0 0.0
  %7886 = vmatpush1.xpose.msra.mxu0 0.0
  %7887 = vmatprep.subr.mxu0 0.0
  %7888 = vmatpush1.xpose.msra.mxu0 0.0
  %7889 = vmatprep.subr.mxu0 0.0
  %7890 = vmatpush1.xpose.msra.mxu0 0.0
  %7891 = vmatprep.subr.mxu0 0.0
  %7892 = vmatpush1.xpose.msra.mxu0 0.0
  %7893 = vmatprep.subr.mxu0 0.0
  %7894 = vmatpush1.xpose.msra.mxu0 0.0
  %7895 = vmatprep.subr.mxu0 0.0
  %7896 = vmatpush1.xpose.msra.mxu0 0.0
  %7897 = vmatprep.subr.mxu0 0.0
  %7898 = vmatpush1.xpose.msra.mxu0 0.0
  %7899 = vmatprep.subr.mxu0 0.0
  %7900 = vmatpush1.xpose.msra.mxu0 0.0
  %7901 = vmatprep.subr.mxu0 0.0
  %7902 = vmatpush1.xpose.msra.mxu0 0.0
  %7903 = vmatprep.subr.mxu0 0.0
  %7904 = vmatpush1.xpose.msra.mxu0 0.0
  %7905 = vmatprep.subr.mxu0 0.0
  %7906 = vmatpush1.xpose.msra.mxu0 0.0
  %7907 = vmatprep.subr.mxu0 0.0
  %7908 = vmatpush1.xpose.msra.mxu0 0.0
  %7909 = vmatprep.subr.mxu0 0.0
  %7910 = vmatpush1.xpose.msra.mxu0 0.0
  %7911 = vmatprep.subr.mxu0 0.0
  %7912 = vmatpush1.xpose.msra.mxu0 0.0
  %7913 = vmatprep.subr.mxu0 0.0
  %7914 = vmatpush1.xpose.msra.mxu0 0.0
  %7915 = vmatprep.subr.mxu0 0.0
  %7916 = vmatpush1.xpose.msra.mxu0 0.0
  %7917 = vmatprep.subr.mxu0 0.0
  %7918 = vmatpush1.xpose.msra.mxu0 0.0
  %7919 = vmatprep.subr.mxu0 0.0
  %7920 = vmatpush1.xpose.msra.mxu0 0.0
  %7921 = vmatprep.subr.mxu0 0.0
  %7922 = vmatpush1.xpose.msra.mxu0 0.0
  %7923 = vmatprep.subr.mxu0 0.0
  %7924 = vmatpush1.xpose.msra.mxu0 0.0
  %7925 = vmatprep.subr.mxu0 0.0
  %7926 = vmatpush1.xpose.msra.mxu0 0.0
  %7927 = vmatprep.subr.mxu0 0.0
  %7928 = vmatpush1.xpose.msra.mxu0 0.0
  %7929 = vmatprep.subr.mxu0 0.0
  %7930 = vmatpush1.xpose.msra.mxu0 0.0
  %7931 = vmatprep.subr.mxu0 0.0
  %7932 = vmatpush1.xpose.msra.mxu0 0.0
  %7933 = vmatprep.mubr.f32.mxu0 0.0
  %7934 = vmatmul.mubr.f32.gmra.mrb[0].mxu0 %v7843
  %v7935 = vpop.f32.mrb[0].mxu0
  %v7936 = vadd.f32 0.0, %v7935
  %v7937 = vpop.f32.mrb[0].mxu0
  %7938 = vdwg.mxu0
  %v7939 = vsel %vm1247, %v6072, 0
  %v7942 = vsel %vm1247, %v6275, 0
  %v7945 = vsel %vm1247, %v6276, 0
  %v7948 = vsel %vm1247, %v6277, 0
  %v7951 = vsel %vm1247, %v6278, 0
  %v7954 = vsel %vm1247, %v6279, 0
  %v7957 = vsel %vm1247, %v6280, 0
  %v7960 = vsel %vm1247, %v6281, 0
  %v7963 = vsel %vm1247, %v6282, 0
  %7965 = vmatprep.subr.mxu0 0.0
  %7966 = vmatpush1.xpose.msra.mxu0 %v7942
  %7967 = vmatprep.subr.mxu0 0.0
  %7968 = vmatpush1.xpose.msra.mxu0 %v7945
  %7969 = vmatprep.subr.mxu0 0.0
  %7970 = vmatpush1.xpose.msra.mxu0 %v7948
  %7971 = vmatprep.subr.mxu0 0.0
  %7972 = vmatpush1.xpose.msra.mxu0 %v7951
  %7973 = vmatprep.subr.mxu0 0.0
  %7974 = vmatpush1.xpose.msra.mxu0 %v7954
  %7975 = vmatprep.subr.mxu0 0.0
  %7976 = vmatpush1.xpose.msra.mxu0 %v7957
  %7977 = vmatprep.subr.mxu0 0.0
  %7978 = vmatpush1.xpose.msra.mxu0 %v7960
  %7979 = vmatprep.subr.mxu0 0.0
  %7980 = vmatpush1.xpose.msra.mxu0 %v7963
  %7981 = vmatprep.subr.mxu0 0.0
  %7982 = vmatpush1.xpose.msra.mxu0 0.0
  %7983 = vmatprep.subr.mxu0 0.0
  %7984 = vmatpush1.xpose.msra.mxu0 0.0
  %7985 = vmatprep.subr.mxu0 0.0
  %7986 = vmatpush1.xpose.msra.mxu0 0.0
  %7987 = vmatprep.subr.mxu0 0.0
  %7988 = vmatpush1.xpose.msra.mxu0 0.0
  %7989 = vmatprep.subr.mxu0 0.0
  %7990 = vmatpush1.xpose.msra.mxu0 0.0
  %7991 = vmatprep.subr.mxu0 0.0
  %7992 = vmatpush1.xpose.msra.mxu0 0.0
  %7993 = vmatprep.subr.mxu0 0.0
  %7994 = vmatpush1.xpose.msra.mxu0 0.0
  %7995 = vmatprep.subr.mxu0 0.0
  %7996 = vmatpush1.xpose.msra.mxu0 0.0
  %7997 = vmatprep.subr.mxu0 0.0
  %7998 = vmatpush1.xpose.msra.mxu0 0.0
  %7999 = vmatprep.subr.mxu0 0.0
  %8000 = vmatpush1.xpose.msra.mxu0 0.0
  %8001 = vmatprep.subr.mxu0 0.0
  %8002 = vmatpush1.xpose.msra.mxu0 0.0
  %8003 = vmatprep.subr.mxu0 0.0
  %8004 = vmatpush1.xpose.msra.mxu0 0.0
  %8005 = vmatprep.subr.mxu0 0.0
  %8006 = vmatpush1.xpose.msra.mxu0 0.0
  %8007 = vmatprep.subr.mxu0 0.0
  %8008 = vmatpush1.xpose.msra.mxu0 0.0
  %8009 = vmatprep.subr.mxu0 0.0
  %8010 = vmatpush1.xpose.msra.mxu0 0.0
  %8011 = vmatprep.subr.mxu0 0.0
  %8012 = vmatpush1.xpose.msra.mxu0 0.0
  %8013 = vmatprep.subr.mxu0 0.0
  %8014 = vmatpush1.xpose.msra.mxu0 0.0
  %8015 = vmatprep.subr.mxu0 0.0
  %8016 = vmatpush1.xpose.msra.mxu0 0.0
  %8017 = vmatprep.subr.mxu0 0.0
  %8018 = vmatpush1.xpose.msra.mxu0 0.0
  %8019 = vmatprep.subr.mxu0 0.0
  %8020 = vmatpush1.xpose.msra.mxu0 0.0
  %8021 = vmatprep.subr.mxu0 0.0
  %8022 = vmatpush1.xpose.msra.mxu0 0.0
  %8023 = vmatprep.subr.mxu0 0.0
  %8024 = vmatpush1.xpose.msra.mxu0 0.0
  %8025 = vmatprep.subr.mxu0 0.0
  %8026 = vmatpush1.xpose.msra.mxu0 0.0
  %8027 = vmatprep.subr.mxu0 0.0
  %8028 = vmatpush1.xpose.msra.mxu0 0.0
  %8029 = vmatprep.mubr.f32.mxu0 0.0
  %8030 = vmatmul.mubr.f32.gmra.mrb[0].mxu0 %v7939
  %v8031 = vpop.f32.mrb[0].mxu0
  %v8032 = vadd.f32 0.0, %v8031
  %v8033 = vpop.f32.mrb[0].mxu0
  %8034 = vdwg.mxu0
  %v8035 = vsel %vm1247, %v6086, 0
  %v8038 = vsel %vm1247, %v6283, 0
  %v8041 = vsel %vm1247, %v6284, 0
  %v8044 = vsel %vm1247, %v6285, 0
  %v8047 = vsel %vm1247, %v6286, 0
  %v8050 = vsel %vm1247, %v6287, 0
  %v8053 = vsel %vm1247, %v6288, 0
  %v8056 = vsel %vm1247, %v6289, 0
  %v8059 = vsel %vm1247, %v6290, 0
  %8061 = vmatprep.subr.mxu0 0.0
  %8062 = vmatpush1.xpose.msra.mxu0 %v8038
  %8063 = vmatprep.subr.mxu0 0.0
  %8064 = vmatpush1.xpose.msra.mxu0 %v8041
  %8065 = vmatprep.subr.mxu0 0.0
  %8066 = vmatpush1.xpose.msra.mxu0 %v8044
  %8067 = vmatprep.subr.mxu0 0.0
  %8068 = vmatpush1.xpose.msra.mxu0 %v8047
  %8069 = vmatprep.subr.mxu0 0.0
  %8070 = vmatpush1.xpose.msra.mxu0 %v8050
  %8071 = vmatprep.subr.mxu0 0.0
  %8072 = vmatpush1.xpose.msra.mxu0 %v8053
  %8073 = vmatprep.subr.mxu0 0.0
  %8074 = vmatpush1.xpose.msra.mxu0 %v8056
  %8075 = vmatprep.subr.mxu0 0.0
  %8076 = vmatpush1.xpose.msra.mxu0 %v8059
  %8077 = vmatprep.subr.mxu0 0.0
  %8078 = vmatpush1.xpose.msra.mxu0 0.0
  %8079 = vmatprep.subr.mxu0 0.0
  %8080 = vmatpush1.xpose.msra.mxu0 0.0
  %8081 = vmatprep.subr.mxu0 0.0
  %8082 = vmatpush1.xpose.msra.mxu0 0.0
  %8083 = vmatprep.subr.mxu0 0.0
  %8084 = vmatpush1.xpose.msra.mxu0 0.0
  %8085 = vmatprep.subr.mxu0 0.0
  %8086 = vmatpush1.xpose.msra.mxu0 0.0
  %8087 = vmatprep.subr.mxu0 0.0
  %8088 = vmatpush1.xpose.msra.mxu0 0.0
  %8089 = vmatprep.subr.mxu0 0.0
  %8090 = vmatpush1.xpose.msra.mxu0 0.0
  %8091 = vmatprep.subr.mxu0 0.0
  %8092 = vmatpush1.xpose.msra.mxu0 0.0
  %8093 = vmatprep.subr.mxu0 0.0
  %8094 = vmatpush1.xpose.msra.mxu0 0.0
  %8095 = vmatprep.subr.mxu0 0.0
  %8096 = vmatpush1.xpose.msra.mxu0 0.0
  %8097 = vmatprep.subr.mxu0 0.0
  %8098 = vmatpush1.xpose.msra.mxu0 0.0
  %8099 = vmatprep.subr.mxu0 0.0
  %8100 = vmatpush1.xpose.msra.mxu0 0.0
  %8101 = vmatprep.subr.mxu0 0.0
  %8102 = vmatpush1.xpose.msra.mxu0 0.0
  %8103 = vmatprep.subr.mxu0 0.0
  %8104 = vmatpush1.xpose.msra.mxu0 0.0
  %8105 = vmatprep.subr.mxu0 0.0
  %8106 = vmatpush1.xpose.msra.mxu0 0.0
  %8107 = vmatprep.subr.mxu0 0.0
  %8108 = vmatpush1.xpose.msra.mxu0 0.0
  %8109 = vmatprep.subr.mxu0 0.0
  %8110 = vmatpush1.xpose.msra.mxu0 0.0
  %8111 = vmatprep.subr.mxu0 0.0
  %8112 = vmatpush1.xpose.msra.mxu0 0.0
  %8113 = vmatprep.subr.mxu0 0.0
  %8114 = vmatpush1.xpose.msra.mxu0 0.0
  %8115 = vmatprep.subr.mxu0 0.0
  %8116 = vmatpush1.xpose.msra.mxu0 0.0
  %8117 = vmatprep.subr.mxu0 0.0
  %8118 = vmatpush1.xpose.msra.mxu0 0.0
  %8119 = vmatprep.subr.mxu0 0.0
  %8120 = vmatpush1.xpose.msra.mxu0 0.0
  %8121 = vmatprep.subr.mxu0 0.0
  %8122 = vmatpush1.xpose.msra.mxu0 0.0
  %8123 = vmatprep.subr.mxu0 0.0
  %8124 = vmatpush1.xpose.msra.mxu0 0.0
  %8125 = vmatprep.mubr.f32.mxu0 0.0
  %8126 = vmatmul.mubr.f32.gmra.mrb[0].mxu0 %v8035
  %v8127 = vpop.f32.mrb[0].mxu0
  %v8128 = vadd.f32 0.0, %v8127
  %v8129 = vpop.f32.mrb[0].mxu0
  %8130 = vdwg.mxu0
  %v8131 = vsel %vm1247, %v6094, 0
  %v8134 = vsel %vm1247, %v6291, 0
  %v8137 = vsel %vm1247, %v6292, 0
  %v8140 = vsel %vm1247, %v6293, 0
  %v8143 = vsel %vm1247, %v6294, 0
  %v8146 = vsel %vm1247, %v6295, 0
  %v8149 = vsel %vm1247, %v6296, 0
  %v8152 = vsel %vm1247, %v6297, 0
  %v8155 = vsel %vm1247, %v6298, 0
  %8157 = vmatprep.subr.mxu0 0.0
  %8158 = vmatpush1.xpose.msra.mxu0 %v8134
  %8159 = vmatprep.subr.mxu0 0.0
  %8160 = vmatpush1.xpose.msra.mxu0 %v8137
  %8161 = vmatprep.subr.mxu0 0.0
  %8162 = vmatpush1.xpose.msra.mxu0 %v8140
  %8163 = vmatprep.subr.mxu0 0.0
  %8164 = vmatpush1.xpose.msra.mxu0 %v8143
  %8165 = vmatprep.subr.mxu0 0.0
  %8166 = vmatpush1.xpose.msra.mxu0 %v8146
  %8167 = vmatprep.subr.mxu0 0.0
  %8168 = vmatpush1.xpose.msra.mxu0 %v8149
  %8169 = vmatprep.subr.mxu0 0.0
  %8170 = vmatpush1.xpose.msra.mxu0 %v8152
  %8171 = vmatprep.subr.mxu0 0.0
  %8172 = vmatpush1.xpose.msra.mxu0 %v8155
  %8173 = vmatprep.subr.mxu0 0.0
  %8174 = vmatpush1.xpose.msra.mxu0 0.0
  %8175 = vmatprep.subr.mxu0 0.0
  %8176 = vmatpush1.xpose.msra.mxu0 0.0
  %8177 = vmatprep.subr.mxu0 0.0
  %8178 = vmatpush1.xpose.msra.mxu0 0.0
  %8179 = vmatprep.subr.mxu0 0.0
  %8180 = vmatpush1.xpose.msra.mxu0 0.0
  %8181 = vmatprep.subr.mxu0 0.0
  %8182 = vmatpush1.xpose.msra.mxu0 0.0
  %8183 = vmatprep.subr.mxu0 0.0
  %8184 = vmatpush1.xpose.msra.mxu0 0.0
  %8185 = vmatprep.subr.mxu0 0.0
  %8186 = vmatpush1.xpose.msra.mxu0 0.0
  %8187 = vmatprep.subr.mxu0 0.0
  %8188 = vmatpush1.xpose.msra.mxu0 0.0
  %8189 = vmatprep.subr.mxu0 0.0
  %8190 = vmatpush1.xpose.msra.mxu0 0.0
  %8191 = vmatprep.subr.mxu0 0.0
  %8192 = vmatpush1.xpose.msra.mxu0 0.0
  %8193 = vmatprep.subr.mxu0 0.0
  %8194 = vmatpush1.xpose.msra.mxu0 0.0
  %8195 = vmatprep.subr.mxu0 0.0
  %8196 = vmatpush1.xpose.msra.mxu0 0.0
  %8197 = vmatprep.subr.mxu0 0.0
  %8198 = vmatpush1.xpose.msra.mxu0 0.0
  %8199 = vmatprep.subr.mxu0 0.0
  %8200 = vmatpush1.xpose.msra.mxu0 0.0
  %8201 = vmatprep.subr.mxu0 0.0
  %8202 = vmatpush1.xpose.msra.mxu0 0.0
  %8203 = vmatprep.subr.mxu0 0.0
  %8204 = vmatpush1.xpose.msra.mxu0 0.0
  %8205 = vmatprep.subr.mxu0 0.0
  %8206 = vmatpush1.xpose.msra.mxu0 0.0
  %8207 = vmatprep.subr.mxu0 0.0
  %8208 = vmatpush1.xpose.msra.mxu0 0.0
  %8209 = vmatprep.subr.mxu0 0.0
  %8210 = vmatpush1.xpose.msra.mxu0 0.0
  %8211 = vmatprep.subr.mxu0 0.0
  %8212 = vmatpush1.xpose.msra.mxu0 0.0
  %8213 = vmatprep.subr.mxu0 0.0
  %8214 = vmatpush1.xpose.msra.mxu0 0.0
  %8215 = vmatprep.subr.mxu0 0.0
  %8216 = vmatpush1.xpose.msra.mxu0 0.0
  %8217 = vmatprep.subr.mxu0 0.0
  %8218 = vmatpush1.xpose.msra.mxu0 0.0
  %8219 = vmatprep.subr.mxu0 0.0
  %8220 = vmatpush1.xpose.msra.mxu0 0.0
  %8221 = vmatprep.mubr.f32.mxu0 0.0
  %8222 = vmatmul.mubr.f32.gmra.mrb[0].mxu0 %v8131
  %v8223 = vpop.f32.mrb[0].mxu0
  %v8224 = vadd.f32 0.0, %v8223
  %v8225 = vpop.f32.mrb[0].mxu0
  %8226 = vdwg.mxu0
  %v8227 = vsel %vm1247, %v6096, 0
  %v8230 = vsel %vm1247, %v6299, 0
  %v8233 = vsel %vm1247, %v6300, 0
  %v8236 = vsel %vm1247, %v6301, 0
  %v8239 = vsel %vm1247, %v6302, 0
  %v8242 = vsel %vm1247, %v6303, 0
  %v8245 = vsel %vm1247, %v6304, 0
  %v8248 = vsel %vm1247, %v6305, 0
  %v8251 = vsel %vm1247, %v6306, 0
  %8253 = vmatprep.subr.mxu0 0.0
  %8254 = vmatpush1.xpose.msra.mxu0 %v8230
  %8255 = vmatprep.subr.mxu0 0.0
  %8256 = vmatpush1.xpose.msra.mxu0 %v8233
  %8257 = vmatprep.subr.mxu0 0.0
  %8258 = vmatpush1.xpose.msra.mxu0 %v8236
  %8259 = vmatprep.subr.mxu0 0.0
  %8260 = vmatpush1.xpose.msra.mxu0 %v8239
  %8261 = vmatprep.subr.mxu0 0.0
  %8262 = vmatpush1.xpose.msra.mxu0 %v8242
  %8263 = vmatprep.subr.mxu0 0.0
  %8264 = vmatpush1.xpose.msra.mxu0 %v8245
  %8265 = vmatprep.subr.mxu0 0.0
  %8266 = vmatpush1.xpose.msra.mxu0 %v8248
  %8267 = vmatprep.subr.mxu0 0.0
  %8268 = vmatpush1.xpose.msra.mxu0 %v8251
  %8269 = vmatprep.subr.mxu0 0.0
  %8270 = vmatpush1.xpose.msra.mxu0 0.0
  %8271 = vmatprep.subr.mxu0 0.0
  %8272 = vmatpush1.xpose.msra.mxu0 0.0
  %8273 = vmatprep.subr.mxu0 0.0
  %8274 = vmatpush1.xpose.msra.mxu0 0.0
  %8275 = vmatprep.subr.mxu0 0.0
  %8276 = vmatpush1.xpose.msra.mxu0 0.0
  %8277 = vmatprep.subr.mxu0 0.0
  %8278 = vmatpush1.xpose.msra.mxu0 0.0
  %8279 = vmatprep.subr.mxu0 0.0
  %8280 = vmatpush1.xpose.msra.mxu0 0.0
  %8281 = vmatprep.subr.mxu0 0.0
  %8282 = vmatpush1.xpose.msra.mxu0 0.0
  %8283 = vmatprep.subr.mxu0 0.0
  %8284 = vmatpush1.xpose.msra.mxu0 0.0
  %8285 = vmatprep.subr.mxu0 0.0
  %8286 = vmatpush1.xpose.msra.mxu0 0.0
  %8287 = vmatprep.subr.mxu0 0.0
  %8288 = vmatpush1.xpose.msra.mxu0 0.0
  %8289 = vmatprep.subr.mxu0 0.0
  %8290 = vmatpush1.xpose.msra.mxu0 0.0
  %8291 = vmatprep.subr.mxu0 0.0
  %8292 = vmatpush1.xpose.msra.mxu0 0.0
  %8293 = vmatprep.subr.mxu0 0.0
  %8294 = vmatpush1.xpose.msra.mxu0 0.0
  %8295 = vmatprep.subr.mxu0 0.0
  %8296 = vmatpush1.xpose.msra.mxu0 0.0
  %8297 = vmatprep.subr.mxu0 0.0
  %8298 = vmatpush1.xpose.msra.mxu0 0.0
  %8299 = vmatprep.subr.mxu0 0.0
  %8300 = vmatpush1.xpose.msra.mxu0 0.0
  %8301 = vmatprep.subr.mxu0 0.0
  %8302 = vmatpush1.xpose.msra.mxu0 0.0
  %8303 = vmatprep.subr.mxu0 0.0
  %8304 = vmatpush1.xpose.msra.mxu0 0.0
  %8305 = vmatprep.subr.mxu0 0.0
  %8306 = vmatpush1.xpose.msra.mxu0 0.0
  %8307 = vmatprep.subr.mxu0 0.0
  %8308 = vmatpush1.xpose.msra.mxu0 0.0
  %8309 = vmatprep.subr.mxu0 0.0
  %8310 = vmatpush1.xpose.msra.mxu0 0.0
  %8311 = vmatprep.subr.mxu0 0.0
  %8312 = vmatpush1.xpose.msra.mxu0 0.0
  %8313 = vmatprep.subr.mxu0 0.0
  %8314 = vmatpush1.xpose.msra.mxu0 0.0
  %8315 = vmatprep.subr.mxu0 0.0
  %8316 = vmatpush1.xpose.msra.mxu0 0.0
  %8317 = vmatprep.mubr.f32.mxu0 0.0
  %8318 = vmatmul.mubr.f32.gmra.mrb[0].mxu0 %v8227
  %v8319 = vpop.f32.mrb[0].mxu0
  %v8320 = vadd.f32 0.0, %v8319
  %v8321 = vpop.f32.mrb[0].mxu0
  %8322 = vdwg.mxu0
  %v8323 = vsel %vm1247, %v6079, 0
  %v8326 = vsel %vm1247, %v6307, 0
  %v8329 = vsel %vm1247, %v6308, 0
  %v8332 = vsel %vm1247, %v6309, 0
  %v8335 = vsel %vm1247, %v6310, 0
  %v8338 = vsel %vm1247, %v6311, 0
  %v8341 = vsel %vm1247, %v6312, 0
  %v8344 = vsel %vm1247, %v6313, 0
  %v8347 = vsel %vm1247, %v6314, 0
  %8349 = vmatprep.subr.mxu0 0.0
  %8350 = vmatpush1.xpose.msra.mxu0 %v8326
  %8351 = vmatprep.subr.mxu0 0.0
  %8352 = vmatpush1.xpose.msra.mxu0 %v8329
  %8353 = vmatprep.subr.mxu0 0.0
  %8354 = vmatpush1.xpose.msra.mxu0 %v8332
  %8355 = vmatprep.subr.mxu0 0.0
  %8356 = vmatpush1.xpose.msra.mxu0 %v8335
  %8357 = vmatprep.subr.mxu0 0.0
  %8358 = vmatpush1.xpose.msra.mxu0 %v8338
  %8359 = vmatprep.subr.mxu0 0.0
  %8360 = vmatpush1.xpose.msra.mxu0 %v8341
  %8361 = vmatprep.subr.mxu0 0.0
  %8362 = vmatpush1.xpose.msra.mxu0 %v8344
  %8363 = vmatprep.subr.mxu0 0.0
  %8364 = vmatpush1.xpose.msra.mxu0 %v8347
  %8365 = vmatprep.subr.mxu0 0.0
  %8366 = vmatpush1.xpose.msra.mxu0 0.0
  %8367 = vmatprep.subr.mxu0 0.0
  %8368 = vmatpush1.xpose.msra.mxu0 0.0
  %8369 = vmatprep.subr.mxu0 0.0
  %8370 = vmatpush1.xpose.msra.mxu0 0.0
  %8371 = vmatprep.subr.mxu0 0.0
  %8372 = vmatpush1.xpose.msra.mxu0 0.0
  %8373 = vmatprep.subr.mxu0 0.0
  %8374 = vmatpush1.xpose.msra.mxu0 0.0
  %8375 = vmatprep.subr.mxu0 0.0
  %8376 = vmatpush1.xpose.msra.mxu0 0.0
  %8377 = vmatprep.subr.mxu0 0.0
  %8378 = vmatpush1.xpose.msra.mxu0 0.0
  %8379 = vmatprep.subr.mxu0 0.0
  %8380 = vmatpush1.xpose.msra.mxu0 0.0
  %8381 = vmatprep.subr.mxu0 0.0
  %8382 = vmatpush1.xpose.msra.mxu0 0.0
  %8383 = vmatprep.subr.mxu0 0.0
  %8384 = vmatpush1.xpose.msra.mxu0 0.0
  %8385 = vmatprep.subr.mxu0 0.0
  %8386 = vmatpush1.xpose.msra.mxu0 0.0
  %8387 = vmatprep.subr.mxu0 0.0
  %8388 = vmatpush1.xpose.msra.mxu0 0.0
  %8389 = vmatprep.subr.mxu0 0.0
  %8390 = vmatpush1.xpose.msra.mxu0 0.0
  %8391 = vmatprep.subr.mxu0 0.0
  %8392 = vmatpush1.xpose.msra.mxu0 0.0
  %8393 = vmatprep.subr.mxu0 0.0
  %8394 = vmatpush1.xpose.msra.mxu0 0.0
  %8395 = vmatprep.subr.mxu0 0.0
  %8396 = vmatpush1.xpose.msra.mxu0 0.0
  %8397 = vmatprep.subr.mxu0 0.0
  %8398 = vmatpush1.xpose.msra.mxu0 0.0
  %8399 = vmatprep.subr.mxu0 0.0
  %8400 = vmatpush1.xpose.msra.mxu0 0.0
  %8401 = vmatprep.subr.mxu0 0.0
  %8402 = vmatpush1.xpose.msra.mxu0 0.0
  %8403 = vmatprep.subr.mxu0 0.0
  %8404 = vmatpush1.xpose.msra.mxu0 0.0
  %8405 = vmatprep.subr.mxu0 0.0
  %8406 = vmatpush1.xpose.msra.mxu0 0.0
  %8407 = vmatprep.subr.mxu0 0.0
  %8408 = vmatpush1.xpose.msra.mxu0 0.0
  %8409 = vmatprep.subr.mxu0 0.0
  %8410 = vmatpush1.xpose.msra.mxu0 0.0
  %8411 = vmatprep.subr.mxu0 0.0
  %8412 = vmatpush1.xpose.msra.mxu0 0.0
  %8413 = vmatprep.mubr.f32.mxu0 0.0
  %8414 = vmatmul.mubr.f32.gmra.mrb[0].mxu0 %v8323
  %v8415 = vpop.f32.mrb[0].mxu0
  %v8416 = vadd.f32 0.0, %v8415
  %v8417 = vpop.f32.mrb[0].mxu0
  %8418 = vdwg.mxu0
  %v8419 = vsel %vm1247, %v6093, 0
  %v8422 = vsel %vm1247, %v6315, 0
  %v8425 = vsel %vm1247, %v6316, 0
  %v8428 = vsel %vm1247, %v6317, 0
  %v8431 = vsel %vm1247, %v6318, 0
  %v8434 = vsel %vm1247, %v6319, 0
  %v8437 = vsel %vm1247, %v6320, 0
  %v8440 = vsel %vm1247, %v6321, 0
  %v8443 = vsel %vm1247, %v6322, 0
  %8445 = vmatprep.subr.mxu0 0.0
  %8446 = vmatpush1.xpose.msra.mxu0 %v8422
  %8447 = vmatprep.subr.mxu0 0.0
  %8448 = vmatpush1.xpose.msra.mxu0 %v8425
  %8449 = vmatprep.subr.mxu0 0.0
  %8450 = vmatpush1.xpose.msra.mxu0 %v8428
  %8451 = vmatprep.subr.mxu0 0.0
  %8452 = vmatpush1.xpose.msra.mxu0 %v8431
  %8453 = vmatprep.subr.mxu0 0.0
  %8454 = vmatpush1.xpose.msra.mxu0 %v8434
  %8455 = vmatprep.subr.mxu0 0.0
  %8456 = vmatpush1.xpose.msra.mxu0 %v8437
  %8457 = vmatprep.subr.mxu0 0.0
  %8458 = vmatpush1.xpose.msra.mxu0 %v8440
  %8459 = vmatprep.subr.mxu0 0.0
  %8460 = vmatpush1.xpose.msra.mxu0 %v8443
  %8461 = vmatprep.subr.mxu0 0.0
  %8462 = vmatpush1.xpose.msra.mxu0 0.0
  %8463 = vmatprep.subr.mxu0 0.0
  %8464 = vmatpush1.xpose.msra.mxu0 0.0
  %8465 = vmatprep.subr.mxu0 0.0
  %8466 = vmatpush1.xpose.msra.mxu0 0.0
  %8467 = vmatprep.subr.mxu0 0.0
  %8468 = vmatpush1.xpose.msra.mxu0 0.0
  %8469 = vmatprep.subr.mxu0 0.0
  %8470 = vmatpush1.xpose.msra.mxu0 0.0
  %8471 = vmatprep.subr.mxu0 0.0
  %8472 = vmatpush1.xpose.msra.mxu0 0.0
  %8473 = vmatprep.subr.mxu0 0.0
  %8474 = vmatpush1.xpose.msra.mxu0 0.0
  %8475 = vmatprep.subr.mxu0 0.0
  %8476 = vmatpush1.xpose.msra.mxu0 0.0
  %8477 = vmatprep.subr.mxu0 0.0
  %8478 = vmatpush1.xpose.msra.mxu0 0.0
  %8479 = vmatprep.subr.mxu0 0.0
  %8480 = vmatpush1.xpose.msra.mxu0 0.0
  %8481 = vmatprep.subr.mxu0 0.0
  %8482 = vmatpush1.xpose.msra.mxu0 0.0
  %8483 = vmatprep.subr.mxu0 0.0
  %8484 = vmatpush1.xpose.msra.mxu0 0.0
  %8485 = vmatprep.subr.mxu0 0.0
  %8486 = vmatpush1.xpose.msra.mxu0 0.0
  %8487 = vmatprep.subr.mxu0 0.0
  %8488 = vmatpush1.xpose.msra.mxu0 0.0
  %8489 = vmatprep.subr.mxu0 0.0
  %8490 = vmatpush1.xpose.msra.mxu0 0.0
  %8491 = vmatprep.subr.mxu0 0.0
  %8492 = vmatpush1.xpose.msra.mxu0 0.0
  %8493 = vmatprep.subr.mxu0 0.0
  %8494 = vmatpush1.xpose.msra.mxu0 0.0
  %8495 = vmatprep.subr.mxu0 0.0
  %8496 = vmatpush1.xpose.msra.mxu0 0.0
  %8497 = vmatprep.subr.mxu0 0.0
  %8498 = vmatpush1.xpose.msra.mxu0 0.0
  %8499 = vmatprep.subr.mxu0 0.0
  %8500 = vmatpush1.xpose.msra.mxu0 0.0
  %8501 = vmatprep.subr.mxu0 0.0
  %8502 = vmatpush1.xpose.msra.mxu0 0.0
  %8503 = vmatprep.subr.mxu0 0.0
  %8504 = vmatpush1.xpose.msra.mxu0 0.0
  %8505 = vmatprep.subr.mxu0 0.0
  %8506 = vmatpush1.xpose.msra.mxu0 0.0
  %8507 = vmatprep.subr.mxu0 0.0
  %8508 = vmatpush1.xpose.msra.mxu0 0.0
  %8509 = vmatprep.mubr.f32.mxu0 0.0
  %8510 = vmatmul.mubr.f32.gmra.mrb[0].mxu0 %v8419
  %v8511 = vpop.f32.mrb[0].mxu0
  %v8512 = vadd.f32 0.0, %v8511
  %v8513 = vpop.f32.mrb[0].mxu0
  %8514 = vdwg.mxu0
  %v8515 = vsel %vm1247, %v6095, 0
  %v8518 = vsel %vm1247, %v6323, 0
  %v8521 = vsel %vm1247, %v6324, 0
  %v8524 = vsel %vm1247, %v6325, 0
  %v8527 = vsel %vm1247, %v6326, 0
  %v8530 = vsel %vm1247, %v6327, 0
  %v8533 = vsel %vm1247, %v6328, 0
  %v8536 = vsel %vm1247, %v6329, 0
  %v8539 = vsel %vm1247, %v6330, 0
  %8541 = vmatprep.subr.mxu0 0.0
  %8542 = vmatpush1.xpose.msra.mxu0 %v8518
  %8543 = vmatprep.subr.mxu0 0.0
  %8544 = vmatpush1.xpose.msra.mxu0 %v8521
  %8545 = vmatprep.subr.mxu0 0.0
  %8546 = vmatpush1.xpose.msra.mxu0 %v8524
  %8547 = vmatprep.subr.mxu0 0.0
  %8548 = vmatpush1.xpose.msra.mxu0 %v8527
  %8549 = vmatprep.subr.mxu0 0.0
  %8550 = vmatpush1.xpose.msra.mxu0 %v8530
  %8551 = vmatprep.subr.mxu0 0.0
  %8552 = vmatpush1.xpose.msra.mxu0 %v8533
  %8553 = vmatprep.subr.mxu0 0.0
  %8554 = vmatpush1.xpose.msra.mxu0 %v8536
  %8555 = vmatprep.subr.mxu0 0.0
  %8556 = vmatpush1.xpose.msra.mxu0 %v8539
  %8557 = vmatprep.subr.mxu0 0.0
  %8558 = vmatpush1.xpose.msra.mxu0 0.0
  %8559 = vmatprep.subr.mxu0 0.0
  %8560 = vmatpush1.xpose.msra.mxu0 0.0
  %8561 = vmatprep.subr.mxu0 0.0
  %8562 = vmatpush1.xpose.msra.mxu0 0.0
  %8563 = vmatprep.subr.mxu0 0.0
  %8564 = vmatpush1.xpose.msra.mxu0 0.0
  %8565 = vmatprep.subr.mxu0 0.0
  %8566 = vmatpush1.xpose.msra.mxu0 0.0
  %8567 = vmatprep.subr.mxu0 0.0
  %8568 = vmatpush1.xpose.msra.mxu0 0.0
  %8569 = vmatprep.subr.mxu0 0.0
  %8570 = vmatpush1.xpose.msra.mxu0 0.0
  %8571 = vmatprep.subr.mxu0 0.0
  %8572 = vmatpush1.xpose.msra.mxu0 0.0
  %8573 = vmatprep.subr.mxu0 0.0
  %8574 = vmatpush1.xpose.msra.mxu0 0.0
  %8575 = vmatprep.subr.mxu0 0.0
  %8576 = vmatpush1.xpose.msra.mxu0 0.0
  %8577 = vmatprep.subr.mxu0 0.0
  %8578 = vmatpush1.xpose.msra.mxu0 0.0
  %8579 = vmatprep.subr.mxu0 0.0
  %8580 = vmatpush1.xpose.msra.mxu0 0.0
  %8581 = vmatprep.subr.mxu0 0.0
  %8582 = vmatpush1.xpose.msra.mxu0 0.0
  %8583 = vmatprep.subr.mxu0 0.0
  %8584 = vmatpush1.xpose.msra.mxu0 0.0
  %8585 = vmatprep.subr.mxu0 0.0
  %8586 = vmatpush1.xpose.msra.mxu0 0.0
  %8587 = vmatprep.subr.mxu0 0.0
  %8588 = vmatpush1.xpose.msra.mxu0 0.0
  %8589 = vmatprep.subr.mxu0 0.0
  %8590 = vmatpush1.xpose.msra.mxu0 0.0
  %8591 = vmatprep.subr.mxu0 0.0
  %8592 = vmatpush1.xpose.msra.mxu0 0.0
  %8593 = vmatprep.subr.mxu0 0.0
  %8594 = vmatpush1.xpose.msra.mxu0 0.0
  %8595 = vmatprep.subr.mxu0 0.0
  %8596 = vmatpush1.xpose.msra.mxu0 0.0
  %8597 = vmatprep.subr.mxu0 0.0
  %8598 = vmatpush1.xpose.msra.mxu0 0.0
  %8599 = vmatprep.subr.mxu0 0.0
  %8600 = vmatpush1.xpose.msra.mxu0 0.0
  %8601 = vmatprep.subr.mxu0 0.0
  %8602 = vmatpush1.xpose.msra.mxu0 0.0
  %8603 = vmatprep.subr.mxu0 0.0
  %8604 = vmatpush1.xpose.msra.mxu0 0.0
  %8605 = vmatprep.mubr.f32.mxu0 0.0
  %8606 = vmatmul.mubr.f32.gmra.mrb[0].mxu0 %v8515
  %v8607 = vpop.f32.mrb[0].mxu0
  %v8608 = vadd.f32 0.0, %v8607
  %v8609 = vpop.f32.mrb[0].mxu0
  %8610 = vdwg.mxu0
  %v8611 = vsel %vm1247, %v6097, 0
  %v8614 = vsel %vm1247, %v6331, 0
  %v8617 = vsel %vm1247, %v6332, 0
  %v8620 = vsel %vm1247, %v6333, 0
  %v8623 = vsel %vm1247, %v6334, 0
  %v8626 = vsel %vm1247, %v6335, 0
  %v8629 = vsel %vm1247, %v6336, 0
  %v8632 = vsel %vm1247, %v6337, 0
  %v8635 = vsel %vm1247, %v6338, 0
  %8637 = vmatprep.subr.mxu0 0.0
  %8638 = vmatpush1.xpose.msra.mxu0 %v8614
  %8639 = vmatprep.subr.mxu0 0.0
  %8640 = vmatpush1.xpose.msra.mxu0 %v8617
  %8641 = vmatprep.subr.mxu0 0.0
  %8642 = vmatpush1.xpose.msra.mxu0 %v8620
  %8643 = vmatprep.subr.mxu0 0.0
  %8644 = vmatpush1.xpose.msra.mxu0 %v8623
  %8645 = vmatprep.subr.mxu0 0.0
  %8646 = vmatpush1.xpose.msra.mxu0 %v8626
  %8647 = vmatprep.subr.mxu0 0.0
  %8648 = vmatpush1.xpose.msra.mxu0 %v8629
  %8649 = vmatprep.subr.mxu0 0.0
  %8650 = vmatpush1.xpose.msra.mxu0 %v8632
  %8651 = vmatprep.subr.mxu0 0.0
  %8652 = vmatpush1.xpose.msra.mxu0 %v8635
  %8653 = vmatprep.subr.mxu0 0.0
  %8654 = vmatpush1.xpose.msra.mxu0 0.0
  %8655 = vmatprep.subr.mxu0 0.0
  %8656 = vmatpush1.xpose.msra.mxu0 0.0
  %8657 = vmatprep.subr.mxu0 0.0
  %8658 = vmatpush1.xpose.msra.mxu0 0.0
  %8659 = vmatprep.subr.mxu0 0.0
  %8660 = vmatpush1.xpose.msra.mxu0 0.0
  %8661 = vmatprep.subr.mxu0 0.0
  %8662 = vmatpush1.xpose.msra.mxu0 0.0
  %8663 = vmatprep.subr.mxu0 0.0
  %8664 = vmatpush1.xpose.msra.mxu0 0.0
  %8665 = vmatprep.subr.mxu0 0.0
  %8666 = vmatpush1.xpose.msra.mxu0 0.0
  %8667 = vmatprep.subr.mxu0 0.0
  %8668 = vmatpush1.xpose.msra.mxu0 0.0
  %8669 = vmatprep.subr.mxu0 0.0
  %8670 = vmatpush1.xpose.msra.mxu0 0.0
  %8671 = vmatprep.subr.mxu0 0.0
  %8672 = vmatpush1.xpose.msra.mxu0 0.0
  %8673 = vmatprep.subr.mxu0 0.0
  %8674 = vmatpush1.xpose.msra.mxu0 0.0
  %8675 = vmatprep.subr.mxu0 0.0
  %8676 = vmatpush1.xpose.msra.mxu0 0.0
  %8677 = vmatprep.subr.mxu0 0.0
  %8678 = vmatpush1.xpose.msra.mxu0 0.0
  %8679 = vmatprep.subr.mxu0 0.0
  %8680 = vmatpush1.xpose.msra.mxu0 0.0
  %8681 = vmatprep.subr.mxu0 0.0
  %8682 = vmatpush1.xpose.msra.mxu0 0.0
  %8683 = vmatprep.subr.mxu0 0.0
  %8684 = vmatpush1.xpose.msra.mxu0 0.0
  %8685 = vmatprep.subr.mxu0 0.0
  %8686 = vmatpush1.xpose.msra.mxu0 0.0
  %8687 = vmatprep.subr.mxu0 0.0
  %8688 = vmatpush1.xpose.msra.mxu0 0.0
  %8689 = vmatprep.subr.mxu0 0.0
  %8690 = vmatpush1.xpose.msra.mxu0 0.0
  %8691 = vmatprep.subr.mxu0 0.0
  %8692 = vmatpush1.xpose.msra.mxu0 0.0
  %8693 = vmatprep.subr.mxu0 0.0
  %8694 = vmatpush1.xpose.msra.mxu0 0.0
  %8695 = vmatprep.subr.mxu0 0.0
  %8696 = vmatpush1.xpose.msra.mxu0 0.0
  %8697 = vmatprep.subr.mxu0 0.0
  %8698 = vmatpush1.xpose.msra.mxu0 0.0
  %8699 = vmatprep.subr.mxu0 0.0
  %8700 = vmatpush1.xpose.msra.mxu0 0.0
  %8701 = vmatprep.mubr.f32.mxu0 0.0
  %8702 = vmatmul.mubr.f32.gmra.mrb[0].mxu0 %v8611
  %v8703 = vpop.f32.mrb[0].mxu0
  %v8704 = vadd.f32 0.0, %v8703
  %v8705 = vpop.f32.mrb[0].mxu0
  %8706 = vdwg.mxu0
  %v8707 = vsel %vm1247, %v6121, 0
  %v8710 = vsel %vm1247, %v6339, 0
  %v8713 = vsel %vm1247, %v6340, 0
  %v8716 = vsel %vm1247, %v6341, 0
  %v8719 = vsel %vm1247, %v6342, 0
  %v8722 = vsel %vm1247, %v6343, 0
  %v8725 = vsel %vm1247, %v6344, 0
  %v8728 = vsel %vm1247, %v6345, 0
  %v8731 = vsel %vm1247, %v6346, 0
  %8733 = vmatprep.subr.mxu0 0.0
  %8734 = vmatpush1.xpose.msra.mxu0 %v8710
  %8735 = vmatprep.subr.mxu0 0.0
  %8736 = vmatpush1.xpose.msra.mxu0 %v8713
  %8737 = vmatprep.subr.mxu0 0.0
  %8738 = vmatpush1.xpose.msra.mxu0 %v8716
  %8739 = vmatprep.subr.mxu0 0.0
  %8740 = vmatpush1.xpose.msra.mxu0 %v8719
  %8741 = vmatprep.subr.mxu0 0.0
  %8742 = vmatpush1.xpose.msra.mxu0 %v8722
  %8743 = vmatprep.subr.mxu0 0.0
  %8744 = vmatpush1.xpose.msra.mxu0 %v8725
  %8745 = vmatprep.subr.mxu0 0.0
  %8746 = vmatpush1.xpose.msra.mxu0 %v8728
  %8747 = vmatprep.subr.mxu0 0.0
  %8748 = vmatpush1.xpose.msra.mxu0 %v8731
  %8749 = vmatprep.subr.mxu0 0.0
  %8750 = vmatpush1.xpose.msra.mxu0 0.0
  %8751 = vmatprep.subr.mxu0 0.0
  %8752 = vmatpush1.xpose.msra.mxu0 0.0
  %8753 = vmatprep.subr.mxu0 0.0
  %8754 = vmatpush1.xpose.msra.mxu0 0.0
  %8755 = vmatprep.subr.mxu0 0.0
  %8756 = vmatpush1.xpose.msra.mxu0 0.0
  %8757 = vmatprep.subr.mxu0 0.0
  %8758 = vmatpush1.xpose.msra.mxu0 0.0
  %8759 = vmatprep.subr.mxu0 0.0
  %8760 = vmatpush1.xpose.msra.mxu0 0.0
  %8761 = vmatprep.subr.mxu0 0.0
  %8762 = vmatpush1.xpose.msra.mxu0 0.0
  %8763 = vmatprep.subr.mxu0 0.0
  %8764 = vmatpush1.xpose.msra.mxu0 0.0
  %8765 = vmatprep.subr.mxu0 0.0
  %8766 = vmatpush1.xpose.msra.mxu0 0.0
  %8767 = vmatprep.subr.mxu0 0.0
  %8768 = vmatpush1.xpose.msra.mxu0 0.0
  %8769 = vmatprep.subr.mxu0 0.0
  %8770 = vmatpush1.xpose.msra.mxu0 0.0
  %8771 = vmatprep.subr.mxu0 0.0
  %8772 = vmatpush1.xpose.msra.mxu0 0.0
  %8773 = vmatprep.subr.mxu0 0.0
  %8774 = vmatpush1.xpose.msra.mxu0 0.0
  %8775 = vmatprep.subr.mxu0 0.0
  %8776 = vmatpush1.xpose.msra.mxu0 0.0
  %8777 = vmatprep.subr.mxu0 0.0
  %8778 = vmatpush1.xpose.msra.mxu0 0.0
  %8779 = vmatprep.subr.mxu0 0.0
  %8780 = vmatpush1.xpose.msra.mxu0 0.0
  %8781 = vmatprep.subr.mxu0 0.0
  %8782 = vmatpush1.xpose.msra.mxu0 0.0
  %8783 = vmatprep.subr.mxu0 0.0
  %8784 = vmatpush1.xpose.msra.mxu0 0.0
  %8785 = vmatprep.subr.mxu0 0.0
  %8786 = vmatpush1.xpose.msra.mxu0 0.0
  %8787 = vmatprep.subr.mxu0 0.0
  %8788 = vmatpush1.xpose.msra.mxu0 0.0
  %8789 = vmatprep.subr.mxu0 0.0
  %8790 = vmatpush1.xpose.msra.mxu0 0.0
  %8791 = vmatprep.subr.mxu0 0.0
  %8792 = vmatpush1.xpose.msra.mxu0 0.0
  %8793 = vmatprep.subr.mxu0 0.0
  %8794 = vmatpush1.xpose.msra.mxu0 0.0
  %8795 = vmatprep.subr.mxu0 0.0
  %8796 = vmatpush1.xpose.msra.mxu0 0.0
  %8797 = vmatprep.mubr.f32.mxu0 0.0
  %8798 = vmatmul.mubr.f32.gmra.mrb[0].mxu0 %v8707
  %v8799 = vpop.f32.mrb[0].mxu0
  %v8800 = vadd.f32 0.0, %v8799
  %v8801 = vpop.f32.mrb[0].mxu0
  %8802 = vdwg.mxu0
  %v8803 = vsel %vm1247, %v6135, 0
  %v8806 = vsel %vm1247, %v6347, 0
  %v8809 = vsel %vm1247, %v6348, 0
  %v8812 = vsel %vm1247, %v6349, 0
  %v8815 = vsel %vm1247, %v6350, 0
  %v8818 = vsel %vm1247, %v6351, 0
  %v8821 = vsel %vm1247, %v6352, 0
  %v8824 = vsel %vm1247, %v6353, 0
  %v8827 = vsel %vm1247, %v6354, 0
  %8829 = vmatprep.subr.mxu0 0.0
  %8830 = vmatpush1.xpose.msra.mxu0 %v8806
  %8831 = vmatprep.subr.mxu0 0.0
  %8832 = vmatpush1.xpose.msra.mxu0 %v8809
  %8833 = vmatprep.subr.mxu0 0.0
  %8834 = vmatpush1.xpose.msra.mxu0 %v8812
  %8835 = vmatprep.subr.mxu0 0.0
  %8836 = vmatpush1.xpose.msra.mxu0 %v8815
  %8837 = vmatprep.subr.mxu0 0.0
  %8838 = vmatpush1.xpose.msra.mxu0 %v8818
  %8839 = vmatprep.subr.mxu0 0.0
  %8840 = vmatpush1.xpose.msra.mxu0 %v8821
  %8841 = vmatprep.subr.mxu0 0.0
  %8842 = vmatpush1.xpose.msra.mxu0 %v8824
  %8843 = vmatprep.subr.mxu0 0.0
  %8844 = vmatpush1.xpose.msra.mxu0 %v8827
  %8845 = vmatprep.subr.mxu0 0.0
  %8846 = vmatpush1.xpose.msra.mxu0 0.0
  %8847 = vmatprep.subr.mxu0 0.0
  %8848 = vmatpush1.xpose.msra.mxu0 0.0
  %8849 = vmatprep.subr.mxu0 0.0
  %8850 = vmatpush1.xpose.msra.mxu0 0.0
  %8851 = vmatprep.subr.mxu0 0.0
  %8852 = vmatpush1.xpose.msra.mxu0 0.0
  %8853 = vmatprep.subr.mxu0 0.0
  %8854 = vmatpush1.xpose.msra.mxu0 0.0
  %8855 = vmatprep.subr.mxu0 0.0
  %8856 = vmatpush1.xpose.msra.mxu0 0.0
  %8857 = vmatprep.subr.mxu0 0.0
  %8858 = vmatpush1.xpose.msra.mxu0 0.0
  %8859 = vmatprep.subr.mxu0 0.0
  %8860 = vmatpush1.xpose.msra.mxu0 0.0
  %8861 = vmatprep.subr.mxu0 0.0
  %8862 = vmatpush1.xpose.msra.mxu0 0.0
  %8863 = vmatprep.subr.mxu0 0.0
  %8864 = vmatpush1.xpose.msra.mxu0 0.0
  %8865 = vmatprep.subr.mxu0 0.0
  %8866 = vmatpush1.xpose.msra.mxu0 0.0
  %8867 = vmatprep.subr.mxu0 0.0
  %8868 = vmatpush1.xpose.msra.mxu0 0.0
  %8869 = vmatprep.subr.mxu0 0.0
  %8870 = vmatpush1.xpose.msra.mxu0 0.0
  %8871 = vmatprep.subr.mxu0 0.0
  %8872 = vmatpush1.xpose.msra.mxu0 0.0
  %8873 = vmatprep.subr.mxu0 0.0
  %8874 = vmatpush1.xpose.msra.mxu0 0.0
  %8875 = vmatprep.subr.mxu0 0.0
  %8876 = vmatpush1.xpose.msra.mxu0 0.0
  %8877 = vmatprep.subr.mxu0 0.0
  %8878 = vmatpush1.xpose.msra.mxu0 0.0
  %8879 = vmatprep.subr.mxu0 0.0
  %8880 = vmatpush1.xpose.msra.mxu0 0.0
  %8881 = vmatprep.subr.mxu0 0.0
  %8882 = vmatpush1.xpose.msra.mxu0 0.0
  %8883 = vmatprep.subr.mxu0 0.0
  %8884 = vmatpush1.xpose.msra.mxu0 0.0
  %8885 = vmatprep.subr.mxu0 0.0
  %8886 = vmatpush1.xpose.msra.mxu0 0.0
  %8887 = vmatprep.subr.mxu0 0.0
  %8888 = vmatpush1.xpose.msra.mxu0 0.0
  %8889 = vmatprep.subr.mxu0 0.0
  %8890 = vmatpush1.xpose.msra.mxu0 0.0
  %8891 = vmatprep.subr.mxu0 0.0
  %8892 = vmatpush1.xpose.msra.mxu0 0.0
  %8893 = vmatprep.mubr.f32.mxu0 0.0
  %8894 = vmatmul.mubr.f32.gmra.mrb[0].mxu0 %v8803
  %v8895 = vpop.f32.mrb[0].mxu0
  %v8896 = vadd.f32 0.0, %v8895
  %v8897 = vpop.f32.mrb[0].mxu0
  %8898 = vdwg.mxu0
  %v8899 = vsel %vm1247, %v6143, 0
  %v8902 = vsel %vm1247, %v6355, 0
  %v8905 = vsel %vm1247, %v6356, 0
  %v8908 = vsel %vm1247, %v6357, 0
  %v8911 = vsel %vm1247, %v6358, 0
  %v8914 = vsel %vm1247, %v6359, 0
  %v8917 = vsel %vm1247, %v6360, 0
  %v8920 = vsel %vm1247, %v6361, 0
  %v8923 = vsel %vm1247, %v6362, 0
  %8925 = vmatprep.subr.mxu0 0.0
  %8926 = vmatpush1.xpose.msra.mxu0 %v8902
  %8927 = vmatprep.subr.mxu0 0.0
  %8928 = vmatpush1.xpose.msra.mxu0 %v8905
  %8929 = vmatprep.subr.mxu0 0.0
  %8930 = vmatpush1.xpose.msra.mxu0 %v8908
  %8931 = vmatprep.subr.mxu0 0.0
  %8932 = vmatpush1.xpose.msra.mxu0 %v8911
  %8933 = vmatprep.subr.mxu0 0.0
  %8934 = vmatpush1.xpose.msra.mxu0 %v8914
  %8935 = vmatprep.subr.mxu0 0.0
  %8936 = vmatpush1.xpose.msra.mxu0 %v8917
  %8937 = vmatprep.subr.mxu0 0.0
  %8938 = vmatpush1.xpose.msra.mxu0 %v8920
  %8939 = vmatprep.subr.mxu0 0.0
  %8940 = vmatpush1.xpose.msra.mxu0 %v8923
  %8941 = vmatprep.subr.mxu0 0.0
  %8942 = vmatpush1.xpose.msra.mxu0 0.0
  %8943 = vmatprep.subr.mxu0 0.0
  %8944 = vmatpush1.xpose.msra.mxu0 0.0
  %8945 = vmatprep.subr.mxu0 0.0
  %8946 = vmatpush1.xpose.msra.mxu0 0.0
  %8947 = vmatprep.subr.mxu0 0.0
  %8948 = vmatpush1.xpose.msra.mxu0 0.0
  %8949 = vmatprep.subr.mxu0 0.0
  %8950 = vmatpush1.xpose.msra.mxu0 0.0
  %8951 = vmatprep.subr.mxu0 0.0
  %8952 = vmatpush1.xpose.msra.mxu0 0.0
  %8953 = vmatprep.subr.mxu0 0.0
  %8954 = vmatpush1.xpose.msra.mxu0 0.0
  %8955 = vmatprep.subr.mxu0 0.0
  %8956 = vmatpush1.xpose.msra.mxu0 0.0
  %8957 = vmatprep.subr.mxu0 0.0
  %8958 = vmatpush1.xpose.msra.mxu0 0.0
  %8959 = vmatprep.subr.mxu0 0.0
  %8960 = vmatpush1.xpose.msra.mxu0 0.0
  %8961 = vmatprep.subr.mxu0 0.0
  %8962 = vmatpush1.xpose.msra.mxu0 0.0
  %8963 = vmatprep.subr.mxu0 0.0
  %8964 = vmatpush1.xpose.msra.mxu0 0.0
  %8965 = vmatprep.subr.mxu0 0.0
  %8966 = vmatpush1.xpose.msra.mxu0 0.0
  %8967 = vmatprep.subr.mxu0 0.0
  %8968 = vmatpush1.xpose.msra.mxu0 0.0
  %8969 = vmatprep.subr.mxu0 0.0
  %8970 = vmatpush1.xpose.msra.mxu0 0.0
  %8971 = vmatprep.subr.mxu0 0.0
  %8972 = vmatpush1.xpose.msra.mxu0 0.0
  %8973 = vmatprep.subr.mxu0 0.0
  %8974 = vmatpush1.xpose.msra.mxu0 0.0
  %8975 = vmatprep.subr.mxu0 0.0
  %8976 = vmatpush1.xpose.msra.mxu0 0.0
  %8977 = vmatprep.subr.mxu0 0.0
  %8978 = vmatpush1.xpose.msra.mxu0 0.0
  %8979 = vmatprep.subr.mxu0 0.0
  %8980 = vmatpush1.xpose.msra.mxu0 0.0
  %8981 = vmatprep.subr.mxu0 0.0
  %8982 = vmatpush1.xpose.msra.mxu0 0.0
  %8983 = vmatprep.subr.mxu0 0.0
  %8984 = vmatpush1.xpose.msra.mxu0 0.0
  %8985 = vmatprep.subr.mxu0 0.0
  %8986 = vmatpush1.xpose.msra.mxu0 0.0
  %8987 = vmatprep.subr.mxu0 0.0
  %8988 = vmatpush1.xpose.msra.mxu0 0.0
  %8989 = vmatprep.mubr.f32.mxu0 0.0
  %8990 = vmatmul.mubr.f32.gmra.mrb[0].mxu0 %v8899
  %v8991 = vpop.f32.mrb[0].mxu0
  %v8992 = vadd.f32 0.0, %v8991
  %v8993 = vpop.f32.mrb[0].mxu0
  %8994 = vdwg.mxu0
  %v8995 = vsel %vm1247, %v6145, 0
  %v8998 = vsel %vm1247, %v6363, 0
  %v9001 = vsel %vm1247, %v6364, 0
  %v9004 = vsel %vm1247, %v6365, 0
  %v9007 = vsel %vm1247, %v6366, 0
  %v9010 = vsel %vm1247, %v6367, 0
  %v9013 = vsel %vm1247, %v6368, 0
  %v9016 = vsel %vm1247, %v6369, 0
  %v9019 = vsel %vm1247, %v6370, 0
  %9021 = vmatprep.subr.mxu0 0.0
  %9022 = vmatpush1.xpose.msra.mxu0 %v8998
  %9023 = vmatprep.subr.mxu0 0.0
  %9024 = vmatpush1.xpose.msra.mxu0 %v9001
  %9025 = vmatprep.subr.mxu0 0.0
  %9026 = vmatpush1.xpose.msra.mxu0 %v9004
  %9027 = vmatprep.subr.mxu0 0.0
  %9028 = vmatpush1.xpose.msra.mxu0 %v9007
  %9029 = vmatprep.subr.mxu0 0.0
  %9030 = vmatpush1.xpose.msra.mxu0 %v9010
  %9031 = vmatprep.subr.mxu0 0.0
  %9032 = vmatpush1.xpose.msra.mxu0 %v9013
  %9033 = vmatprep.subr.mxu0 0.0
  %9034 = vmatpush1.xpose.msra.mxu0 %v9016
  %9035 = vmatprep.subr.mxu0 0.0
  %9036 = vmatpush1.xpose.msra.mxu0 %v9019
  %9037 = vmatprep.subr.mxu0 0.0
  %9038 = vmatpush1.xpose.msra.mxu0 0.0
  %9039 = vmatprep.subr.mxu0 0.0
  %9040 = vmatpush1.xpose.msra.mxu0 0.0
  %9041 = vmatprep.subr.mxu0 0.0
  %9042 = vmatpush1.xpose.msra.mxu0 0.0
  %9043 = vmatprep.subr.mxu0 0.0
  %9044 = vmatpush1.xpose.msra.mxu0 0.0
  %9045 = vmatprep.subr.mxu0 0.0
  %9046 = vmatpush1.xpose.msra.mxu0 0.0
  %9047 = vmatprep.subr.mxu0 0.0
  %9048 = vmatpush1.xpose.msra.mxu0 0.0
  %9049 = vmatprep.subr.mxu0 0.0
  %9050 = vmatpush1.xpose.msra.mxu0 0.0
  %9051 = vmatprep.subr.mxu0 0.0
  %9052 = vmatpush1.xpose.msra.mxu0 0.0
  %9053 = vmatprep.subr.mxu0 0.0
  %9054 = vmatpush1.xpose.msra.mxu0 0.0
  %9055 = vmatprep.subr.mxu0 0.0
  %9056 = vmatpush1.xpose.msra.mxu0 0.0
  %9057 = vmatprep.subr.mxu0 0.0
  %9058 = vmatpush1.xpose.msra.mxu0 0.0
  %9059 = vmatprep.subr.mxu0 0.0
  %9060 = vmatpush1.xpose.msra.mxu0 0.0
  %9061 = vmatprep.subr.mxu0 0.0
  %9062 = vmatpush1.xpose.msra.mxu0 0.0
  %9063 = vmatprep.subr.mxu0 0.0
  %9064 = vmatpush1.xpose.msra.mxu0 0.0
  %9065 = vmatprep.subr.mxu0 0.0
  %9066 = vmatpush1.xpose.msra.mxu0 0.0
  %9067 = vmatprep.subr.mxu0 0.0
  %9068 = vmatpush1.xpose.msra.mxu0 0.0
  %9069 = vmatprep.subr.mxu0 0.0
  %9070 = vmatpush1.xpose.msra.mxu0 0.0
  %9071 = vmatprep.subr.mxu0 0.0
  %9072 = vmatpush1.xpose.msra.mxu0 0.0
  %9073 = vmatprep.subr.mxu0 0.0
  %9074 = vmatpush1.xpose.msra.mxu0 0.0
  %9075 = vmatprep.subr.mxu0 0.0
  %9076 = vmatpush1.xpose.msra.mxu0 0.0
  %9077 = vmatprep.subr.mxu0 0.0
  %9078 = vmatpush1.xpose.msra.mxu0 0.0
  %9079 = vmatprep.subr.mxu0 0.0
  %9080 = vmatpush1.xpose.msra.mxu0 0.0
  %9081 = vmatprep.subr.mxu0 0.0
  %9082 = vmatpush1.xpose.msra.mxu0 0.0
  %9083 = vmatprep.subr.mxu0 0.0
  %9084 = vmatpush1.xpose.msra.mxu0 0.0
  %9085 = vmatprep.mubr.f32.mxu0 0.0
  %9086 = vmatmul.mubr.f32.gmra.mrb[0].mxu0 %v8995
  %v9087 = vpop.f32.mrb[0].mxu0
  %v9088 = vadd.f32 0.0, %v9087
  %v9089 = vpop.f32.mrb[0].mxu0
  %9090 = vdwg.mxu0
  %v9091 = vsel %vm1247, %v6128, 0
  %v9094 = vsel %vm1247, %v6371, 0
  %v9097 = vsel %vm1247, %v6372, 0
  %v9100 = vsel %vm1247, %v6373, 0
  %v9103 = vsel %vm1247, %v6374, 0
  %v9106 = vsel %vm1247, %v6375, 0
  %v9109 = vsel %vm1247, %v6376, 0
  %v9112 = vsel %vm1247, %v6377, 0
  %v9115 = vsel %vm1247, %v6378, 0
  %9117 = vmatprep.subr.mxu0 0.0
  %9118 = vmatpush1.xpose.msra.mxu0 %v9094
  %9119 = vmatprep.subr.mxu0 0.0
  %9120 = vmatpush1.xpose.msra.mxu0 %v9097
  %9121 = vmatprep.subr.mxu0 0.0
  %9122 = vmatpush1.xpose.msra.mxu0 %v9100
  %9123 = vmatprep.subr.mxu0 0.0
  %9124 = vmatpush1.xpose.msra.mxu0 %v9103
  %9125 = vmatprep.subr.mxu0 0.0
  %9126 = vmatpush1.xpose.msra.mxu0 %v9106
  %9127 = vmatprep.subr.mxu0 0.0
  %9128 = vmatpush1.xpose.msra.mxu0 %v9109
  %9129 = vmatprep.subr.mxu0 0.0
  %9130 = vmatpush1.xpose.msra.mxu0 %v9112
  %9131 = vmatprep.subr.mxu0 0.0
  %9132 = vmatpush1.xpose.msra.mxu0 %v9115
  %9133 = vmatprep.subr.mxu0 0.0
  %9134 = vmatpush1.xpose.msra.mxu0 0.0
  %9135 = vmatprep.subr.mxu0 0.0
  %9136 = vmatpush1.xpose.msra.mxu0 0.0
  %9137 = vmatprep.subr.mxu0 0.0
  %9138 = vmatpush1.xpose.msra.mxu0 0.0
  %9139 = vmatprep.subr.mxu0 0.0
  %9140 = vmatpush1.xpose.msra.mxu0 0.0
  %9141 = vmatprep.subr.mxu0 0.0
  %9142 = vmatpush1.xpose.msra.mxu0 0.0
  %9143 = vmatprep.subr.mxu0 0.0
  %9144 = vmatpush1.xpose.msra.mxu0 0.0
  %9145 = vmatprep.subr.mxu0 0.0
  %9146 = vmatpush1.xpose.msra.mxu0 0.0
  %9147 = vmatprep.subr.mxu0 0.0
  %9148 = vmatpush1.xpose.msra.mxu0 0.0
  %9149 = vmatprep.subr.mxu0 0.0
  %9150 = vmatpush1.xpose.msra.mxu0 0.0
  %9151 = vmatprep.subr.mxu0 0.0
  %9152 = vmatpush1.xpose.msra.mxu0 0.0
  %9153 = vmatprep.subr.mxu0 0.0
  %9154 = vmatpush1.xpose.msra.mxu0 0.0
  %9155 = vmatprep.subr.mxu0 0.0
  %9156 = vmatpush1.xpose.msra.mxu0 0.0
  %9157 = vmatprep.subr.mxu0 0.0
  %9158 = vmatpush1.xpose.msra.mxu0 0.0
  %9159 = vmatprep.subr.mxu0 0.0
  %9160 = vmatpush1.xpose.msra.mxu0 0.0
  %9161 = vmatprep.subr.mxu0 0.0
  %9162 = vmatpush1.xpose.msra.mxu0 0.0
  %9163 = vmatprep.subr.mxu0 0.0
  %9164 = vmatpush1.xpose.msra.mxu0 0.0
  %9165 = vmatprep.subr.mxu0 0.0
  %9166 = vmatpush1.xpose.msra.mxu0 0.0
  %9167 = vmatprep.subr.mxu0 0.0
  %9168 = vmatpush1.xpose.msra.mxu0 0.0
  %9169 = vmatprep.subr.mxu0 0.0
  %9170 = vmatpush1.xpose.msra.mxu0 0.0
  %9171 = vmatprep.subr.mxu0 0.0
  %9172 = vmatpush1.xpose.msra.mxu0 0.0
  %9173 = vmatprep.subr.mxu0 0.0
  %9174 = vmatpush1.xpose.msra.mxu0 0.0
  %9175 = vmatprep.subr.mxu0 0.0
  %9176 = vmatpush1.xpose.msra.mxu0 0.0
  %9177 = vmatprep.subr.mxu0 0.0
  %9178 = vmatpush1.xpose.msra.mxu0 0.0
  %9179 = vmatprep.subr.mxu0 0.0
  %9180 = vmatpush1.xpose.msra.mxu0 0.0
  %9181 = vmatprep.mubr.f32.mxu0 0.0
  %9182 = vmatmul.mubr.f32.gmra.mrb[0].mxu0 %v9091
  %v9183 = vpop.f32.mrb[0].mxu0
  %v9184 = vadd.f32 0.0, %v9183
  %v9185 = vpop.f32.mrb[0].mxu0
  %9186 = vdwg.mxu0
  %v9187 = vsel %vm1247, %v6142, 0
  %v9190 = vsel %vm1247, %v6379, 0
  %v9193 = vsel %vm1247, %v6380, 0
  %v9196 = vsel %vm1247, %v6381, 0
  %v9199 = vsel %vm1247, %v6382, 0
  %v9202 = vsel %vm1247, %v6383, 0
  %v9205 = vsel %vm1247, %v6384, 0
  %v9208 = vsel %vm1247, %v6385, 0
  %v9211 = vsel %vm1247, %v6386, 0
  %9213 = vmatprep.subr.mxu0 0.0
  %9214 = vmatpush1.xpose.msra.mxu0 %v9190
  %9215 = vmatprep.subr.mxu0 0.0
  %9216 = vmatpush1.xpose.msra.mxu0 %v9193
  %9217 = vmatprep.subr.mxu0 0.0
  %9218 = vmatpush1.xpose.msra.mxu0 %v9196
  %9219 = vmatprep.subr.mxu0 0.0
  %9220 = vmatpush1.xpose.msra.mxu0 %v9199
  %9221 = vmatprep.subr.mxu0 0.0
  %9222 = vmatpush1.xpose.msra.mxu0 %v9202
  %9223 = vmatprep.subr.mxu0 0.0
  %9224 = vmatpush1.xpose.msra.mxu0 %v9205
  %9225 = vmatprep.subr.mxu0 0.0
  %9226 = vmatpush1.xpose.msra.mxu0 %v9208
  %9227 = vmatprep.subr.mxu0 0.0
  %9228 = vmatpush1.xpose.msra.mxu0 %v9211
  %9229 = vmatprep.subr.mxu0 0.0
  %9230 = vmatpush1.xpose.msra.mxu0 0.0
  %9231 = vmatprep.subr.mxu0 0.0
  %9232 = vmatpush1.xpose.msra.mxu0 0.0
  %9233 = vmatprep.subr.mxu0 0.0
  %9234 = vmatpush1.xpose.msra.mxu0 0.0
  %9235 = vmatprep.subr.mxu0 0.0
  %9236 = vmatpush1.xpose.msra.mxu0 0.0
  %9237 = vmatprep.subr.mxu0 0.0
  %9238 = vmatpush1.xpose.msra.mxu0 0.0
  %9239 = vmatprep.subr.mxu0 0.0
  %9240 = vmatpush1.xpose.msra.mxu0 0.0
  %9241 = vmatprep.subr.mxu0 0.0
  %9242 = vmatpush1.xpose.msra.mxu0 0.0
  %9243 = vmatprep.subr.mxu0 0.0
  %9244 = vmatpush1.xpose.msra.mxu0 0.0
  %9245 = vmatprep.subr.mxu0 0.0
  %9246 = vmatpush1.xpose.msra.mxu0 0.0
  %9247 = vmatprep.subr.mxu0 0.0
  %9248 = vmatpush1.xpose.msra.mxu0 0.0
  %9249 = vmatprep.subr.mxu0 0.0
  %9250 = vmatpush1.xpose.msra.mxu0 0.0
  %9251 = vmatprep.subr.mxu0 0.0
  %9252 = vmatpush1.xpose.msra.mxu0 0.0
  %9253 = vmatprep.subr.mxu0 0.0
  %9254 = vmatpush1.xpose.msra.mxu0 0.0
  %9255 = vmatprep.subr.mxu0 0.0
  %9256 = vmatpush1.xpose.msra.mxu0 0.0
  %9257 = vmatprep.subr.mxu0 0.0
  %9258 = vmatpush1.xpose.msra.mxu0 0.0
  %9259 = vmatprep.subr.mxu0 0.0
  %9260 = vmatpush1.xpose.msra.mxu0 0.0
  %9261 = vmatprep.subr.mxu0 0.0
  %9262 = vmatpush1.xpose.msra.mxu0 0.0
  %9263 = vmatprep.subr.mxu0 0.0
  %9264 = vmatpush1.xpose.msra.mxu0 0.0
  %9265 = vmatprep.subr.mxu0 0.0
  %9266 = vmatpush1.xpose.msra.mxu0 0.0
  %9267 = vmatprep.subr.mxu0 0.0
  %9268 = vmatpush1.xpose.msra.mxu0 0.0
  %9269 = vmatprep.subr.mxu0 0.0
  %9270 = vmatpush1.xpose.msra.mxu0 0.0
  %9271 = vmatprep.subr.mxu0 0.0
  %9272 = vmatpush1.xpose.msra.mxu0 0.0
  %9273 = vmatprep.subr.mxu0 0.0
  %9274 = vmatpush1.xpose.msra.mxu0 0.0
  %9275 = vmatprep.subr.mxu0 0.0
  %9276 = vmatpush1.xpose.msra.mxu0 0.0
  %9277 = vmatprep.mubr.f32.mxu0 0.0
  %9278 = vmatmul.mubr.f32.gmra.mrb[0].mxu0 %v9187
  %v9279 = vpop.f32.mrb[0].mxu0
  %v9280 = vadd.f32 0.0, %v9279
  %v9281 = vpop.f32.mrb[0].mxu0
  %9282 = vdwg.mxu0
  %v9283 = vsel %vm1247, %v6144, 0
  %v9286 = vsel %vm1247, %v6387, 0
  %v9289 = vsel %vm1247, %v6388, 0
  %v9292 = vsel %vm1247, %v6389, 0
  %v9295 = vsel %vm1247, %v6390, 0
  %v9298 = vsel %vm1247, %v6391, 0
  %v9301 = vsel %vm1247, %v6392, 0
  %v9304 = vsel %vm1247, %v6393, 0
  %v9307 = vsel %vm1247, %v6394, 0
  %9309 = vmatprep.subr.mxu0 0.0
  %9310 = vmatpush1.xpose.msra.mxu0 %v9286
  %9311 = vmatprep.subr.mxu0 0.0
  %9312 = vmatpush1.xpose.msra.mxu0 %v9289
  %9313 = vmatprep.subr.mxu0 0.0
  %9314 = vmatpush1.xpose.msra.mxu0 %v9292
  %9315 = vmatprep.subr.mxu0 0.0
  %9316 = vmatpush1.xpose.msra.mxu0 %v9295
  %9317 = vmatprep.subr.mxu0 0.0
  %9318 = vmatpush1.xpose.msra.mxu0 %v9298
  %9319 = vmatprep.subr.mxu0 0.0
  %9320 = vmatpush1.xpose.msra.mxu0 %v9301
  %9321 = vmatprep.subr.mxu0 0.0
  %9322 = vmatpush1.xpose.msra.mxu0 %v9304
  %9323 = vmatprep.subr.mxu0 0.0
  %9324 = vmatpush1.xpose.msra.mxu0 %v9307
  %9325 = vmatprep.subr.mxu0 0.0
  %9326 = vmatpush1.xpose.msra.mxu0 0.0
  %9327 = vmatprep.subr.mxu0 0.0
  %9328 = vmatpush1.xpose.msra.mxu0 0.0
  %9329 = vmatprep.subr.mxu0 0.0
  %9330 = vmatpush1.xpose.msra.mxu0 0.0
  %9331 = vmatprep.subr.mxu0 0.0
  %9332 = vmatpush1.xpose.msra.mxu0 0.0
  %9333 = vmatprep.subr.mxu0 0.0
  %9334 = vmatpush1.xpose.msra.mxu0 0.0
  %9335 = vmatprep.subr.mxu0 0.0
  %9336 = vmatpush1.xpose.msra.mxu0 0.0
  %9337 = vmatprep.subr.mxu0 0.0
  %9338 = vmatpush1.xpose.msra.mxu0 0.0
  %9339 = vmatprep.subr.mxu0 0.0
  %9340 = vmatpush1.xpose.msra.mxu0 0.0
  %9341 = vmatprep.subr.mxu0 0.0
  %9342 = vmatpush1.xpose.msra.mxu0 0.0
  %9343 = vmatprep.subr.mxu0 0.0
  %9344 = vmatpush1.xpose.msra.mxu0 0.0
  %9345 = vmatprep.subr.mxu0 0.0
  %9346 = vmatpush1.xpose.msra.mxu0 0.0
  %9347 = vmatprep.subr.mxu0 0.0
  %9348 = vmatpush1.xpose.msra.mxu0 0.0
  %9349 = vmatprep.subr.mxu0 0.0
  %9350 = vmatpush1.xpose.msra.mxu0 0.0
  %9351 = vmatprep.subr.mxu0 0.0
  %9352 = vmatpush1.xpose.msra.mxu0 0.0
  %9353 = vmatprep.subr.mxu0 0.0
  %9354 = vmatpush1.xpose.msra.mxu0 0.0
  %9355 = vmatprep.subr.mxu0 0.0
  %9356 = vmatpush1.xpose.msra.mxu0 0.0
  %9357 = vmatprep.subr.mxu0 0.0
  %9358 = vmatpush1.xpose.msra.mxu0 0.0
  %9359 = vmatprep.subr.mxu0 0.0
  %9360 = vmatpush1.xpose.msra.mxu0 0.0
  %9361 = vmatprep.subr.mxu0 0.0
  %9362 = vmatpush1.xpose.msra.mxu0 0.0
  %9363 = vmatprep.subr.mxu0 0.0
  %9364 = vmatpush1.xpose.msra.mxu0 0.0
  %9365 = vmatprep.subr.mxu0 0.0
  %9366 = vmatpush1.xpose.msra.mxu0 0.0
  %9367 = vmatprep.subr.mxu0 0.0
  %9368 = vmatpush1.xpose.msra.mxu0 0.0
  %9369 = vmatprep.subr.mxu0 0.0
  %9370 = vmatpush1.xpose.msra.mxu0 0.0
  %9371 = vmatprep.subr.mxu0 0.0
  %9372 = vmatpush1.xpose.msra.mxu0 0.0
  %9373 = vmatprep.mubr.f32.mxu0 0.0
  %9374 = vmatmul.mubr.f32.gmra.mrb[0].mxu0 %v9283
  %v9375 = vpop.f32.mrb[0].mxu0
  %v9376 = vadd.f32 0.0, %v9375
  %v9377 = vpop.f32.mrb[0].mxu0
  %9378 = vdwg.mxu0
  %v9379 = vsel %vm1247, %v6146, 0
  %v9382 = vsel %vm1247, %v6395, 0
  %v9385 = vsel %vm1247, %v6396, 0
  %v9388 = vsel %vm1247, %v6397, 0
  %v9391 = vsel %vm1247, %v6398, 0
  %v9394 = vsel %vm1247, %v6399, 0
  %v9397 = vsel %vm1247, %v6400, 0
  %v9400 = vsel %vm1247, %v6401, 0
  %v9403 = vsel %vm1247, %v6402, 0
  %9405 = vmatprep.subr.mxu0 0.0
  %9406 = vmatpush1.xpose.msra.mxu0 %v9382
  %9407 = vmatprep.subr.mxu0 0.0
  %9408 = vmatpush1.xpose.msra.mxu0 %v9385
  %9409 = vmatprep.subr.mxu0 0.0
  %9410 = vmatpush1.xpose.msra.mxu0 %v9388
  %9411 = vmatprep.subr.mxu0 0.0
  %9412 = vmatpush1.xpose.msra.mxu0 %v9391
  %9413 = vmatprep.subr.mxu0 0.0
  %9414 = vmatpush1.xpose.msra.mxu0 %v9394
  %9415 = vmatprep.subr.mxu0 0.0
  %9416 = vmatpush1.xpose.msra.mxu0 %v9397
  %9417 = vmatprep.subr.mxu0 0.0
  %9418 = vmatpush1.xpose.msra.mxu0 %v9400
  %9419 = vmatprep.subr.mxu0 0.0
  %9420 = vmatpush1.xpose.msra.mxu0 %v9403
  %9421 = vmatprep.subr.mxu0 0.0
  %9422 = vmatpush1.xpose.msra.mxu0 0.0
  %9423 = vmatprep.subr.mxu0 0.0
  %9424 = vmatpush1.xpose.msra.mxu0 0.0
  %9425 = vmatprep.subr.mxu0 0.0
  %9426 = vmatpush1.xpose.msra.mxu0 0.0
  %9427 = vmatprep.subr.mxu0 0.0
  %9428 = vmatpush1.xpose.msra.mxu0 0.0
  %9429 = vmatprep.subr.mxu0 0.0
  %9430 = vmatpush1.xpose.msra.mxu0 0.0
  %9431 = vmatprep.subr.mxu0 0.0
  %9432 = vmatpush1.xpose.msra.mxu0 0.0
  %9433 = vmatprep.subr.mxu0 0.0
  %9434 = vmatpush1.xpose.msra.mxu0 0.0
  %9435 = vmatprep.subr.mxu0 0.0
  %9436 = vmatpush1.xpose.msra.mxu0 0.0
  %9437 = vmatprep.subr.mxu0 0.0
  %9438 = vmatpush1.xpose.msra.mxu0 0.0
  %9439 = vmatprep.subr.mxu0 0.0
  %9440 = vmatpush1.xpose.msra.mxu0 0.0
  %9441 = vmatprep.subr.mxu0 0.0
  %9442 = vmatpush1.xpose.msra.mxu0 0.0
  %9443 = vmatprep.subr.mxu0 0.0
  %9444 = vmatpush1.xpose.msra.mxu0 0.0
  %9445 = vmatprep.subr.mxu0 0.0
  %9446 = vmatpush1.xpose.msra.mxu0 0.0
  %9447 = vmatprep.subr.mxu0 0.0
  %9448 = vmatpush1.xpose.msra.mxu0 0.0
  %9449 = vmatprep.subr.mxu0 0.0
  %9450 = vmatpush1.xpose.msra.mxu0 0.0
  %9451 = vmatprep.subr.mxu0 0.0
  %9452 = vmatpush1.xpose.msra.mxu0 0.0
  %9453 = vmatprep.subr.mxu0 0.0
  %9454 = vmatpush1.xpose.msra.mxu0 0.0
  %9455 = vmatprep.subr.mxu0 0.0
  %9456 = vmatpush1.xpose.msra.mxu0 0.0
  %9457 = vmatprep.subr.mxu0 0.0
  %9458 = vmatpush1.xpose.msra.mxu0 0.0
  %9459 = vmatprep.subr.mxu0 0.0
  %9460 = vmatpush1.xpose.msra.mxu0 0.0
  %9461 = vmatprep.subr.mxu0 0.0
  %9462 = vmatpush1.xpose.msra.mxu0 0.0
  %9463 = vmatprep.subr.mxu0 0.0
  %9464 = vmatpush1.xpose.msra.mxu0 0.0
  %9465 = vmatprep.subr.mxu0 0.0
  %9466 = vmatpush1.xpose.msra.mxu0 0.0
  %9467 = vmatprep.subr.mxu0 0.0
  %9468 = vmatpush1.xpose.msra.mxu0 0.0
  %9469 = vmatprep.mubr.f32.mxu0 0.0
  %9470 = vmatmul.mubr.f32.gmra.mrb[0].mxu0 %v9379
  %v9471 = vpop.f32.mrb[0].mxu0
  %v9472 = vadd.f32 0.0, %v9471
  %v9473 = vpop.f32.mrb[0].mxu0
  %9474 = vdwg.mxu0
  %v9507 = vrot.slane %v6592, 7
  %v9508 = vsel %vm4353, %v9507, %v6496
  %v9509 = vrot.slane %v6688, 6
  %v9510 = vsel %vm4356, %v9509, %v9508
  %v9511 = vrot.slane %v6784, 5
  %v9512 = vsel %vm4359, %v9511, %v9510
  %v9513 = vrot.slane %v6880, 4
  %v9514 = vsel %vm4362, %v9513, %v9512
  %v9515 = vrot.slane %v6976, 3
  %v9516 = vsel %vm4365, %v9515, %v9514
  %v9517 = vrot.slane %v7072, 2
  %v9518 = vsel %vm4368, %v9517, %v9516
  %v9519 = vrot.slane %v7168, 1
  %v9520 = vsel %vm4371, %v9519, %v9518
  %v9521 = vrot.slane %v7360, 7
  %v9522 = vsel %vm4353, %v9521, %v7264
  %v9523 = vrot.slane %v7456, 6
  %v9524 = vsel %vm4356, %v9523, %v9522
  %v9525 = vrot.slane %v7552, 5
  %v9526 = vsel %vm4359, %v9525, %v9524
  %v9527 = vrot.slane %v7648, 4
  %v9528 = vsel %vm4362, %v9527, %v9526
  %v9529 = vrot.slane %v7744, 3
  %v9530 = vsel %vm4365, %v9529, %v9528
  %v9531 = vrot.slane %v7840, 2
  %v9532 = vsel %vm4368, %v9531, %v9530
  %v9533 = vrot.slane %v7936, 1
  %v9534 = vsel %vm4371, %v9533, %v9532
  %v9535 = vrot.slane %v8128, 7
  %v9536 = vsel %vm4353, %v9535, %v8032
  %v9537 = vrot.slane %v8224, 6
  %v9538 = vsel %vm4356, %v9537, %v9536
  %v9539 = vrot.slane %v8320, 5
  %v9540 = vsel %vm4359, %v9539, %v9538
  %v9541 = vrot.slane %v8416, 4
  %v9542 = vsel %vm4362, %v9541, %v9540
  %v9543 = vrot.slane %v8512, 3
  %v9544 = vsel %vm4365, %v9543, %v9542
  %v9545 = vrot.slane %v8608, 2
  %v9546 = vsel %vm4368, %v9545, %v9544
  %v9547 = vrot.slane %v8704, 1
  %v9548 = vsel %vm4371, %v9547, %v9546
  %v9549 = vrot.slane %v8896, 7
  %v9550 = vsel %vm4353, %v9549, %v8800
  %v9551 = vrot.slane %v8992, 6
  %v9552 = vsel %vm4356, %v9551, %v9550
  %v9553 = vrot.slane %v9088, 5
  %v9554 = vsel %vm4359, %v9553, %v9552
  %v9555 = vrot.slane %v9184, 4
  %v9556 = vsel %vm4362, %v9555, %v9554
  %v9557 = vrot.slane %v9280, 3
  %v9558 = vsel %vm4365, %v9557, %v9556
  %v9559 = vrot.slane %v9376, 2
  %v9560 = vsel %vm4368, %v9559, %v9558
  %v9561 = vrot.slane %v9472, 1
  %v9562 = vsel %vm4371, %v9561, %v9560
  %9563 = vrot.lane.b32.xlu0 %v9520, 96
  %v9564 = vpop.permute.xlu0 %9563
  %9565 = vrot.lane.b32.xlu0 %v9534, 96
  %v9566 = vpop.permute.xlu0 %9565
  %9567 = vrot.lane.b32.xlu0 %v9548, 96
  %v9568 = vpop.permute.xlu0 %9567
  %9569 = vrot.lane.b32.xlu0 %v9562, 96
  %v9570 = vpop.permute.xlu0 %9569
  %9575 = vmatprep.subr.mxu0 0.0
  %9576 = vmatpush1.msra.mxu0 %v9564
  %9577 = vmatprep.subr.mxu0 0.0
  %9578 = vmatpush1.msra.mxu0 %v9566
  %9579 = vmatprep.subr.mxu0 0.0
  %9580 = vmatpush1.msra.mxu0 %v9568
  %9581 = vmatprep.subr.mxu0 0.0
  %9582 = vmatpush1.msra.mxu0 %v9570
  %9583 = vmatprep.subr.mxu0 0.0
  %9584 = vmatpush1.msra.mxu0 0.0
  %9585 = vmatprep.subr.mxu0 0.0
  %9586 = vmatpush1.msra.mxu0 0.0
  %9587 = vmatprep.subr.mxu0 0.0
  %9588 = vmatpush1.msra.mxu0 0.0
  %9589 = vmatprep.subr.mxu0 0.0
  %9590 = vmatpush1.msra.mxu0 0.0
  %9591 = vmatprep.subr.mxu0 0.0
  %9592 = vmatpush1.msra.mxu0 0.0
  %9593 = vmatprep.subr.mxu0 0.0
  %9594 = vmatpush1.msra.mxu0 0.0
  %9595 = vmatprep.subr.mxu0 0.0
  %9596 = vmatpush1.msra.mxu0 0.0
  %9597 = vmatprep.subr.mxu0 0.0
  %9598 = vmatpush1.msra.mxu0 0.0
  %9599 = vmatprep.subr.mxu0 0.0
  %9600 = vmatpush1.msra.mxu0 0.0
  %9601 = vmatprep.subr.mxu0 0.0
  %9602 = vmatpush1.msra.mxu0 0.0
  %9603 = vmatprep.subr.mxu0 0.0
  %9604 = vmatpush1.msra.mxu0 0.0
  %9605 = vmatprep.subr.mxu0 0.0
  %9606 = vmatpush1.msra.mxu0 0.0
  %9607 = vmatprep.subr.mxu0 0.0
  %9608 = vmatpush1.msra.mxu0 0.0
  %9609 = vmatprep.subr.mxu0 0.0
  %9610 = vmatpush1.msra.mxu0 0.0
  %9611 = vmatprep.subr.mxu0 0.0
  %9612 = vmatpush1.msra.mxu0 0.0
  %9613 = vmatprep.subr.mxu0 0.0
  %9614 = vmatpush1.msra.mxu0 0.0
  %9615 = vmatprep.subr.mxu0 0.0
  %9616 = vmatpush1.msra.mxu0 0.0
  %9617 = vmatprep.subr.mxu0 0.0
  %9618 = vmatpush1.msra.mxu0 0.0
  %9619 = vmatprep.subr.mxu0 0.0
  %9620 = vmatpush1.msra.mxu0 0.0
  %9621 = vmatprep.subr.mxu0 0.0
  %9622 = vmatpush1.msra.mxu0 0.0
  %9623 = vmatprep.subr.mxu0 0.0
  %9624 = vmatpush1.msra.mxu0 0.0
  %9625 = vmatprep.subr.mxu0 0.0
  %9626 = vmatpush1.msra.mxu0 0.0
  %9627 = vmatprep.subr.mxu0 0.0
  %9628 = vmatpush1.msra.mxu0 0.0
  %9629 = vmatprep.subr.mxu0 0.0
  %9630 = vmatpush1.msra.mxu0 0.0
  %9631 = vmatprep.subr.mxu0 0.0
  %9632 = vmatpush1.msra.mxu0 0.0
  %9633 = vmatprep.subr.mxu0 0.0
  %9634 = vmatpush1.msra.mxu0 0.0
  %9635 = vmatprep.subr.mxu0 0.0
  %9636 = vmatpush1.msra.mxu0 0.0
  %9637 = vmatprep.subr.mxu0 0.0
  %9638 = vmatpush1.msra.mxu0 0.0
  %9639 = vmatprep.mubr.f32.mxu0 0.0
  %9640 = vmatmul.mubr.f32.gmra.mrb[0].mxu0 %v4428
  %v9641 = vpop.f32.mrb[0].mxu0
  %v9642 = vadd.f32 0.0, %v9641
  %v9643 = vpop.f32.mrb[0].mxu0
  %9644 = vmatprep.mubr.f32.mxu0 0.0
  %9645 = vmatmul.mubr.f32.gmra.mrb[0].mxu0 %v4431
  %v9646 = vpop.f32.mrb[0].mxu0
  %v9647 = vadd.f32 0.0, %v9646
  %v9648 = vpop.f32.mrb[0].mxu0
  %9649 = vmatprep.mubr.f32.mxu0 0.0
  %9650 = vmatmul.mubr.f32.gmra.mrb[0].mxu0 %v4434
  %v9651 = vpop.f32.mrb[0].mxu0
  %v9652 = vadd.f32 0.0, %v9651
  %v9653 = vpop.f32.mrb[0].mxu0
  %9654 = vmatprep.mubr.f32.mxu0 0.0
  %9655 = vmatmul.mubr.f32.gmra.mrb[0].mxu0 %v4437
  %v9656 = vpop.f32.mrb[0].mxu0
  %v9657 = vadd.f32 0.0, %v9656
  %v9658 = vpop.f32.mrb[0].mxu0
  %9659 = vmatprep.mubr.f32.mxu0 0.0
  %9660 = vmatmul.mubr.f32.gmra.mrb[0].mxu0 %v4440
  %v9661 = vpop.f32.mrb[0].mxu0
  %v9662 = vadd.f32 0.0, %v9661
  %v9663 = vpop.f32.mrb[0].mxu0
  %9664 = vmatprep.mubr.f32.mxu0 0.0
  %9665 = vmatmul.mubr.f32.gmra.mrb[0].mxu0 %v4443
  %v9666 = vpop.f32.mrb[0].mxu0
  %v9667 = vadd.f32 0.0, %v9666
  %v9668 = vpop.f32.mrb[0].mxu0
  %9669 = vmatprep.mubr.f32.mxu0 0.0
  %9670 = vmatmul.mubr.f32.gmra.mrb[0].mxu0 %v4446
  %v9671 = vpop.f32.mrb[0].mxu0
  %v9672 = vadd.f32 0.0, %v9671
  %v9673 = vpop.f32.mrb[0].mxu0
  %9674 = vmatprep.mubr.f32.mxu0 0.0
  %9675 = vmatmul.mubr.f32.gmra.mrb[0].mxu0 %v4449
  %v9676 = vpop.f32.mrb[0].mxu0
  %v9677 = vadd.f32 0.0, %v9676
  %v9678 = vpop.f32.mrb[0].mxu0
  %9679 = vmatprep.mubr.f32.mxu0 0.0
  %9680 = vmatmul.mubr.f32.gmra.mrb[0].mxu0 %v4452
  %v9681 = vpop.f32.mrb[0].mxu0
  %v9682 = vadd.f32 0.0, %v9681
  %v9683 = vpop.f32.mrb[0].mxu0
  %9684 = vmatprep.mubr.f32.mxu0 0.0
  %9685 = vmatmul.mubr.f32.gmra.mrb[0].mxu0 %v4455
  %v9686 = vpop.f32.mrb[0].mxu0
  %v9687 = vadd.f32 0.0, %v9686
  %v9688 = vpop.f32.mrb[0].mxu0
  %9689 = vmatprep.mubr.f32.mxu0 0.0
  %9690 = vmatmul.mubr.f32.gmra.mrb[0].mxu0 %v4458
  %v9691 = vpop.f32.mrb[0].mxu0
  %v9692 = vadd.f32 0.0, %v9691
  %v9693 = vpop.f32.mrb[0].mxu0
  %9694 = vmatprep.mubr.f32.mxu0 0.0
  %9695 = vmatmul.mubr.f32.gmra.mrb[0].mxu0 %v4461
  %v9696 = vpop.f32.mrb[0].mxu0
  %v9697 = vadd.f32 0.0, %v9696
  %v9698 = vpop.f32.mrb[0].mxu0
  %9699 = vmatprep.mubr.f32.mxu0 0.0
  %9700 = vmatmul.mubr.f32.gmra.mrb[0].mxu0 %v4464
  %v9701 = vpop.f32.mrb[0].mxu0
  %v9702 = vadd.f32 0.0, %v9701
  %v9703 = vpop.f32.mrb[0].mxu0
  %9704 = vmatprep.mubr.f32.mxu0 0.0
  %9705 = vmatmul.mubr.f32.gmra.mrb[0].mxu0 %v4467
  %v9706 = vpop.f32.mrb[0].mxu0
  %v9707 = vadd.f32 0.0, %v9706
  %v9708 = vpop.f32.mrb[0].mxu0
  %9709 = vmatprep.mubr.f32.mxu0 0.0
  %9710 = vmatmul.mubr.f32.gmra.mrb[0].mxu0 %v4470
  %v9711 = vpop.f32.mrb[0].mxu0
  %v9712 = vadd.f32 0.0, %v9711
  %v9713 = vpop.f32.mrb[0].mxu0
  %9714 = vmatprep.mubr.f32.mxu0 0.0
  %9715 = vmatmul.mubr.f32.gmra.mrb[0].mxu0 %v4473
  %v9716 = vpop.f32.mrb[0].mxu0
  %v9717 = vadd.f32 0.0, %v9716
  %v9718 = vpop.f32.mrb[0].mxu0
  %9719 = vmatprep.mubr.f32.mxu0 0.0
  %9720 = vmatmul.mubr.f32.gmra.mrb[0].mxu0 %v4476
  %v9721 = vpop.f32.mrb[0].mxu0
  %v9722 = vadd.f32 0.0, %v9721
  %v9723 = vpop.f32.mrb[0].mxu0
  %9724 = vmatprep.mubr.f32.mxu0 0.0
  %9725 = vmatmul.mubr.f32.gmra.mrb[0].mxu0 %v4479
  %v9726 = vpop.f32.mrb[0].mxu0
  %v9727 = vadd.f32 0.0, %v9726
  %v9728 = vpop.f32.mrb[0].mxu0
  %9729 = vmatprep.mubr.f32.mxu0 0.0
  %9730 = vmatmul.mubr.f32.gmra.mrb[0].mxu0 %v4482
  %v9731 = vpop.f32.mrb[0].mxu0
  %v9732 = vadd.f32 0.0, %v9731
  %v9733 = vpop.f32.mrb[0].mxu0
  %9734 = vmatprep.mubr.f32.mxu0 0.0
  %9735 = vmatmul.mubr.f32.gmra.mrb[0].mxu0 %v4485
  %v9736 = vpop.f32.mrb[0].mxu0
  %v9737 = vadd.f32 0.0, %v9736
  %v9738 = vpop.f32.mrb[0].mxu0
  %9739 = vmatprep.mubr.f32.mxu0 0.0
  %9740 = vmatmul.mubr.f32.gmra.mrb[0].mxu0 %v4488
  %v9741 = vpop.f32.mrb[0].mxu0
  %v9742 = vadd.f32 0.0, %v9741
  %v9743 = vpop.f32.mrb[0].mxu0
  %9744 = vmatprep.mubr.f32.mxu0 0.0
  %9745 = vmatmul.mubr.f32.gmra.mrb[0].mxu0 %v4491
  %v9746 = vpop.f32.mrb[0].mxu0
  %v9747 = vadd.f32 0.0, %v9746
  %v9748 = vpop.f32.mrb[0].mxu0
  %9749 = vmatprep.mubr.f32.mxu0 0.0
  %9750 = vmatmul.mubr.f32.gmra.mrb[0].mxu0 %v4494
  %v9751 = vpop.f32.mrb[0].mxu0
  %v9752 = vadd.f32 0.0, %v9751
  %v9753 = vpop.f32.mrb[0].mxu0
  %9754 = vmatprep.mubr.f32.mxu0 0.0
  %9755 = vmatmul.mubr.f32.gmra.mrb[0].mxu0 %v4497
  %v9756 = vpop.f32.mrb[0].mxu0
  %v9757 = vadd.f32 0.0, %v9756
  %v9758 = vpop.f32.mrb[0].mxu0
  %9759 = vmatprep.mubr.f32.mxu0 0.0
  %9760 = vmatmul.mubr.f32.gmra.mrb[0].mxu0 %v4500
  %v9761 = vpop.f32.mrb[0].mxu0
  %v9762 = vadd.f32 0.0, %v9761
  %v9763 = vpop.f32.mrb[0].mxu0
  %9764 = vmatprep.mubr.f32.mxu0 0.0
  %9765 = vmatmul.mubr.f32.gmra.mrb[0].mxu0 %v4503
  %v9766 = vpop.f32.mrb[0].mxu0
  %v9767 = vadd.f32 0.0, %v9766
  %v9768 = vpop.f32.mrb[0].mxu0
  %9769 = vmatprep.mubr.f32.mxu0 0.0
  %9770 = vmatmul.mubr.f32.gmra.mrb[0].mxu0 %v4506
  %v9771 = vpop.f32.mrb[0].mxu0
  %v9772 = vadd.f32 0.0, %v9771
  %v9773 = vpop.f32.mrb[0].mxu0
  %9774 = vmatprep.mubr.f32.mxu0 0.0
  %9775 = vmatmul.mubr.f32.gmra.mrb[0].mxu0 %v4509
  %v9776 = vpop.f32.mrb[0].mxu0
  %v9777 = vadd.f32 0.0, %v9776
  %v9778 = vpop.f32.mrb[0].mxu0
  %9779 = vmatprep.mubr.f32.mxu0 0.0
  %9780 = vmatmul.mubr.f32.gmra.mrb[0].mxu0 %v4512
  %v9781 = vpop.f32.mrb[0].mxu0
  %v9782 = vadd.f32 0.0, %v9781
  %v9783 = vpop.f32.mrb[0].mxu0
  %9784 = vmatprep.mubr.f32.mxu0 0.0
  %9785 = vmatmul.mubr.f32.gmra.mrb[0].mxu0 %v4515
  %v9786 = vpop.f32.mrb[0].mxu0
  %v9787 = vadd.f32 0.0, %v9786
  %v9788 = vpop.f32.mrb[0].mxu0
  %9789 = vmatprep.mubr.f32.mxu0 0.0
  %9790 = vmatmul.mubr.f32.gmra.mrb[0].mxu0 %v4518
  %v9791 = vpop.f32.mrb[0].mxu0
  %v9792 = vadd.f32 0.0, %v9791
  %v9793 = vpop.f32.mrb[0].mxu0
  %9794 = vmatprep.mubr.f32.mxu0 0.0
  %9795 = vmatmul.mubr.f32.gmra.mrb[0].mxu0 %v4521
  %v9796 = vpop.f32.mrb[0].mxu0
  %v9797 = vadd.f32 0.0, %v9796
  %v9798 = vpop.f32.mrb[0].mxu0
  %9799 = vdwg.mxu0
  %9804 = vmatprep.subr.mxu0 0.0
  %9805 = vmatpush1.msra.mxu0 %v9520
  %9806 = vmatprep.subr.mxu0 0.0
  %9807 = vmatpush1.msra.mxu0 %v9534
  %9808 = vmatprep.subr.mxu0 0.0
  %9809 = vmatpush1.msra.mxu0 %v9548
  %9810 = vmatprep.subr.mxu0 0.0
  %9811 = vmatpush1.msra.mxu0 %v9562
  %9812 = vmatprep.subr.mxu0 0.0
  %9813 = vmatpush1.msra.mxu0 0.0
  %9814 = vmatprep.subr.mxu0 0.0
  %9815 = vmatpush1.msra.mxu0 0.0
  %9816 = vmatprep.subr.mxu0 0.0
  %9817 = vmatpush1.msra.mxu0 0.0
  %9818 = vmatprep.subr.mxu0 0.0
  %9819 = vmatpush1.msra.mxu0 0.0
  %9820 = vmatprep.subr.mxu0 0.0
  %9821 = vmatpush1.msra.mxu0 0.0
  %9822 = vmatprep.subr.mxu0 0.0
  %9823 = vmatpush1.msra.mxu0 0.0
  %9824 = vmatprep.subr.mxu0 0.0
  %9825 = vmatpush1.msra.mxu0 0.0
  %9826 = vmatprep.subr.mxu0 0.0
  %9827 = vmatpush1.msra.mxu0 0.0
  %9828 = vmatprep.subr.mxu0 0.0
  %9829 = vmatpush1.msra.mxu0 0.0
  %9830 = vmatprep.subr.mxu0 0.0
  %9831 = vmatpush1.msra.mxu0 0.0
  %9832 = vmatprep.subr.mxu0 0.0
  %9833 = vmatpush1.msra.mxu0 0.0
  %9834 = vmatprep.subr.mxu0 0.0
  %9835 = vmatpush1.msra.mxu0 0.0
  %9836 = vmatprep.subr.mxu0 0.0
  %9837 = vmatpush1.msra.mxu0 0.0
  %9838 = vmatprep.subr.mxu0 0.0
  %9839 = vmatpush1.msra.mxu0 0.0
  %9840 = vmatprep.subr.mxu0 0.0
  %9841 = vmatpush1.msra.mxu0 0.0
  %9842 = vmatprep.subr.mxu0 0.0
  %9843 = vmatpush1.msra.mxu0 0.0
  %9844 = vmatprep.subr.mxu0 0.0
  %9845 = vmatpush1.msra.mxu0 0.0
  %9846 = vmatprep.subr.mxu0 0.0
  %9847 = vmatpush1.msra.mxu0 0.0
  %9848 = vmatprep.subr.mxu0 0.0
  %9849 = vmatpush1.msra.mxu0 0.0
  %9850 = vmatprep.subr.mxu0 0.0
  %9851 = vmatpush1.msra.mxu0 0.0
  %9852 = vmatprep.subr.mxu0 0.0
  %9853 = vmatpush1.msra.mxu0 0.0
  %9854 = vmatprep.subr.mxu0 0.0
  %9855 = vmatpush1.msra.mxu0 0.0
  %9856 = vmatprep.subr.mxu0 0.0
  %9857 = vmatpush1.msra.mxu0 0.0
  %9858 = vmatprep.subr.mxu0 0.0
  %9859 = vmatpush1.msra.mxu0 0.0
  %9860 = vmatprep.subr.mxu0 0.0
  %9861 = vmatpush1.msra.mxu0 0.0
  %9862 = vmatprep.subr.mxu0 0.0
  %9863 = vmatpush1.msra.mxu0 0.0
  %9864 = vmatprep.subr.mxu0 0.0
  %9865 = vmatpush1.msra.mxu0 0.0
  %9866 = vmatprep.subr.mxu0 0.0
  %9867 = vmatpush1.msra.mxu0 0.0
  %9868 = vmatprep.mubr.f32.mxu0 0.0
  %9869 = vmatmul.mubr.f32.gmra.mrb[0].mxu0 %v4753
  %v9870 = vpop.f32.mrb[0].mxu0
  %v9871 = vadd.f32 %v9642, %v9870
  %v9872 = vpop.f32.mrb[0].mxu0
  %9873 = vmatprep.mubr.f32.mxu0 0.0
  %9874 = vmatmul.mubr.f32.gmra.mrb[0].mxu0 %v4756
  %v9875 = vpop.f32.mrb[0].mxu0
  %v9876 = vadd.f32 %v9647, %v9875
  %v9877 = vpop.f32.mrb[0].mxu0
  %9878 = vmatprep.mubr.f32.mxu0 0.0
  %9879 = vmatmul.mubr.f32.gmra.mrb[0].mxu0 %v4759
  %v9880 = vpop.f32.mrb[0].mxu0
  %v9881 = vadd.f32 %v9652, %v9880
  %v9882 = vpop.f32.mrb[0].mxu0
  %9883 = vmatprep.mubr.f32.mxu0 0.0
  %9884 = vmatmul.mubr.f32.gmra.mrb[0].mxu0 %v4762
  %v9885 = vpop.f32.mrb[0].mxu0
  %v9886 = vadd.f32 %v9657, %v9885
  %v9887 = vpop.f32.mrb[0].mxu0
  %9888 = vmatprep.mubr.f32.mxu0 0.0
  %9889 = vmatmul.mubr.f32.gmra.mrb[0].mxu0 %v4765
  %v9890 = vpop.f32.mrb[0].mxu0
  %v9891 = vadd.f32 %v9662, %v9890
  %v9892 = vpop.f32.mrb[0].mxu0
  %9893 = vmatprep.mubr.f32.mxu0 0.0
  %9894 = vmatmul.mubr.f32.gmra.mrb[0].mxu0 %v4768
  %v9895 = vpop.f32.mrb[0].mxu0
  %v9896 = vadd.f32 %v9667, %v9895
  %v9897 = vpop.f32.mrb[0].mxu0
  %9898 = vmatprep.mubr.f32.mxu0 0.0
  %9899 = vmatmul.mubr.f32.gmra.mrb[0].mxu0 %v4771
  %v9900 = vpop.f32.mrb[0].mxu0
  %v9901 = vadd.f32 %v9672, %v9900
  %v9902 = vpop.f32.mrb[0].mxu0
  %9903 = vmatprep.mubr.f32.mxu0 0.0
  %9904 = vmatmul.mubr.f32.gmra.mrb[0].mxu0 %v4774
  %v9905 = vpop.f32.mrb[0].mxu0
  %v9906 = vadd.f32 %v9677, %v9905
  %v9907 = vpop.f32.mrb[0].mxu0
  %9908 = vmatprep.mubr.f32.mxu0 0.0
  %9909 = vmatmul.mubr.f32.gmra.mrb[0].mxu0 %v4777
  %v9910 = vpop.f32.mrb[0].mxu0
  %v9911 = vadd.f32 %v9682, %v9910
  %v9912 = vpop.f32.mrb[0].mxu0
  %9913 = vmatprep.mubr.f32.mxu0 0.0
  %9914 = vmatmul.mubr.f32.gmra.mrb[0].mxu0 %v4780
  %v9915 = vpop.f32.mrb[0].mxu0
  %v9916 = vadd.f32 %v9687, %v9915
  %v9917 = vpop.f32.mrb[0].mxu0
  %9918 = vmatprep.mubr.f32.mxu0 0.0
  %9919 = vmatmul.mubr.f32.gmra.mrb[0].mxu0 %v4783
  %v9920 = vpop.f32.mrb[0].mxu0
  %v9921 = vadd.f32 %v9692, %v9920
  %v9922 = vpop.f32.mrb[0].mxu0
  %9923 = vmatprep.mubr.f32.mxu0 0.0
  %9924 = vmatmul.mubr.f32.gmra.mrb[0].mxu0 %v4786
  %v9925 = vpop.f32.mrb[0].mxu0
  %v9926 = vadd.f32 %v9697, %v9925
  %v9927 = vpop.f32.mrb[0].mxu0
  %9928 = vmatprep.mubr.f32.mxu0 0.0
  %9929 = vmatmul.mubr.f32.gmra.mrb[0].mxu0 %v4789
  %v9930 = vpop.f32.mrb[0].mxu0
  %v9931 = vadd.f32 %v9702, %v9930
  %v9932 = vpop.f32.mrb[0].mxu0
  %9933 = vmatprep.mubr.f32.mxu0 0.0
  %9934 = vmatmul.mubr.f32.gmra.mrb[0].mxu0 %v4792
  %v9935 = vpop.f32.mrb[0].mxu0
  %v9936 = vadd.f32 %v9707, %v9935
  %v9937 = vpop.f32.mrb[0].mxu0
  %9938 = vmatprep.mubr.f32.mxu0 0.0
  %9939 = vmatmul.mubr.f32.gmra.mrb[0].mxu0 %v4795
  %v9940 = vpop.f32.mrb[0].mxu0
  %v9941 = vadd.f32 %v9712, %v9940
  %v9942 = vpop.f32.mrb[0].mxu0
  %9943 = vmatprep.mubr.f32.mxu0 0.0
  %9944 = vmatmul.mubr.f32.gmra.mrb[0].mxu0 %v4798
  %v9945 = vpop.f32.mrb[0].mxu0
  %v9946 = vadd.f32 %v9717, %v9945
  %v9947 = vpop.f32.mrb[0].mxu0
  %9948 = vmatprep.mubr.f32.mxu0 0.0
  %9949 = vmatmul.mubr.f32.gmra.mrb[0].mxu0 %v4801
  %v9950 = vpop.f32.mrb[0].mxu0
  %v9951 = vadd.f32 %v9722, %v9950
  %v9952 = vpop.f32.mrb[0].mxu0
  %9953 = vmatprep.mubr.f32.mxu0 0.0
  %9954 = vmatmul.mubr.f32.gmra.mrb[0].mxu0 %v4804
  %v9955 = vpop.f32.mrb[0].mxu0
  %v9956 = vadd.f32 %v9727, %v9955
  %v9957 = vpop.f32.mrb[0].mxu0
  %9958 = vmatprep.mubr.f32.mxu0 0.0
  %9959 = vmatmul.mubr.f32.gmra.mrb[0].mxu0 %v4807
  %v9960 = vpop.f32.mrb[0].mxu0
  %v9961 = vadd.f32 %v9732, %v9960
  %v9962 = vpop.f32.mrb[0].mxu0
  %9963 = vmatprep.mubr.f32.mxu0 0.0
  %9964 = vmatmul.mubr.f32.gmra.mrb[0].mxu0 %v4810
  %v9965 = vpop.f32.mrb[0].mxu0
  %v9966 = vadd.f32 %v9737, %v9965
  %v9967 = vpop.f32.mrb[0].mxu0
  %9968 = vmatprep.mubr.f32.mxu0 0.0
  %9969 = vmatmul.mubr.f32.gmra.mrb[0].mxu0 %v4813
  %v9970 = vpop.f32.mrb[0].mxu0
  %v9971 = vadd.f32 %v9742, %v9970
  %v9972 = vpop.f32.mrb[0].mxu0
  %9973 = vmatprep.mubr.f32.mxu0 0.0
  %9974 = vmatmul.mubr.f32.gmra.mrb[0].mxu0 %v4816
  %v9975 = vpop.f32.mrb[0].mxu0
  %v9976 = vadd.f32 %v9747, %v9975
  %v9977 = vpop.f32.mrb[0].mxu0
  %9978 = vmatprep.mubr.f32.mxu0 0.0
  %9979 = vmatmul.mubr.f32.gmra.mrb[0].mxu0 %v4819
  %v9980 = vpop.f32.mrb[0].mxu0
  %v9981 = vadd.f32 %v9752, %v9980
  %v9982 = vpop.f32.mrb[0].mxu0
  %9983 = vmatprep.mubr.f32.mxu0 0.0
  %9984 = vmatmul.mubr.f32.gmra.mrb[0].mxu0 %v4822
  %v9985 = vpop.f32.mrb[0].mxu0
  %v9986 = vadd.f32 %v9757, %v9985
  %v9987 = vpop.f32.mrb[0].mxu0
  %9988 = vmatprep.mubr.f32.mxu0 0.0
  %9989 = vmatmul.mubr.f32.gmra.mrb[0].mxu0 %v4825
  %v9990 = vpop.f32.mrb[0].mxu0
  %v9991 = vadd.f32 %v9762, %v9990
  %v9992 = vpop.f32.mrb[0].mxu0
  %9993 = vmatprep.mubr.f32.mxu0 0.0
  %9994 = vmatmul.mubr.f32.gmra.mrb[0].mxu0 %v4828
  %v9995 = vpop.f32.mrb[0].mxu0
  %v9996 = vadd.f32 %v9767, %v9995
  %v9997 = vpop.f32.mrb[0].mxu0
  %9998 = vmatprep.mubr.f32.mxu0 0.0
  %9999 = vmatmul.mubr.f32.gmra.mrb[0].mxu0 %v4831
  %v10000 = vpop.f32.mrb[0].mxu0
  %v10001 = vadd.f32 %v9772, %v10000
  %v10002 = vpop.f32.mrb[0].mxu0
  %10003 = vmatprep.mubr.f32.mxu0 0.0
  %10004 = vmatmul.mubr.f32.gmra.mrb[0].mxu0 %v4834
  %v10005 = vpop.f32.mrb[0].mxu0
  %v10006 = vadd.f32 %v9777, %v10005
  %v10007 = vpop.f32.mrb[0].mxu0
  %10008 = vmatprep.mubr.f32.mxu0 0.0
  %10009 = vmatmul.mubr.f32.gmra.mrb[0].mxu0 %v4837
  %v10010 = vpop.f32.mrb[0].mxu0
  %v10011 = vadd.f32 %v9782, %v10010
  %v10012 = vpop.f32.mrb[0].mxu0
  %10013 = vmatprep.mubr.f32.mxu0 0.0
  %10014 = vmatmul.mubr.f32.gmra.mrb[0].mxu0 %v4840
  %v10015 = vpop.f32.mrb[0].mxu0
  %v10016 = vadd.f32 %v9787, %v10015
  %v10017 = vpop.f32.mrb[0].mxu0
  %10018 = vmatprep.mubr.f32.mxu0 0.0
  %10019 = vmatmul.mubr.f32.gmra.mrb[0].mxu0 %v4843
  %v10020 = vpop.f32.mrb[0].mxu0
  %v10021 = vadd.f32 %v9792, %v10020
  %v10022 = vpop.f32.mrb[0].mxu0
  %10023 = vmatprep.mubr.f32.mxu0 0.0
  %10024 = vmatmul.mubr.f32.gmra.mrb[0].mxu0 %v4846
  %v10025 = vpop.f32.mrb[0].mxu0
  %v10026 = vadd.f32 %v9797, %v10025
  %v10027 = vpop.f32.mrb[0].mxu0
  %10028 = vdwg.mxu0
  %v10029 = vld [vmem:[%s11] sm:$0xff]
  %v10030 = vld [vmem:[%s11 + $0x8] sm:$0xff]
  %v10031 = vld [vmem:[%s11 + $0x10] sm:$0xff]
  %v10032 = vld [vmem:[%s11 + $0x18] sm:$0xff]
  %v10034 = vsel %vm786, %v5725, 0
  %v10037 = vsel %vm786, %v5726, 0
  %v10040 = vsel %vm786, %v5727, 0
  %v10043 = vsel %vm786, %v5728, 0
  %v10046 = vsel %vm786, %v5729, 0
  %v10049 = vsel %vm786, %v5730, 0
  %v10052 = vsel %vm786, %v5731, 0
  %v10055 = vsel %vm786, %v5732, 0
  %v10058 = vsel %vm786, %v5733, 0
  %v10061 = vsel %vm786, %v5734, 0
  %v10064 = vsel %vm786, %v5735, 0
  %v10067 = vsel %vm786, %v5736, 0
  %v10070 = vsel %vm786, %v5737, 0
  %v10073 = vsel %vm786, %v5738, 0
  %v10076 = vsel %vm786, %v5739, 0
  %v10079 = vsel %vm786, %v5740, 0
  %v10082 = vsel %vm786, %v5741, 0
  %v10085 = vsel %vm786, %v5742, 0
  %v10088 = vsel %vm786, %v5743, 0
  %v10091 = vsel %vm786, %v5744, 0
  %v10094 = vsel %vm786, %v5745, 0
  %v10097 = vsel %vm786, %v5746, 0
  %v10100 = vsel %vm786, %v5747, 0
  %v10103 = vsel %vm786, %v5748, 0
  %v10106 = vsel %vm786, %v5749, 0
  %v10109 = vsel %vm786, %v5750, 0
  %v10112 = vsel %vm786, %v5751, 0
  %v10115 = vsel %vm786, %v5752, 0
  %v10118 = vsel %vm786, %v5753, 0
  %v10121 = vsel %vm786, %v5754, 0
  %v10124 = vsel %vm786, %v5755, 0
  %v10127 = vsel %vm786, %v5756, 0
  %10129 = vmatprep.subr.mxu0 0.0
  %10130 = vmatpush1.msra.mxu0 %v10029
  %10131 = vmatprep.subr.mxu0 0.0
  %10132 = vmatpush1.msra.mxu0 %v10030
  %10133 = vmatprep.subr.mxu0 0.0
  %10134 = vmatpush1.msra.mxu0 %v10031
  %10135 = vmatprep.subr.mxu0 0.0
  %10136 = vmatpush1.msra.mxu0 %v10032
  %10137 = vmatprep.subr.mxu0 0.0
  %10138 = vmatpush1.msra.mxu0 0.0
  %10139 = vmatprep.subr.mxu0 0.0
  %10140 = vmatpush1.msra.mxu0 0.0
  %10141 = vmatprep.subr.mxu0 0.0
  %10142 = vmatpush1.msra.mxu0 0.0
  %10143 = vmatprep.subr.mxu0 0.0
  %10144 = vmatpush1.msra.mxu0 0.0
  %10145 = vmatprep.subr.mxu0 0.0
  %10146 = vmatpush1.msra.mxu0 0.0
  %10147 = vmatprep.subr.mxu0 0.0
  %10148 = vmatpush1.msra.mxu0 0.0
  %10149 = vmatprep.subr.mxu0 0.0
  %10150 = vmatpush1.msra.mxu0 0.0
  %10151 = vmatprep.subr.mxu0 0.0
  %10152 = vmatpush1.msra.mxu0 0.0
  %10153 = vmatprep.subr.mxu0 0.0
  %10154 = vmatpush1.msra.mxu0 0.0
  %10155 = vmatprep.subr.mxu0 0.0
  %10156 = vmatpush1.msra.mxu0 0.0
  %10157 = vmatprep.subr.mxu0 0.0
  %10158 = vmatpush1.msra.mxu0 0.0
  %10159 = vmatprep.subr.mxu0 0.0
  %10160 = vmatpush1.msra.mxu0 0.0
  %10161 = vmatprep.subr.mxu0 0.0
  %10162 = vmatpush1.msra.mxu0 0.0
  %10163 = vmatprep.subr.mxu0 0.0
  %10164 = vmatpush1.msra.mxu0 0.0
  %10165 = vmatprep.subr.mxu0 0.0
  %10166 = vmatpush1.msra.mxu0 0.0
  %10167 = vmatprep.subr.mxu0 0.0
  %10168 = vmatpush1.msra.mxu0 0.0
  %10169 = vmatprep.subr.mxu0 0.0
  %10170 = vmatpush1.msra.mxu0 0.0
  %10171 = vmatprep.subr.mxu0 0.0
  %10172 = vmatpush1.msra.mxu0 0.0
  %10173 = vmatprep.subr.mxu0 0.0
  %10174 = vmatpush1.msra.mxu0 0.0
  %10175 = vmatprep.subr.mxu0 0.0
  %10176 = vmatpush1.msra.mxu0 0.0
  %10177 = vmatprep.subr.mxu0 0.0
  %10178 = vmatpush1.msra.mxu0 0.0
  %10179 = vmatprep.subr.mxu0 0.0
  %10180 = vmatpush1.msra.mxu0 0.0
  %10181 = vmatprep.subr.mxu0 0.0
  %10182 = vmatpush1.msra.mxu0 0.0
  %10183 = vmatprep.subr.mxu0 0.0
  %10184 = vmatpush1.msra.mxu0 0.0
  %10185 = vmatprep.subr.mxu0 0.0
  %10186 = vmatpush1.msra.mxu0 0.0
  %10187 = vmatprep.subr.mxu0 0.0
  %10188 = vmatpush1.msra.mxu0 0.0
  %10189 = vmatprep.subr.mxu0 0.0
  %10190 = vmatpush1.msra.mxu0 0.0
  %10191 = vmatprep.subr.mxu0 0.0
  %10192 = vmatpush1.msra.mxu0 0.0
  %10193 = vmatprep.mubr.f32.mxu0 0.0
  %10194 = vmatmul.mubr.f32.gmra.mrb[0].mxu0 %v10034
  %v10195 = vpop.f32.mrb[0].mxu0
  %v10196 = vadd.f32 0.0, %v10195
  %v10197 = vpop.f32.mrb[0].mxu0
  %10198 = vmatprep.mubr.f32.mxu0 0.0
  %10199 = vmatmul.mubr.f32.gmra.mrb[0].mxu0 %v10037
  %v10200 = vpop.f32.mrb[0].mxu0
  %v10201 = vadd.f32 0.0, %v10200
  %v10202 = vpop.f32.mrb[0].mxu0
  %10203 = vmatprep.mubr.f32.mxu0 0.0
  %10204 = vmatmul.mubr.f32.gmra.mrb[0].mxu0 %v10040
  %v10205 = vpop.f32.mrb[0].mxu0
  %v10206 = vadd.f32 0.0, %v10205
  %v10207 = vpop.f32.mrb[0].mxu0
  %10208 = vmatprep.mubr.f32.mxu0 0.0
  %10209 = vmatmul.mubr.f32.gmra.mrb[0].mxu0 %v10043
  %v10210 = vpop.f32.mrb[0].mxu0
  %v10211 = vadd.f32 0.0, %v10210
  %v10212 = vpop.f32.mrb[0].mxu0
  %10213 = vmatprep.mubr.f32.mxu0 0.0
  %10214 = vmatmul.mubr.f32.gmra.mrb[0].mxu0 %v10046
  %v10215 = vpop.f32.mrb[0].mxu0
  %v10216 = vadd.f32 0.0, %v10215
  %v10217 = vpop.f32.mrb[0].mxu0
  %10218 = vmatprep.mubr.f32.mxu0 0.0
  %10219 = vmatmul.mubr.f32.gmra.mrb[0].mxu0 %v10049
  %v10220 = vpop.f32.mrb[0].mxu0
  %v10221 = vadd.f32 0.0, %v10220
  %v10222 = vpop.f32.mrb[0].mxu0
  %10223 = vmatprep.mubr.f32.mxu0 0.0
  %10224 = vmatmul.mubr.f32.gmra.mrb[0].mxu0 %v10052
  %v10225 = vpop.f32.mrb[0].mxu0
  %v10226 = vadd.f32 0.0, %v10225
  %v10227 = vpop.f32.mrb[0].mxu0
  %10228 = vmatprep.mubr.f32.mxu0 0.0
  %10229 = vmatmul.mubr.f32.gmra.mrb[0].mxu0 %v10055
  %v10230 = vpop.f32.mrb[0].mxu0
  %v10231 = vadd.f32 0.0, %v10230
  %v10232 = vpop.f32.mrb[0].mxu0
  %10233 = vmatprep.mubr.f32.mxu0 0.0
  %10234 = vmatmul.mubr.f32.gmra.mrb[0].mxu0 %v10058
  %v10235 = vpop.f32.mrb[0].mxu0
  %v10236 = vadd.f32 0.0, %v10235
  %v10237 = vpop.f32.mrb[0].mxu0
  %10238 = vmatprep.mubr.f32.mxu0 0.0
  %10239 = vmatmul.mubr.f32.gmra.mrb[0].mxu0 %v10061
  %v10240 = vpop.f32.mrb[0].mxu0
  %v10241 = vadd.f32 0.0, %v10240
  %v10242 = vpop.f32.mrb[0].mxu0
  %10243 = vmatprep.mubr.f32.mxu0 0.0
  %10244 = vmatmul.mubr.f32.gmra.mrb[0].mxu0 %v10064
  %v10245 = vpop.f32.mrb[0].mxu0
  %v10246 = vadd.f32 0.0, %v10245
  %v10247 = vpop.f32.mrb[0].mxu0
  %10248 = vmatprep.mubr.f32.mxu0 0.0
  %10249 = vmatmul.mubr.f32.gmra.mrb[0].mxu0 %v10067
  %v10250 = vpop.f32.mrb[0].mxu0
  %v10251 = vadd.f32 0.0, %v10250
  %v10252 = vpop.f32.mrb[0].mxu0
  %10253 = vmatprep.mubr.f32.mxu0 0.0
  %10254 = vmatmul.mubr.f32.gmra.mrb[0].mxu0 %v10070
  %v10255 = vpop.f32.mrb[0].mxu0
  %v10256 = vadd.f32 0.0, %v10255
  %v10257 = vpop.f32.mrb[0].mxu0
  %10258 = vmatprep.mubr.f32.mxu0 0.0
  %10259 = vmatmul.mubr.f32.gmra.mrb[0].mxu0 %v10073
  %v10260 = vpop.f32.mrb[0].mxu0
  %v10261 = vadd.f32 0.0, %v10260
  %v10262 = vpop.f32.mrb[0].mxu0
  %10263 = vmatprep.mubr.f32.mxu0 0.0
  %10264 = vmatmul.mubr.f32.gmra.mrb[0].mxu0 %v10076
  %v10265 = vpop.f32.mrb[0].mxu0
  %v10266 = vadd.f32 0.0, %v10265
  %v10267 = vpop.f32.mrb[0].mxu0
  %10268 = vmatprep.mubr.f32.mxu0 0.0
  %10269 = vmatmul.mubr.f32.gmra.mrb[0].mxu0 %v10079
  %v10270 = vpop.f32.mrb[0].mxu0
  %v10271 = vadd.f32 0.0, %v10270
  %v10272 = vpop.f32.mrb[0].mxu0
  %10273 = vmatprep.mubr.f32.mxu0 0.0
  %10274 = vmatmul.mubr.f32.gmra.mrb[0].mxu0 %v10082
  %v10275 = vpop.f32.mrb[0].mxu0
  %v10276 = vadd.f32 0.0, %v10275
  %v10277 = vpop.f32.mrb[0].mxu0
  %10278 = vmatprep.mubr.f32.mxu0 0.0
  %10279 = vmatmul.mubr.f32.gmra.mrb[0].mxu0 %v10085
  %v10280 = vpop.f32.mrb[0].mxu0
  %v10281 = vadd.f32 0.0, %v10280
  %v10282 = vpop.f32.mrb[0].mxu0
  %10283 = vmatprep.mubr.f32.mxu0 0.0
  %10284 = vmatmul.mubr.f32.gmra.mrb[0].mxu0 %v10088
  %v10285 = vpop.f32.mrb[0].mxu0
  %v10286 = vadd.f32 0.0, %v10285
  %v10287 = vpop.f32.mrb[0].mxu0
  %10288 = vmatprep.mubr.f32.mxu0 0.0
  %10289 = vmatmul.mubr.f32.gmra.mrb[0].mxu0 %v10091
  %v10290 = vpop.f32.mrb[0].mxu0
  %v10291 = vadd.f32 0.0, %v10290
  %v10292 = vpop.f32.mrb[0].mxu0
  %10293 = vmatprep.mubr.f32.mxu0 0.0
  %10294 = vmatmul.mubr.f32.gmra.mrb[0].mxu0 %v10094
  %v10295 = vpop.f32.mrb[0].mxu0
  %v10296 = vadd.f32 0.0, %v10295
  %v10297 = vpop.f32.mrb[0].mxu0
  %10298 = vmatprep.mubr.f32.mxu0 0.0
  %10299 = vmatmul.mubr.f32.gmra.mrb[0].mxu0 %v10097
  %v10300 = vpop.f32.mrb[0].mxu0
  %v10301 = vadd.f32 0.0, %v10300
  %v10302 = vpop.f32.mrb[0].mxu0
  %10303 = vmatprep.mubr.f32.mxu0 0.0
  %10304 = vmatmul.mubr.f32.gmra.mrb[0].mxu0 %v10100
  %v10305 = vpop.f32.mrb[0].mxu0
  %v10306 = vadd.f32 0.0, %v10305
  %v10307 = vpop.f32.mrb[0].mxu0
  %10308 = vmatprep.mubr.f32.mxu0 0.0
  %10309 = vmatmul.mubr.f32.gmra.mrb[0].mxu0 %v10103
  %v10310 = vpop.f32.mrb[0].mxu0
  %v10311 = vadd.f32 0.0, %v10310
  %v10312 = vpop.f32.mrb[0].mxu0
  %10313 = vmatprep.mubr.f32.mxu0 0.0
  %10314 = vmatmul.mubr.f32.gmra.mrb[0].mxu0 %v10106
  %v10315 = vpop.f32.mrb[0].mxu0
  %v10316 = vadd.f32 0.0, %v10315
  %v10317 = vpop.f32.mrb[0].mxu0
  %10318 = vmatprep.mubr.f32.mxu0 0.0
  %10319 = vmatmul.mubr.f32.gmra.mrb[0].mxu0 %v10109
  %v10320 = vpop.f32.mrb[0].mxu0
  %v10321 = vadd.f32 0.0, %v10320
  %v10322 = vpop.f32.mrb[0].mxu0
  %10323 = vmatprep.mubr.f32.mxu0 0.0
  %10324 = vmatmul.mubr.f32.gmra.mrb[0].mxu0 %v10112
  %v10325 = vpop.f32.mrb[0].mxu0
  %v10326 = vadd.f32 0.0, %v10325
  %v10327 = vpop.f32.mrb[0].mxu0
  %10328 = vmatprep.mubr.f32.mxu0 0.0
  %10329 = vmatmul.mubr.f32.gmra.mrb[0].mxu0 %v10115
  %v10330 = vpop.f32.mrb[0].mxu0
  %v10331 = vadd.f32 0.0, %v10330
  %v10332 = vpop.f32.mrb[0].mxu0
  %10333 = vmatprep.mubr.f32.mxu0 0.0
  %10334 = vmatmul.mubr.f32.gmra.mrb[0].mxu0 %v10118
  %v10335 = vpop.f32.mrb[0].mxu0
  %v10336 = vadd.f32 0.0, %v10335
  %v10337 = vpop.f32.mrb[0].mxu0
  %10338 = vmatprep.mubr.f32.mxu0 0.0
  %10339 = vmatmul.mubr.f32.gmra.mrb[0].mxu0 %v10121
  %v10340 = vpop.f32.mrb[0].mxu0
  %v10341 = vadd.f32 0.0, %v10340
  %v10342 = vpop.f32.mrb[0].mxu0
  %10343 = vmatprep.mubr.f32.mxu0 0.0
  %10344 = vmatmul.mubr.f32.gmra.mrb[0].mxu0 %v10124
  %v10345 = vpop.f32.mrb[0].mxu0
  %v10346 = vadd.f32 0.0, %v10345
  %v10347 = vpop.f32.mrb[0].mxu0
  %10348 = vmatprep.mubr.f32.mxu0 0.0
  %10349 = vmatmul.mubr.f32.gmra.mrb[0].mxu0 %v10127
  %v10350 = vpop.f32.mrb[0].mxu0
  %v10351 = vadd.f32 0.0, %v10350
  %v10352 = vpop.f32.mrb[0].mxu0
  %10353 = vdwg.mxu0
  %v10354 = vadd.f32 %v9871, %v10196
  %v10355 = vadd.f32 %v9876, %v10201
  %v10356 = vadd.f32 %v9881, %v10206
  %v10357 = vadd.f32 %v9886, %v10211
  %v10358 = vadd.f32 %v9891, %v10216
  %v10359 = vadd.f32 %v9896, %v10221
  %v10360 = vadd.f32 %v9901, %v10226
  %v10361 = vadd.f32 %v9906, %v10231
  %v10362 = vadd.f32 %v9911, %v10236
  %v10363 = vadd.f32 %v9916, %v10241
  %v10364 = vadd.f32 %v9921, %v10246
  %v10365 = vadd.f32 %v9926, %v10251
  %v10366 = vadd.f32 %v9931, %v10256
  %v10367 = vadd.f32 %v9936, %v10261
  %v10368 = vadd.f32 %v9941, %v10266
  %v10369 = vadd.f32 %v9946, %v10271
  %v10370 = vadd.f32 %v9951, %v10276
  %v10371 = vadd.f32 %v9956, %v10281
  %v10372 = vadd.f32 %v9961, %v10286
  %v10373 = vadd.f32 %v9966, %v10291
  %v10374 = vadd.f32 %v9971, %v10296
  %v10375 = vadd.f32 %v9976, %v10301
  %v10376 = vadd.f32 %v9981, %v10306
  %v10377 = vadd.f32 %v9986, %v10311
  %v10378 = vadd.f32 %v9991, %v10316
  %v10379 = vadd.f32 %v9996, %v10321
  %v10380 = vadd.f32 %v10001, %v10326
  %v10381 = vadd.f32 %v10006, %v10331
  %v10382 = vadd.f32 %v10011, %v10336
  %v10383 = vadd.f32 %v10016, %v10341
  %v10384 = vadd.f32 %v10021, %v10346
  %v10385 = vadd.f32 %v10026, %v10351
  %v10386 = vld [vmem:[%s12] sm:$0x1]
  %v10388 = vlaneseq
  %v10389 = vshrl.u32 %v10388, 7
  %v10390 = vsub.s32 0, %v10389
  %v10391 = vrot.slane %v10386, %v10390
  %v10393 = vadd.f32 %v10354, %v10391
  %v10394 = vadd.f32 %v10355, %v10391
  %v10395 = vadd.f32 %v10356, %v10391
  %v10396 = vadd.f32 %v10357, %v10391
  %v10397 = vadd.f32 %v10358, %v10391
  %v10398 = vadd.f32 %v10359, %v10391
  %v10399 = vadd.f32 %v10360, %v10391
  %v10400 = vadd.f32 %v10361, %v10391
  %v10401 = vadd.f32 %v10362, %v10391
  %v10402 = vadd.f32 %v10363, %v10391
  %v10403 = vadd.f32 %v10364, %v10391
  %v10404 = vadd.f32 %v10365, %v10391
  %v10405 = vadd.f32 %v10366, %v10391
  %v10406 = vadd.f32 %v10367, %v10391
  %v10407 = vadd.f32 %v10368, %v10391
  %v10408 = vadd.f32 %v10369, %v10391
  %v10409 = vadd.f32 %v10370, %v10391
  %v10410 = vadd.f32 %v10371, %v10391
  %v10411 = vadd.f32 %v10372, %v10391
  %v10412 = vadd.f32 %v10373, %v10391
  %v10413 = vadd.f32 %v10374, %v10391
  %v10414 = vadd.f32 %v10375, %v10391
  %v10415 = vadd.f32 %v10376, %v10391
  %v10416 = vadd.f32 %v10377, %v10391
  %v10417 = vadd.f32 %v10378, %v10391
  %v10418 = vadd.f32 %v10379, %v10391
  %v10419 = vadd.f32 %v10380, %v10391
  %v10420 = vadd.f32 %v10381, %v10391
  %v10421 = vadd.f32 %v10382, %v10391
  %v10422 = vadd.f32 %v10383, %v10391
  %v10423 = vadd.f32 %v10384, %v10391
  %v10424 = vadd.f32 %v10385, %v10391
  %v10425 = vld [vmem:[%s13] sm:$0xff]
  %v10426 = vld [vmem:[%s13 + $0x8] sm:$0xff]
  %v10427 = vld [vmem:[%s13 + $0x10] sm:$0xff]
  %v10428 = vld [vmem:[%s13 + $0x18] sm:$0xff]
  %v10429 = vld [vmem:[%s14] sm:$0x1]
  %v10431 = vlaneseq
  %v10432 = vshrl.u32 %v10431, 7
  %v10433 = vsub.s32 0, %v10432
  %v10434 = vrot.slane %v10429, %v10433
  %v10437 = vsel %vm786, %v10393, 0
  %v10440 = vsel %vm786, %v10394, 0
  %v10443 = vsel %vm786, %v10395, 0
  %v10446 = vsel %vm786, %v10396, 0
  %v10449 = vsel %vm786, %v10397, 0
  %v10452 = vsel %vm786, %v10398, 0
  %v10455 = vsel %vm786, %v10399, 0
  %v10458 = vsel %vm786, %v10400, 0
  %v10461 = vsel %vm786, %v10401, 0
  %v10464 = vsel %vm786, %v10402, 0
  %v10467 = vsel %vm786, %v10403, 0
  %v10470 = vsel %vm786, %v10404, 0
  %v10473 = vsel %vm786, %v10405, 0
  %v10476 = vsel %vm786, %v10406, 0
  %v10479 = vsel %vm786, %v10407, 0
  %v10482 = vsel %vm786, %v10408, 0
  %v10485 = vsel %vm786, %v10409, 0
  %v10488 = vsel %vm786, %v10410, 0
  %v10491 = vsel %vm786, %v10411, 0
  %v10494 = vsel %vm786, %v10412, 0
  %v10497 = vsel %vm786, %v10413, 0
  %v10500 = vsel %vm786, %v10414, 0
  %v10503 = vsel %vm786, %v10415, 0
  %v10506 = vsel %vm786, %v10416, 0
  %v10509 = vsel %vm786, %v10417, 0
  %v10512 = vsel %vm786, %v10418, 0
  %v10515 = vsel %vm786, %v10419, 0
  %v10518 = vsel %vm786, %v10420, 0
  %v10521 = vsel %vm786, %v10421, 0
  %v10524 = vsel %vm786, %v10422, 0
  %v10527 = vsel %vm786, %v10423, 0
  %v10530 = vsel %vm786, %v10424, 0
  %10532 = vmatprep.subr.mxu0 0.0
  %10533 = vmatpush1.msra.mxu0 %v10425
  %10534 = vmatprep.subr.mxu0 0.0
  %10535 = vmatpush1.msra.mxu0 %v10426
  %10536 = vmatprep.subr.mxu0 0.0
  %10537 = vmatpush1.msra.mxu0 %v10427
  %10538 = vmatprep.subr.mxu0 0.0
  %10539 = vmatpush1.msra.mxu0 %v10428
  %10540 = vmatprep.subr.mxu0 0.0
  %10541 = vmatpush1.msra.mxu0 0.0
  %10542 = vmatprep.subr.mxu0 0.0
  %10543 = vmatpush1.msra.mxu0 0.0
  %10544 = vmatprep.subr.mxu0 0.0
  %10545 = vmatpush1.msra.mxu0 0.0
  %10546 = vmatprep.subr.mxu0 0.0
  %10547 = vmatpush1.msra.mxu0 0.0
  %10548 = vmatprep.subr.mxu0 0.0
  %10549 = vmatpush1.msra.mxu0 0.0
  %10550 = vmatprep.subr.mxu0 0.0
  %10551 = vmatpush1.msra.mxu0 0.0
  %10552 = vmatprep.subr.mxu0 0.0
  %10553 = vmatpush1.msra.mxu0 0.0
  %10554 = vmatprep.subr.mxu0 0.0
  %10555 = vmatpush1.msra.mxu0 0.0
  %10556 = vmatprep.subr.mxu0 0.0
  %10557 = vmatpush1.msra.mxu0 0.0
  %10558 = vmatprep.subr.mxu0 0.0
  %10559 = vmatpush1.msra.mxu0 0.0
  %10560 = vmatprep.subr.mxu0 0.0
  %10561 = vmatpush1.msra.mxu0 0.0
  %10562 = vmatprep.subr.mxu0 0.0
  %10563 = vmatpush1.msra.mxu0 0.0
  %10564 = vmatprep.subr.mxu0 0.0
  %10565 = vmatpush1.msra.mxu0 0.0
  %10566 = vmatprep.subr.mxu0 0.0
  %10567 = vmatpush1.msra.mxu0 0.0
  %10568 = vmatprep.subr.mxu0 0.0
  %10569 = vmatpush1.msra.mxu0 0.0
  %10570 = vmatprep.subr.mxu0 0.0
  %10571 = vmatpush1.msra.mxu0 0.0
  %10572 = vmatprep.subr.mxu0 0.0
  %10573 = vmatpush1.msra.mxu0 0.0
  %10574 = vmatprep.subr.mxu0 0.0
  %10575 = vmatpush1.msra.mxu0 0.0
  %10576 = vmatprep.subr.mxu0 0.0
  %10577 = vmatpush1.msra.mxu0 0.0
  %10578 = vmatprep.subr.mxu0 0.0
  %10579 = vmatpush1.msra.mxu0 0.0
  %10580 = vmatprep.subr.mxu0 0.0
  %10581 = vmatpush1.msra.mxu0 0.0
  %10582 = vmatprep.subr.mxu0 0.0
  %10583 = vmatpush1.msra.mxu0 0.0
  %10584 = vmatprep.subr.mxu0 0.0
  %10585 = vmatpush1.msra.mxu0 0.0
  %10586 = vmatprep.subr.mxu0 0.0
  %10587 = vmatpush1.msra.mxu0 0.0
  %10588 = vmatprep.subr.mxu0 0.0
  %10589 = vmatpush1.msra.mxu0 0.0
  %10590 = vmatprep.subr.mxu0 0.0
  %10591 = vmatpush1.msra.mxu0 0.0
  %10592 = vmatprep.subr.mxu0 0.0
  %10593 = vmatpush1.msra.mxu0 0.0
  %10594 = vmatprep.subr.mxu0 0.0
  %10595 = vmatpush1.msra.mxu0 0.0
  %10596 = vmatprep.mubr.f32.mxu0 0.0
  %10597 = vmatmul.mubr.f32.gmra.mrb[0].mxu0 %v10437
  %v10598 = vpop.f32.mrb[0].mxu0
  %v10599 = vadd.f32 %v10434, %v10598
  %v10600 = vpop.f32.mrb[0].mxu0
  %10601 = vmatprep.mubr.f32.mxu0 0.0
  %10602 = vmatmul.mubr.f32.gmra.mrb[0].mxu0 %v10440
  %v10603 = vpop.f32.mrb[0].mxu0
  %v10604 = vadd.f32 %v10434, %v10603
  %v10605 = vpop.f32.mrb[0].mxu0
  %10606 = vmatprep.mubr.f32.mxu0 0.0
  %10607 = vmatmul.mubr.f32.gmra.mrb[0].mxu0 %v10443
  %v10608 = vpop.f32.mrb[0].mxu0
  %v10609 = vadd.f32 %v10434, %v10608
  %v10610 = vpop.f32.mrb[0].mxu0
  %10611 = vmatprep.mubr.f32.mxu0 0.0
  %10612 = vmatmul.mubr.f32.gmra.mrb[0].mxu0 %v10446
  %v10613 = vpop.f32.mrb[0].mxu0
  %v10614 = vadd.f32 %v10434, %v10613
  %v10615 = vpop.f32.mrb[0].mxu0
  %10616 = vmatprep.mubr.f32.mxu0 0.0
  %10617 = vmatmul.mubr.f32.gmra.mrb[0].mxu0 %v10449
  %v10618 = vpop.f32.mrb[0].mxu0
  %v10619 = vadd.f32 %v10434, %v10618
  %v10620 = vpop.f32.mrb[0].mxu0
  %10621 = vmatprep.mubr.f32.mxu0 0.0
  %10622 = vmatmul.mubr.f32.gmra.mrb[0].mxu0 %v10452
  %v10623 = vpop.f32.mrb[0].mxu0
  %v10624 = vadd.f32 %v10434, %v10623
  %v10625 = vpop.f32.mrb[0].mxu0
  %10626 = vmatprep.mubr.f32.mxu0 0.0
  %10627 = vmatmul.mubr.f32.gmra.mrb[0].mxu0 %v10455
  %v10628 = vpop.f32.mrb[0].mxu0
  %v10629 = vadd.f32 %v10434, %v10628
  %v10630 = vpop.f32.mrb[0].mxu0
  %10631 = vmatprep.mubr.f32.mxu0 0.0
  %10632 = vmatmul.mubr.f32.gmra.mrb[0].mxu0 %v10458
  %v10633 = vpop.f32.mrb[0].mxu0
  %v10634 = vadd.f32 %v10434, %v10633
  %v10635 = vpop.f32.mrb[0].mxu0
  %10636 = vmatprep.mubr.f32.mxu0 0.0
  %10637 = vmatmul.mubr.f32.gmra.mrb[0].mxu0 %v10461
  %v10638 = vpop.f32.mrb[0].mxu0
  %v10639 = vadd.f32 %v10434, %v10638
  %v10640 = vpop.f32.mrb[0].mxu0
  %10641 = vmatprep.mubr.f32.mxu0 0.0
  %10642 = vmatmul.mubr.f32.gmra.mrb[0].mxu0 %v10464
  %v10643 = vpop.f32.mrb[0].mxu0
  %v10644 = vadd.f32 %v10434, %v10643
  %v10645 = vpop.f32.mrb[0].mxu0
  %10646 = vmatprep.mubr.f32.mxu0 0.0
  %10647 = vmatmul.mubr.f32.gmra.mrb[0].mxu0 %v10467
  %v10648 = vpop.f32.mrb[0].mxu0
  %v10649 = vadd.f32 %v10434, %v10648
  %v10650 = vpop.f32.mrb[0].mxu0
  %10651 = vmatprep.mubr.f32.mxu0 0.0
  %10652 = vmatmul.mubr.f32.gmra.mrb[0].mxu0 %v10470
  %v10653 = vpop.f32.mrb[0].mxu0
  %v10654 = vadd.f32 %v10434, %v10653
  %v10655 = vpop.f32.mrb[0].mxu0
  %10656 = vmatprep.mubr.f32.mxu0 0.0
  %10657 = vmatmul.mubr.f32.gmra.mrb[0].mxu0 %v10473
  %v10658 = vpop.f32.mrb[0].mxu0
  %v10659 = vadd.f32 %v10434, %v10658
  %v10660 = vpop.f32.mrb[0].mxu0
  %10661 = vmatprep.mubr.f32.mxu0 0.0
  %10662 = vmatmul.mubr.f32.gmra.mrb[0].mxu0 %v10476
  %v10663 = vpop.f32.mrb[0].mxu0
  %v10664 = vadd.f32 %v10434, %v10663
  %v10665 = vpop.f32.mrb[0].mxu0
  %10666 = vmatprep.mubr.f32.mxu0 0.0
  %10667 = vmatmul.mubr.f32.gmra.mrb[0].mxu0 %v10479
  %v10668 = vpop.f32.mrb[0].mxu0
  %v10669 = vadd.f32 %v10434, %v10668
  %v10670 = vpop.f32.mrb[0].mxu0
  %10671 = vmatprep.mubr.f32.mxu0 0.0
  %10672 = vmatmul.mubr.f32.gmra.mrb[0].mxu0 %v10482
  %v10673 = vpop.f32.mrb[0].mxu0
  %v10674 = vadd.f32 %v10434, %v10673
  %v10675 = vpop.f32.mrb[0].mxu0
  %10676 = vmatprep.mubr.f32.mxu0 0.0
  %10677 = vmatmul.mubr.f32.gmra.mrb[0].mxu0 %v10485
  %v10678 = vpop.f32.mrb[0].mxu0
  %v10679 = vadd.f32 %v10434, %v10678
  %v10680 = vpop.f32.mrb[0].mxu0
  %10681 = vmatprep.mubr.f32.mxu0 0.0
  %10682 = vmatmul.mubr.f32.gmra.mrb[0].mxu0 %v10488
  %v10683 = vpop.f32.mrb[0].mxu0
  %v10684 = vadd.f32 %v10434, %v10683
  %v10685 = vpop.f32.mrb[0].mxu0
  %10686 = vmatprep.mubr.f32.mxu0 0.0
  %10687 = vmatmul.mubr.f32.gmra.mrb[0].mxu0 %v10491
  %v10688 = vpop.f32.mrb[0].mxu0
  %v10689 = vadd.f32 %v10434, %v10688
  %v10690 = vpop.f32.mrb[0].mxu0
  %10691 = vmatprep.mubr.f32.mxu0 0.0
  %10692 = vmatmul.mubr.f32.gmra.mrb[0].mxu0 %v10494
  %v10693 = vpop.f32.mrb[0].mxu0
  %v10694 = vadd.f32 %v10434, %v10693
  %v10695 = vpop.f32.mrb[0].mxu0
  %10696 = vmatprep.mubr.f32.mxu0 0.0
  %10697 = vmatmul.mubr.f32.gmra.mrb[0].mxu0 %v10497
  %v10698 = vpop.f32.mrb[0].mxu0
  %v10699 = vadd.f32 %v10434, %v10698
  %v10700 = vpop.f32.mrb[0].mxu0
  %10701 = vmatprep.mubr.f32.mxu0 0.0
  %10702 = vmatmul.mubr.f32.gmra.mrb[0].mxu0 %v10500
  %v10703 = vpop.f32.mrb[0].mxu0
  %v10704 = vadd.f32 %v10434, %v10703
  %v10705 = vpop.f32.mrb[0].mxu0
  %10706 = vmatprep.mubr.f32.mxu0 0.0
  %10707 = vmatmul.mubr.f32.gmra.mrb[0].mxu0 %v10503
  %v10708 = vpop.f32.mrb[0].mxu0
  %v10709 = vadd.f32 %v10434, %v10708
  %v10710 = vpop.f32.mrb[0].mxu0
  %10711 = vmatprep.mubr.f32.mxu0 0.0
  %10712 = vmatmul.mubr.f32.gmra.mrb[0].mxu0 %v10506
  %v10713 = vpop.f32.mrb[0].mxu0
  %v10714 = vadd.f32 %v10434, %v10713
  %v10715 = vpop.f32.mrb[0].mxu0
  %10716 = vmatprep.mubr.f32.mxu0 0.0
  %10717 = vmatmul.mubr.f32.gmra.mrb[0].mxu0 %v10509
  %v10718 = vpop.f32.mrb[0].mxu0
  %v10719 = vadd.f32 %v10434, %v10718
  %v10720 = vpop.f32.mrb[0].mxu0
  %10721 = vmatprep.mubr.f32.mxu0 0.0
  %10722 = vmatmul.mubr.f32.gmra.mrb[0].mxu0 %v10512
  %v10723 = vpop.f32.mrb[0].mxu0
  %v10724 = vadd.f32 %v10434, %v10723
  %v10725 = vpop.f32.mrb[0].mxu0
  %10726 = vmatprep.mubr.f32.mxu0 0.0
  %10727 = vmatmul.mubr.f32.gmra.mrb[0].mxu0 %v10515
  %v10728 = vpop.f32.mrb[0].mxu0
  %v10729 = vadd.f32 %v10434, %v10728
  %v10730 = vpop.f32.mrb[0].mxu0
  %10731 = vmatprep.mubr.f32.mxu0 0.0
  %10732 = vmatmul.mubr.f32.gmra.mrb[0].mxu0 %v10518
  %v10733 = vpop.f32.mrb[0].mxu0
  %v10734 = vadd.f32 %v10434, %v10733
  %v10735 = vpop.f32.mrb[0].mxu0
  %10736 = vmatprep.mubr.f32.mxu0 0.0
  %10737 = vmatmul.mubr.f32.gmra.mrb[0].mxu0 %v10521
  %v10738 = vpop.f32.mrb[0].mxu0
  %v10739 = vadd.f32 %v10434, %v10738
  %v10740 = vpop.f32.mrb[0].mxu0
  %10741 = vmatprep.mubr.f32.mxu0 0.0
  %10742 = vmatmul.mubr.f32.gmra.mrb[0].mxu0 %v10524
  %v10743 = vpop.f32.mrb[0].mxu0
  %v10744 = vadd.f32 %v10434, %v10743
  %v10745 = vpop.f32.mrb[0].mxu0
  %10746 = vmatprep.mubr.f32.mxu0 0.0
  %10747 = vmatmul.mubr.f32.gmra.mrb[0].mxu0 %v10527
  %v10748 = vpop.f32.mrb[0].mxu0
  %v10749 = vadd.f32 %v10434, %v10748
  %v10750 = vpop.f32.mrb[0].mxu0
  %10751 = vmatprep.mubr.f32.mxu0 0.0
  %10752 = vmatmul.mubr.f32.gmra.mrb[0].mxu0 %v10530
  %v10753 = vpop.f32.mrb[0].mxu0
  %v10754 = vadd.f32 %v10434, %v10753
  %v10755 = vpop.f32.mrb[0].mxu0
  %10756 = vdwg.mxu0
  %v10757 = vmul.f32 %v10599, 0.5
  %v10758 = vmul.f32 %v10604, 0.5
  %v10759 = vmul.f32 %v10609, 0.5
  %v10760 = vmul.f32 %v10614, 0.5
  %v10761 = vmul.f32 %v10619, 0.5
  %v10762 = vmul.f32 %v10624, 0.5
  %v10763 = vmul.f32 %v10629, 0.5
  %v10764 = vmul.f32 %v10634, 0.5
  %v10765 = vmul.f32 %v10639, 0.5
  %v10766 = vmul.f32 %v10644, 0.5
  %v10767 = vmul.f32 %v10649, 0.5
  %v10768 = vmul.f32 %v10654, 0.5
  %v10769 = vmul.f32 %v10659, 0.5
  %v10770 = vmul.f32 %v10664, 0.5
  %v10771 = vmul.f32 %v10669, 0.5
  %v10772 = vmul.f32 %v10674, 0.5
  %v10773 = vmul.f32 %v10679, 0.5
  %v10774 = vmul.f32 %v10684, 0.5
  %v10775 = vmul.f32 %v10689, 0.5
  %v10776 = vmul.f32 %v10694, 0.5
  %v10777 = vmul.f32 %v10699, 0.5
  %v10778 = vmul.f32 %v10704, 0.5
  %v10779 = vmul.f32 %v10709, 0.5
  %v10780 = vmul.f32 %v10714, 0.5
  %v10781 = vmul.f32 %v10719, 0.5
  %v10782 = vmul.f32 %v10724, 0.5
  %v10783 = vmul.f32 %v10729, 0.5
  %v10784 = vmul.f32 %v10734, 0.5
  %v10785 = vmul.f32 %v10739, 0.5
  %v10786 = vmul.f32 %v10744, 0.5
  %v10787 = vmul.f32 %v10749, 0.5
  %v10788 = vmul.f32 %v10754, 0.5
  %v10789 = vmul.f32 %v10599, 0.044715
  %v10790 = vmul.f32 %v10604, 0.044715
  %v10791 = vmul.f32 %v10609, 0.044715
  %v10792 = vmul.f32 %v10614, 0.044715
  %v10793 = vmul.f32 %v10619, 0.044715
  %v10794 = vmul.f32 %v10624, 0.044715
  %v10795 = vmul.f32 %v10629, 0.044715
  %v10796 = vmul.f32 %v10634, 0.044715
  %v10797 = vmul.f32 %v10639, 0.044715
  %v10798 = vmul.f32 %v10644, 0.044715
  %v10799 = vmul.f32 %v10649, 0.044715
  %v10800 = vmul.f32 %v10654, 0.044715
  %v10801 = vmul.f32 %v10659, 0.044715
  %v10802 = vmul.f32 %v10664, 0.044715
  %v10803 = vmul.f32 %v10669, 0.044715
  %v10804 = vmul.f32 %v10674, 0.044715
  %v10805 = vmul.f32 %v10679, 0.044715
  %v10806 = vmul.f32 %v10684, 0.044715
  %v10807 = vmul.f32 %v10689, 0.044715
  %v10808 = vmul.f32 %v10694, 0.044715
  %v10809 = vmul.f32 %v10699, 0.044715
  %v10810 = vmul.f32 %v10704, 0.044715
  %v10811 = vmul.f32 %v10709, 0.044715
  %v10812 = vmul.f32 %v10714, 0.044715
  %v10813 = vmul.f32 %v10719, 0.044715
  %v10814 = vmul.f32 %v10724, 0.044715
  %v10815 = vmul.f32 %v10729, 0.044715
  %v10816 = vmul.f32 %v10734, 0.044715
  %v10817 = vmul.f32 %v10739, 0.044715
  %v10818 = vmul.f32 %v10744, 0.044715
  %v10819 = vmul.f32 %v10749, 0.044715
  %v10820 = vmul.f32 %v10754, 0.044715
  %v10821 = vmul.f32 %v10789, %v10599
  %v10822 = vmul.f32 %v10790, %v10604
  %v10823 = vmul.f32 %v10791, %v10609
  %v10824 = vmul.f32 %v10792, %v10614
  %v10825 = vmul.f32 %v10793, %v10619
  %v10826 = vmul.f32 %v10794, %v10624
  %v10827 = vmul.f32 %v10795, %v10629
  %v10828 = vmul.f32 %v10796, %v10634
  %v10829 = vmul.f32 %v10797, %v10639
  %v10830 = vmul.f32 %v10798, %v10644
  %v10831 = vmul.f32 %v10799, %v10649
  %v10832 = vmul.f32 %v10800, %v10654
  %v10833 = vmul.f32 %v10801, %v10659
  %v10834 = vmul.f32 %v10802, %v10664
  %v10835 = vmul.f32 %v10803, %v10669
  %v10836 = vmul.f32 %v10804, %v10674
  %v10837 = vmul.f32 %v10805, %v10679
  %v10838 = vmul.f32 %v10806, %v10684
  %v10839 = vmul.f32 %v10807, %v10689
  %v10840 = vmul.f32 %v10808, %v10694
  %v10841 = vmul.f32 %v10809, %v10699
  %v10842 = vmul.f32 %v10810, %v10704
  %v10843 = vmul.f32 %v10811, %v10709
  %v10844 = vmul.f32 %v10812, %v10714
  %v10845 = vmul.f32 %v10813, %v10719
  %v10846 = vmul.f32 %v10814, %v10724
  %v10847 = vmul.f32 %v10815, %v10729
  %v10848 = vmul.f32 %v10816, %v10734
  %v10849 = vmul.f32 %v10817, %v10739
  %v10850 = vmul.f32 %v10818, %v10744
  %v10851 = vmul.f32 %v10819, %v10749
  %v10852 = vmul.f32 %v10820, %v10754
  %v10853 = vmul.f32 %v10821, %v10599
  %v10854 = vmul.f32 %v10822, %v10604
  %v10855 = vmul.f32 %v10823, %v10609
  %v10856 = vmul.f32 %v10824, %v10614
  %v10857 = vmul.f32 %v10825, %v10619
  %v10858 = vmul.f32 %v10826, %v10624
  %v10859 = vmul.f32 %v10827, %v10629
  %v10860 = vmul.f32 %v10828, %v10634
  %v10861 = vmul.f32 %v10829, %v10639
  %v10862 = vmul.f32 %v10830, %v10644
  %v10863 = vmul.f32 %v10831, %v10649
  %v10864 = vmul.f32 %v10832, %v10654
  %v10865 = vmul.f32 %v10833, %v10659
  %v10866 = vmul.f32 %v10834, %v10664
  %v10867 = vmul.f32 %v10835, %v10669
  %v10868 = vmul.f32 %v10836, %v10674
  %v10869 = vmul.f32 %v10837, %v10679
  %v10870 = vmul.f32 %v10838, %v10684
  %v10871 = vmul.f32 %v10839, %v10689
  %v10872 = vmul.f32 %v10840, %v10694
  %v10873 = vmul.f32 %v10841, %v10699
  %v10874 = vmul.f32 %v10842, %v10704
  %v10875 = vmul.f32 %v10843, %v10709
  %v10876 = vmul.f32 %v10844, %v10714
  %v10877 = vmul.f32 %v10845, %v10719
  %v10878 = vmul.f32 %v10846, %v10724
  %v10879 = vmul.f32 %v10847, %v10729
  %v10880 = vmul.f32 %v10848, %v10734
  %v10881 = vmul.f32 %v10849, %v10739
  %v10882 = vmul.f32 %v10850, %v10744
  %v10883 = vmul.f32 %v10851, %v10749
  %v10884 = vmul.f32 %v10852, %v10754
  %v10885 = vadd.f32 %v10599, %v10853
  %v10886 = vadd.f32 %v10604, %v10854
  %v10887 = vadd.f32 %v10609, %v10855
  %v10888 = vadd.f32 %v10614, %v10856
  %v10889 = vadd.f32 %v10619, %v10857
  %v10890 = vadd.f32 %v10624, %v10858
  %v10891 = vadd.f32 %v10629, %v10859
  %v10892 = vadd.f32 %v10634, %v10860
  %v10893 = vadd.f32 %v10639, %v10861
  %v10894 = vadd.f32 %v10644, %v10862
  %v10895 = vadd.f32 %v10649, %v10863
  %v10896 = vadd.f32 %v10654, %v10864
  %v10897 = vadd.f32 %v10659, %v10865
  %v10898 = vadd.f32 %v10664, %v10866
  %v10899 = vadd.f32 %v10669, %v10867
  %v10900 = vadd.f32 %v10674, %v10868
  %v10901 = vadd.f32 %v10679, %v10869
  %v10902 = vadd.f32 %v10684, %v10870
  %v10903 = vadd.f32 %v10689, %v10871
  %v10904 = vadd.f32 %v10694, %v10872
  %v10905 = vadd.f32 %v10699, %v10873
  %v10906 = vadd.f32 %v10704, %v10874
  %v10907 = vadd.f32 %v10709, %v10875
  %v10908 = vadd.f32 %v10714, %v10876
  %v10909 = vadd.f32 %v10719, %v10877
  %v10910 = vadd.f32 %v10724, %v10878
  %v10911 = vadd.f32 %v10729, %v10879
  %v10912 = vadd.f32 %v10734, %v10880
  %v10913 = vadd.f32 %v10739, %v10881
  %v10914 = vadd.f32 %v10744, %v10882
  %v10915 = vadd.f32 %v10749, %v10883
  %v10916 = vadd.f32 %v10754, %v10884
  %v10917 = vmul.f32 %v10885, 0.7978846
  %v10918 = vmul.f32 %v10886, 0.7978846
  %v10919 = vmul.f32 %v10887, 0.7978846
  %v10920 = vmul.f32 %v10888, 0.7978846
  %v10921 = vmul.f32 %v10889, 0.7978846
  %v10922 = vmul.f32 %v10890, 0.7978846
  %v10923 = vmul.f32 %v10891, 0.7978846
  %v10924 = vmul.f32 %v10892, 0.7978846
  %v10925 = vmul.f32 %v10893, 0.7978846
  %v10926 = vmul.f32 %v10894, 0.7978846
  %v10927 = vmul.f32 %v10895, 0.7978846
  %v10928 = vmul.f32 %v10896, 0.7978846
  %v10929 = vmul.f32 %v10897, 0.7978846
  %v10930 = vmul.f32 %v10898, 0.7978846
  %v10931 = vmul.f32 %v10899, 0.7978846
  %v10932 = vmul.f32 %v10900, 0.7978846
  %v10933 = vmul.f32 %v10901, 0.7978846
  %v10934 = vmul.f32 %v10902, 0.7978846
  %v10935 = vmul.f32 %v10903, 0.7978846
  %v10936 = vmul.f32 %v10904, 0.7978846
  %v10937 = vmul.f32 %v10905, 0.7978846
  %v10938 = vmul.f32 %v10906, 0.7978846
  %v10939 = vmul.f32 %v10907, 0.7978846
  %v10940 = vmul.f32 %v10908, 0.7978846
  %v10941 = vmul.f32 %v10909, 0.7978846
  %v10942 = vmul.f32 %v10910, 0.7978846
  %v10943 = vmul.f32 %v10911, 0.7978846
  %v10944 = vmul.f32 %v10912, 0.7978846
  %v10945 = vmul.f32 %v10913, 0.7978846
  %v10946 = vmul.f32 %v10914, 0.7978846
  %v10947 = vmul.f32 %v10915, 0.7978846
  %v10948 = vmul.f32 %v10916, 0.7978846
  %v10949 = vtanh.pop %v10917
  %v10950 = vtanh.pop %v10918
  %v10951 = vtanh.pop %v10919
  %v10952 = vtanh.pop %v10920
  %v10953 = vtanh.pop %v10921
  %v10954 = vtanh.pop %v10922
  %v10955 = vtanh.pop %v10923
  %v10956 = vtanh.pop %v10924
  %v10957 = vtanh.pop %v10925
  %v10958 = vtanh.pop %v10926
  %v10959 = vtanh.pop %v10927
  %v10960 = vtanh.pop %v10928
  %v10961 = vtanh.pop %v10929
  %v10962 = vtanh.pop %v10930
  %v10963 = vtanh.pop %v10931
  %v10964 = vtanh.pop %v10932
  %v10965 = vtanh.pop %v10933
  %v10966 = vtanh.pop %v10934
  %v10967 = vtanh.pop %v10935
  %v10968 = vtanh.pop %v10936
  %v10969 = vtanh.pop %v10937
  %v10970 = vtanh.pop %v10938
  %v10971 = vtanh.pop %v10939
  %v10972 = vtanh.pop %v10940
  %v10973 = vtanh.pop %v10941
  %v10974 = vtanh.pop %v10942
  %v10975 = vtanh.pop %v10943
  %v10976 = vtanh.pop %v10944
  %v10977 = vtanh.pop %v10945
  %v10978 = vtanh.pop %v10946
  %v10979 = vtanh.pop %v10947
  %v10980 = vtanh.pop %v10948
  %v10981 = vadd.f32 %v10949, 1.0
  %v10982 = vadd.f32 %v10950, 1.0
  %v10983 = vadd.f32 %v10951, 1.0
  %v10984 = vadd.f32 %v10952, 1.0
  %v10985 = vadd.f32 %v10953, 1.0
  %v10986 = vadd.f32 %v10954, 1.0
  %v10987 = vadd.f32 %v10955, 1.0
  %v10988 = vadd.f32 %v10956, 1.0
  %v10989 = vadd.f32 %v10957, 1.0
  %v10990 = vadd.f32 %v10958, 1.0
  %v10991 = vadd.f32 %v10959, 1.0
  %v10992 = vadd.f32 %v10960, 1.0
  %v10993 = vadd.f32 %v10961, 1.0
  %v10994 = vadd.f32 %v10962, 1.0
  %v10995 = vadd.f32 %v10963, 1.0
  %v10996 = vadd.f32 %v10964, 1.0
  %v10997 = vadd.f32 %v10965, 1.0
  %v10998 = vadd.f32 %v10966, 1.0
  %v10999 = vadd.f32 %v10967, 1.0
  %v11000 = vadd.f32 %v10968, 1.0
  %v11001 = vadd.f32 %v10969, 1.0
  %v11002 = vadd.f32 %v10970, 1.0
  %v11003 = vadd.f32 %v10971, 1.0
  %v11004 = vadd.f32 %v10972, 1.0
  %v11005 = vadd.f32 %v10973, 1.0
  %v11006 = vadd.f32 %v10974, 1.0
  %v11007 = vadd.f32 %v10975, 1.0
  %v11008 = vadd.f32 %v10976, 1.0
  %v11009 = vadd.f32 %v10977, 1.0
  %v11010 = vadd.f32 %v10978, 1.0
  %v11011 = vadd.f32 %v10979, 1.0
  %v11012 = vadd.f32 %v10980, 1.0
  %v11013 = vmul.f32 %v10757, %v10981
  %v11014 = vmul.f32 %v10758, %v10982
  %v11015 = vmul.f32 %v10759, %v10983
  %v11016 = vmul.f32 %v10760, %v10984
  %v11017 = vmul.f32 %v10761, %v10985
  %v11018 = vmul.f32 %v10762, %v10986
  %v11019 = vmul.f32 %v10763, %v10987
  %v11020 = vmul.f32 %v10764, %v10988
  %v11021 = vmul.f32 %v10765, %v10989
  %v11022 = vmul.f32 %v10766, %v10990
  %v11023 = vmul.f32 %v10767, %v10991
  %v11024 = vmul.f32 %v10768, %v10992
  %v11025 = vmul.f32 %v10769, %v10993
  %v11026 = vmul.f32 %v10770, %v10994
  %v11027 = vmul.f32 %v10771, %v10995
  %v11028 = vmul.f32 %v10772, %v10996
  %v11029 = vmul.f32 %v10773, %v10997
  %v11030 = vmul.f32 %v10774, %v10998
  %v11031 = vmul.f32 %v10775, %v10999
  %v11032 = vmul.f32 %v10776, %v11000
  %v11033 = vmul.f32 %v10777, %v11001
  %v11034 = vmul.f32 %v10778, %v11002
  %v11035 = vmul.f32 %v10779, %v11003
  %v11036 = vmul.f32 %v10780, %v11004
  %v11037 = vmul.f32 %v10781, %v11005
  %v11038 = vmul.f32 %v10782, %v11006
  %v11039 = vmul.f32 %v10783, %v11007
  %v11040 = vmul.f32 %v10784, %v11008
  %v11041 = vmul.f32 %v10785, %v11009
  %v11042 = vmul.f32 %v10786, %v11010
  %v11043 = vmul.f32 %v10787, %v11011
  %v11044 = vmul.f32 %v10788, %v11012
  %v11045 = vld [vmem:[%s15] sm:$0xff]
  %v11046 = vld [vmem:[%s15 + $0x8] sm:$0xff]
  %v11047 = vld [vmem:[%s15 + $0x10] sm:$0xff]
  %v11048 = vld [vmem:[%s15 + $0x18] sm:$0xff]
  %v11049 = vld [vmem:[%s15 + $0x20] sm:$0xff]
  %v11050 = vld [vmem:[%s15 + $0x28] sm:$0xff]
  %v11051 = vld [vmem:[%s15 + $0x30] sm:$0xff]
  %v11052 = vld [vmem:[%s15 + $0x38] sm:$0xff]
  %v11053 = vld [vmem:[%s15 + $0x40] sm:$0xff]
  %v11054 = vld [vmem:[%s15 + $0x48] sm:$0xff]
  %v11055 = vld [vmem:[%s15 + $0x50] sm:$0xff]
  %v11056 = vld [vmem:[%s15 + $0x58] sm:$0xff]
  %v11057 = vld [vmem:[%s15 + $0x60] sm:$0xff]
  %v11058 = vld [vmem:[%s15 + $0x68] sm:$0xff]
  %v11059 = vld [vmem:[%s15 + $0x70] sm:$0xff]
  %v11060 = vld [vmem:[%s15 + $0x78] sm:$0xff]
  %v11061 = vld [vmem:[%s16] sm:$0x1]
  %v11063 = vlaneseq
  %v11064 = vshrl.u32 %v11063, 7
  %v11065 = vsub.s32 0, %v11064
  %v11066 = vrot.slane %v11061, %v11065
  %11068 = vmatprep.subr.mxu0 0.0
  %11069 = vmatpush1.msra.mxu0 %v11045
  %11070 = vmatprep.subr.mxu0 0.0
  %11071 = vmatpush1.msra.mxu0 %v11046
  %11072 = vmatprep.subr.mxu0 0.0
  %11073 = vmatpush1.msra.mxu0 %v11047
  %11074 = vmatprep.subr.mxu0 0.0
  %11075 = vmatpush1.msra.mxu0 %v11048
  %11076 = vmatprep.subr.mxu0 0.0
  %11077 = vmatpush1.msra.mxu0 %v11049
  %11078 = vmatprep.subr.mxu0 0.0
  %11079 = vmatpush1.msra.mxu0 %v11050
  %11080 = vmatprep.subr.mxu0 0.0
  %11081 = vmatpush1.msra.mxu0 %v11051
  %11082 = vmatprep.subr.mxu0 0.0
  %11083 = vmatpush1.msra.mxu0 %v11052
  %11084 = vmatprep.subr.mxu0 0.0
  %11085 = vmatpush1.msra.mxu0 %v11053
  %11086 = vmatprep.subr.mxu0 0.0
  %11087 = vmatpush1.msra.mxu0 %v11054
  %11088 = vmatprep.subr.mxu0 0.0
  %11089 = vmatpush1.msra.mxu0 %v11055
  %11090 = vmatprep.subr.mxu0 0.0
  %11091 = vmatpush1.msra.mxu0 %v11056
  %11092 = vmatprep.subr.mxu0 0.0
  %11093 = vmatpush1.msra.mxu0 %v11057
  %11094 = vmatprep.subr.mxu0 0.0
  %11095 = vmatpush1.msra.mxu0 %v11058
  %11096 = vmatprep.subr.mxu0 0.0
  %11097 = vmatpush1.msra.mxu0 %v11059
  %11098 = vmatprep.subr.mxu0 0.0
  %11099 = vmatpush1.msra.mxu0 %v11060
  %11100 = vmatprep.subr.mxu0 0.0
  %11101 = vmatpush1.msra.mxu0 0.0
  %11102 = vmatprep.subr.mxu0 0.0
  %11103 = vmatpush1.msra.mxu0 0.0
  %11104 = vmatprep.subr.mxu0 0.0
  %11105 = vmatpush1.msra.mxu0 0.0
  %11106 = vmatprep.subr.mxu0 0.0
  %11107 = vmatpush1.msra.mxu0 0.0
  %11108 = vmatprep.subr.mxu0 0.0
  %11109 = vmatpush1.msra.mxu0 0.0
  %11110 = vmatprep.subr.mxu0 0.0
  %11111 = vmatpush1.msra.mxu0 0.0
  %11112 = vmatprep.subr.mxu0 0.0
  %11113 = vmatpush1.msra.mxu0 0.0
  %11114 = vmatprep.subr.mxu0 0.0
  %11115 = vmatpush1.msra.mxu0 0.0
  %11116 = vmatprep.subr.mxu0 0.0
  %11117 = vmatpush1.msra.mxu0 0.0
  %11118 = vmatprep.subr.mxu0 0.0
  %11119 = vmatpush1.msra.mxu0 0.0
  %11120 = vmatprep.subr.mxu0 0.0
  %11121 = vmatpush1.msra.mxu0 0.0
  %11122 = vmatprep.subr.mxu0 0.0
  %11123 = vmatpush1.msra.mxu0 0.0
  %11124 = vmatprep.subr.mxu0 0.0
  %11125 = vmatpush1.msra.mxu0 0.0
  %11126 = vmatprep.subr.mxu0 0.0
  %11127 = vmatpush1.msra.mxu0 0.0
  %11128 = vmatprep.subr.mxu0 0.0
  %11129 = vmatpush1.msra.mxu0 0.0
  %11130 = vmatprep.subr.mxu0 0.0
  %11131 = vmatpush1.msra.mxu0 0.0
  %11132 = vmatprep.mubr.f32.mxu0 0.0
  %11133 = vmatmul.mubr.f32.gmra.mrb[0].mxu0 %v11013
  %v11134 = vpop.f32.mrb[0].mxu0
  %v11135 = vadd.f32 %v11066, %v11134
  %v11136 = vpop.f32.mrb[0].mxu0
  %11137 = vmatprep.mubr.f32.mxu0 0.0
  %11138 = vmatmul.mubr.f32.gmra.mrb[0].mxu0 %v11014
  %v11139 = vpop.f32.mrb[0].mxu0
  %v11140 = vadd.f32 %v11066, %v11139
  %v11141 = vpop.f32.mrb[0].mxu0
  %11142 = vmatprep.mubr.f32.mxu0 0.0
  %11143 = vmatmul.mubr.f32.gmra.mrb[0].mxu0 %v11015
  %v11144 = vpop.f32.mrb[0].mxu0
  %v11145 = vadd.f32 %v11066, %v11144
  %v11146 = vpop.f32.mrb[0].mxu0
  %11147 = vmatprep.mubr.f32.mxu0 0.0
  %11148 = vmatmul.mubr.f32.gmra.mrb[0].mxu0 %v11016
  %v11149 = vpop.f32.mrb[0].mxu0
  %v11150 = vadd.f32 %v11066, %v11149
  %v11151 = vpop.f32.mrb[0].mxu0
  %11152 = vmatprep.mubr.f32.mxu0 0.0
  %11153 = vmatmul.mubr.f32.gmra.mrb[0].mxu0 %v11017
  %v11154 = vpop.f32.mrb[0].mxu0
  %v11155 = vadd.f32 %v11066, %v11154
  %v11156 = vpop.f32.mrb[0].mxu0
  %11157 = vmatprep.mubr.f32.mxu0 0.0
  %11158 = vmatmul.mubr.f32.gmra.mrb[0].mxu0 %v11018
  %v11159 = vpop.f32.mrb[0].mxu0
  %v11160 = vadd.f32 %v11066, %v11159
  %v11161 = vpop.f32.mrb[0].mxu0
  %11162 = vmatprep.mubr.f32.mxu0 0.0
  %11163 = vmatmul.mubr.f32.gmra.mrb[0].mxu0 %v11019
  %v11164 = vpop.f32.mrb[0].mxu0
  %v11165 = vadd.f32 %v11066, %v11164
  %v11166 = vpop.f32.mrb[0].mxu0
  %11167 = vmatprep.mubr.f32.mxu0 0.0
  %11168 = vmatmul.mubr.f32.gmra.mrb[0].mxu0 %v11020
  %v11169 = vpop.f32.mrb[0].mxu0
  %v11170 = vadd.f32 %v11066, %v11169
  %v11171 = vpop.f32.mrb[0].mxu0
  %11172 = vmatprep.mubr.f32.mxu0 0.0
  %11173 = vmatmul.mubr.f32.gmra.mrb[0].mxu0 %v11021
  %v11174 = vpop.f32.mrb[0].mxu0
  %v11175 = vadd.f32 %v11066, %v11174
  %v11176 = vpop.f32.mrb[0].mxu0
  %11177 = vmatprep.mubr.f32.mxu0 0.0
  %11178 = vmatmul.mubr.f32.gmra.mrb[0].mxu0 %v11022
  %v11179 = vpop.f32.mrb[0].mxu0
  %v11180 = vadd.f32 %v11066, %v11179
  %v11181 = vpop.f32.mrb[0].mxu0
  %11182 = vmatprep.mubr.f32.mxu0 0.0
  %11183 = vmatmul.mubr.f32.gmra.mrb[0].mxu0 %v11023
  %v11184 = vpop.f32.mrb[0].mxu0
  %v11185 = vadd.f32 %v11066, %v11184
  %v11186 = vpop.f32.mrb[0].mxu0
  %11187 = vmatprep.mubr.f32.mxu0 0.0
  %11188 = vmatmul.mubr.f32.gmra.mrb[0].mxu0 %v11024
  %v11189 = vpop.f32.mrb[0].mxu0
  %v11190 = vadd.f32 %v11066, %v11189
  %v11191 = vpop.f32.mrb[0].mxu0
  %11192 = vmatprep.mubr.f32.mxu0 0.0
  %11193 = vmatmul.mubr.f32.gmra.mrb[0].mxu0 %v11025
  %v11194 = vpop.f32.mrb[0].mxu0
  %v11195 = vadd.f32 %v11066, %v11194
  %v11196 = vpop.f32.mrb[0].mxu0
  %11197 = vmatprep.mubr.f32.mxu0 0.0
  %11198 = vmatmul.mubr.f32.gmra.mrb[0].mxu0 %v11026
  %v11199 = vpop.f32.mrb[0].mxu0
  %v11200 = vadd.f32 %v11066, %v11199
  %v11201 = vpop.f32.mrb[0].mxu0
  %11202 = vmatprep.mubr.f32.mxu0 0.0
  %11203 = vmatmul.mubr.f32.gmra.mrb[0].mxu0 %v11027
  %v11204 = vpop.f32.mrb[0].mxu0
  %v11205 = vadd.f32 %v11066, %v11204
  %v11206 = vpop.f32.mrb[0].mxu0
  %11207 = vmatprep.mubr.f32.mxu0 0.0
  %11208 = vmatmul.mubr.f32.gmra.mrb[0].mxu0 %v11028
  %v11209 = vpop.f32.mrb[0].mxu0
  %v11210 = vadd.f32 %v11066, %v11209
  %v11211 = vpop.f32.mrb[0].mxu0
  %11212 = vmatprep.mubr.f32.mxu0 0.0
  %11213 = vmatmul.mubr.f32.gmra.mrb[0].mxu0 %v11029
  %v11214 = vpop.f32.mrb[0].mxu0
  %v11215 = vadd.f32 %v11066, %v11214
  %v11216 = vpop.f32.mrb[0].mxu0
  %11217 = vmatprep.mubr.f32.mxu0 0.0
  %11218 = vmatmul.mubr.f32.gmra.mrb[0].mxu0 %v11030
  %v11219 = vpop.f32.mrb[0].mxu0
  %v11220 = vadd.f32 %v11066, %v11219
  %v11221 = vpop.f32.mrb[0].mxu0
  %11222 = vmatprep.mubr.f32.mxu0 0.0
  %11223 = vmatmul.mubr.f32.gmra.mrb[0].mxu0 %v11031
  %v11224 = vpop.f32.mrb[0].mxu0
  %v11225 = vadd.f32 %v11066, %v11224
  %v11226 = vpop.f32.mrb[0].mxu0
  %11227 = vmatprep.mubr.f32.mxu0 0.0
  %11228 = vmatmul.mubr.f32.gmra.mrb[0].mxu0 %v11032
  %v11229 = vpop.f32.mrb[0].mxu0
  %v11230 = vadd.f32 %v11066, %v11229
  %v11231 = vpop.f32.mrb[0].mxu0
  %11232 = vmatprep.mubr.f32.mxu0 0.0
  %11233 = vmatmul.mubr.f32.gmra.mrb[0].mxu0 %v11033
  %v11234 = vpop.f32.mrb[0].mxu0
  %v11235 = vadd.f32 %v11066, %v11234
  %v11236 = vpop.f32.mrb[0].mxu0
  %11237 = vmatprep.mubr.f32.mxu0 0.0
  %11238 = vmatmul.mubr.f32.gmra.mrb[0].mxu0 %v11034
  %v11239 = vpop.f32.mrb[0].mxu0
  %v11240 = vadd.f32 %v11066, %v11239
  %v11241 = vpop.f32.mrb[0].mxu0
  %11242 = vmatprep.mubr.f32.mxu0 0.0
  %11243 = vmatmul.mubr.f32.gmra.mrb[0].mxu0 %v11035
  %v11244 = vpop.f32.mrb[0].mxu0
  %v11245 = vadd.f32 %v11066, %v11244
  %v11246 = vpop.f32.mrb[0].mxu0
  %11247 = vmatprep.mubr.f32.mxu0 0.0
  %11248 = vmatmul.mubr.f32.gmra.mrb[0].mxu0 %v11036
  %v11249 = vpop.f32.mrb[0].mxu0
  %v11250 = vadd.f32 %v11066, %v11249
  %v11251 = vpop.f32.mrb[0].mxu0
  %11252 = vmatprep.mubr.f32.mxu0 0.0
  %11253 = vmatmul.mubr.f32.gmra.mrb[0].mxu0 %v11037
  %v11254 = vpop.f32.mrb[0].mxu0
  %v11255 = vadd.f32 %v11066, %v11254
  %v11256 = vpop.f32.mrb[0].mxu0
  %11257 = vmatprep.mubr.f32.mxu0 0.0
  %11258 = vmatmul.mubr.f32.gmra.mrb[0].mxu0 %v11038
  %v11259 = vpop.f32.mrb[0].mxu0
  %v11260 = vadd.f32 %v11066, %v11259
  %v11261 = vpop.f32.mrb[0].mxu0
  %11262 = vmatprep.mubr.f32.mxu0 0.0
  %11263 = vmatmul.mubr.f32.gmra.mrb[0].mxu0 %v11039
  %v11264 = vpop.f32.mrb[0].mxu0
  %v11265 = vadd.f32 %v11066, %v11264
  %v11266 = vpop.f32.mrb[0].mxu0
  %11267 = vmatprep.mubr.f32.mxu0 0.0
  %11268 = vmatmul.mubr.f32.gmra.mrb[0].mxu0 %v11040
  %v11269 = vpop.f32.mrb[0].mxu0
  %v11270 = vadd.f32 %v11066, %v11269
  %v11271 = vpop.f32.mrb[0].mxu0
  %11272 = vmatprep.mubr.f32.mxu0 0.0
  %11273 = vmatmul.mubr.f32.gmra.mrb[0].mxu0 %v11041
  %v11274 = vpop.f32.mrb[0].mxu0
  %v11275 = vadd.f32 %v11066, %v11274
  %v11276 = vpop.f32.mrb[0].mxu0
  %11277 = vmatprep.mubr.f32.mxu0 0.0
  %11278 = vmatmul.mubr.f32.gmra.mrb[0].mxu0 %v11042
  %v11279 = vpop.f32.mrb[0].mxu0
  %v11280 = vadd.f32 %v11066, %v11279
  %v11281 = vpop.f32.mrb[0].mxu0
  %11282 = vmatprep.mubr.f32.mxu0 0.0
  %11283 = vmatmul.mubr.f32.gmra.mrb[0].mxu0 %v11043
  %v11284 = vpop.f32.mrb[0].mxu0
  %v11285 = vadd.f32 %v11066, %v11284
  %v11286 = vpop.f32.mrb[0].mxu0
  %11287 = vmatprep.mubr.f32.mxu0 0.0
  %11288 = vmatmul.mubr.f32.gmra.mrb[0].mxu0 %v11044
  %v11289 = vpop.f32.mrb[0].mxu0
  %v11290 = vadd.f32 %v11066, %v11289
  %v11291 = vpop.f32.mrb[0].mxu0
  %11292 = vdwg.mxu0
  %v11293 = vsub.f32 0.0, %v11135
  %v11294 = vsub.f32 0.0, %v11140
  %v11295 = vsub.f32 0.0, %v11145
  %v11296 = vsub.f32 0.0, %v11150
  %v11297 = vsub.f32 0.0, %v11155
  %v11298 = vsub.f32 0.0, %v11160
  %v11299 = vsub.f32 0.0, %v11165
  %v11300 = vsub.f32 0.0, %v11170
  %v11301 = vsub.f32 0.0, %v11175
  %v11302 = vsub.f32 0.0, %v11180
  %v11303 = vsub.f32 0.0, %v11185
  %v11304 = vsub.f32 0.0, %v11190
  %v11305 = vsub.f32 0.0, %v11195
  %v11306 = vsub.f32 0.0, %v11200
  %v11307 = vsub.f32 0.0, %v11205
  %v11308 = vsub.f32 0.0, %v11210
  %v11309 = vsub.f32 0.0, %v11215
  %v11310 = vsub.f32 0.0, %v11220
  %v11311 = vsub.f32 0.0, %v11225
  %v11312 = vsub.f32 0.0, %v11230
  %v11313 = vsub.f32 0.0, %v11235
  %v11314 = vsub.f32 0.0, %v11240
  %v11315 = vsub.f32 0.0, %v11245
  %v11316 = vsub.f32 0.0, %v11250
  %v11317 = vsub.f32 0.0, %v11255
  %v11318 = vsub.f32 0.0, %v11260
  %v11319 = vsub.f32 0.0, %v11265
  %v11320 = vsub.f32 0.0, %v11270
  %v11321 = vsub.f32 0.0, %v11275
  %v11322 = vsub.f32 0.0, %v11280
  %v11323 = vsub.f32 0.0, %v11285
  %v11324 = vsub.f32 0.0, %v11290
  %v11325 = vmul.f32 %v11293, 1.442695
  %v11326 = vpow.pop %v11325
  %v11327 = vmul.f32 %v11294, 1.442695
  %v11328 = vpow.pop %v11327
  %v11329 = vmul.f32 %v11295, 1.442695
  %v11330 = vpow.pop %v11329
  %v11331 = vmul.f32 %v11296, 1.442695
  %v11332 = vpow.pop %v11331
  %v11333 = vmul.f32 %v11297, 1.442695
  %v11334 = vpow.pop %v11333
  %v11335 = vmul.f32 %v11298, 1.442695
  %v11336 = vpow.pop %v11335
  %v11337 = vmul.f32 %v11299, 1.442695
  %v11338 = vpow.pop %v11337
  %v11339 = vmul.f32 %v11300, 1.442695
  %v11340 = vpow.pop %v11339
  %v11341 = vmul.f32 %v11301, 1.442695
  %v11342 = vpow.pop %v11341
  %v11343 = vmul.f32 %v11302, 1.442695
  %v11344 = vpow.pop %v11343
  %v11345 = vmul.f32 %v11303, 1.442695
  %v11346 = vpow.pop %v11345
  %v11347 = vmul.f32 %v11304, 1.442695
  %v11348 = vpow.pop %v11347
  %v11349 = vmul.f32 %v11305, 1.442695
  %v11350 = vpow.pop %v11349
  %v11351 = vmul.f32 %v11306, 1.442695
  %v11352 = vpow.pop %v11351
  %v11353 = vmul.f32 %v11307, 1.442695
  %v11354 = vpow.pop %v11353
  %v11355 = vmul.f32 %v11308, 1.442695
  %v11356 = vpow.pop %v11355
  %v11357 = vmul.f32 %v11309, 1.442695
  %v11358 = vpow.pop %v11357
  %v11359 = vmul.f32 %v11310, 1.442695
  %v11360 = vpow.pop %v11359
  %v11361 = vmul.f32 %v11311, 1.442695
  %v11362 = vpow.pop %v11361
  %v11363 = vmul.f32 %v11312, 1.442695
  %v11364 = vpow.pop %v11363
  %v11365 = vmul.f32 %v11313, 1.442695
  %v11366 = vpow.pop %v11365
  %v11367 = vmul.f32 %v11314, 1.442695
  %v11368 = vpow.pop %v11367
  %v11369 = vmul.f32 %v11315, 1.442695
  %v11370 = vpow.pop %v11369
  %v11371 = vmul.f32 %v11316, 1.442695
  %v11372 = vpow.pop %v11371
  %v11373 = vmul.f32 %v11317, 1.442695
  %v11374 = vpow.pop %v11373
  %v11375 = vmul.f32 %v11318, 1.442695
  %v11376 = vpow.pop %v11375
  %v11377 = vmul.f32 %v11319, 1.442695
  %v11378 = vpow.pop %v11377
  %v11379 = vmul.f32 %v11320, 1.442695
  %v11380 = vpow.pop %v11379
  %v11381 = vmul.f32 %v11321, 1.442695
  %v11382 = vpow.pop %v11381
  %v11383 = vmul.f32 %v11322, 1.442695
  %v11384 = vpow.pop %v11383
  %v11385 = vmul.f32 %v11323, 1.442695
  %v11386 = vpow.pop %v11385
  %v11387 = vmul.f32 %v11324, 1.442695
  %v11388 = vpow.pop %v11387
  %v11389 = vadd.f32 %v11326, 1.0
  %v11390 = vadd.f32 %v11328, 1.0
  %v11391 = vadd.f32 %v11330, 1.0
  %v11392 = vadd.f32 %v11332, 1.0
  %v11393 = vadd.f32 %v11334, 1.0
  %v11394 = vadd.f32 %v11336, 1.0
  %v11395 = vadd.f32 %v11338, 1.0
  %v11396 = vadd.f32 %v11340, 1.0
  %v11397 = vadd.f32 %v11342, 1.0
  %v11398 = vadd.f32 %v11344, 1.0
  %v11399 = vadd.f32 %v11346, 1.0
  %v11400 = vadd.f32 %v11348, 1.0
  %v11401 = vadd.f32 %v11350, 1.0
  %v11402 = vadd.f32 %v11352, 1.0
  %v11403 = vadd.f32 %v11354, 1.0
  %v11404 = vadd.f32 %v11356, 1.0
  %v11405 = vadd.f32 %v11358, 1.0
  %v11406 = vadd.f32 %v11360, 1.0
  %v11407 = vadd.f32 %v11362, 1.0
  %v11408 = vadd.f32 %v11364, 1.0
  %v11409 = vadd.f32 %v11366, 1.0
  %v11410 = vadd.f32 %v11368, 1.0
  %v11411 = vadd.f32 %v11370, 1.0
  %v11412 = vadd.f32 %v11372, 1.0
  %v11413 = vadd.f32 %v11374, 1.0
  %v11414 = vadd.f32 %v11376, 1.0
  %v11415 = vadd.f32 %v11378, 1.0
  %v11416 = vadd.f32 %v11380, 1.0
  %v11417 = vadd.f32 %v11382, 1.0
  %v11418 = vadd.f32 %v11384, 1.0
  %v11419 = vadd.f32 %v11386, 1.0
  %v11420 = vadd.f32 %v11388, 1.0
  %v11421 = vrcp.pop %v11389
  %v11422 = vmul.f32 1.0, %v11421
  %v11423 = vrcp.pop %v11390
  %v11424 = vmul.f32 1.0, %v11423
  %v11425 = vrcp.pop %v11391
  %v11426 = vmul.f32 1.0, %v11425
  %v11427 = vrcp.pop %v11392
  %v11428 = vmul.f32 1.0, %v11427
  %v11429 = vrcp.pop %v11393
  %v11430 = vmul.f32 1.0, %v11429
  %v11431 = vrcp.pop %v11394
  %v11432 = vmul.f32 1.0, %v11431
  %v11433 = vrcp.pop %v11395
  %v11434 = vmul.f32 1.0, %v11433
  %v11435 = vrcp.pop %v11396
  %v11436 = vmul.f32 1.0, %v11435
  %v11437 = vrcp.pop %v11397
  %v11438 = vmul.f32 1.0, %v11437
  %v11439 = vrcp.pop %v11398
  %v11440 = vmul.f32 1.0, %v11439
  %v11441 = vrcp.pop %v11399
  %v11442 = vmul.f32 1.0, %v11441
  %v11443 = vrcp.pop %v11400
  %v11444 = vmul.f32 1.0, %v11443
  %v11445 = vrcp.pop %v11401
  %v11446 = vmul.f32 1.0, %v11445
  %v11447 = vrcp.pop %v11402
  %v11448 = vmul.f32 1.0, %v11447
  %v11449 = vrcp.pop %v11403
  %v11450 = vmul.f32 1.0, %v11449
  %v11451 = vrcp.pop %v11404
  %v11452 = vmul.f32 1.0, %v11451
  %v11453 = vrcp.pop %v11405
  %v11454 = vmul.f32 1.0, %v11453
  %v11455 = vrcp.pop %v11406
  %v11456 = vmul.f32 1.0, %v11455
  %v11457 = vrcp.pop %v11407
  %v11458 = vmul.f32 1.0, %v11457
  %v11459 = vrcp.pop %v11408
  %v11460 = vmul.f32 1.0, %v11459
  %v11461 = vrcp.pop %v11409
  %v11462 = vmul.f32 1.0, %v11461
  %v11463 = vrcp.pop %v11410
  %v11464 = vmul.f32 1.0, %v11463
  %v11465 = vrcp.pop %v11411
  %v11466 = vmul.f32 1.0, %v11465
  %v11467 = vrcp.pop %v11412
  %v11468 = vmul.f32 1.0, %v11467
  %v11469 = vrcp.pop %v11413
  %v11470 = vmul.f32 1.0, %v11469
  %v11471 = vrcp.pop %v11414
  %v11472 = vmul.f32 1.0, %v11471
  %v11473 = vrcp.pop %v11415
  %v11474 = vmul.f32 1.0, %v11473
  %v11475 = vrcp.pop %v11416
  %v11476 = vmul.f32 1.0, %v11475
  %v11477 = vrcp.pop %v11417
  %v11478 = vmul.f32 1.0, %v11477
  %v11479 = vrcp.pop %v11418
  %v11480 = vmul.f32 1.0, %v11479
  %v11481 = vrcp.pop %v11419
  %v11482 = vmul.f32 1.0, %v11481
  %v11483 = vrcp.pop %v11420
  %v11484 = vmul.f32 1.0, %v11483
  %vm11485 = vcmask 39936
  %11486 = vst.msk [vmem:[%s17] sm:$0xff] %vm11485, %v11422
  %11487 = vst.msk [vmem:[%s17 + $0x8] sm:$0xff] %vm11485, %v11424
  %11488 = vst.msk [vmem:[%s17 + $0x10] sm:$0xff] %vm11485, %v11426
  %11489 = vst.msk [vmem:[%s17 + $0x18] sm:$0xff] %vm11485, %v11428
  %11490 = vst.msk [vmem:[%s17 + $0x20] sm:$0xff] %vm11485, %v11430
  %11491 = vst.msk [vmem:[%s17 + $0x28] sm:$0xff] %vm11485, %v11432
  %11492 = vst.msk [vmem:[%s17 + $0x30] sm:$0xff] %vm11485, %v11434
  %11493 = vst.msk [vmem:[%s17 + $0x38] sm:$0xff] %vm11485, %v11436
  %11494 = vst.msk [vmem:[%s17 + $0x40] sm:$0xff] %vm11485, %v11438
  %11495 = vst.msk [vmem:[%s17 + $0x48] sm:$0xff] %vm11485, %v11440
  %11496 = vst.msk [vmem:[%s17 + $0x50] sm:$0xff] %vm11485, %v11442
  %11497 = vst.msk [vmem:[%s17 + $0x58] sm:$0xff] %vm11485, %v11444
  %11498 = vst.msk [vmem:[%s17 + $0x60] sm:$0xff] %vm11485, %v11446
  %11499 = vst.msk [vmem:[%s17 + $0x68] sm:$0xff] %vm11485, %v11448
  %11500 = vst.msk [vmem:[%s17 + $0x70] sm:$0xff] %vm11485, %v11450
  %11501 = vst.msk [vmem:[%s17 + $0x78] sm:$0xff] %vm11485, %v11452
  %11502 = vst.msk [vmem:[%s17 + $0x80] sm:$0xff] %vm11485, %v11454
  %11503 = vst.msk [vmem:[%s17 + $0x88] sm:$0xff] %vm11485, %v11456
  %11504 = vst.msk [vmem:[%s17 + $0x90] sm:$0xff] %vm11485, %v11458
  %11505 = vst.msk [vmem:[%s17 + $0x98] sm:$0xff] %vm11485, %v11460
  %11506 = vst.msk [vmem:[%s17 + $0xa0] sm:$0xff] %vm11485, %v11462
  %11507 = vst.msk [vmem:[%s17 + $0xa8] sm:$0xff] %vm11485, %v11464
  %11508 = vst.msk [vmem:[%s17 + $0xb0] sm:$0xff] %vm11485, %v11466
  %11509 = vst.msk [vmem:[%s17 + $0xb8] sm:$0xff] %vm11485, %v11468
  %11510 = vst.msk [vmem:[%s17 + $0xc0] sm:$0xff] %vm11485, %v11470
  %11511 = vst.msk [vmem:[%s17 + $0xc8] sm:$0xff] %vm11485, %v11472
  %11512 = vst.msk [vmem:[%s17 + $0xd0] sm:$0xff] %vm11485, %v11474
  %11513 = vst.msk [vmem:[%s17 + $0xd8] sm:$0xff] %vm11485, %v11476
  %11514 = vst.msk [vmem:[%s17 + $0xe0] sm:$0xff] %vm11485, %v11478
  %11515 = vst.msk [vmem:[%s17 + $0xe8] sm:$0xff] %vm11485, %v11480
  %11516 = vst.msk [vmem:[%s17 + $0xf0] sm:$0xff] %vm11485, %v11482
  %11517 = vst.msk [vmem:[%s17 + $0xf8] sm:$0xff] %vm11485, %v11484
  // Predicated region
  $region70: #{fno_net_forward.1} parent=0 // pred_check
    _
  $region71: #{fno_net_forward.1} parent=0 // pred_check_branch
    %11519 = sbr.rel (0) target = $region73
  $region72: #{fno_net_forward.1} parent=0 // pred_region
    _
  $region73: #{fno_net_forward.1} parent=0 // pred_fallthru
    _
  // Predicated region
  $region74: #{fno_net_forward.1} parent=0 // pred_check
    _
  $region75: #{fno_net_forward.1} parent=0 // pred_check_branch
    %11521 = sbr.rel (0) target = $region77
  $region76: #{fno_net_forward.1} parent=0 // pred_region
    _
  $region77: #{fno_net_forward.1} parent=0 // pred_fallthru
    _

</llo_original>
